<compile_context>
chip_gen: v5e
topology: v5e:2x2
jax: 0.10.0
libtpu: 0.0.40
codegen_flags: <defaults>
</compile_context>

<pallas_src>
import math

import jax
import jax.numpy as jnp
from jax.experimental import pallas as pl


# ----------------------------------------------------------------------------
# Config / constants
# ----------------------------------------------------------------------------
class Config:
    depth = 2
    GT_pooling_rate = [1, 2]
    token_len = 16
    pred_len = 16            # must equal token_len for the AR-roll shapes to match
    GT_d_model = 32
    GT_d_ff = 64
    n_heads = 4
    GT_e_layers = 1
    dropout = 0.1            # eval mode -> identity
    factor = 1
    output_attention = False
    activation = "gelu"
    seq_len = 64
    enc_in = 4


GRID_SIZE = 5
SPLINE_ORDER = 3
CHEB_DEGREE = 3


def uniform_knots(grid_size=GRID_SIZE, spline_order=SPLINE_ORDER, grid_range=(-1.0, 1.0)):
    h = (grid_range[1] - grid_range[0]) / grid_size
    return tuple(float(j * h + grid_range[0])
                 for j in range(-spline_order, grid_size + spline_order + 1))


# ----------------------------------------------------------------------------
# In-kernel math helpers (f32, VPU/EUP friendly, no exotic lowerings)
# ----------------------------------------------------------------------------
def _gelu_tanh(x):
    # tanh-approximate GELU: tanh goes to the EUP (separate bundle slot),
    # cutting VALU pressure in the fused encoder epilogue.
    # TODO(synk): PyTorch F.gelu is exact-erf; tanh approximation differs by
    # ~1e-3 relative -- acceptable under the parity tolerance.
    c = 0.7978845608028654  # sqrt(2/pi)
    return 0.5 * x * (1.0 + jnp.tanh(c * (x + 0.044715 * x * x * x)))


def _layernorm(x, g, b, eps):
    mean = jnp.mean(x, axis=-1, keepdims=True)
    var = jnp.mean((x - mean) ** 2, axis=-1, keepdims=True)
    return (x - mean) * jax.lax.rsqrt(var + eps) * g + b


# ----------------------------------------------------------------------------
# Fused per-block kernel: embedding -> encoder layer(s) -> MoE head
# ----------------------------------------------------------------------------
def _make_block_kernel(n_layers, *, L, H, E, d_model, eps, knots,
                       spline_order, degree, scale):
    D = d_model
    NEG = -1e30

    def kernel(*refs):
        idx = 0
        patches_ref = refs[idx]; idx += 1
        emb_w_ref = refs[idx]; idx += 1
        pe_ref = refs[idx]; idx += 1
        layer_refs = []
        for _ in range(n_layers):
            layer_refs.append(refs[idx:idx + 12]); idx += 12
        (norm_g_ref, norm_b_ref, gate_w_ref, gate_b_ref, base_w_ref,
         sw_ref, cw_ref, lin_w_ref, lin_b_ref) = refs[idx:idx + 9]; idx += 9
        out_ref = refs[idx]

        M = patches_ref.shape[0]

        # --- patch embedding (no bias) + positional embedding ---
        x = (jnp.dot(patches_ref[...], emb_w_ref[...],
                     preferred_element_type=jnp.float32) + pe_ref[...])

        # --- block-diagonal causal additive mask built in-kernel ---
        # rows are grouped contiguously per (batch*channel); attention only
        # within a group and only to key positions <= query position.
        row = jax.lax.broadcasted_iota(jnp.int32, (M, M), 0)
        col = jax.lax.broadcasted_iota(jnp.int32, (M, M), 1)
        if (L & (L - 1)) == 0:                       # L is a power of two
            shift = L.bit_length() - 1
            same_group = (row >> shift) == (col >> shift)
        else:
            same_group = (row // L) == (col // L)
        allowed = (col <= row) & same_group
        mask = jnp.where(allowed, 0.0, NEG).astype(jnp.float32)

        # --- encoder layers (statically unrolled; GT_e_layers == 1 here) ---
        for lr in layer_refs:
            (wqkv_ref, bqkv_ref, wo_ref, bo_ref, n1_g_ref, n1_b_ref,
             w1_ref, b1_ref, w2_ref, b2_ref, n2_g_ref, n2_b_ref) = lr

            qkv = (jnp.dot(x, wqkv_ref[...], preferred_element_type=jnp.float32)
                   + bqkv_ref[...])                  # (M, 3D), VMEM-resident
            wo = wo_ref[...]

            # heads via static lane slices of qkv; concat folded into out-proj
            attn = bo_ref[...]                       # (1, D), broadcasts
            for h in range(H):
                qh = qkv[:, h * E:(h + 1) * E]
                kh = qkv[:, D + h * E:D + (h + 1) * E]
                vh = qkv[:, 2 * D + h * E:2 * D + (h + 1) * E]
                s = jax.lax.dot_general(qh, kh, (((1,), (1,)), ((), ())),
                                        preferred_element_type=jnp.float32)
                s = s * scale + mask                 # (M, M)
                s = s - jnp.max(s, axis=-1, keepdims=True)
                p = jnp.exp(s)
                p = p / jnp.sum(p, axis=-1, keepdims=True)
                oh = jnp.dot(p, vh, preferred_element_type=jnp.float32)   # (M, E)
                attn = attn + jnp.dot(oh, wo[h * E:(h + 1) * E, :],
                                      preferred_element_type=jnp.float32)

            x1 = _layernorm(x + attn, n1_g_ref[...], n1_b_ref[...], eps)
            y = _gelu_tanh(jnp.dot(x1, w1_ref[...],
                                   preferred_element_type=jnp.float32) + b1_ref[...])
            y = jnp.dot(y, w2_ref[...], preferred_element_type=jnp.float32) + b2_ref[...]
            x = _layernorm(x1 + y, n2_g_ref[...], n2_b_ref[...], eps)

        # --- encoder final LayerNorm ---
        x = _layernorm(x, norm_g_ref[...], norm_b_ref[...], eps)

        # --- gate: softmax(x @ gate_w + gate_b) -> (M, 3) ---
        logits = (jnp.dot(x, gate_w_ref[...], preferred_element_type=jnp.float32)
                  + gate_b_ref[...])
        logits = logits - jnp.max(logits, axis=-1, keepdims=True)
        g = jnp.exp(logits)
        g = g / jnp.sum(g, axis=-1, keepdims=True)

        # --- expert 0: KANLinear = SiLU(x) @ base_w + sum_j B_j(x) @ sw_j ---
        e0 = jnp.dot(x * jax.nn.sigmoid(x), base_w_ref[...],
                     preferred_element_type=jnp.float32)
        bases = [jnp.where((x >= knots[j]) & (x < knots[j + 1]), 1.0, 0.0)
                 for j in range(len(knots) - 1)]
        for k in range(1, spline_order + 1):
            bases = [
                (x - knots[j]) * (1.0 / (knots[j + k] - knots[j])) * bases[j]
                + (knots[j + k + 1] - x) * (1.0 / (knots[j + k + 1] - knots[j + 1])) * bases[j + 1]
                for j in range(len(bases) - 1)
            ]
        sw = sw_ref[...]                              # (J*D, out), basis-major rows
        for j, bj in enumerate(bases):
            e0 = e0 + jnp.dot(bj, sw[j * D:(j + 1) * D, :],
                              preferred_element_type=jnp.float32)
        # TODO(synk): PyTorch KANLinear applies a Bernoulli dropout mask even in
        # eval (the `if self.train:` bug); nondeterministic, so it is skipped.

        # --- expert 1: ChebyKAN -- T_d(tanh x) via the Chebyshev recurrence ---
        t = jnp.tanh(x)
        cw = cw_ref[...]                              # ((deg+1)*D, out), d-major rows
        polys = [jnp.ones_like(t), t]
        for _ in range(2, degree + 1):
            polys.append(2.0 * t * polys[-1] - polys[-2])
        e1 = jnp.dot(polys[0], cw[:D, :], preferred_element_type=jnp.float32)
        for d_i in range(1, degree + 1):
            e1 = e1 + jnp.dot(polys[d_i], cw[d_i * D:(d_i + 1) * D, :],
                              preferred_element_type=jnp.float32)

        # --- expert 2: plain Linear ---
        e2 = (jnp.dot(x, lin_w_ref[...], preferred_element_type=jnp.float32)
              + lin_b_ref[...])

        out_ref[...] = e0 * g[:, 0:1] + e1 * g[:, 1:2] + e2 * g[:, 2:3]

    return kernel


def run_gpht_block_kernel(patches, pe_full, bp, *, L, H, E, d_model, pred_len,
                          eps, knots):
    n_layers = len(bp["layers"])
    M = patches.shape[0]
    kernel = _make_block_kernel(
        n_layers, L=L, H=H, E=E, d_model=d_model, eps=eps, knots=knots,
        spline_order=SPLINE_ORDER, degree=CHEB_DEGREE, scale=1.0 / math.sqrt(E))
    args = [patches, bp["emb_w"], pe_full]
    for lp in bp["layers"]:
        args += [lp["wqkv"], lp["bqkv"], lp["wo"], lp["bo"],
                 lp["n1_g"], lp["n1_b"], lp["w1"], lp["b1"],
                 lp["w2"], lp["b2"], lp["n2_g"], lp["n2_b"]]
    args += [bp["norm_g"], bp["norm_b"], bp["gate_w"], bp["gate_b"],
             bp["base_w"], bp["sw"], bp["cw"], bp["lin_w"], bp["lin_b"]]
    return pl.pallas_call(
        kernel,
        out_shape=jax.ShapeDtypeStruct((M, pred_len), jnp.float32),
    )(*args)


# ----------------------------------------------------------------------------
# Model glue (plain JAX): pooling, patching, positional embedding, AR-roll.
# The positional embedding is a pure constant under jit (constant-folded).
# ----------------------------------------------------------------------------
def positional_embedding(L, d_model):
    position = jnp.arange(L, dtype=jnp.float32)[:, None]
    div_term = jnp.exp(jnp.arange(0, d_model, 2, dtype=jnp.float32)
                       * -(math.log(10000.0) / d_model))
    pe = jnp.zeros((L, d_model), jnp.float32)
    pe = pe.at[:, 0::2].set(jnp.sin(position * div_term))
    pe = pe.at[:, 1::2].set(jnp.cos(position * div_term))
    return pe


def gpht_block(x_enc, bp, cfg, depth, knots):
    m = cfg.GT_pooling_rate[depth]
    patch = cfg.token_len // m
    dm = cfg.GT_d_model
    x = jnp.transpose(x_enc, (0, 2, 1))                          # (B, C, L)
    B, C, L = x.shape
    if m > 1:
        x = x.reshape(B, C, L // m, m).max(axis=-1)              # MaxPool1d(m)
    Ld = L // m
    n_patch = Ld // patch
    Bn = B * C
    patches = x.reshape(Bn * n_patch, patch)                     # non-overlapping patches

    pe_full = jnp.tile(positional_embedding(n_patch, dm), (Bn, 1))   # constant-folded
    dec2d = run_gpht_block_kernel(
        patches, pe_full, bp,
        L=n_patch, H=cfg.n_heads, E=dm // cfg.n_heads, d_model=dm,
        pred_len=cfg.pred_len, eps=1e-5, knots=knots)            # (Bn*n_patch, pred)

    dec = dec2d.reshape(B, C, n_patch * cfg.pred_len)
    return jnp.transpose(dec, (0, 2, 1))                         # (B, n_patch*pred_len, C)


def forecast(x_enc, prepped, cfg, knots):
    means = jnp.mean(x_enc, axis=1, keepdims=True)
    x = x_enc - means
    var = jnp.mean(x * x, axis=1, keepdims=True)                 # unbiased=False
    stdev = jnp.sqrt(var + 1e-5)
    x = x / stdev
    seq_len = x.shape[1]
    dec_out = jnp.zeros_like(x)
    for i in range(cfg.depth):
        out_enc = gpht_block(x, prepped["blocks"][i], cfg, i, knots)
        dec_out = dec_out + out_enc[:, -seq_len:, :]
        ar_roll = jnp.concatenate(
            [jnp.zeros((x.shape[0], cfg.token_len, x.shape[2]), x.dtype), out_enc],
            axis=1)[:, :-cfg.token_len, :]
        x = x - ar_roll
    dec_out = dec_out * stdev[:, 0, :][:, None, :]
    dec_out = dec_out + means[:, 0, :][:, None, :]
    return dec_out


def model_forward(x_enc, x_mark_enc, x_dec, x_mark_dec, prepped, cfg, knots):
    del x_mark_enc, x_dec, x_mark_dec
    return forecast(x_enc, prepped, cfg, knots)


# ----------------------------------------------------------------------------
# One-time parameter preprocessing (hoisted out of the jitted forward):
# Q|K|V concat, bias reshapes, spline-weight scale+repack, Cheby-coeff repack.
# ----------------------------------------------------------------------------
def prepare_params(params):
    out_blocks = []
    for bp in params["blocks"]:
        layers = []
        for lp in bp["layers"]:
            layers.append(dict(
                wqkv=jnp.concatenate([lp["wq"], lp["wk"], lp["wv"]], axis=1),
                bqkv=jnp.concatenate([lp["bq"], lp["bk"], lp["bv"]]).reshape(1, -1),
                wo=lp["wo"], bo=lp["bo"].reshape(1, -1),
                n1_g=lp["n1_g"].reshape(1, -1), n1_b=lp["n1_b"].reshape(1, -1),
                w1=lp["w1"], b1=lp["b1"].reshape(1, -1),
                w2=lp["w2"], b2=lp["b2"].reshape(1, -1),
                n2_g=lp["n2_g"].reshape(1, -1), n2_b=lp["n2_b"].reshape(1, -1)))
        head = bp["head"]
        out = head["lin_w"].shape[1]
        # spline weight: (out, in, J) * scaler -> basis-major (J*in, out) so the
        # in-kernel per-basis row slices sw[j*D:(j+1)*D] match bases[j] ordering.
        scaled = head["kan"]["spline_w"] * head["kan"]["spline_scaler"][..., None]
        sw = jnp.transpose(scaled, (2, 1, 0)).reshape(-1, out)
        # Chebyshev coeffs: (in, out, d+1) -> d-major ((d+1)*in, out)
        cw = jnp.transpose(head["cheby_coeffs"], (2, 0, 1)).reshape(-1, out)
        out_blocks.append(dict(
            emb_w=bp["emb_w"], layers=layers,
            norm_g=bp["norm_g"].reshape(1, -1), norm_b=bp["norm_b"].reshape(1, -1),
            gate_w=head["gate_w"], gate_b=head["gate_b"].reshape(1, -1),
            base_w=head["kan"]["base_w"], sw=sw, cw=cw,
            lin_w=head["lin_w"], lin_b=head["lin_b"].reshape(1, -1)))
    return dict(blocks=out_blocks)


# ----------------------------------------------------------------------------
# Deterministic parameter init (synthetic; torch's lstsq-based spline init is
# replaced by small random coefficients; per-feature KAN grids are the uniform
# init grid, handled as static knots in the fused kernel).
# ----------------------------------------------------------------------------
def _init_linear(key, fan_in, fan_out):
    kw, kb = jax.random.split(key)
    bound = 1.0 / math.sqrt(fan_in)
    w = jax.random.uniform(kw, (fan_in, fan_out), jnp.float32, -bound, bound)
    b = jax.random.uniform(kb, (fan_out,), jnp.float32, -bound, bound)
    return w, b


def init_params(key, cfg):
    dm, dff, out = cfg.GT_d_model, cfg.GT_d_ff, cfg.pred_len
    blocks = []
    for d in range(cfg.depth):
        patch = cfg.token_len // cfg.GT_pooling_rate[d]
        key, kemb = jax.random.split(key)
        bound = 1.0 / math.sqrt(patch)
        emb_w = jax.random.uniform(kemb, (patch, dm), jnp.float32, -bound, bound)
        layers = []
        for _ in range(cfg.GT_e_layers):
            key, kq, kk, kv, ko, k1, k2 = jax.random.split(key, 7)
            wq, bq = _init_linear(kq, dm, dm)
            wk, bk = _init_linear(kk, dm, dm)
            wv, bv = _init_linear(kv, dm, dm)
            wo, bo = _init_linear(ko, dm, dm)
            w1, b1 = _init_linear(k1, dm, dff)
            w2, b2 = _init_linear(k2, dff, dm)
            layers.append(dict(
                wq=wq, bq=bq, wk=wk, bk=bk, wv=wv, bv=bv, wo=wo, bo=bo,
                w1=w1, b1=b1, w2=w2, b2=b2,
                n1_g=jnp.ones((dm,), jnp.float32), n1_b=jnp.zeros((dm,), jnp.float32),
                n2_g=jnp.ones((dm,), jnp.float32), n2_b=jnp.zeros((dm,), jnp.float32)))
        key, kg, kb_, ksw, kss, kcc, klw = jax.random.split(key, 7)
        gate_w, gate_b = _init_linear(kg, dm, 3)
        base_w, _ = _init_linear(kb_, dm, out)                     # stored (in, out)
        spline_w = 0.02 * jax.random.normal(
            ksw, (out, dm, GRID_SIZE + SPLINE_ORDER), jnp.float32)
        spline_scaler = jax.random.uniform(
            kss, (out, dm), jnp.float32, -1.0 / math.sqrt(dm), 1.0 / math.sqrt(dm))
        cheby_coeffs = jax.random.normal(kcc, (dm, out, CHEB_DEGREE + 1),
                                         jnp.float32) / (dm * (CHEB_DEGREE + 1))
        lin_w, lin_b = _init_linear(klw, dm, out)
        head = dict(
            gate_w=gate_w, gate_b=gate_b,
            kan=dict(base_w=base_w, spline_w=spline_w, spline_scaler=spline_scaler),
            cheby_coeffs=cheby_coeffs, lin_w=lin_w, lin_b=lin_b)
        blocks.append(dict(
            emb_w=emb_w, layers=layers,
            norm_g=jnp.ones((dm,), jnp.float32), norm_b=jnp.zeros((dm,), jnp.float32),
            head=head))
    return dict(blocks=blocks)


# ----------------------------------------------------------------------------
if __name__ == "__main__":
    cfg = Config()
    knots = uniform_knots()
    key = jax.random.PRNGKey(0)
    kx, kp = jax.random.split(key)
    x_enc = jax.random.normal(kx, (2, cfg.seq_len, cfg.enc_in), jnp.float32)
    x_mark_enc = jnp.zeros((2, cfg.seq_len, 4), jnp.float32)       # unused
    x_dec = jnp.zeros((2, cfg.pred_len, cfg.enc_in), jnp.float32)  # unused
    x_mark_dec = jnp.zeros((2, cfg.pred_len, 4), jnp.float32)      # unused

    params = init_params(kp, cfg)
    prepped = prepare_params(params)          # one-time preprocessing, outside jit

    fwd = jax.jit(lambda xe, p: model_forward(xe, x_mark_enc, x_dec, x_mark_dec,
                                              p, cfg, knots))
    out = fwd(x_enc, prepped)
    jax.block_until_ready(out)
    assert out.shape == (2, cfg.seq_len, cfg.enc_in)
    assert bool(jnp.all(jnp.isfinite(out)))
    print("KERNEL_OK")
</pallas_src>

<mosaic_0001>
module attributes {stable_mosaic.version = 11 : i64} {
  func.func @kernel(%arg0: memref<32x16xf32, #tpu.memory_space<vmem>>, %arg1: memref<16x32xf32, #tpu.memory_space<vmem>>, %arg2: memref<32x32xf32, #tpu.memory_space<vmem>>, %arg3: memref<32x96xf32, #tpu.memory_space<vmem>>, %arg4: memref<1x96xf32, #tpu.memory_space<vmem>>, %arg5: memref<32x32xf32, #tpu.memory_space<vmem>>, %arg6: memref<1x32xf32, #tpu.memory_space<vmem>>, %arg7: memref<1x32xf32, #tpu.memory_space<vmem>>, %arg8: memref<1x32xf32, #tpu.memory_space<vmem>>, %arg9: memref<32x64xf32, #tpu.memory_space<vmem>>, %arg10: memref<1x64xf32, #tpu.memory_space<vmem>>, %arg11: memref<64x32xf32, #tpu.memory_space<vmem>>, %arg12: memref<1x32xf32, #tpu.memory_space<vmem>>, %arg13: memref<1x32xf32, #tpu.memory_space<vmem>>, %arg14: memref<1x32xf32, #tpu.memory_space<vmem>>, %arg15: memref<1x32xf32, #tpu.memory_space<vmem>>, %arg16: memref<1x32xf32, #tpu.memory_space<vmem>>, %arg17: memref<32x3xf32, #tpu.memory_space<vmem>>, %arg18: memref<1x3xf32, #tpu.memory_space<vmem>>, %arg19: memref<32x16xf32, #tpu.memory_space<vmem>>, %arg20: memref<256x16xf32, #tpu.memory_space<vmem>>, %arg21: memref<128x16xf32, #tpu.memory_space<vmem>>, %arg22: memref<32x16xf32, #tpu.memory_space<vmem>>, %arg23: memref<1x16xf32, #tpu.memory_space<vmem>>, %arg24: memref<32x16xf32, #tpu.memory_space<vmem>>) attributes {dimension_semantics = [], scalar_prefetch = 0 : i64, scratch_operands = 0 : i64, tpu.core_type = #tpu.core_type<tc>} {
    %c0 = arith.constant 0 : index
    %c0_0 = arith.constant 0 : index
    %0 = vector.load %arg0[%c0, %c0_0] : memref<32x16xf32, #tpu.memory_space<vmem>>, vector<32x16xf32>
    %c0_1 = arith.constant 0 : index
    %c0_2 = arith.constant 0 : index
    %1 = vector.load %arg1[%c0_1, %c0_2] : memref<16x32xf32, #tpu.memory_space<vmem>>, vector<16x32xf32>
    %cst = arith.constant dense<0.000000e+00> : vector<32x32xf32>
    %2 = tpu.matmul %0, %1, %cst {dimension_numbers = #tpu.dot_dimension_numbers<[1], [0], [0], [1], [0, 0, 1, 1], [], []>} : vector<32x16xf32>, vector<16x32xf32>, vector<32x32xf32> -> vector<32x32xf32>
    %c0_3 = arith.constant 0 : index
    %c0_4 = arith.constant 0 : index
    %3 = vector.load %arg2[%c0_3, %c0_4] : memref<32x32xf32, #tpu.memory_space<vmem>>, vector<32x32xf32>
    %4 = arith.addf %2, %3 : vector<32x32xf32>
    %5 = tpu.iota {dimensions = array<i32: 0>} : vector<32x32xi32>
    %6 = tpu.iota {dimensions = array<i32: 1>} : vector<32x32xi32>
    %c2_i32 = arith.constant 2 : i32
    %7 = vector.broadcast %c2_i32 : i32 to vector<32x32xi32>
    %8 = arith.shrsi %5, %7 : vector<32x32xi32>
    %c2_i32_5 = arith.constant 2 : i32
    %9 = vector.broadcast %c2_i32_5 : i32 to vector<32x32xi32>
    %10 = arith.shrsi %6, %9 : vector<32x32xi32>
    %11 = arith.cmpi eq, %8, %10 : vector<32x32xi32>
    %12 = arith.cmpi sle, %6, %5 : vector<32x32xi32>
    %13 = arith.andi %12, %11 : vector<32x32xi1>
    %cst_6 = arith.constant 0.000000e+00 : f32
    %cst_7 = arith.constant -1.000000e+30 : f32
    %14 = vector.broadcast %cst_6 : f32 to vector<32x32xf32>
    %15 = vector.broadcast %cst_7 : f32 to vector<32x32xf32>
    %16 = arith.select %13, %14, %15 : vector<32x32xi1>, vector<32x32xf32>
    %c0_8 = arith.constant 0 : index
    %c0_9 = arith.constant 0 : index
    %17 = vector.load %arg3[%c0_8, %c0_9] : memref<32x96xf32, #tpu.memory_space<vmem>>, vector<32x96xf32>
    %cst_10 = arith.constant dense<0.000000e+00> : vector<32x96xf32>
    %18 = tpu.matmul %4, %17, %cst_10 {dimension_numbers = #tpu.dot_dimension_numbers<[1], [0], [0], [1], [0, 0, 1, 1], [], []>} : vector<32x32xf32>, vector<32x96xf32>, vector<32x96xf32> -> vector<32x96xf32>
    %c0_11 = arith.constant 0 : index
    %c0_12 = arith.constant 0 : index
    %19 = vector.load %arg4[%c0_11, %c0_12] : memref<1x96xf32, #tpu.memory_space<vmem>>, vector<1x96xf32>
    %20 = vector.broadcast %19 : vector<1x96xf32> to vector<32x96xf32>
    %21 = arith.addf %18, %20 : vector<32x96xf32>
    %c0_13 = arith.constant 0 : index
    %c0_14 = arith.constant 0 : index
    %22 = vector.load %arg5[%c0_13, %c0_14] : memref<32x32xf32, #tpu.memory_space<vmem>>, vector<32x32xf32>
    %c0_15 = arith.constant 0 : index
    %c0_16 = arith.constant 0 : index
    %23 = vector.load %arg6[%c0_15, %c0_16] : memref<1x32xf32, #tpu.memory_space<vmem>>, vector<1x32xf32>
    %24 = vector.extract_strided_slice %21 {offsets = [0, 0], sizes = [32, 8], strides = [1, 1]} : vector<32x96xf32> to vector<32x8xf32>
    %25 = vector.extract_strided_slice %21 {offsets = [0, 32], sizes = [32, 8], strides = [1, 1]} : vector<32x96xf32> to vector<32x8xf32>
    %26 = vector.extract_strided_slice %21 {offsets = [0, 64], sizes = [32, 8], strides = [1, 1]} : vector<32x96xf32> to vector<32x8xf32>
    %cst_17 = arith.constant dense<0.000000e+00> : vector<32x32xf32>
    %27 = tpu.matmul %24, %25, %cst_17 {dimension_numbers = #tpu.dot_dimension_numbers<[1], [1], [0], [0], [0, 0, 1, 0], [], []>} : vector<32x8xf32>, vector<32x8xf32>, vector<32x32xf32> -> vector<32x32xf32>
    %cst_18 = arith.constant 0.353553385 : f32
    %28 = vector.broadcast %cst_18 : f32 to vector<32x32xf32>
    %29 = arith.mulf %27, %28 : vector<32x32xf32>
    %30 = arith.addf %29, %16 : vector<32x32xf32>
    %cst_19 = arith.constant dense<0xFF800000> : vector<32xf32>
    %31 = vector.multi_reduction <maximumf>, %30, %cst_19 [1] : vector<32x32xf32> to vector<32xf32>
    %32 = vector.shape_cast %31 : vector<32xf32> to vector<32x1xf32>
    %33 = vector.broadcast %32 : vector<32x1xf32> to vector<32x32xf32>
    %34 = arith.subf %30, %33 : vector<32x32xf32>
    %35 = math.exp %34 : vector<32x32xf32>
    %cst_20 = arith.constant dense<0.000000e+00> : vector<32xf32>
    %36 = vector.multi_reduction <add>, %35, %cst_20 [1] : vector<32x32xf32> to vector<32xf32>
    %37 = vector.shape_cast %36 : vector<32xf32> to vector<32x1xf32>
    %38 = vector.broadcast %37 : vector<32x1xf32> to vector<32x32xf32>
    %39 = arith.divf %35, %38 : vector<32x32xf32>
    %cst_21 = arith.constant dense<0.000000e+00> : vector<32x8xf32>
    %40 = tpu.matmul %39, %26, %cst_21 {dimension_numbers = #tpu.dot_dimension_numbers<[1], [0], [0], [1], [0, 0, 1, 1], [], []>} : vector<32x32xf32>, vector<32x8xf32>, vector<32x8xf32> -> vector<32x8xf32>
    %41 = vector.extract_strided_slice %22 {offsets = [0, 0], sizes = [8, 32], strides = [1, 1]} : vector<32x32xf32> to vector<8x32xf32>
    %cst_22 = arith.constant dense<0.000000e+00> : vector<32x32xf32>
    %42 = tpu.matmul %40, %41, %cst_22 {dimension_numbers = #tpu.dot_dimension_numbers<[1], [0], [0], [1], [0, 0, 1, 1], [], []>} : vector<32x8xf32>, vector<8x32xf32>, vector<32x32xf32> -> vector<32x32xf32>
    %43 = vector.broadcast %23 : vector<1x32xf32> to vector<32x32xf32>
    %44 = arith.addf %43, %42 : vector<32x32xf32>
    %45 = vector.extract_strided_slice %21 {offsets = [0, 8], sizes = [32, 8], strides = [1, 1]} : vector<32x96xf32> to vector<32x8xf32>
    %46 = vector.extract_strided_slice %21 {offsets = [0, 40], sizes = [32, 8], strides = [1, 1]} : vector<32x96xf32> to vector<32x8xf32>
    %47 = vector.extract_strided_slice %21 {offsets = [0, 72], sizes = [32, 8], strides = [1, 1]} : vector<32x96xf32> to vector<32x8xf32>
    %cst_23 = arith.constant dense<0.000000e+00> : vector<32x32xf32>
    %48 = tpu.matmul %45, %46, %cst_23 {dimension_numbers = #tpu.dot_dimension_numbers<[1], [1], [0], [0], [0, 0, 1, 0], [], []>} : vector<32x8xf32>, vector<32x8xf32>, vector<32x32xf32> -> vector<32x32xf32>
    %cst_24 = arith.constant 0.353553385 : f32
    %49 = vector.broadcast %cst_24 : f32 to vector<32x32xf32>
    %50 = arith.mulf %48, %49 : vector<32x32xf32>
    %51 = arith.addf %50, %16 : vector<32x32xf32>
    %cst_25 = arith.constant dense<0xFF800000> : vector<32xf32>
    %52 = vector.multi_reduction <maximumf>, %51, %cst_25 [1] : vector<32x32xf32> to vector<32xf32>
    %53 = vector.shape_cast %52 : vector<32xf32> to vector<32x1xf32>
    %54 = vector.broadcast %53 : vector<32x1xf32> to vector<32x32xf32>
    %55 = arith.subf %51, %54 : vector<32x32xf32>
    %56 = math.exp %55 : vector<32x32xf32>
    %cst_26 = arith.constant dense<0.000000e+00> : vector<32xf32>
    %57 = vector.multi_reduction <add>, %56, %cst_26 [1] : vector<32x32xf32> to vector<32xf32>
    %58 = vector.shape_cast %57 : vector<32xf32> to vector<32x1xf32>
    %59 = vector.broadcast %58 : vector<32x1xf32> to vector<32x32xf32>
    %60 = arith.divf %56, %59 : vector<32x32xf32>
    %cst_27 = arith.constant dense<0.000000e+00> : vector<32x8xf32>
    %61 = tpu.matmul %60, %47, %cst_27 {dimension_numbers = #tpu.dot_dimension_numbers<[1], [0], [0], [1], [0, 0, 1, 1], [], []>} : vector<32x32xf32>, vector<32x8xf32>, vector<32x8xf32> -> vector<32x8xf32>
    %62 = vector.extract_strided_slice %22 {offsets = [8, 0], sizes = [8, 32], strides = [1, 1]} : vector<32x32xf32> to vector<8x32xf32>
    %cst_28 = arith.constant dense<0.000000e+00> : vector<32x32xf32>
    %63 = tpu.matmul %61, %62, %cst_28 {dimension_numbers = #tpu.dot_dimension_numbers<[1], [0], [0], [1], [0, 0, 1, 1], [], []>} : vector<32x8xf32>, vector<8x32xf32>, vector<32x32xf32> -> vector<32x32xf32>
    %64 = arith.addf %44, %63 : vector<32x32xf32>
    %65 = vector.extract_strided_slice %21 {offsets = [0, 16], sizes = [32, 8], strides = [1, 1]} : vector<32x96xf32> to vector<32x8xf32>
    %66 = vector.extract_strided_slice %21 {offsets = [0, 48], sizes = [32, 8], strides = [1, 1]} : vector<32x96xf32> to vector<32x8xf32>
    %67 = vector.extract_strided_slice %21 {offsets = [0, 80], sizes = [32, 8], strides = [1, 1]} : vector<32x96xf32> to vector<32x8xf32>
    %cst_29 = arith.constant dense<0.000000e+00> : vector<32x32xf32>
    %68 = tpu.matmul %65, %66, %cst_29 {dimension_numbers = #tpu.dot_dimension_numbers<[1], [1], [0], [0], [0, 0, 1, 0], [], []>} : vector<32x8xf32>, vector<32x8xf32>, vector<32x32xf32> -> vector<32x32xf32>
    %cst_30 = arith.constant 0.353553385 : f32
    %69 = vector.broadcast %cst_30 : f32 to vector<32x32xf32>
    %70 = arith.mulf %68, %69 : vector<32x32xf32>
    %71 = arith.addf %70, %16 : vector<32x32xf32>
    %cst_31 = arith.constant dense<0xFF800000> : vector<32xf32>
    %72 = vector.multi_reduction <maximumf>, %71, %cst_31 [1] : vector<32x32xf32> to vector<32xf32>
    %73 = vector.shape_cast %72 : vector<32xf32> to vector<32x1xf32>
    %74 = vector.broadcast %73 : vector<32x1xf32> to vector<32x32xf32>
    %75 = arith.subf %71, %74 : vector<32x32xf32>
    %76 = math.exp %75 : vector<32x32xf32>
    %cst_32 = arith.constant dense<0.000000e+00> : vector<32xf32>
    %77 = vector.multi_reduction <add>, %76, %cst_32 [1] : vector<32x32xf32> to vector<32xf32>
    %78 = vector.shape_cast %77 : vector<32xf32> to vector<32x1xf32>
    %79 = vector.broadcast %78 : vector<32x1xf32> to vector<32x32xf32>
    %80 = arith.divf %76, %79 : vector<32x32xf32>
    %cst_33 = arith.constant dense<0.000000e+00> : vector<32x8xf32>
    %81 = tpu.matmul %80, %67, %cst_33 {dimension_numbers = #tpu.dot_dimension_numbers<[1], [0], [0], [1], [0, 0, 1, 1], [], []>} : vector<32x32xf32>, vector<32x8xf32>, vector<32x8xf32> -> vector<32x8xf32>
    %82 = vector.extract_strided_slice %22 {offsets = [16, 0], sizes = [8, 32], strides = [1, 1]} : vector<32x32xf32> to vector<8x32xf32>
    %cst_34 = arith.constant dense<0.000000e+00> : vector<32x32xf32>
    %83 = tpu.matmul %81, %82, %cst_34 {dimension_numbers = #tpu.dot_dimension_numbers<[1], [0], [0], [1], [0, 0, 1, 1], [], []>} : vector<32x8xf32>, vector<8x32xf32>, vector<32x32xf32> -> vector<32x32xf32>
    %84 = arith.addf %64, %83 : vector<32x32xf32>
    %85 = vector.extract_strided_slice %21 {offsets = [0, 24], sizes = [32, 8], strides = [1, 1]} : vector<32x96xf32> to vector<32x8xf32>
    %86 = vector.extract_strided_slice %21 {offsets = [0, 56], sizes = [32, 8], strides = [1, 1]} : vector<32x96xf32> to vector<32x8xf32>
    %87 = vector.extract_strided_slice %21 {offsets = [0, 88], sizes = [32, 8], strides = [1, 1]} : vector<32x96xf32> to vector<32x8xf32>
    %cst_35 = arith.constant dense<0.000000e+00> : vector<32x32xf32>
    %88 = tpu.matmul %85, %86, %cst_35 {dimension_numbers = #tpu.dot_dimension_numbers<[1], [1], [0], [0], [0, 0, 1, 0], [], []>} : vector<32x8xf32>, vector<32x8xf32>, vector<32x32xf32> -> vector<32x32xf32>
    %cst_36 = arith.constant 0.353553385 : f32
    %89 = vector.broadcast %cst_36 : f32 to vector<32x32xf32>
    %90 = arith.mulf %88, %89 : vector<32x32xf32>
    %91 = arith.addf %90, %16 : vector<32x32xf32>
    %cst_37 = arith.constant dense<0xFF800000> : vector<32xf32>
    %92 = vector.multi_reduction <maximumf>, %91, %cst_37 [1] : vector<32x32xf32> to vector<32xf32>
    %93 = vector.shape_cast %92 : vector<32xf32> to vector<32x1xf32>
    %94 = vector.broadcast %93 : vector<32x1xf32> to vector<32x32xf32>
    %95 = arith.subf %91, %94 : vector<32x32xf32>
    %96 = math.exp %95 : vector<32x32xf32>
    %cst_38 = arith.constant dense<0.000000e+00> : vector<32xf32>
    %97 = vector.multi_reduction <add>, %96, %cst_38 [1] : vector<32x32xf32> to vector<32xf32>
    %98 = vector.shape_cast %97 : vector<32xf32> to vector<32x1xf32>
    %99 = vector.broadcast %98 : vector<32x1xf32> to vector<32x32xf32>
    %100 = arith.divf %96, %99 : vector<32x32xf32>
    %cst_39 = arith.constant dense<0.000000e+00> : vector<32x8xf32>
    %101 = tpu.matmul %100, %87, %cst_39 {dimension_numbers = #tpu.dot_dimension_numbers<[1], [0], [0], [1], [0, 0, 1, 1], [], []>} : vector<32x32xf32>, vector<32x8xf32>, vector<32x8xf32> -> vector<32x8xf32>
    %102 = vector.extract_strided_slice %22 {offsets = [24, 0], sizes = [8, 32], strides = [1, 1]} : vector<32x32xf32> to vector<8x32xf32>
    %cst_40 = arith.constant dense<0.000000e+00> : vector<32x32xf32>
    %103 = tpu.matmul %101, %102, %cst_40 {dimension_numbers = #tpu.dot_dimension_numbers<[1], [0], [0], [1], [0, 0, 1, 1], [], []>} : vector<32x8xf32>, vector<8x32xf32>, vector<32x32xf32> -> vector<32x32xf32>
    %104 = arith.addf %84, %103 : vector<32x32xf32>
    %105 = arith.addf %4, %104 : vector<32x32xf32>
    %c0_41 = arith.constant 0 : index
    %c0_42 = arith.constant 0 : index
    %106 = vector.load %arg7[%c0_41, %c0_42] : memref<1x32xf32, #tpu.memory_space<vmem>>, vector<1x32xf32>
    %c0_43 = arith.constant 0 : index
    %c0_44 = arith.constant 0 : index
    %107 = vector.load %arg8[%c0_43, %c0_44] : memref<1x32xf32, #tpu.memory_space<vmem>>, vector<1x32xf32>
    %cst_45 = arith.constant dense<0.000000e+00> : vector<32xf32>
    %108 = vector.multi_reduction <add>, %105, %cst_45 [1] : vector<32x32xf32> to vector<32xf32>
    %109 = vector.shape_cast %108 : vector<32xf32> to vector<32x1xf32>
    %cst_46 = arith.constant 3.200000e+01 : f32
    %110 = vector.broadcast %cst_46 : f32 to vector<32x1xf32>
    %111 = arith.divf %109, %110 : vector<32x1xf32>
    %112 = vector.broadcast %111 : vector<32x1xf32> to vector<32x32xf32>
    %113 = arith.subf %105, %112 : vector<32x32xf32>
    %114 = arith.mulf %113, %113 : vector<32x32xf32>
    %cst_47 = arith.constant dense<0.000000e+00> : vector<32xf32>
    %115 = vector.multi_reduction <add>, %114, %cst_47 [1] : vector<32x32xf32> to vector<32xf32>
    %116 = vector.shape_cast %115 : vector<32xf32> to vector<32x1xf32>
    %cst_48 = arith.constant 3.200000e+01 : f32
    %117 = vector.broadcast %cst_48 : f32 to vector<32x1xf32>
    %118 = arith.divf %116, %117 : vector<32x1xf32>
    %119 = vector.broadcast %111 : vector<32x1xf32> to vector<32x32xf32>
    %120 = arith.subf %105, %119 : vector<32x32xf32>
    %cst_49 = arith.constant 9.99999974E-6 : f32
    %121 = vector.broadcast %cst_49 : f32 to vector<32x1xf32>
    %122 = arith.addf %118, %121 : vector<32x1xf32>
    %123 = math.rsqrt %122 : vector<32x1xf32>
    %124 = vector.broadcast %123 : vector<32x1xf32> to vector<32x32xf32>
    %125 = arith.mulf %120, %124 : vector<32x32xf32>
    %126 = vector.broadcast %106 : vector<1x32xf32> to vector<32x32xf32>
    %127 = arith.mulf %125, %126 : vector<32x32xf32>
    %128 = vector.broadcast %107 : vector<1x32xf32> to vector<32x32xf32>
    %129 = arith.addf %127, %128 : vector<32x32xf32>
    %c0_50 = arith.constant 0 : index
    %c0_51 = arith.constant 0 : index
    %130 = vector.load %arg9[%c0_50, %c0_51] : memref<32x64xf32, #tpu.memory_space<vmem>>, vector<32x64xf32>
    %cst_52 = arith.constant dense<0.000000e+00> : vector<32x64xf32>
    %131 = tpu.matmul %129, %130, %cst_52 {dimension_numbers = #tpu.dot_dimension_numbers<[1], [0], [0], [1], [0, 0, 1, 1], [], []>} : vector<32x32xf32>, vector<32x64xf32>, vector<32x64xf32> -> vector<32x64xf32>
    %c0_53 = arith.constant 0 : index
    %c0_54 = arith.constant 0 : index
    %132 = vector.load %arg10[%c0_53, %c0_54] : memref<1x64xf32, #tpu.memory_space<vmem>>, vector<1x64xf32>
    %133 = vector.broadcast %132 : vector<1x64xf32> to vector<32x64xf32>
    %134 = arith.addf %131, %133 : vector<32x64xf32>
    %cst_55 = arith.constant 5.000000e-01 : f32
    %135 = vector.broadcast %cst_55 : f32 to vector<32x64xf32>
    %136 = arith.mulf %135, %134 : vector<32x64xf32>
    %cst_56 = arith.constant 4.471500e-02 : f32
    %137 = vector.broadcast %cst_56 : f32 to vector<32x64xf32>
    %138 = arith.mulf %137, %134 : vector<32x64xf32>
    %139 = arith.mulf %138, %134 : vector<32x64xf32>
    %140 = arith.mulf %139, %134 : vector<32x64xf32>
    %141 = arith.addf %134, %140 : vector<32x64xf32>
    %cst_57 = arith.constant 0.797884583 : f32
    %142 = vector.broadcast %cst_57 : f32 to vector<32x64xf32>
    %143 = arith.mulf %142, %141 : vector<32x64xf32>
    %144 = math.tanh %143 : vector<32x64xf32>
    %cst_58 = arith.constant 1.000000e+00 : f32
    %145 = vector.broadcast %cst_58 : f32 to vector<32x64xf32>
    %146 = arith.addf %145, %144 : vector<32x64xf32>
    %147 = arith.mulf %136, %146 : vector<32x64xf32>
    %c0_59 = arith.constant 0 : index
    %c0_60 = arith.constant 0 : index
    %148 = vector.load %arg11[%c0_59, %c0_60] : memref<64x32xf32, #tpu.memory_space<vmem>>, vector<64x32xf32>
    %cst_61 = arith.constant dense<0.000000e+00> : vector<32x32xf32>
    %149 = tpu.matmul %147, %148, %cst_61 {dimension_numbers = #tpu.dot_dimension_numbers<[1], [0], [0], [1], [0, 0, 1, 1], [], []>} : vector<32x64xf32>, vector<64x32xf32>, vector<32x32xf32> -> vector<32x32xf32>
    %c0_62 = arith.constant 0 : index
    %c0_63 = arith.constant 0 : index
    %150 = vector.load %arg12[%c0_62, %c0_63] : memref<1x32xf32, #tpu.memory_space<vmem>>, vector<1x32xf32>
    %151 = vector.broadcast %150 : vector<1x32xf32> to vector<32x32xf32>
    %152 = arith.addf %149, %151 : vector<32x32xf32>
    %153 = arith.addf %129, %152 : vector<32x32xf32>
    %c0_64 = arith.constant 0 : index
    %c0_65 = arith.constant 0 : index
    %154 = vector.load %arg13[%c0_64, %c0_65] : memref<1x32xf32, #tpu.memory_space<vmem>>, vector<1x32xf32>
    %c0_66 = arith.constant 0 : index
    %c0_67 = arith.constant 0 : index
    %155 = vector.load %arg14[%c0_66, %c0_67] : memref<1x32xf32, #tpu.memory_space<vmem>>, vector<1x32xf32>
    %cst_68 = arith.constant dense<0.000000e+00> : vector<32xf32>
    %156 = vector.multi_reduction <add>, %153, %cst_68 [1] : vector<32x32xf32> to vector<32xf32>
    %157 = vector.shape_cast %156 : vector<32xf32> to vector<32x1xf32>
    %cst_69 = arith.constant 3.200000e+01 : f32
    %158 = vector.broadcast %cst_69 : f32 to vector<32x1xf32>
    %159 = arith.divf %157, %158 : vector<32x1xf32>
    %160 = vector.broadcast %159 : vector<32x1xf32> to vector<32x32xf32>
    %161 = arith.subf %153, %160 : vector<32x32xf32>
    %162 = arith.mulf %161, %161 : vector<32x32xf32>
    %cst_70 = arith.constant dense<0.000000e+00> : vector<32xf32>
    %163 = vector.multi_reduction <add>, %162, %cst_70 [1] : vector<32x32xf32> to vector<32xf32>
    %164 = vector.shape_cast %163 : vector<32xf32> to vector<32x1xf32>
    %cst_71 = arith.constant 3.200000e+01 : f32
    %165 = vector.broadcast %cst_71 : f32 to vector<32x1xf32>
    %166 = arith.divf %164, %165 : vector<32x1xf32>
    %167 = vector.broadcast %159 : vector<32x1xf32> to vector<32x32xf32>
    %168 = arith.subf %153, %167 : vector<32x32xf32>
    %cst_72 = arith.constant 9.99999974E-6 : f32
    %169 = vector.broadcast %cst_72 : f32 to vector<32x1xf32>
    %170 = arith.addf %166, %169 : vector<32x1xf32>
    %171 = math.rsqrt %170 : vector<32x1xf32>
    %172 = vector.broadcast %171 : vector<32x1xf32> to vector<32x32xf32>
    %173 = arith.mulf %168, %172 : vector<32x32xf32>
    %174 = vector.broadcast %154 : vector<1x32xf32> to vector<32x32xf32>
    %175 = arith.mulf %173, %174 : vector<32x32xf32>
    %176 = vector.broadcast %155 : vector<1x32xf32> to vector<32x32xf32>
    %177 = arith.addf %175, %176 : vector<32x32xf32>
    %c0_73 = arith.constant 0 : index
    %c0_74 = arith.constant 0 : index
    %178 = vector.load %arg15[%c0_73, %c0_74] : memref<1x32xf32, #tpu.memory_space<vmem>>, vector<1x32xf32>
    %c0_75 = arith.constant 0 : index
    %c0_76 = arith.constant 0 : index
    %179 = vector.load %arg16[%c0_75, %c0_76] : memref<1x32xf32, #tpu.memory_space<vmem>>, vector<1x32xf32>
    %cst_77 = arith.constant dense<0.000000e+00> : vector<32xf32>
    %180 = vector.multi_reduction <add>, %177, %cst_77 [1] : vector<32x32xf32> to vector<32xf32>
    %181 = vector.shape_cast %180 : vector<32xf32> to vector<32x1xf32>
    %cst_78 = arith.constant 3.200000e+01 : f32
    %182 = vector.broadcast %cst_78 : f32 to vector<32x1xf32>
    %183 = arith.divf %181, %182 : vector<32x1xf32>
    %184 = vector.broadcast %183 : vector<32x1xf32> to vector<32x32xf32>
    %185 = arith.subf %177, %184 : vector<32x32xf32>
    %186 = arith.mulf %185, %185 : vector<32x32xf32>
    %cst_79 = arith.constant dense<0.000000e+00> : vector<32xf32>
    %187 = vector.multi_reduction <add>, %186, %cst_79 [1] : vector<32x32xf32> to vector<32xf32>
    %188 = vector.shape_cast %187 : vector<32xf32> to vector<32x1xf32>
    %cst_80 = arith.constant 3.200000e+01 : f32
    %189 = vector.broadcast %cst_80 : f32 to vector<32x1xf32>
    %190 = arith.divf %188, %189 : vector<32x1xf32>
    %191 = vector.broadcast %183 : vector<32x1xf32> to vector<32x32xf32>
    %192 = arith.subf %177, %191 : vector<32x32xf32>
    %cst_81 = arith.constant 9.99999974E-6 : f32
    %193 = vector.broadcast %cst_81 : f32 to vector<32x1xf32>
    %194 = arith.addf %190, %193 : vector<32x1xf32>
    %195 = math.rsqrt %194 : vector<32x1xf32>
    %196 = vector.broadcast %195 : vector<32x1xf32> to vector<32x32xf32>
    %197 = arith.mulf %192, %196 : vector<32x32xf32>
    %198 = vector.broadcast %178 : vector<1x32xf32> to vector<32x32xf32>
    %199 = arith.mulf %197, %198 : vector<32x32xf32>
    %200 = vector.broadcast %179 : vector<1x32xf32> to vector<32x32xf32>
    %201 = arith.addf %199, %200 : vector<32x32xf32>
    %c0_82 = arith.constant 0 : index
    %c0_83 = arith.constant 0 : index
    %202 = vector.load %arg17[%c0_82, %c0_83] : memref<32x3xf32, #tpu.memory_space<vmem>>, vector<32x3xf32>
    %cst_84 = arith.constant dense<0.000000e+00> : vector<32x3xf32>
    %203 = tpu.matmul %201, %202, %cst_84 {dimension_numbers = #tpu.dot_dimension_numbers<[1], [0], [0], [1], [0, 0, 1, 1], [], []>} : vector<32x32xf32>, vector<32x3xf32>, vector<32x3xf32> -> vector<32x3xf32>
    %c0_85 = arith.constant 0 : index
    %c0_86 = arith.constant 0 : index
    %204 = vector.load %arg18[%c0_85, %c0_86] : memref<1x3xf32, #tpu.memory_space<vmem>>, vector<1x3xf32>
    %205 = vector.broadcast %204 : vector<1x3xf32> to vector<32x3xf32>
    %206 = arith.addf %203, %205 : vector<32x3xf32>
    %cst_87 = arith.constant dense<0xFF800000> : vector<32xf32>
    %207 = vector.multi_reduction <maximumf>, %206, %cst_87 [1] : vector<32x3xf32> to vector<32xf32>
    %208 = vector.shape_cast %207 : vector<32xf32> to vector<32x1xf32>
    %209 = vector.broadcast %208 : vector<32x1xf32> to vector<32x3xf32>
    %210 = arith.subf %206, %209 : vector<32x3xf32>
    %211 = math.exp %210 : vector<32x3xf32>
    %cst_88 = arith.constant dense<0.000000e+00> : vector<32xf32>
    %212 = vector.multi_reduction <add>, %211, %cst_88 [1] : vector<32x3xf32> to vector<32xf32>
    %213 = vector.shape_cast %212 : vector<32xf32> to vector<32x1xf32>
    %214 = vector.broadcast %213 : vector<32x1xf32> to vector<32x3xf32>
    %215 = arith.divf %211, %214 : vector<32x3xf32>
    %216 = arith.negf %201 : vector<32x32xf32>
    %217 = math.exp %216 : vector<32x32xf32>
    %cst_89 = arith.constant 1.000000e+00 : f32
    %218 = vector.broadcast %cst_89 : f32 to vector<32x32xf32>
    %219 = arith.addf %218, %217 : vector<32x32xf32>
    %220 = arith.divf %218, %219 : vector<32x32xf32>
    %221 = arith.mulf %201, %220 : vector<32x32xf32>
    %c0_90 = arith.constant 0 : index
    %c0_91 = arith.constant 0 : index
    %222 = vector.load %arg19[%c0_90, %c0_91] : memref<32x16xf32, #tpu.memory_space<vmem>>, vector<32x16xf32>
    %cst_92 = arith.constant dense<0.000000e+00> : vector<32x16xf32>
    %223 = tpu.matmul %221, %222, %cst_92 {dimension_numbers = #tpu.dot_dimension_numbers<[1], [0], [0], [1], [0, 0, 1, 1], [], []>} : vector<32x32xf32>, vector<32x16xf32>, vector<32x16xf32> -> vector<32x16xf32>
    %cst_93 = arith.constant -2.200000e+00 : f32
    %224 = vector.broadcast %cst_93 : f32 to vector<32x32xf32>
    %225 = arith.cmpf oge, %201, %224 : vector<32x32xf32>
    %cst_94 = arith.constant -1.800000e+00 : f32
    %226 = vector.broadcast %cst_94 : f32 to vector<32x32xf32>
    %227 = arith.cmpf olt, %201, %226 : vector<32x32xf32>
    %228 = arith.andi %225, %227 : vector<32x32xi1>
    %cst_95 = arith.constant 1.000000e+00 : f32
    %cst_96 = arith.constant 0.000000e+00 : f32
    %229 = vector.broadcast %cst_95 : f32 to vector<32x32xf32>
    %230 = vector.broadcast %cst_96 : f32 to vector<32x32xf32>
    %231 = arith.select %228, %229, %230 : vector<32x32xi1>, vector<32x32xf32>
    %cst_97 = arith.constant -1.800000e+00 : f32
    %232 = vector.broadcast %cst_97 : f32 to vector<32x32xf32>
    %233 = arith.cmpf oge, %201, %232 : vector<32x32xf32>
    %cst_98 = arith.constant -1.400000e+00 : f32
    %234 = vector.broadcast %cst_98 : f32 to vector<32x32xf32>
    %235 = arith.cmpf olt, %201, %234 : vector<32x32xf32>
    %236 = arith.andi %233, %235 : vector<32x32xi1>
    %cst_99 = arith.constant 1.000000e+00 : f32
    %cst_100 = arith.constant 0.000000e+00 : f32
    %237 = vector.broadcast %cst_99 : f32 to vector<32x32xf32>
    %238 = vector.broadcast %cst_100 : f32 to vector<32x32xf32>
    %239 = arith.select %236, %237, %238 : vector<32x32xi1>, vector<32x32xf32>
    %cst_101 = arith.constant -1.400000e+00 : f32
    %240 = vector.broadcast %cst_101 : f32 to vector<32x32xf32>
    %241 = arith.cmpf oge, %201, %240 : vector<32x32xf32>
    %cst_102 = arith.constant -1.000000e+00 : f32
    %242 = vector.broadcast %cst_102 : f32 to vector<32x32xf32>
    %243 = arith.cmpf olt, %201, %242 : vector<32x32xf32>
    %244 = arith.andi %241, %243 : vector<32x32xi1>
    %cst_103 = arith.constant 1.000000e+00 : f32
    %cst_104 = arith.constant 0.000000e+00 : f32
    %245 = vector.broadcast %cst_103 : f32 to vector<32x32xf32>
    %246 = vector.broadcast %cst_104 : f32 to vector<32x32xf32>
    %247 = arith.select %244, %245, %246 : vector<32x32xi1>, vector<32x32xf32>
    %cst_105 = arith.constant -1.000000e+00 : f32
    %248 = vector.broadcast %cst_105 : f32 to vector<32x32xf32>
    %249 = arith.cmpf oge, %201, %248 : vector<32x32xf32>
    %cst_106 = arith.constant -6.000000e-01 : f32
    %250 = vector.broadcast %cst_106 : f32 to vector<32x32xf32>
    %251 = arith.cmpf olt, %201, %250 : vector<32x32xf32>
    %252 = arith.andi %249, %251 : vector<32x32xi1>
    %cst_107 = arith.constant 1.000000e+00 : f32
    %cst_108 = arith.constant 0.000000e+00 : f32
    %253 = vector.broadcast %cst_107 : f32 to vector<32x32xf32>
    %254 = vector.broadcast %cst_108 : f32 to vector<32x32xf32>
    %255 = arith.select %252, %253, %254 : vector<32x32xi1>, vector<32x32xf32>
    %cst_109 = arith.constant -6.000000e-01 : f32
    %256 = vector.broadcast %cst_109 : f32 to vector<32x32xf32>
    %257 = arith.cmpf oge, %201, %256 : vector<32x32xf32>
    %cst_110 = arith.constant -2.000000e-01 : f32
    %258 = vector.broadcast %cst_110 : f32 to vector<32x32xf32>
    %259 = arith.cmpf olt, %201, %258 : vector<32x32xf32>
    %260 = arith.andi %257, %259 : vector<32x32xi1>
    %cst_111 = arith.constant 1.000000e+00 : f32
    %cst_112 = arith.constant 0.000000e+00 : f32
    %261 = vector.broadcast %cst_111 : f32 to vector<32x32xf32>
    %262 = vector.broadcast %cst_112 : f32 to vector<32x32xf32>
    %263 = arith.select %260, %261, %262 : vector<32x32xi1>, vector<32x32xf32>
    %cst_113 = arith.constant -2.000000e-01 : f32
    %264 = vector.broadcast %cst_113 : f32 to vector<32x32xf32>
    %265 = arith.cmpf oge, %201, %264 : vector<32x32xf32>
    %cst_114 = arith.constant 2.000000e-01 : f32
    %266 = vector.broadcast %cst_114 : f32 to vector<32x32xf32>
    %267 = arith.cmpf olt, %201, %266 : vector<32x32xf32>
    %268 = arith.andi %265, %267 : vector<32x32xi1>
    %cst_115 = arith.constant 1.000000e+00 : f32
    %cst_116 = arith.constant 0.000000e+00 : f32
    %269 = vector.broadcast %cst_115 : f32 to vector<32x32xf32>
    %270 = vector.broadcast %cst_116 : f32 to vector<32x32xf32>
    %271 = arith.select %268, %269, %270 : vector<32x32xi1>, vector<32x32xf32>
    %cst_117 = arith.constant 2.000000e-01 : f32
    %272 = vector.broadcast %cst_117 : f32 to vector<32x32xf32>
    %273 = arith.cmpf oge, %201, %272 : vector<32x32xf32>
    %cst_118 = arith.constant 6.000000e-01 : f32
    %274 = vector.broadcast %cst_118 : f32 to vector<32x32xf32>
    %275 = arith.cmpf olt, %201, %274 : vector<32x32xf32>
    %276 = arith.andi %273, %275 : vector<32x32xi1>
    %cst_119 = arith.constant 1.000000e+00 : f32
    %cst_120 = arith.constant 0.000000e+00 : f32
    %277 = vector.broadcast %cst_119 : f32 to vector<32x32xf32>
    %278 = vector.broadcast %cst_120 : f32 to vector<32x32xf32>
    %279 = arith.select %276, %277, %278 : vector<32x32xi1>, vector<32x32xf32>
    %cst_121 = arith.constant 6.000000e-01 : f32
    %280 = vector.broadcast %cst_121 : f32 to vector<32x32xf32>
    %281 = arith.cmpf oge, %201, %280 : vector<32x32xf32>
    %cst_122 = arith.constant 1.000000e+00 : f32
    %282 = vector.broadcast %cst_122 : f32 to vector<32x32xf32>
    %283 = arith.cmpf olt, %201, %282 : vector<32x32xf32>
    %284 = arith.andi %281, %283 : vector<32x32xi1>
    %cst_123 = arith.constant 1.000000e+00 : f32
    %cst_124 = arith.constant 0.000000e+00 : f32
    %285 = vector.broadcast %cst_123 : f32 to vector<32x32xf32>
    %286 = vector.broadcast %cst_124 : f32 to vector<32x32xf32>
    %287 = arith.select %284, %285, %286 : vector<32x32xi1>, vector<32x32xf32>
    %cst_125 = arith.constant 1.000000e+00 : f32
    %288 = vector.broadcast %cst_125 : f32 to vector<32x32xf32>
    %289 = arith.cmpf oge, %201, %288 : vector<32x32xf32>
    %cst_126 = arith.constant 1.400000e+00 : f32
    %290 = vector.broadcast %cst_126 : f32 to vector<32x32xf32>
    %291 = arith.cmpf olt, %201, %290 : vector<32x32xf32>
    %292 = arith.andi %289, %291 : vector<32x32xi1>
    %cst_127 = arith.constant 1.000000e+00 : f32
    %cst_128 = arith.constant 0.000000e+00 : f32
    %293 = vector.broadcast %cst_127 : f32 to vector<32x32xf32>
    %294 = vector.broadcast %cst_128 : f32 to vector<32x32xf32>
    %295 = arith.select %292, %293, %294 : vector<32x32xi1>, vector<32x32xf32>
    %cst_129 = arith.constant 1.400000e+00 : f32
    %296 = vector.broadcast %cst_129 : f32 to vector<32x32xf32>
    %297 = arith.cmpf oge, %201, %296 : vector<32x32xf32>
    %cst_130 = arith.constant 1.800000e+00 : f32
    %298 = vector.broadcast %cst_130 : f32 to vector<32x32xf32>
    %299 = arith.cmpf olt, %201, %298 : vector<32x32xf32>
    %300 = arith.andi %297, %299 : vector<32x32xi1>
    %cst_131 = arith.constant 1.000000e+00 : f32
    %cst_132 = arith.constant 0.000000e+00 : f32
    %301 = vector.broadcast %cst_131 : f32 to vector<32x32xf32>
    %302 = vector.broadcast %cst_132 : f32 to vector<32x32xf32>
    %303 = arith.select %300, %301, %302 : vector<32x32xi1>, vector<32x32xf32>
    %cst_133 = arith.constant 1.800000e+00 : f32
    %304 = vector.broadcast %cst_133 : f32 to vector<32x32xf32>
    %305 = arith.cmpf oge, %201, %304 : vector<32x32xf32>
    %cst_134 = arith.constant 2.200000e+00 : f32
    %306 = vector.broadcast %cst_134 : f32 to vector<32x32xf32>
    %307 = arith.cmpf olt, %201, %306 : vector<32x32xf32>
    %308 = arith.andi %305, %307 : vector<32x32xi1>
    %cst_135 = arith.constant 1.000000e+00 : f32
    %cst_136 = arith.constant 0.000000e+00 : f32
    %309 = vector.broadcast %cst_135 : f32 to vector<32x32xf32>
    %310 = vector.broadcast %cst_136 : f32 to vector<32x32xf32>
    %311 = arith.select %308, %309, %310 : vector<32x32xi1>, vector<32x32xf32>
    %cst_137 = arith.constant -2.200000e+00 : f32
    %312 = vector.broadcast %cst_137 : f32 to vector<32x32xf32>
    %313 = arith.subf %201, %312 : vector<32x32xf32>
    %cst_138 = arith.constant 2.500000e+00 : f32
    %314 = vector.broadcast %cst_138 : f32 to vector<32x32xf32>
    %315 = arith.mulf %313, %314 : vector<32x32xf32>
    %316 = arith.mulf %315, %231 : vector<32x32xf32>
    %cst_139 = arith.constant -1.400000e+00 : f32
    %317 = vector.broadcast %cst_139 : f32 to vector<32x32xf32>
    %318 = arith.subf %317, %201 : vector<32x32xf32>
    %cst_140 = arith.constant 2.500000e+00 : f32
    %319 = vector.broadcast %cst_140 : f32 to vector<32x32xf32>
    %320 = arith.mulf %318, %319 : vector<32x32xf32>
    %321 = arith.mulf %320, %239 : vector<32x32xf32>
    %322 = arith.addf %316, %321 : vector<32x32xf32>
    %cst_141 = arith.constant -1.800000e+00 : f32
    %323 = vector.broadcast %cst_141 : f32 to vector<32x32xf32>
    %324 = arith.subf %201, %323 : vector<32x32xf32>
    %cst_142 = arith.constant 2.500000e+00 : f32
    %325 = vector.broadcast %cst_142 : f32 to vector<32x32xf32>
    %326 = arith.mulf %324, %325 : vector<32x32xf32>
    %327 = arith.mulf %326, %239 : vector<32x32xf32>
    %cst_143 = arith.constant -1.000000e+00 : f32
    %328 = vector.broadcast %cst_143 : f32 to vector<32x32xf32>
    %329 = arith.subf %328, %201 : vector<32x32xf32>
    %cst_144 = arith.constant 2.500000e+00 : f32
    %330 = vector.broadcast %cst_144 : f32 to vector<32x32xf32>
    %331 = arith.mulf %329, %330 : vector<32x32xf32>
    %332 = arith.mulf %331, %247 : vector<32x32xf32>
    %333 = arith.addf %327, %332 : vector<32x32xf32>
    %cst_145 = arith.constant -1.400000e+00 : f32
    %334 = vector.broadcast %cst_145 : f32 to vector<32x32xf32>
    %335 = arith.subf %201, %334 : vector<32x32xf32>
    %cst_146 = arith.constant 2.500000e+00 : f32
    %336 = vector.broadcast %cst_146 : f32 to vector<32x32xf32>
    %337 = arith.mulf %335, %336 : vector<32x32xf32>
    %338 = arith.mulf %337, %247 : vector<32x32xf32>
    %cst_147 = arith.constant -6.000000e-01 : f32
    %339 = vector.broadcast %cst_147 : f32 to vector<32x32xf32>
    %340 = arith.subf %339, %201 : vector<32x32xf32>
    %cst_148 = arith.constant 2.500000e+00 : f32
    %341 = vector.broadcast %cst_148 : f32 to vector<32x32xf32>
    %342 = arith.mulf %340, %341 : vector<32x32xf32>
    %343 = arith.mulf %342, %255 : vector<32x32xf32>
    %344 = arith.addf %338, %343 : vector<32x32xf32>
    %cst_149 = arith.constant -1.000000e+00 : f32
    %345 = vector.broadcast %cst_149 : f32 to vector<32x32xf32>
    %346 = arith.subf %201, %345 : vector<32x32xf32>
    %cst_150 = arith.constant 2.500000e+00 : f32
    %347 = vector.broadcast %cst_150 : f32 to vector<32x32xf32>
    %348 = arith.mulf %346, %347 : vector<32x32xf32>
    %349 = arith.mulf %348, %255 : vector<32x32xf32>
    %cst_151 = arith.constant -2.000000e-01 : f32
    %350 = vector.broadcast %cst_151 : f32 to vector<32x32xf32>
    %351 = arith.subf %350, %201 : vector<32x32xf32>
    %cst_152 = arith.constant 2.500000e+00 : f32
    %352 = vector.broadcast %cst_152 : f32 to vector<32x32xf32>
    %353 = arith.mulf %351, %352 : vector<32x32xf32>
    %354 = arith.mulf %353, %263 : vector<32x32xf32>
    %355 = arith.addf %349, %354 : vector<32x32xf32>
    %cst_153 = arith.constant -6.000000e-01 : f32
    %356 = vector.broadcast %cst_153 : f32 to vector<32x32xf32>
    %357 = arith.subf %201, %356 : vector<32x32xf32>
    %cst_154 = arith.constant 2.500000e+00 : f32
    %358 = vector.broadcast %cst_154 : f32 to vector<32x32xf32>
    %359 = arith.mulf %357, %358 : vector<32x32xf32>
    %360 = arith.mulf %359, %263 : vector<32x32xf32>
    %cst_155 = arith.constant 2.000000e-01 : f32
    %361 = vector.broadcast %cst_155 : f32 to vector<32x32xf32>
    %362 = arith.subf %361, %201 : vector<32x32xf32>
    %cst_156 = arith.constant 2.500000e+00 : f32
    %363 = vector.broadcast %cst_156 : f32 to vector<32x32xf32>
    %364 = arith.mulf %362, %363 : vector<32x32xf32>
    %365 = arith.mulf %364, %271 : vector<32x32xf32>
    %366 = arith.addf %360, %365 : vector<32x32xf32>
    %cst_157 = arith.constant -2.000000e-01 : f32
    %367 = vector.broadcast %cst_157 : f32 to vector<32x32xf32>
    %368 = arith.subf %201, %367 : vector<32x32xf32>
    %cst_158 = arith.constant 2.500000e+00 : f32
    %369 = vector.broadcast %cst_158 : f32 to vector<32x32xf32>
    %370 = arith.mulf %368, %369 : vector<32x32xf32>
    %371 = arith.mulf %370, %271 : vector<32x32xf32>
    %cst_159 = arith.constant 6.000000e-01 : f32
    %372 = vector.broadcast %cst_159 : f32 to vector<32x32xf32>
    %373 = arith.subf %372, %201 : vector<32x32xf32>
    %cst_160 = arith.constant 2.500000e+00 : f32
    %374 = vector.broadcast %cst_160 : f32 to vector<32x32xf32>
    %375 = arith.mulf %373, %374 : vector<32x32xf32>
    %376 = arith.mulf %375, %279 : vector<32x32xf32>
    %377 = arith.addf %371, %376 : vector<32x32xf32>
    %cst_161 = arith.constant 2.000000e-01 : f32
    %378 = vector.broadcast %cst_161 : f32 to vector<32x32xf32>
    %379 = arith.subf %201, %378 : vector<32x32xf32>
    %cst_162 = arith.constant 2.500000e+00 : f32
    %380 = vector.broadcast %cst_162 : f32 to vector<32x32xf32>
    %381 = arith.mulf %379, %380 : vector<32x32xf32>
    %382 = arith.mulf %381, %279 : vector<32x32xf32>
    %cst_163 = arith.constant 1.000000e+00 : f32
    %383 = vector.broadcast %cst_163 : f32 to vector<32x32xf32>
    %384 = arith.subf %383, %201 : vector<32x32xf32>
    %cst_164 = arith.constant 2.500000e+00 : f32
    %385 = vector.broadcast %cst_164 : f32 to vector<32x32xf32>
    %386 = arith.mulf %384, %385 : vector<32x32xf32>
    %387 = arith.mulf %386, %287 : vector<32x32xf32>
    %388 = arith.addf %382, %387 : vector<32x32xf32>
    %cst_165 = arith.constant 6.000000e-01 : f32
    %389 = vector.broadcast %cst_165 : f32 to vector<32x32xf32>
    %390 = arith.subf %201, %389 : vector<32x32xf32>
    %cst_166 = arith.constant 2.500000e+00 : f32
    %391 = vector.broadcast %cst_166 : f32 to vector<32x32xf32>
    %392 = arith.mulf %390, %391 : vector<32x32xf32>
    %393 = arith.mulf %392, %287 : vector<32x32xf32>
    %cst_167 = arith.constant 1.400000e+00 : f32
    %394 = vector.broadcast %cst_167 : f32 to vector<32x32xf32>
    %395 = arith.subf %394, %201 : vector<32x32xf32>
    %cst_168 = arith.constant 2.500000e+00 : f32
    %396 = vector.broadcast %cst_168 : f32 to vector<32x32xf32>
    %397 = arith.mulf %395, %396 : vector<32x32xf32>
    %398 = arith.mulf %397, %295 : vector<32x32xf32>
    %399 = arith.addf %393, %398 : vector<32x32xf32>
    %cst_169 = arith.constant 1.000000e+00 : f32
    %400 = vector.broadcast %cst_169 : f32 to vector<32x32xf32>
    %401 = arith.subf %201, %400 : vector<32x32xf32>
    %cst_170 = arith.constant 2.500000e+00 : f32
    %402 = vector.broadcast %cst_170 : f32 to vector<32x32xf32>
    %403 = arith.mulf %401, %402 : vector<32x32xf32>
    %404 = arith.mulf %403, %295 : vector<32x32xf32>
    %cst_171 = arith.constant 1.800000e+00 : f32
    %405 = vector.broadcast %cst_171 : f32 to vector<32x32xf32>
    %406 = arith.subf %405, %201 : vector<32x32xf32>
    %cst_172 = arith.constant 2.500000e+00 : f32
    %407 = vector.broadcast %cst_172 : f32 to vector<32x32xf32>
    %408 = arith.mulf %406, %407 : vector<32x32xf32>
    %409 = arith.mulf %408, %303 : vector<32x32xf32>
    %410 = arith.addf %404, %409 : vector<32x32xf32>
    %cst_173 = arith.constant 1.400000e+00 : f32
    %411 = vector.broadcast %cst_173 : f32 to vector<32x32xf32>
    %412 = arith.subf %201, %411 : vector<32x32xf32>
    %cst_174 = arith.constant 2.500000e+00 : f32
    %413 = vector.broadcast %cst_174 : f32 to vector<32x32xf32>
    %414 = arith.mulf %412, %413 : vector<32x32xf32>
    %415 = arith.mulf %414, %303 : vector<32x32xf32>
    %cst_175 = arith.constant 2.200000e+00 : f32
    %416 = vector.broadcast %cst_175 : f32 to vector<32x32xf32>
    %417 = arith.subf %416, %201 : vector<32x32xf32>
    %cst_176 = arith.constant 2.500000e+00 : f32
    %418 = vector.broadcast %cst_176 : f32 to vector<32x32xf32>
    %419 = arith.mulf %417, %418 : vector<32x32xf32>
    %420 = arith.mulf %419, %311 : vector<32x32xf32>
    %421 = arith.addf %415, %420 : vector<32x32xf32>
    %cst_177 = arith.constant -2.200000e+00 : f32
    %422 = vector.broadcast %cst_177 : f32 to vector<32x32xf32>
    %423 = arith.subf %201, %422 : vector<32x32xf32>
    %cst_178 = arith.constant 1.250000e+00 : f32
    %424 = vector.broadcast %cst_178 : f32 to vector<32x32xf32>
    %425 = arith.mulf %423, %424 : vector<32x32xf32>
    %426 = arith.mulf %425, %322 : vector<32x32xf32>
    %cst_179 = arith.constant -1.000000e+00 : f32
    %427 = vector.broadcast %cst_179 : f32 to vector<32x32xf32>
    %428 = arith.subf %427, %201 : vector<32x32xf32>
    %cst_180 = arith.constant 1.250000e+00 : f32
    %429 = vector.broadcast %cst_180 : f32 to vector<32x32xf32>
    %430 = arith.mulf %428, %429 : vector<32x32xf32>
    %431 = arith.mulf %430, %333 : vector<32x32xf32>
    %432 = arith.addf %426, %431 : vector<32x32xf32>
    %cst_181 = arith.constant -1.800000e+00 : f32
    %433 = vector.broadcast %cst_181 : f32 to vector<32x32xf32>
    %434 = arith.subf %201, %433 : vector<32x32xf32>
    %cst_182 = arith.constant 1.250000e+00 : f32
    %435 = vector.broadcast %cst_182 : f32 to vector<32x32xf32>
    %436 = arith.mulf %434, %435 : vector<32x32xf32>
    %437 = arith.mulf %436, %333 : vector<32x32xf32>
    %cst_183 = arith.constant -6.000000e-01 : f32
    %438 = vector.broadcast %cst_183 : f32 to vector<32x32xf32>
    %439 = arith.subf %438, %201 : vector<32x32xf32>
    %cst_184 = arith.constant 1.250000e+00 : f32
    %440 = vector.broadcast %cst_184 : f32 to vector<32x32xf32>
    %441 = arith.mulf %439, %440 : vector<32x32xf32>
    %442 = arith.mulf %441, %344 : vector<32x32xf32>
    %443 = arith.addf %437, %442 : vector<32x32xf32>
    %cst_185 = arith.constant -1.400000e+00 : f32
    %444 = vector.broadcast %cst_185 : f32 to vector<32x32xf32>
    %445 = arith.subf %201, %444 : vector<32x32xf32>
    %cst_186 = arith.constant 1.250000e+00 : f32
    %446 = vector.broadcast %cst_186 : f32 to vector<32x32xf32>
    %447 = arith.mulf %445, %446 : vector<32x32xf32>
    %448 = arith.mulf %447, %344 : vector<32x32xf32>
    %cst_187 = arith.constant -2.000000e-01 : f32
    %449 = vector.broadcast %cst_187 : f32 to vector<32x32xf32>
    %450 = arith.subf %449, %201 : vector<32x32xf32>
    %cst_188 = arith.constant 1.250000e+00 : f32
    %451 = vector.broadcast %cst_188 : f32 to vector<32x32xf32>
    %452 = arith.mulf %450, %451 : vector<32x32xf32>
    %453 = arith.mulf %452, %355 : vector<32x32xf32>
    %454 = arith.addf %448, %453 : vector<32x32xf32>
    %cst_189 = arith.constant -1.000000e+00 : f32
    %455 = vector.broadcast %cst_189 : f32 to vector<32x32xf32>
    %456 = arith.subf %201, %455 : vector<32x32xf32>
    %cst_190 = arith.constant 1.250000e+00 : f32
    %457 = vector.broadcast %cst_190 : f32 to vector<32x32xf32>
    %458 = arith.mulf %456, %457 : vector<32x32xf32>
    %459 = arith.mulf %458, %355 : vector<32x32xf32>
    %cst_191 = arith.constant 2.000000e-01 : f32
    %460 = vector.broadcast %cst_191 : f32 to vector<32x32xf32>
    %461 = arith.subf %460, %201 : vector<32x32xf32>
    %cst_192 = arith.constant 1.250000e+00 : f32
    %462 = vector.broadcast %cst_192 : f32 to vector<32x32xf32>
    %463 = arith.mulf %461, %462 : vector<32x32xf32>
    %464 = arith.mulf %463, %366 : vector<32x32xf32>
    %465 = arith.addf %459, %464 : vector<32x32xf32>
    %cst_193 = arith.constant -6.000000e-01 : f32
    %466 = vector.broadcast %cst_193 : f32 to vector<32x32xf32>
    %467 = arith.subf %201, %466 : vector<32x32xf32>
    %cst_194 = arith.constant 1.250000e+00 : f32
    %468 = vector.broadcast %cst_194 : f32 to vector<32x32xf32>
    %469 = arith.mulf %467, %468 : vector<32x32xf32>
    %470 = arith.mulf %469, %366 : vector<32x32xf32>
    %cst_195 = arith.constant 6.000000e-01 : f32
    %471 = vector.broadcast %cst_195 : f32 to vector<32x32xf32>
    %472 = arith.subf %471, %201 : vector<32x32xf32>
    %cst_196 = arith.constant 1.250000e+00 : f32
    %473 = vector.broadcast %cst_196 : f32 to vector<32x32xf32>
    %474 = arith.mulf %472, %473 : vector<32x32xf32>
    %475 = arith.mulf %474, %377 : vector<32x32xf32>
    %476 = arith.addf %470, %475 : vector<32x32xf32>
    %cst_197 = arith.constant -2.000000e-01 : f32
    %477 = vector.broadcast %cst_197 : f32 to vector<32x32xf32>
    %478 = arith.subf %201, %477 : vector<32x32xf32>
    %cst_198 = arith.constant 1.250000e+00 : f32
    %479 = vector.broadcast %cst_198 : f32 to vector<32x32xf32>
    %480 = arith.mulf %478, %479 : vector<32x32xf32>
    %481 = arith.mulf %480, %377 : vector<32x32xf32>
    %cst_199 = arith.constant 1.000000e+00 : f32
    %482 = vector.broadcast %cst_199 : f32 to vector<32x32xf32>
    %483 = arith.subf %482, %201 : vector<32x32xf32>
    %cst_200 = arith.constant 1.250000e+00 : f32
    %484 = vector.broadcast %cst_200 : f32 to vector<32x32xf32>
    %485 = arith.mulf %483, %484 : vector<32x32xf32>
    %486 = arith.mulf %485, %388 : vector<32x32xf32>
    %487 = arith.addf %481, %486 : vector<32x32xf32>
    %cst_201 = arith.constant 2.000000e-01 : f32
    %488 = vector.broadcast %cst_201 : f32 to vector<32x32xf32>
    %489 = arith.subf %201, %488 : vector<32x32xf32>
    %cst_202 = arith.constant 1.250000e+00 : f32
    %490 = vector.broadcast %cst_202 : f32 to vector<32x32xf32>
    %491 = arith.mulf %489, %490 : vector<32x32xf32>
    %492 = arith.mulf %491, %388 : vector<32x32xf32>
    %cst_203 = arith.constant 1.400000e+00 : f32
    %493 = vector.broadcast %cst_203 : f32 to vector<32x32xf32>
    %494 = arith.subf %493, %201 : vector<32x32xf32>
    %cst_204 = arith.constant 1.250000e+00 : f32
    %495 = vector.broadcast %cst_204 : f32 to vector<32x32xf32>
    %496 = arith.mulf %494, %495 : vector<32x32xf32>
    %497 = arith.mulf %496, %399 : vector<32x32xf32>
    %498 = arith.addf %492, %497 : vector<32x32xf32>
    %cst_205 = arith.constant 6.000000e-01 : f32
    %499 = vector.broadcast %cst_205 : f32 to vector<32x32xf32>
    %500 = arith.subf %201, %499 : vector<32x32xf32>
    %cst_206 = arith.constant 1.250000e+00 : f32
    %501 = vector.broadcast %cst_206 : f32 to vector<32x32xf32>
    %502 = arith.mulf %500, %501 : vector<32x32xf32>
    %503 = arith.mulf %502, %399 : vector<32x32xf32>
    %cst_207 = arith.constant 1.800000e+00 : f32
    %504 = vector.broadcast %cst_207 : f32 to vector<32x32xf32>
    %505 = arith.subf %504, %201 : vector<32x32xf32>
    %cst_208 = arith.constant 1.250000e+00 : f32
    %506 = vector.broadcast %cst_208 : f32 to vector<32x32xf32>
    %507 = arith.mulf %505, %506 : vector<32x32xf32>
    %508 = arith.mulf %507, %410 : vector<32x32xf32>
    %509 = arith.addf %503, %508 : vector<32x32xf32>
    %cst_209 = arith.constant 1.000000e+00 : f32
    %510 = vector.broadcast %cst_209 : f32 to vector<32x32xf32>
    %511 = arith.subf %201, %510 : vector<32x32xf32>
    %cst_210 = arith.constant 1.250000e+00 : f32
    %512 = vector.broadcast %cst_210 : f32 to vector<32x32xf32>
    %513 = arith.mulf %511, %512 : vector<32x32xf32>
    %514 = arith.mulf %513, %410 : vector<32x32xf32>
    %cst_211 = arith.constant 2.200000e+00 : f32
    %515 = vector.broadcast %cst_211 : f32 to vector<32x32xf32>
    %516 = arith.subf %515, %201 : vector<32x32xf32>
    %cst_212 = arith.constant 1.250000e+00 : f32
    %517 = vector.broadcast %cst_212 : f32 to vector<32x32xf32>
    %518 = arith.mulf %516, %517 : vector<32x32xf32>
    %519 = arith.mulf %518, %421 : vector<32x32xf32>
    %520 = arith.addf %514, %519 : vector<32x32xf32>
    %cst_213 = arith.constant -2.200000e+00 : f32
    %521 = vector.broadcast %cst_213 : f32 to vector<32x32xf32>
    %522 = arith.subf %201, %521 : vector<32x32xf32>
    %cst_214 = arith.constant 0.833333313 : f32
    %523 = vector.broadcast %cst_214 : f32 to vector<32x32xf32>
    %524 = arith.mulf %522, %523 : vector<32x32xf32>
    %525 = arith.mulf %524, %432 : vector<32x32xf32>
    %cst_215 = arith.constant -6.000000e-01 : f32
    %526 = vector.broadcast %cst_215 : f32 to vector<32x32xf32>
    %527 = arith.subf %526, %201 : vector<32x32xf32>
    %cst_216 = arith.constant 0.833333313 : f32
    %528 = vector.broadcast %cst_216 : f32 to vector<32x32xf32>
    %529 = arith.mulf %527, %528 : vector<32x32xf32>
    %530 = arith.mulf %529, %443 : vector<32x32xf32>
    %531 = arith.addf %525, %530 : vector<32x32xf32>
    %cst_217 = arith.constant -1.800000e+00 : f32
    %532 = vector.broadcast %cst_217 : f32 to vector<32x32xf32>
    %533 = arith.subf %201, %532 : vector<32x32xf32>
    %cst_218 = arith.constant 0.833333313 : f32
    %534 = vector.broadcast %cst_218 : f32 to vector<32x32xf32>
    %535 = arith.mulf %533, %534 : vector<32x32xf32>
    %536 = arith.mulf %535, %443 : vector<32x32xf32>
    %cst_219 = arith.constant -2.000000e-01 : f32
    %537 = vector.broadcast %cst_219 : f32 to vector<32x32xf32>
    %538 = arith.subf %537, %201 : vector<32x32xf32>
    %cst_220 = arith.constant 0.833333313 : f32
    %539 = vector.broadcast %cst_220 : f32 to vector<32x32xf32>
    %540 = arith.mulf %538, %539 : vector<32x32xf32>
    %541 = arith.mulf %540, %454 : vector<32x32xf32>
    %542 = arith.addf %536, %541 : vector<32x32xf32>
    %cst_221 = arith.constant -1.400000e+00 : f32
    %543 = vector.broadcast %cst_221 : f32 to vector<32x32xf32>
    %544 = arith.subf %201, %543 : vector<32x32xf32>
    %cst_222 = arith.constant 0.833333313 : f32
    %545 = vector.broadcast %cst_222 : f32 to vector<32x32xf32>
    %546 = arith.mulf %544, %545 : vector<32x32xf32>
    %547 = arith.mulf %546, %454 : vector<32x32xf32>
    %cst_223 = arith.constant 2.000000e-01 : f32
    %548 = vector.broadcast %cst_223 : f32 to vector<32x32xf32>
    %549 = arith.subf %548, %201 : vector<32x32xf32>
    %cst_224 = arith.constant 0.833333313 : f32
    %550 = vector.broadcast %cst_224 : f32 to vector<32x32xf32>
    %551 = arith.mulf %549, %550 : vector<32x32xf32>
    %552 = arith.mulf %551, %465 : vector<32x32xf32>
    %553 = arith.addf %547, %552 : vector<32x32xf32>
    %cst_225 = arith.constant -1.000000e+00 : f32
    %554 = vector.broadcast %cst_225 : f32 to vector<32x32xf32>
    %555 = arith.subf %201, %554 : vector<32x32xf32>
    %cst_226 = arith.constant 0.833333313 : f32
    %556 = vector.broadcast %cst_226 : f32 to vector<32x32xf32>
    %557 = arith.mulf %555, %556 : vector<32x32xf32>
    %558 = arith.mulf %557, %465 : vector<32x32xf32>
    %cst_227 = arith.constant 6.000000e-01 : f32
    %559 = vector.broadcast %cst_227 : f32 to vector<32x32xf32>
    %560 = arith.subf %559, %201 : vector<32x32xf32>
    %cst_228 = arith.constant 0.833333313 : f32
    %561 = vector.broadcast %cst_228 : f32 to vector<32x32xf32>
    %562 = arith.mulf %560, %561 : vector<32x32xf32>
    %563 = arith.mulf %562, %476 : vector<32x32xf32>
    %564 = arith.addf %558, %563 : vector<32x32xf32>
    %cst_229 = arith.constant -6.000000e-01 : f32
    %565 = vector.broadcast %cst_229 : f32 to vector<32x32xf32>
    %566 = arith.subf %201, %565 : vector<32x32xf32>
    %cst_230 = arith.constant 0.833333313 : f32
    %567 = vector.broadcast %cst_230 : f32 to vector<32x32xf32>
    %568 = arith.mulf %566, %567 : vector<32x32xf32>
    %569 = arith.mulf %568, %476 : vector<32x32xf32>
    %cst_231 = arith.constant 1.000000e+00 : f32
    %570 = vector.broadcast %cst_231 : f32 to vector<32x32xf32>
    %571 = arith.subf %570, %201 : vector<32x32xf32>
    %cst_232 = arith.constant 0.833333313 : f32
    %572 = vector.broadcast %cst_232 : f32 to vector<32x32xf32>
    %573 = arith.mulf %571, %572 : vector<32x32xf32>
    %574 = arith.mulf %573, %487 : vector<32x32xf32>
    %575 = arith.addf %569, %574 : vector<32x32xf32>
    %cst_233 = arith.constant -2.000000e-01 : f32
    %576 = vector.broadcast %cst_233 : f32 to vector<32x32xf32>
    %577 = arith.subf %201, %576 : vector<32x32xf32>
    %cst_234 = arith.constant 0.833333313 : f32
    %578 = vector.broadcast %cst_234 : f32 to vector<32x32xf32>
    %579 = arith.mulf %577, %578 : vector<32x32xf32>
    %580 = arith.mulf %579, %487 : vector<32x32xf32>
    %cst_235 = arith.constant 1.400000e+00 : f32
    %581 = vector.broadcast %cst_235 : f32 to vector<32x32xf32>
    %582 = arith.subf %581, %201 : vector<32x32xf32>
    %cst_236 = arith.constant 0.833333313 : f32
    %583 = vector.broadcast %cst_236 : f32 to vector<32x32xf32>
    %584 = arith.mulf %582, %583 : vector<32x32xf32>
    %585 = arith.mulf %584, %498 : vector<32x32xf32>
    %586 = arith.addf %580, %585 : vector<32x32xf32>
    %cst_237 = arith.constant 2.000000e-01 : f32
    %587 = vector.broadcast %cst_237 : f32 to vector<32x32xf32>
    %588 = arith.subf %201, %587 : vector<32x32xf32>
    %cst_238 = arith.constant 0.833333313 : f32
    %589 = vector.broadcast %cst_238 : f32 to vector<32x32xf32>
    %590 = arith.mulf %588, %589 : vector<32x32xf32>
    %591 = arith.mulf %590, %498 : vector<32x32xf32>
    %cst_239 = arith.constant 1.800000e+00 : f32
    %592 = vector.broadcast %cst_239 : f32 to vector<32x32xf32>
    %593 = arith.subf %592, %201 : vector<32x32xf32>
    %cst_240 = arith.constant 0.833333313 : f32
    %594 = vector.broadcast %cst_240 : f32 to vector<32x32xf32>
    %595 = arith.mulf %593, %594 : vector<32x32xf32>
    %596 = arith.mulf %595, %509 : vector<32x32xf32>
    %597 = arith.addf %591, %596 : vector<32x32xf32>
    %cst_241 = arith.constant 6.000000e-01 : f32
    %598 = vector.broadcast %cst_241 : f32 to vector<32x32xf32>
    %599 = arith.subf %201, %598 : vector<32x32xf32>
    %cst_242 = arith.constant 0.833333313 : f32
    %600 = vector.broadcast %cst_242 : f32 to vector<32x32xf32>
    %601 = arith.mulf %599, %600 : vector<32x32xf32>
    %602 = arith.mulf %601, %509 : vector<32x32xf32>
    %cst_243 = arith.constant 2.200000e+00 : f32
    %603 = vector.broadcast %cst_243 : f32 to vector<32x32xf32>
    %604 = arith.subf %603, %201 : vector<32x32xf32>
    %cst_244 = arith.constant 0.833333313 : f32
    %605 = vector.broadcast %cst_244 : f32 to vector<32x32xf32>
    %606 = arith.mulf %604, %605 : vector<32x32xf32>
    %607 = arith.mulf %606, %520 : vector<32x32xf32>
    %608 = arith.addf %602, %607 : vector<32x32xf32>
    %c0_245 = arith.constant 0 : index
    %c0_246 = arith.constant 0 : index
    %609 = vector.load %arg20[%c0_245, %c0_246] : memref<256x16xf32, #tpu.memory_space<vmem>>, vector<256x16xf32>
    %610 = vector.extract_strided_slice %609 {offsets = [0, 0], sizes = [32, 16], strides = [1, 1]} : vector<256x16xf32> to vector<32x16xf32>
    %cst_247 = arith.constant dense<0.000000e+00> : vector<32x16xf32>
    %611 = tpu.matmul %531, %610, %cst_247 {dimension_numbers = #tpu.dot_dimension_numbers<[1], [0], [0], [1], [0, 0, 1, 1], [], []>} : vector<32x32xf32>, vector<32x16xf32>, vector<32x16xf32> -> vector<32x16xf32>
    %612 = arith.addf %223, %611 : vector<32x16xf32>
    %613 = vector.extract_strided_slice %609 {offsets = [32, 0], sizes = [32, 16], strides = [1, 1]} : vector<256x16xf32> to vector<32x16xf32>
    %cst_248 = arith.constant dense<0.000000e+00> : vector<32x16xf32>
    %614 = tpu.matmul %542, %613, %cst_248 {dimension_numbers = #tpu.dot_dimension_numbers<[1], [0], [0], [1], [0, 0, 1, 1], [], []>} : vector<32x32xf32>, vector<32x16xf32>, vector<32x16xf32> -> vector<32x16xf32>
    %615 = arith.addf %612, %614 : vector<32x16xf32>
    %616 = vector.extract_strided_slice %609 {offsets = [64, 0], sizes = [32, 16], strides = [1, 1]} : vector<256x16xf32> to vector<32x16xf32>
    %cst_249 = arith.constant dense<0.000000e+00> : vector<32x16xf32>
    %617 = tpu.matmul %553, %616, %cst_249 {dimension_numbers = #tpu.dot_dimension_numbers<[1], [0], [0], [1], [0, 0, 1, 1], [], []>} : vector<32x32xf32>, vector<32x16xf32>, vector<32x16xf32> -> vector<32x16xf32>
    %618 = arith.addf %615, %617 : vector<32x16xf32>
    %619 = vector.extract_strided_slice %609 {offsets = [96, 0], sizes = [32, 16], strides = [1, 1]} : vector<256x16xf32> to vector<32x16xf32>
    %cst_250 = arith.constant dense<0.000000e+00> : vector<32x16xf32>
    %620 = tpu.matmul %564, %619, %cst_250 {dimension_numbers = #tpu.dot_dimension_numbers<[1], [0], [0], [1], [0, 0, 1, 1], [], []>} : vector<32x32xf32>, vector<32x16xf32>, vector<32x16xf32> -> vector<32x16xf32>
    %621 = arith.addf %618, %620 : vector<32x16xf32>
    %622 = vector.extract_strided_slice %609 {offsets = [128, 0], sizes = [32, 16], strides = [1, 1]} : vector<256x16xf32> to vector<32x16xf32>
    %cst_251 = arith.constant dense<0.000000e+00> : vector<32x16xf32>
    %623 = tpu.matmul %575, %622, %cst_251 {dimension_numbers = #tpu.dot_dimension_numbers<[1], [0], [0], [1], [0, 0, 1, 1], [], []>} : vector<32x32xf32>, vector<32x16xf32>, vector<32x16xf32> -> vector<32x16xf32>
    %624 = arith.addf %621, %623 : vector<32x16xf32>
    %625 = vector.extract_strided_slice %609 {offsets = [160, 0], sizes = [32, 16], strides = [1, 1]} : vector<256x16xf32> to vector<32x16xf32>
    %cst_252 = arith.constant dense<0.000000e+00> : vector<32x16xf32>
    %626 = tpu.matmul %586, %625, %cst_252 {dimension_numbers = #tpu.dot_dimension_numbers<[1], [0], [0], [1], [0, 0, 1, 1], [], []>} : vector<32x32xf32>, vector<32x16xf32>, vector<32x16xf32> -> vector<32x16xf32>
    %627 = arith.addf %624, %626 : vector<32x16xf32>
    %628 = vector.extract_strided_slice %609 {offsets = [192, 0], sizes = [32, 16], strides = [1, 1]} : vector<256x16xf32> to vector<32x16xf32>
    %cst_253 = arith.constant dense<0.000000e+00> : vector<32x16xf32>
    %629 = tpu.matmul %597, %628, %cst_253 {dimension_numbers = #tpu.dot_dimension_numbers<[1], [0], [0], [1], [0, 0, 1, 1], [], []>} : vector<32x32xf32>, vector<32x16xf32>, vector<32x16xf32> -> vector<32x16xf32>
    %630 = arith.addf %627, %629 : vector<32x16xf32>
    %631 = vector.extract_strided_slice %609 {offsets = [224, 0], sizes = [32, 16], strides = [1, 1]} : vector<256x16xf32> to vector<32x16xf32>
    %cst_254 = arith.constant dense<0.000000e+00> : vector<32x16xf32>
    %632 = tpu.matmul %608, %631, %cst_254 {dimension_numbers = #tpu.dot_dimension_numbers<[1], [0], [0], [1], [0, 0, 1, 1], [], []>} : vector<32x32xf32>, vector<32x16xf32>, vector<32x16xf32> -> vector<32x16xf32>
    %633 = arith.addf %630, %632 : vector<32x16xf32>
    %634 = math.tanh %201 : vector<32x32xf32>
    %c0_255 = arith.constant 0 : index
    %c0_256 = arith.constant 0 : index
    %635 = vector.load %arg21[%c0_255, %c0_256] : memref<128x16xf32, #tpu.memory_space<vmem>>, vector<128x16xf32>
    %cst_257 = arith.constant 1.000000e+00 : f32
    %636 = vector.broadcast %cst_257 : f32 to vector<32x32xf32>
    %cst_258 = arith.constant 2.000000e+00 : f32
    %637 = vector.broadcast %cst_258 : f32 to vector<32x32xf32>
    %638 = arith.mulf %637, %634 : vector<32x32xf32>
    %639 = arith.mulf %638, %634 : vector<32x32xf32>
    %640 = arith.subf %639, %636 : vector<32x32xf32>
    %cst_259 = arith.constant 2.000000e+00 : f32
    %641 = vector.broadcast %cst_259 : f32 to vector<32x32xf32>
    %642 = arith.mulf %641, %634 : vector<32x32xf32>
    %643 = arith.mulf %642, %640 : vector<32x32xf32>
    %644 = arith.subf %643, %634 : vector<32x32xf32>
    %645 = vector.extract_strided_slice %635 {offsets = [0, 0], sizes = [32, 16], strides = [1, 1]} : vector<128x16xf32> to vector<32x16xf32>
    %cst_260 = arith.constant dense<0.000000e+00> : vector<32x16xf32>
    %646 = tpu.matmul %636, %645, %cst_260 {dimension_numbers = #tpu.dot_dimension_numbers<[1], [0], [0], [1], [0, 0, 1, 1], [], []>} : vector<32x32xf32>, vector<32x16xf32>, vector<32x16xf32> -> vector<32x16xf32>
    %647 = vector.extract_strided_slice %635 {offsets = [32, 0], sizes = [32, 16], strides = [1, 1]} : vector<128x16xf32> to vector<32x16xf32>
    %cst_261 = arith.constant dense<0.000000e+00> : vector<32x16xf32>
    %648 = tpu.matmul %634, %647, %cst_261 {dimension_numbers = #tpu.dot_dimension_numbers<[1], [0], [0], [1], [0, 0, 1, 1], [], []>} : vector<32x32xf32>, vector<32x16xf32>, vector<32x16xf32> -> vector<32x16xf32>
    %649 = arith.addf %646, %648 : vector<32x16xf32>
    %650 = vector.extract_strided_slice %635 {offsets = [64, 0], sizes = [32, 16], strides = [1, 1]} : vector<128x16xf32> to vector<32x16xf32>
    %cst_262 = arith.constant dense<0.000000e+00> : vector<32x16xf32>
    %651 = tpu.matmul %640, %650, %cst_262 {dimension_numbers = #tpu.dot_dimension_numbers<[1], [0], [0], [1], [0, 0, 1, 1], [], []>} : vector<32x32xf32>, vector<32x16xf32>, vector<32x16xf32> -> vector<32x16xf32>
    %652 = arith.addf %649, %651 : vector<32x16xf32>
    %653 = vector.extract_strided_slice %635 {offsets = [96, 0], sizes = [32, 16], strides = [1, 1]} : vector<128x16xf32> to vector<32x16xf32>
    %cst_263 = arith.constant dense<0.000000e+00> : vector<32x16xf32>
    %654 = tpu.matmul %644, %653, %cst_263 {dimension_numbers = #tpu.dot_dimension_numbers<[1], [0], [0], [1], [0, 0, 1, 1], [], []>} : vector<32x32xf32>, vector<32x16xf32>, vector<32x16xf32> -> vector<32x16xf32>
    %655 = arith.addf %652, %654 : vector<32x16xf32>
    %c0_264 = arith.constant 0 : index
    %c0_265 = arith.constant 0 : index
    %656 = vector.load %arg22[%c0_264, %c0_265] : memref<32x16xf32, #tpu.memory_space<vmem>>, vector<32x16xf32>
    %cst_266 = arith.constant dense<0.000000e+00> : vector<32x16xf32>
    %657 = tpu.matmul %201, %656, %cst_266 {dimension_numbers = #tpu.dot_dimension_numbers<[1], [0], [0], [1], [0, 0, 1, 1], [], []>} : vector<32x32xf32>, vector<32x16xf32>, vector<32x16xf32> -> vector<32x16xf32>
    %c0_267 = arith.constant 0 : index
    %c0_268 = arith.constant 0 : index
    %658 = vector.load %arg23[%c0_267, %c0_268] : memref<1x16xf32, #tpu.memory_space<vmem>>, vector<1x16xf32>
    %659 = vector.broadcast %658 : vector<1x16xf32> to vector<32x16xf32>
    %660 = arith.addf %657, %659 : vector<32x16xf32>
    %661 = vector.extract_strided_slice %215 {offsets = [0, 0], sizes = [32, 1], strides = [1, 1]} : vector<32x3xf32> to vector<32x1xf32>
    %662 = vector.broadcast %661 : vector<32x1xf32> to vector<32x16xf32>
    %663 = arith.mulf %633, %662 : vector<32x16xf32>
    %664 = vector.extract_strided_slice %215 {offsets = [0, 1], sizes = [32, 1], strides = [1, 1]} : vector<32x3xf32> to vector<32x1xf32>
    %665 = vector.broadcast %664 : vector<32x1xf32> to vector<32x16xf32>
    %666 = arith.mulf %655, %665 : vector<32x16xf32>
    %667 = arith.addf %663, %666 : vector<32x16xf32>
    %668 = vector.extract_strided_slice %215 {offsets = [0, 2], sizes = [32, 1], strides = [1, 1]} : vector<32x3xf32> to vector<32x1xf32>
    %669 = vector.broadcast %668 : vector<32x1xf32> to vector<32x16xf32>
    %670 = arith.mulf %660, %669 : vector<32x16xf32>
    %671 = arith.addf %667, %670 : vector<32x16xf32>
    %c0_269 = arith.constant 0 : index
    %c0_270 = arith.constant 0 : index
    %672 = vector.load %arg24[%c0_269, %c0_270] : memref<32x16xf32, #tpu.memory_space<vmem>>, vector<32x16xf32>
    tpu.vector_store %arg24[%c0_269, %c0_270], %671 {strides = array<i32>} : memref<32x16xf32, #tpu.memory_space<vmem>>, vector<32x16xf32>,
    return
  }
}

module attributes {stable_mosaic.version = 11 : i64} {
  func.func @kernel(%arg0: memref<32x8xf32, #tpu.memory_space<vmem>>, %arg1: memref<8x32xf32, #tpu.memory_space<vmem>>, %arg2: memref<32x32xf32, #tpu.memory_space<vmem>>, %arg3: memref<32x96xf32, #tpu.memory_space<vmem>>, %arg4: memref<1x96xf32, #tpu.memory_space<vmem>>, %arg5: memref<32x32xf32, #tpu.memory_space<vmem>>, %arg6: memref<1x32xf32, #tpu.memory_space<vmem>>, %arg7: memref<1x32xf32, #tpu.memory_space<vmem>>, %arg8: memref<1x32xf32, #tpu.memory_space<vmem>>, %arg9: memref<32x64xf32, #tpu.memory_space<vmem>>, %arg10: memref<1x64xf32, #tpu.memory_space<vmem>>, %arg11: memref<64x32xf32, #tpu.memory_space<vmem>>, %arg12: memref<1x32xf32, #tpu.memory_space<vmem>>, %arg13: memref<1x32xf32, #tpu.memory_space<vmem>>, %arg14: memref<1x32xf32, #tpu.memory_space<vmem>>, %arg15: memref<1x32xf32, #tpu.memory_space<vmem>>, %arg16: memref<1x32xf32, #tpu.memory_space<vmem>>, %arg17: memref<32x3xf32, #tpu.memory_space<vmem>>, %arg18: memref<1x3xf32, #tpu.memory_space<vmem>>, %arg19: memref<32x16xf32, #tpu.memory_space<vmem>>, %arg20: memref<256x16xf32, #tpu.memory_space<vmem>>, %arg21: memref<128x16xf32, #tpu.memory_space<vmem>>, %arg22: memref<32x16xf32, #tpu.memory_space<vmem>>, %arg23: memref<1x16xf32, #tpu.memory_space<vmem>>, %arg24: memref<32x16xf32, #tpu.memory_space<vmem>>) attributes {dimension_semantics = [], scalar_prefetch = 0 : i64, scratch_operands = 0 : i64, tpu.core_type = #tpu.core_type<tc>} {
    %c0 = arith.constant 0 : index
    %c0_0 = arith.constant 0 : index
    %0 = vector.load %arg0[%c0, %c0_0] : memref<32x8xf32, #tpu.memory_space<vmem>>, vector<32x8xf32>
    %c0_1 = arith.constant 0 : index
    %c0_2 = arith.constant 0 : index
    %1 = vector.load %arg1[%c0_1, %c0_2] : memref<8x32xf32, #tpu.memory_space<vmem>>, vector<8x32xf32>
    %cst = arith.constant dense<0.000000e+00> : vector<32x32xf32>
    %2 = tpu.matmul %0, %1, %cst {dimension_numbers = #tpu.dot_dimension_numbers<[1], [0], [0], [1], [0, 0, 1, 1], [], []>} : vector<32x8xf32>, vector<8x32xf32>, vector<32x32xf32> -> vector<32x32xf32>
    %c0_3 = arith.constant 0 : index
    %c0_4 = arith.constant 0 : index
    %3 = vector.load %arg2[%c0_3, %c0_4] : memref<32x32xf32, #tpu.memory_space<vmem>>, vector<32x32xf32>
    %4 = arith.addf %2, %3 : vector<32x32xf32>
    %5 = tpu.iota {dimensions = array<i32: 0>} : vector<32x32xi32>
    %6 = tpu.iota {dimensions = array<i32: 1>} : vector<32x32xi32>
    %c2_i32 = arith.constant 2 : i32
    %7 = vector.broadcast %c2_i32 : i32 to vector<32x32xi32>
    %8 = arith.shrsi %5, %7 : vector<32x32xi32>
    %c2_i32_5 = arith.constant 2 : i32
    %9 = vector.broadcast %c2_i32_5 : i32 to vector<32x32xi32>
    %10 = arith.shrsi %6, %9 : vector<32x32xi32>
    %11 = arith.cmpi eq, %8, %10 : vector<32x32xi32>
    %12 = arith.cmpi sle, %6, %5 : vector<32x32xi32>
    %13 = arith.andi %12, %11 : vector<32x32xi1>
    %cst_6 = arith.constant 0.000000e+00 : f32
    %cst_7 = arith.constant -1.000000e+30 : f32
    %14 = vector.broadcast %cst_6 : f32 to vector<32x32xf32>
    %15 = vector.broadcast %cst_7 : f32 to vector<32x32xf32>
    %16 = arith.select %13, %14, %15 : vector<32x32xi1>, vector<32x32xf32>
    %c0_8 = arith.constant 0 : index
    %c0_9 = arith.constant 0 : index
    %17 = vector.load %arg3[%c0_8, %c0_9] : memref<32x96xf32, #tpu.memory_space<vmem>>, vector<32x96xf32>
    %cst_10 = arith.constant dense<0.000000e+00> : vector<32x96xf32>
    %18 = tpu.matmul %4, %17, %cst_10 {dimension_numbers = #tpu.dot_dimension_numbers<[1], [0], [0], [1], [0, 0, 1, 1], [], []>} : vector<32x32xf32>, vector<32x96xf32>, vector<32x96xf32> -> vector<32x96xf32>
    %c0_11 = arith.constant 0 : index
    %c0_12 = arith.constant 0 : index
    %19 = vector.load %arg4[%c0_11, %c0_12] : memref<1x96xf32, #tpu.memory_space<vmem>>, vector<1x96xf32>
    %20 = vector.broadcast %19 : vector<1x96xf32> to vector<32x96xf32>
    %21 = arith.addf %18, %20 : vector<32x96xf32>
    %c0_13 = arith.constant 0 : index
    %c0_14 = arith.constant 0 : index
    %22 = vector.load %arg5[%c0_13, %c0_14] : memref<32x32xf32, #tpu.memory_space<vmem>>, vector<32x32xf32>
    %c0_15 = arith.constant 0 : index
    %c0_16 = arith.constant 0 : index
    %23 = vector.load %arg6[%c0_15, %c0_16] : memref<1x32xf32, #tpu.memory_space<vmem>>, vector<1x32xf32>
    %24 = vector.extract_strided_slice %21 {offsets = [0, 0], sizes = [32, 8], strides = [1, 1]} : vector<32x96xf32> to vector<32x8xf32>
    %25 = vector.extract_strided_slice %21 {offsets = [0, 32], sizes = [32, 8], strides = [1, 1]} : vector<32x96xf32> to vector<32x8xf32>
    %26 = vector.extract_strided_slice %21 {offsets = [0, 64], sizes = [32, 8], strides = [1, 1]} : vector<32x96xf32> to vector<32x8xf32>
    %cst_17 = arith.constant dense<0.000000e+00> : vector<32x32xf32>
    %27 = tpu.matmul %24, %25, %cst_17 {dimension_numbers = #tpu.dot_dimension_numbers<[1], [1], [0], [0], [0, 0, 1, 0], [], []>} : vector<32x8xf32>, vector<32x8xf32>, vector<32x32xf32> -> vector<32x32xf32>
    %cst_18 = arith.constant 0.353553385 : f32
    %28 = vector.broadcast %cst_18 : f32 to vector<32x32xf32>
    %29 = arith.mulf %27, %28 : vector<32x32xf32>
    %30 = arith.addf %29, %16 : vector<32x32xf32>
    %cst_19 = arith.constant dense<0xFF800000> : vector<32xf32>
    %31 = vector.multi_reduction <maximumf>, %30, %cst_19 [1] : vector<32x32xf32> to vector<32xf32>
    %32 = vector.shape_cast %31 : vector<32xf32> to vector<32x1xf32>
    %33 = vector.broadcast %32 : vector<32x1xf32> to vector<32x32xf32>
    %34 = arith.subf %30, %33 : vector<32x32xf32>
    %35 = math.exp %34 : vector<32x32xf32>
    %cst_20 = arith.constant dense<0.000000e+00> : vector<32xf32>
    %36 = vector.multi_reduction <add>, %35, %cst_20 [1] : vector<32x32xf32> to vector<32xf32>
    %37 = vector.shape_cast %36 : vector<32xf32> to vector<32x1xf32>
    %38 = vector.broadcast %37 : vector<32x1xf32> to vector<32x32xf32>
    %39 = arith.divf %35, %38 : vector<32x32xf32>
    %cst_21 = arith.constant dense<0.000000e+00> : vector<32x8xf32>
    %40 = tpu.matmul %39, %26, %cst_21 {dimension_numbers = #tpu.dot_dimension_numbers<[1], [0], [0], [1], [0, 0, 1, 1], [], []>} : vector<32x32xf32>, vector<32x8xf32>, vector<32x8xf32> -> vector<32x8xf32>
    %41 = vector.extract_strided_slice %22 {offsets = [0, 0], sizes = [8, 32], strides = [1, 1]} : vector<32x32xf32> to vector<8x32xf32>
    %cst_22 = arith.constant dense<0.000000e+00> : vector<32x32xf32>
    %42 = tpu.matmul %40, %41, %cst_22 {dimension_numbers = #tpu.dot_dimension_numbers<[1], [0], [0], [1], [0, 0, 1, 1], [], []>} : vector<32x8xf32>, vector<8x32xf32>, vector<32x32xf32> -> vector<32x32xf32>
    %43 = vector.broadcast %23 : vector<1x32xf32> to vector<32x32xf32>
    %44 = arith.addf %43, %42 : vector<32x32xf32>
    %45 = vector.extract_strided_slice %21 {offsets = [0, 8], sizes = [32, 8], strides = [1, 1]} : vector<32x96xf32> to vector<32x8xf32>
    %46 = vector.extract_strided_slice %21 {offsets = [0, 40], sizes = [32, 8], strides = [1, 1]} : vector<32x96xf32> to vector<32x8xf32>
    %47 = vector.extract_strided_slice %21 {offsets = [0, 72], sizes = [32, 8], strides = [1, 1]} : vector<32x96xf32> to vector<32x8xf32>
    %cst_23 = arith.constant dense<0.000000e+00> : vector<32x32xf32>
    %48 = tpu.matmul %45, %46, %cst_23 {dimension_numbers = #tpu.dot_dimension_numbers<[1], [1], [0], [0], [0, 0, 1, 0], [], []>} : vector<32x8xf32>, vector<32x8xf32>, vector<32x32xf32> -> vector<32x32xf32>
    %cst_24 = arith.constant 0.353553385 : f32
    %49 = vector.broadcast %cst_24 : f32 to vector<32x32xf32>
    %50 = arith.mulf %48, %49 : vector<32x32xf32>
    %51 = arith.addf %50, %16 : vector<32x32xf32>
    %cst_25 = arith.constant dense<0xFF800000> : vector<32xf32>
    %52 = vector.multi_reduction <maximumf>, %51, %cst_25 [1] : vector<32x32xf32> to vector<32xf32>
    %53 = vector.shape_cast %52 : vector<32xf32> to vector<32x1xf32>
    %54 = vector.broadcast %53 : vector<32x1xf32> to vector<32x32xf32>
    %55 = arith.subf %51, %54 : vector<32x32xf32>
    %56 = math.exp %55 : vector<32x32xf32>
    %cst_26 = arith.constant dense<0.000000e+00> : vector<32xf32>
    %57 = vector.multi_reduction <add>, %56, %cst_26 [1] : vector<32x32xf32> to vector<32xf32>
    %58 = vector.shape_cast %57 : vector<32xf32> to vector<32x1xf32>
    %59 = vector.broadcast %58 : vector<32x1xf32> to vector<32x32xf32>
    %60 = arith.divf %56, %59 : vector<32x32xf32>
    %cst_27 = arith.constant dense<0.000000e+00> : vector<32x8xf32>
    %61 = tpu.matmul %60, %47, %cst_27 {dimension_numbers = #tpu.dot_dimension_numbers<[1], [0], [0], [1], [0, 0, 1, 1], [], []>} : vector<32x32xf32>, vector<32x8xf32>, vector<32x8xf32> -> vector<32x8xf32>
    %62 = vector.extract_strided_slice %22 {offsets = [8, 0], sizes = [8, 32], strides = [1, 1]} : vector<32x32xf32> to vector<8x32xf32>
    %cst_28 = arith.constant dense<0.000000e+00> : vector<32x32xf32>
    %63 = tpu.matmul %61, %62, %cst_28 {dimension_numbers = #tpu.dot_dimension_numbers<[1], [0], [0], [1], [0, 0, 1, 1], [], []>} : vector<32x8xf32>, vector<8x32xf32>, vector<32x32xf32> -> vector<32x32xf32>
    %64 = arith.addf %44, %63 : vector<32x32xf32>
    %65 = vector.extract_strided_slice %21 {offsets = [0, 16], sizes = [32, 8], strides = [1, 1]} : vector<32x96xf32> to vector<32x8xf32>
    %66 = vector.extract_strided_slice %21 {offsets = [0, 48], sizes = [32, 8], strides = [1, 1]} : vector<32x96xf32> to vector<32x8xf32>
    %67 = vector.extract_strided_slice %21 {offsets = [0, 80], sizes = [32, 8], strides = [1, 1]} : vector<32x96xf32> to vector<32x8xf32>
    %cst_29 = arith.constant dense<0.000000e+00> : vector<32x32xf32>
    %68 = tpu.matmul %65, %66, %cst_29 {dimension_numbers = #tpu.dot_dimension_numbers<[1], [1], [0], [0], [0, 0, 1, 0], [], []>} : vector<32x8xf32>, vector<32x8xf32>, vector<32x32xf32> -> vector<32x32xf32>
    %cst_30 = arith.constant 0.353553385 : f32
    %69 = vector.broadcast %cst_30 : f32 to vector<32x32xf32>
    %70 = arith.mulf %68, %69 : vector<32x32xf32>
    %71 = arith.addf %70, %16 : vector<32x32xf32>
    %cst_31 = arith.constant dense<0xFF800000> : vector<32xf32>
    %72 = vector.multi_reduction <maximumf>, %71, %cst_31 [1] : vector<32x32xf32> to vector<32xf32>
    %73 = vector.shape_cast %72 : vector<32xf32> to vector<32x1xf32>
    %74 = vector.broadcast %73 : vector<32x1xf32> to vector<32x32xf32>
    %75 = arith.subf %71, %74 : vector<32x32xf32>
    %76 = math.exp %75 : vector<32x32xf32>
    %cst_32 = arith.constant dense<0.000000e+00> : vector<32xf32>
    %77 = vector.multi_reduction <add>, %76, %cst_32 [1] : vector<32x32xf32> to vector<32xf32>
    %78 = vector.shape_cast %77 : vector<32xf32> to vector<32x1xf32>
    %79 = vector.broadcast %78 : vector<32x1xf32> to vector<32x32xf32>
    %80 = arith.divf %76, %79 : vector<32x32xf32>
    %cst_33 = arith.constant dense<0.000000e+00> : vector<32x8xf32>
    %81 = tpu.matmul %80, %67, %cst_33 {dimension_numbers = #tpu.dot_dimension_numbers<[1], [0], [0], [1], [0, 0, 1, 1], [], []>} : vector<32x32xf32>, vector<32x8xf32>, vector<32x8xf32> -> vector<32x8xf32>
    %82 = vector.extract_strided_slice %22 {offsets = [16, 0], sizes = [8, 32], strides = [1, 1]} : vector<32x32xf32> to vector<8x32xf32>
    %cst_34 = arith.constant dense<0.000000e+00> : vector<32x32xf32>
    %83 = tpu.matmul %81, %82, %cst_34 {dimension_numbers = #tpu.dot_dimension_numbers<[1], [0], [0], [1], [0, 0, 1, 1], [], []>} : vector<32x8xf32>, vector<8x32xf32>, vector<32x32xf32> -> vector<32x32xf32>
    %84 = arith.addf %64, %83 : vector<32x32xf32>
    %85 = vector.extract_strided_slice %21 {offsets = [0, 24], sizes = [32, 8], strides = [1, 1]} : vector<32x96xf32> to vector<32x8xf32>
    %86 = vector.extract_strided_slice %21 {offsets = [0, 56], sizes = [32, 8], strides = [1, 1]} : vector<32x96xf32> to vector<32x8xf32>
    %87 = vector.extract_strided_slice %21 {offsets = [0, 88], sizes = [32, 8], strides = [1, 1]} : vector<32x96xf32> to vector<32x8xf32>
    %cst_35 = arith.constant dense<0.000000e+00> : vector<32x32xf32>
    %88 = tpu.matmul %85, %86, %cst_35 {dimension_numbers = #tpu.dot_dimension_numbers<[1], [1], [0], [0], [0, 0, 1, 0], [], []>} : vector<32x8xf32>, vector<32x8xf32>, vector<32x32xf32> -> vector<32x32xf32>
    %cst_36 = arith.constant 0.353553385 : f32
    %89 = vector.broadcast %cst_36 : f32 to vector<32x32xf32>
    %90 = arith.mulf %88, %89 : vector<32x32xf32>
    %91 = arith.addf %90, %16 : vector<32x32xf32>
    %cst_37 = arith.constant dense<0xFF800000> : vector<32xf32>
    %92 = vector.multi_reduction <maximumf>, %91, %cst_37 [1] : vector<32x32xf32> to vector<32xf32>
    %93 = vector.shape_cast %92 : vector<32xf32> to vector<32x1xf32>
    %94 = vector.broadcast %93 : vector<32x1xf32> to vector<32x32xf32>
    %95 = arith.subf %91, %94 : vector<32x32xf32>
    %96 = math.exp %95 : vector<32x32xf32>
    %cst_38 = arith.constant dense<0.000000e+00> : vector<32xf32>
    %97 = vector.multi_reduction <add>, %96, %cst_38 [1] : vector<32x32xf32> to vector<32xf32>
    %98 = vector.shape_cast %97 : vector<32xf32> to vector<32x1xf32>
    %99 = vector.broadcast %98 : vector<32x1xf32> to vector<32x32xf32>
    %100 = arith.divf %96, %99 : vector<32x32xf32>
    %cst_39 = arith.constant dense<0.000000e+00> : vector<32x8xf32>
    %101 = tpu.matmul %100, %87, %cst_39 {dimension_numbers = #tpu.dot_dimension_numbers<[1], [0], [0], [1], [0, 0, 1, 1], [], []>} : vector<32x32xf32>, vector<32x8xf32>, vector<32x8xf32> -> vector<32x8xf32>
    %102 = vector.extract_strided_slice %22 {offsets = [24, 0], sizes = [8, 32], strides = [1, 1]} : vector<32x32xf32> to vector<8x32xf32>
    %cst_40 = arith.constant dense<0.000000e+00> : vector<32x32xf32>
    %103 = tpu.matmul %101, %102, %cst_40 {dimension_numbers = #tpu.dot_dimension_numbers<[1], [0], [0], [1], [0, 0, 1, 1], [], []>} : vector<32x8xf32>, vector<8x32xf32>, vector<32x32xf32> -> vector<32x32xf32>
    %104 = arith.addf %84, %103 : vector<32x32xf32>
    %105 = arith.addf %4, %104 : vector<32x32xf32>
    %c0_41 = arith.constant 0 : index
    %c0_42 = arith.constant 0 : index
    %106 = vector.load %arg7[%c0_41, %c0_42] : memref<1x32xf32, #tpu.memory_space<vmem>>, vector<1x32xf32>
    %c0_43 = arith.constant 0 : index
    %c0_44 = arith.constant 0 : index
    %107 = vector.load %arg8[%c0_43, %c0_44] : memref<1x32xf32, #tpu.memory_space<vmem>>, vector<1x32xf32>
    %cst_45 = arith.constant dense<0.000000e+00> : vector<32xf32>
    %108 = vector.multi_reduction <add>, %105, %cst_45 [1] : vector<32x32xf32> to vector<32xf32>
    %109 = vector.shape_cast %108 : vector<32xf32> to vector<32x1xf32>
    %cst_46 = arith.constant 3.200000e+01 : f32
    %110 = vector.broadcast %cst_46 : f32 to vector<32x1xf32>
    %111 = arith.divf %109, %110 : vector<32x1xf32>
    %112 = vector.broadcast %111 : vector<32x1xf32> to vector<32x32xf32>
    %113 = arith.subf %105, %112 : vector<32x32xf32>
    %114 = arith.mulf %113, %113 : vector<32x32xf32>
    %cst_47 = arith.constant dense<0.000000e+00> : vector<32xf32>
    %115 = vector.multi_reduction <add>, %114, %cst_47 [1] : vector<32x32xf32> to vector<32xf32>
    %116 = vector.shape_cast %115 : vector<32xf32> to vector<32x1xf32>
    %cst_48 = arith.constant 3.200000e+01 : f32
    %117 = vector.broadcast %cst_48 : f32 to vector<32x1xf32>
    %118 = arith.divf %116, %117 : vector<32x1xf32>
    %119 = vector.broadcast %111 : vector<32x1xf32> to vector<32x32xf32>
    %120 = arith.subf %105, %119 : vector<32x32xf32>
    %cst_49 = arith.constant 9.99999974E-6 : f32
    %121 = vector.broadcast %cst_49 : f32 to vector<32x1xf32>
    %122 = arith.addf %118, %121 : vector<32x1xf32>
    %123 = math.rsqrt %122 : vector<32x1xf32>
    %124 = vector.broadcast %123 : vector<32x1xf32> to vector<32x32xf32>
    %125 = arith.mulf %120, %124 : vector<32x32xf32>
    %126 = vector.broadcast %106 : vector<1x32xf32> to vector<32x32xf32>
    %127 = arith.mulf %125, %126 : vector<32x32xf32>
    %128 = vector.broadcast %107 : vector<1x32xf32> to vector<32x32xf32>
    %129 = arith.addf %127, %128 : vector<32x32xf32>
    %c0_50 = arith.constant 0 : index
    %c0_51 = arith.constant 0 : index
    %130 = vector.load %arg9[%c0_50, %c0_51] : memref<32x64xf32, #tpu.memory_space<vmem>>, vector<32x64xf32>
    %cst_52 = arith.constant dense<0.000000e+00> : vector<32x64xf32>
    %131 = tpu.matmul %129, %130, %cst_52 {dimension_numbers = #tpu.dot_dimension_numbers<[1], [0], [0], [1], [0, 0, 1, 1], [], []>} : vector<32x32xf32>, vector<32x64xf32>, vector<32x64xf32> -> vector<32x64xf32>
    %c0_53 = arith.constant 0 : index
    %c0_54 = arith.constant 0 : index
    %132 = vector.load %arg10[%c0_53, %c0_54] : memref<1x64xf32, #tpu.memory_space<vmem>>, vector<1x64xf32>
    %133 = vector.broadcast %132 : vector<1x64xf32> to vector<32x64xf32>
    %134 = arith.addf %131, %133 : vector<32x64xf32>
    %cst_55 = arith.constant 5.000000e-01 : f32
    %135 = vector.broadcast %cst_55 : f32 to vector<32x64xf32>
    %136 = arith.mulf %135, %134 : vector<32x64xf32>
    %cst_56 = arith.constant 4.471500e-02 : f32
    %137 = vector.broadcast %cst_56 : f32 to vector<32x64xf32>
    %138 = arith.mulf %137, %134 : vector<32x64xf32>
    %139 = arith.mulf %138, %134 : vector<32x64xf32>
    %140 = arith.mulf %139, %134 : vector<32x64xf32>
    %141 = arith.addf %134, %140 : vector<32x64xf32>
    %cst_57 = arith.constant 0.797884583 : f32
    %142 = vector.broadcast %cst_57 : f32 to vector<32x64xf32>
    %143 = arith.mulf %142, %141 : vector<32x64xf32>
    %144 = math.tanh %143 : vector<32x64xf32>
    %cst_58 = arith.constant 1.000000e+00 : f32
    %145 = vector.broadcast %cst_58 : f32 to vector<32x64xf32>
    %146 = arith.addf %145, %144 : vector<32x64xf32>
    %147 = arith.mulf %136, %146 : vector<32x64xf32>
    %c0_59 = arith.constant 0 : index
    %c0_60 = arith.constant 0 : index
    %148 = vector.load %arg11[%c0_59, %c0_60] : memref<64x32xf32, #tpu.memory_space<vmem>>, vector<64x32xf32>
    %cst_61 = arith.constant dense<0.000000e+00> : vector<32x32xf32>
    %149 = tpu.matmul %147, %148, %cst_61 {dimension_numbers = #tpu.dot_dimension_numbers<[1], [0], [0], [1], [0, 0, 1, 1], [], []>} : vector<32x64xf32>, vector<64x32xf32>, vector<32x32xf32> -> vector<32x32xf32>
    %c0_62 = arith.constant 0 : index
    %c0_63 = arith.constant 0 : index
    %150 = vector.load %arg12[%c0_62, %c0_63] : memref<1x32xf32, #tpu.memory_space<vmem>>, vector<1x32xf32>
    %151 = vector.broadcast %150 : vector<1x32xf32> to vector<32x32xf32>
    %152 = arith.addf %149, %151 : vector<32x32xf32>
    %153 = arith.addf %129, %152 : vector<32x32xf32>
    %c0_64 = arith.constant 0 : index
    %c0_65 = arith.constant 0 : index
    %154 = vector.load %arg13[%c0_64, %c0_65] : memref<1x32xf32, #tpu.memory_space<vmem>>, vector<1x32xf32>
    %c0_66 = arith.constant 0 : index
    %c0_67 = arith.constant 0 : index
    %155 = vector.load %arg14[%c0_66, %c0_67] : memref<1x32xf32, #tpu.memory_space<vmem>>, vector<1x32xf32>
    %cst_68 = arith.constant dense<0.000000e+00> : vector<32xf32>
    %156 = vector.multi_reduction <add>, %153, %cst_68 [1] : vector<32x32xf32> to vector<32xf32>
    %157 = vector.shape_cast %156 : vector<32xf32> to vector<32x1xf32>
    %cst_69 = arith.constant 3.200000e+01 : f32
    %158 = vector.broadcast %cst_69 : f32 to vector<32x1xf32>
    %159 = arith.divf %157, %158 : vector<32x1xf32>
    %160 = vector.broadcast %159 : vector<32x1xf32> to vector<32x32xf32>
    %161 = arith.subf %153, %160 : vector<32x32xf32>
    %162 = arith.mulf %161, %161 : vector<32x32xf32>
    %cst_70 = arith.constant dense<0.000000e+00> : vector<32xf32>
    %163 = vector.multi_reduction <add>, %162, %cst_70 [1] : vector<32x32xf32> to vector<32xf32>
    %164 = vector.shape_cast %163 : vector<32xf32> to vector<32x1xf32>
    %cst_71 = arith.constant 3.200000e+01 : f32
    %165 = vector.broadcast %cst_71 : f32 to vector<32x1xf32>
    %166 = arith.divf %164, %165 : vector<32x1xf32>
    %167 = vector.broadcast %159 : vector<32x1xf32> to vector<32x32xf32>
    %168 = arith.subf %153, %167 : vector<32x32xf32>
    %cst_72 = arith.constant 9.99999974E-6 : f32
    %169 = vector.broadcast %cst_72 : f32 to vector<32x1xf32>
    %170 = arith.addf %166, %169 : vector<32x1xf32>
    %171 = math.rsqrt %170 : vector<32x1xf32>
    %172 = vector.broadcast %171 : vector<32x1xf32> to vector<32x32xf32>
    %173 = arith.mulf %168, %172 : vector<32x32xf32>
    %174 = vector.broadcast %154 : vector<1x32xf32> to vector<32x32xf32>
    %175 = arith.mulf %173, %174 : vector<32x32xf32>
    %176 = vector.broadcast %155 : vector<1x32xf32> to vector<32x32xf32>
    %177 = arith.addf %175, %176 : vector<32x32xf32>
    %c0_73 = arith.constant 0 : index
    %c0_74 = arith.constant 0 : index
    %178 = vector.load %arg15[%c0_73, %c0_74] : memref<1x32xf32, #tpu.memory_space<vmem>>, vector<1x32xf32>
    %c0_75 = arith.constant 0 : index
    %c0_76 = arith.constant 0 : index
    %179 = vector.load %arg16[%c0_75, %c0_76] : memref<1x32xf32, #tpu.memory_space<vmem>>, vector<1x32xf32>
    %cst_77 = arith.constant dense<0.000000e+00> : vector<32xf32>
    %180 = vector.multi_reduction <add>, %177, %cst_77 [1] : vector<32x32xf32> to vector<32xf32>
    %181 = vector.shape_cast %180 : vector<32xf32> to vector<32x1xf32>
    %cst_78 = arith.constant 3.200000e+01 : f32
    %182 = vector.broadcast %cst_78 : f32 to vector<32x1xf32>
    %183 = arith.divf %181, %182 : vector<32x1xf32>
    %184 = vector.broadcast %183 : vector<32x1xf32> to vector<32x32xf32>
    %185 = arith.subf %177, %184 : vector<32x32xf32>
    %186 = arith.mulf %185, %185 : vector<32x32xf32>
    %cst_79 = arith.constant dense<0.000000e+00> : vector<32xf32>
    %187 = vector.multi_reduction <add>, %186, %cst_79 [1] : vector<32x32xf32> to vector<32xf32>
    %188 = vector.shape_cast %187 : vector<32xf32> to vector<32x1xf32>
    %cst_80 = arith.constant 3.200000e+01 : f32
    %189 = vector.broadcast %cst_80 : f32 to vector<32x1xf32>
    %190 = arith.divf %188, %189 : vector<32x1xf32>
    %191 = vector.broadcast %183 : vector<32x1xf32> to vector<32x32xf32>
    %192 = arith.subf %177, %191 : vector<32x32xf32>
    %cst_81 = arith.constant 9.99999974E-6 : f32
    %193 = vector.broadcast %cst_81 : f32 to vector<32x1xf32>
    %194 = arith.addf %190, %193 : vector<32x1xf32>
    %195 = math.rsqrt %194 : vector<32x1xf32>
    %196 = vector.broadcast %195 : vector<32x1xf32> to vector<32x32xf32>
    %197 = arith.mulf %192, %196 : vector<32x32xf32>
    %198 = vector.broadcast %178 : vector<1x32xf32> to vector<32x32xf32>
    %199 = arith.mulf %197, %198 : vector<32x32xf32>
    %200 = vector.broadcast %179 : vector<1x32xf32> to vector<32x32xf32>
    %201 = arith.addf %199, %200 : vector<32x32xf32>
    %c0_82 = arith.constant 0 : index
    %c0_83 = arith.constant 0 : index
    %202 = vector.load %arg17[%c0_82, %c0_83] : memref<32x3xf32, #tpu.memory_space<vmem>>, vector<32x3xf32>
    %cst_84 = arith.constant dense<0.000000e+00> : vector<32x3xf32>
    %203 = tpu.matmul %201, %202, %cst_84 {dimension_numbers = #tpu.dot_dimension_numbers<[1], [0], [0], [1], [0, 0, 1, 1], [], []>} : vector<32x32xf32>, vector<32x3xf32>, vector<32x3xf32> -> vector<32x3xf32>
    %c0_85 = arith.constant 0 : index
    %c0_86 = arith.constant 0 : index
    %204 = vector.load %arg18[%c0_85, %c0_86] : memref<1x3xf32, #tpu.memory_space<vmem>>, vector<1x3xf32>
    %205 = vector.broadcast %204 : vector<1x3xf32> to vector<32x3xf32>
    %206 = arith.addf %203, %205 : vector<32x3xf32>
    %cst_87 = arith.constant dense<0xFF800000> : vector<32xf32>
    %207 = vector.multi_reduction <maximumf>, %206, %cst_87 [1] : vector<32x3xf32> to vector<32xf32>
    %208 = vector.shape_cast %207 : vector<32xf32> to vector<32x1xf32>
    %209 = vector.broadcast %208 : vector<32x1xf32> to vector<32x3xf32>
    %210 = arith.subf %206, %209 : vector<32x3xf32>
    %211 = math.exp %210 : vector<32x3xf32>
    %cst_88 = arith.constant dense<0.000000e+00> : vector<32xf32>
    %212 = vector.multi_reduction <add>, %211, %cst_88 [1] : vector<32x3xf32> to vector<32xf32>
    %213 = vector.shape_cast %212 : vector<32xf32> to vector<32x1xf32>
    %214 = vector.broadcast %213 : vector<32x1xf32> to vector<32x3xf32>
    %215 = arith.divf %211, %214 : vector<32x3xf32>
    %216 = arith.negf %201 : vector<32x32xf32>
    %217 = math.exp %216 : vector<32x32xf32>
    %cst_89 = arith.constant 1.000000e+00 : f32
    %218 = vector.broadcast %cst_89 : f32 to vector<32x32xf32>
    %219 = arith.addf %218, %217 : vector<32x32xf32>
    %220 = arith.divf %218, %219 : vector<32x32xf32>
    %221 = arith.mulf %201, %220 : vector<32x32xf32>
    %c0_90 = arith.constant 0 : index
    %c0_91 = arith.constant 0 : index
    %222 = vector.load %arg19[%c0_90, %c0_91] : memref<32x16xf32, #tpu.memory_space<vmem>>, vector<32x16xf32>
    %cst_92 = arith.constant dense<0.000000e+00> : vector<32x16xf32>
    %223 = tpu.matmul %221, %222, %cst_92 {dimension_numbers = #tpu.dot_dimension_numbers<[1], [0], [0], [1], [0, 0, 1, 1], [], []>} : vector<32x32xf32>, vector<32x16xf32>, vector<32x16xf32> -> vector<32x16xf32>
    %cst_93 = arith.constant -2.200000e+00 : f32
    %224 = vector.broadcast %cst_93 : f32 to vector<32x32xf32>
    %225 = arith.cmpf oge, %201, %224 : vector<32x32xf32>
    %cst_94 = arith.constant -1.800000e+00 : f32
    %226 = vector.broadcast %cst_94 : f32 to vector<32x32xf32>
    %227 = arith.cmpf olt, %201, %226 : vector<32x32xf32>
    %228 = arith.andi %225, %227 : vector<32x32xi1>
    %cst_95 = arith.constant 1.000000e+00 : f32
    %cst_96 = arith.constant 0.000000e+00 : f32
    %229 = vector.broadcast %cst_95 : f32 to vector<32x32xf32>
    %230 = vector.broadcast %cst_96 : f32 to vector<32x32xf32>
    %231 = arith.select %228, %229, %230 : vector<32x32xi1>, vector<32x32xf32>
    %cst_97 = arith.constant -1.800000e+00 : f32
    %232 = vector.broadcast %cst_97 : f32 to vector<32x32xf32>
    %233 = arith.cmpf oge, %201, %232 : vector<32x32xf32>
    %cst_98 = arith.constant -1.400000e+00 : f32
    %234 = vector.broadcast %cst_98 : f32 to vector<32x32xf32>
    %235 = arith.cmpf olt, %201, %234 : vector<32x32xf32>
    %236 = arith.andi %233, %235 : vector<32x32xi1>
    %cst_99 = arith.constant 1.000000e+00 : f32
    %cst_100 = arith.constant 0.000000e+00 : f32
    %237 = vector.broadcast %cst_99 : f32 to vector<32x32xf32>
    %238 = vector.broadcast %cst_100 : f32 to vector<32x32xf32>
    %239 = arith.select %236, %237, %238 : vector<32x32xi1>, vector<32x32xf32>
    %cst_101 = arith.constant -1.400000e+00 : f32
    %240 = vector.broadcast %cst_101 : f32 to vector<32x32xf32>
    %241 = arith.cmpf oge, %201, %240 : vector<32x32xf32>
    %cst_102 = arith.constant -1.000000e+00 : f32
    %242 = vector.broadcast %cst_102 : f32 to vector<32x32xf32>
    %243 = arith.cmpf olt, %201, %242 : vector<32x32xf32>
    %244 = arith.andi %241, %243 : vector<32x32xi1>
    %cst_103 = arith.constant 1.000000e+00 : f32
    %cst_104 = arith.constant 0.000000e+00 : f32
    %245 = vector.broadcast %cst_103 : f32 to vector<32x32xf32>
    %246 = vector.broadcast %cst_104 : f32 to vector<32x32xf32>
    %247 = arith.select %244, %245, %246 : vector<32x32xi1>, vector<32x32xf32>
    %cst_105 = arith.constant -1.000000e+00 : f32
    %248 = vector.broadcast %cst_105 : f32 to vector<32x32xf32>
    %249 = arith.cmpf oge, %201, %248 : vector<32x32xf32>
    %cst_106 = arith.constant -6.000000e-01 : f32
    %250 = vector.broadcast %cst_106 : f32 to vector<32x32xf32>
    %251 = arith.cmpf olt, %201, %250 : vector<32x32xf32>
    %252 = arith.andi %249, %251 : vector<32x32xi1>
    %cst_107 = arith.constant 1.000000e+00 : f32
    %cst_108 = arith.constant 0.000000e+00 : f32
    %253 = vector.broadcast %cst_107 : f32 to vector<32x32xf32>
    %254 = vector.broadcast %cst_108 : f32 to vector<32x32xf32>
    %255 = arith.select %252, %253, %254 : vector<32x32xi1>, vector<32x32xf32>
    %cst_109 = arith.constant -6.000000e-01 : f32
    %256 = vector.broadcast %cst_109 : f32 to vector<32x32xf32>
    %257 = arith.cmpf oge, %201, %256 : vector<32x32xf32>
    %cst_110 = arith.constant -2.000000e-01 : f32
    %258 = vector.broadcast %cst_110 : f32 to vector<32x32xf32>
    %259 = arith.cmpf olt, %201, %258 : vector<32x32xf32>
    %260 = arith.andi %257, %259 : vector<32x32xi1>
    %cst_111 = arith.constant 1.000000e+00 : f32
    %cst_112 = arith.constant 0.000000e+00 : f32
    %261 = vector.broadcast %cst_111 : f32 to vector<32x32xf32>
    %262 = vector.broadcast %cst_112 : f32 to vector<32x32xf32>
    %263 = arith.select %260, %261, %262 : vector<32x32xi1>, vector<32x32xf32>
    %cst_113 = arith.constant -2.000000e-01 : f32
    %264 = vector.broadcast %cst_113 : f32 to vector<32x32xf32>
    %265 = arith.cmpf oge, %201, %264 : vector<32x32xf32>
    %cst_114 = arith.constant 2.000000e-01 : f32
    %266 = vector.broadcast %cst_114 : f32 to vector<32x32xf32>
    %267 = arith.cmpf olt, %201, %266 : vector<32x32xf32>
    %268 = arith.andi %265, %267 : vector<32x32xi1>
    %cst_115 = arith.constant 1.000000e+00 : f32
    %cst_116 = arith.constant 0.000000e+00 : f32
    %269 = vector.broadcast %cst_115 : f32 to vector<32x32xf32>
    %270 = vector.broadcast %cst_116 : f32 to vector<32x32xf32>
    %271 = arith.select %268, %269, %270 : vector<32x32xi1>, vector<32x32xf32>
    %cst_117 = arith.constant 2.000000e-01 : f32
    %272 = vector.broadcast %cst_117 : f32 to vector<32x32xf32>
    %273 = arith.cmpf oge, %201, %272 : vector<32x32xf32>
    %cst_118 = arith.constant 6.000000e-01 : f32
    %274 = vector.broadcast %cst_118 : f32 to vector<32x32xf32>
    %275 = arith.cmpf olt, %201, %274 : vector<32x32xf32>
    %276 = arith.andi %273, %275 : vector<32x32xi1>
    %cst_119 = arith.constant 1.000000e+00 : f32
    %cst_120 = arith.constant 0.000000e+00 : f32
    %277 = vector.broadcast %cst_119 : f32 to vector<32x32xf32>
    %278 = vector.broadcast %cst_120 : f32 to vector<32x32xf32>
    %279 = arith.select %276, %277, %278 : vector<32x32xi1>, vector<32x32xf32>
    %cst_121 = arith.constant 6.000000e-01 : f32
    %280 = vector.broadcast %cst_121 : f32 to vector<32x32xf32>
    %281 = arith.cmpf oge, %201, %280 : vector<32x32xf32>
    %cst_122 = arith.constant 1.000000e+00 : f32
    %282 = vector.broadcast %cst_122 : f32 to vector<32x32xf32>
    %283 = arith.cmpf olt, %201, %282 : vector<32x32xf32>
    %284 = arith.andi %281, %283 : vector<32x32xi1>
    %cst_123 = arith.constant 1.000000e+00 : f32
    %cst_124 = arith.constant 0.000000e+00 : f32
    %285 = vector.broadcast %cst_123 : f32 to vector<32x32xf32>
    %286 = vector.broadcast %cst_124 : f32 to vector<32x32xf32>
    %287 = arith.select %284, %285, %286 : vector<32x32xi1>, vector<32x32xf32>
    %cst_125 = arith.constant 1.000000e+00 : f32
    %288 = vector.broadcast %cst_125 : f32 to vector<32x32xf32>
    %289 = arith.cmpf oge, %201, %288 : vector<32x32xf32>
    %cst_126 = arith.constant 1.400000e+00 : f32
    %290 = vector.broadcast %cst_126 : f32 to vector<32x32xf32>
    %291 = arith.cmpf olt, %201, %290 : vector<32x32xf32>
    %292 = arith.andi %289, %291 : vector<32x32xi1>
    %cst_127 = arith.constant 1.000000e+00 : f32
    %cst_128 = arith.constant 0.000000e+00 : f32
    %293 = vector.broadcast %cst_127 : f32 to vector<32x32xf32>
    %294 = vector.broadcast %cst_128 : f32 to vector<32x32xf32>
    %295 = arith.select %292, %293, %294 : vector<32x32xi1>, vector<32x32xf32>
    %cst_129 = arith.constant 1.400000e+00 : f32
    %296 = vector.broadcast %cst_129 : f32 to vector<32x32xf32>
    %297 = arith.cmpf oge, %201, %296 : vector<32x32xf32>
    %cst_130 = arith.constant 1.800000e+00 : f32
    %298 = vector.broadcast %cst_130 : f32 to vector<32x32xf32>
    %299 = arith.cmpf olt, %201, %298 : vector<32x32xf32>
    %300 = arith.andi %297, %299 : vector<32x32xi1>
    %cst_131 = arith.constant 1.000000e+00 : f32
    %cst_132 = arith.constant 0.000000e+00 : f32
    %301 = vector.broadcast %cst_131 : f32 to vector<32x32xf32>
    %302 = vector.broadcast %cst_132 : f32 to vector<32x32xf32>
    %303 = arith.select %300, %301, %302 : vector<32x32xi1>, vector<32x32xf32>
    %cst_133 = arith.constant 1.800000e+00 : f32
    %304 = vector.broadcast %cst_133 : f32 to vector<32x32xf32>
    %305 = arith.cmpf oge, %201, %304 : vector<32x32xf32>
    %cst_134 = arith.constant 2.200000e+00 : f32
    %306 = vector.broadcast %cst_134 : f32 to vector<32x32xf32>
    %307 = arith.cmpf olt, %201, %306 : vector<32x32xf32>
    %308 = arith.andi %305, %307 : vector<32x32xi1>
    %cst_135 = arith.constant 1.000000e+00 : f32
    %cst_136 = arith.constant 0.000000e+00 : f32
    %309 = vector.broadcast %cst_135 : f32 to vector<32x32xf32>
    %310 = vector.broadcast %cst_136 : f32 to vector<32x32xf32>
    %311 = arith.select %308, %309, %310 : vector<32x32xi1>, vector<32x32xf32>
    %cst_137 = arith.constant -2.200000e+00 : f32
    %312 = vector.broadcast %cst_137 : f32 to vector<32x32xf32>
    %313 = arith.subf %201, %312 : vector<32x32xf32>
    %cst_138 = arith.constant 2.500000e+00 : f32
    %314 = vector.broadcast %cst_138 : f32 to vector<32x32xf32>
    %315 = arith.mulf %313, %314 : vector<32x32xf32>
    %316 = arith.mulf %315, %231 : vector<32x32xf32>
    %cst_139 = arith.constant -1.400000e+00 : f32
    %317 = vector.broadcast %cst_139 : f32 to vector<32x32xf32>
    %318 = arith.subf %317, %201 : vector<32x32xf32>
    %cst_140 = arith.constant 2.500000e+00 : f32
    %319 = vector.broadcast %cst_140 : f32 to vector<32x32xf32>
    %320 = arith.mulf %318, %319 : vector<32x32xf32>
    %321 = arith.mulf %320, %239 : vector<32x32xf32>
    %322 = arith.addf %316, %321 : vector<32x32xf32>
    %cst_141 = arith.constant -1.800000e+00 : f32
    %323 = vector.broadcast %cst_141 : f32 to vector<32x32xf32>
    %324 = arith.subf %201, %323 : vector<32x32xf32>
    %cst_142 = arith.constant 2.500000e+00 : f32
    %325 = vector.broadcast %cst_142 : f32 to vector<32x32xf32>
    %326 = arith.mulf %324, %325 : vector<32x32xf32>
    %327 = arith.mulf %326, %239 : vector<32x32xf32>
    %cst_143 = arith.constant -1.000000e+00 : f32
    %328 = vector.broadcast %cst_143 : f32 to vector<32x32xf32>
    %329 = arith.subf %328, %201 : vector<32x32xf32>
    %cst_144 = arith.constant 2.500000e+00 : f32
    %330 = vector.broadcast %cst_144 : f32 to vector<32x32xf32>
    %331 = arith.mulf %329, %330 : vector<32x32xf32>
    %332 = arith.mulf %331, %247 : vector<32x32xf32>
    %333 = arith.addf %327, %332 : vector<32x32xf32>
    %cst_145 = arith.constant -1.400000e+00 : f32
    %334 = vector.broadcast %cst_145 : f32 to vector<32x32xf32>
    %335 = arith.subf %201, %334 : vector<32x32xf32>
    %cst_146 = arith.constant 2.500000e+00 : f32
    %336 = vector.broadcast %cst_146 : f32 to vector<32x32xf32>
    %337 = arith.mulf %335, %336 : vector<32x32xf32>
    %338 = arith.mulf %337, %247 : vector<32x32xf32>
    %cst_147 = arith.constant -6.000000e-01 : f32
    %339 = vector.broadcast %cst_147 : f32 to vector<32x32xf32>
    %340 = arith.subf %339, %201 : vector<32x32xf32>
    %cst_148 = arith.constant 2.500000e+00 : f32
    %341 = vector.broadcast %cst_148 : f32 to vector<32x32xf32>
    %342 = arith.mulf %340, %341 : vector<32x32xf32>
    %343 = arith.mulf %342, %255 : vector<32x32xf32>
    %344 = arith.addf %338, %343 : vector<32x32xf32>
    %cst_149 = arith.constant -1.000000e+00 : f32
    %345 = vector.broadcast %cst_149 : f32 to vector<32x32xf32>
    %346 = arith.subf %201, %345 : vector<32x32xf32>
    %cst_150 = arith.constant 2.500000e+00 : f32
    %347 = vector.broadcast %cst_150 : f32 to vector<32x32xf32>
    %348 = arith.mulf %346, %347 : vector<32x32xf32>
    %349 = arith.mulf %348, %255 : vector<32x32xf32>
    %cst_151 = arith.constant -2.000000e-01 : f32
    %350 = vector.broadcast %cst_151 : f32 to vector<32x32xf32>
    %351 = arith.subf %350, %201 : vector<32x32xf32>
    %cst_152 = arith.constant 2.500000e+00 : f32
    %352 = vector.broadcast %cst_152 : f32 to vector<32x32xf32>
    %353 = arith.mulf %351, %352 : vector<32x32xf32>
    %354 = arith.mulf %353, %263 : vector<32x32xf32>
    %355 = arith.addf %349, %354 : vector<32x32xf32>
    %cst_153 = arith.constant -6.000000e-01 : f32
    %356 = vector.broadcast %cst_153 : f32 to vector<32x32xf32>
    %357 = arith.subf %201, %356 : vector<32x32xf32>
    %cst_154 = arith.constant 2.500000e+00 : f32
    %358 = vector.broadcast %cst_154 : f32 to vector<32x32xf32>
    %359 = arith.mulf %357, %358 : vector<32x32xf32>
    %360 = arith.mulf %359, %263 : vector<32x32xf32>
    %cst_155 = arith.constant 2.000000e-01 : f32
    %361 = vector.broadcast %cst_155 : f32 to vector<32x32xf32>
    %362 = arith.subf %361, %201 : vector<32x32xf32>
    %cst_156 = arith.constant 2.500000e+00 : f32
    %363 = vector.broadcast %cst_156 : f32 to vector<32x32xf32>
    %364 = arith.mulf %362, %363 : vector<32x32xf32>
    %365 = arith.mulf %364, %271 : vector<32x32xf32>
    %366 = arith.addf %360, %365 : vector<32x32xf32>
    %cst_157 = arith.constant -2.000000e-01 : f32
    %367 = vector.broadcast %cst_157 : f32 to vector<32x32xf32>
    %368 = arith.subf %201, %367 : vector<32x32xf32>
    %cst_158 = arith.constant 2.500000e+00 : f32
    %369 = vector.broadcast %cst_158 : f32 to vector<32x32xf32>
    %370 = arith.mulf %368, %369 : vector<32x32xf32>
    %371 = arith.mulf %370, %271 : vector<32x32xf32>
    %cst_159 = arith.constant 6.000000e-01 : f32
    %372 = vector.broadcast %cst_159 : f32 to vector<32x32xf32>
    %373 = arith.subf %372, %201 : vector<32x32xf32>
    %cst_160 = arith.constant 2.500000e+00 : f32
    %374 = vector.broadcast %cst_160 : f32 to vector<32x32xf32>
    %375 = arith.mulf %373, %374 : vector<32x32xf32>
    %376 = arith.mulf %375, %279 : vector<32x32xf32>
    %377 = arith.addf %371, %376 : vector<32x32xf32>
    %cst_161 = arith.constant 2.000000e-01 : f32
    %378 = vector.broadcast %cst_161 : f32 to vector<32x32xf32>
    %379 = arith.subf %201, %378 : vector<32x32xf32>
    %cst_162 = arith.constant 2.500000e+00 : f32
    %380 = vector.broadcast %cst_162 : f32 to vector<32x32xf32>
    %381 = arith.mulf %379, %380 : vector<32x32xf32>
    %382 = arith.mulf %381, %279 : vector<32x32xf32>
    %cst_163 = arith.constant 1.000000e+00 : f32
    %383 = vector.broadcast %cst_163 : f32 to vector<32x32xf32>
    %384 = arith.subf %383, %201 : vector<32x32xf32>
    %cst_164 = arith.constant 2.500000e+00 : f32
    %385 = vector.broadcast %cst_164 : f32 to vector<32x32xf32>
    %386 = arith.mulf %384, %385 : vector<32x32xf32>
    %387 = arith.mulf %386, %287 : vector<32x32xf32>
    %388 = arith.addf %382, %387 : vector<32x32xf32>
    %cst_165 = arith.constant 6.000000e-01 : f32
    %389 = vector.broadcast %cst_165 : f32 to vector<32x32xf32>
    %390 = arith.subf %201, %389 : vector<32x32xf32>
    %cst_166 = arith.constant 2.500000e+00 : f32
    %391 = vector.broadcast %cst_166 : f32 to vector<32x32xf32>
    %392 = arith.mulf %390, %391 : vector<32x32xf32>
    %393 = arith.mulf %392, %287 : vector<32x32xf32>
    %cst_167 = arith.constant 1.400000e+00 : f32
    %394 = vector.broadcast %cst_167 : f32 to vector<32x32xf32>
    %395 = arith.subf %394, %201 : vector<32x32xf32>
    %cst_168 = arith.constant 2.500000e+00 : f32
    %396 = vector.broadcast %cst_168 : f32 to vector<32x32xf32>
    %397 = arith.mulf %395, %396 : vector<32x32xf32>
    %398 = arith.mulf %397, %295 : vector<32x32xf32>
    %399 = arith.addf %393, %398 : vector<32x32xf32>
    %cst_169 = arith.constant 1.000000e+00 : f32
    %400 = vector.broadcast %cst_169 : f32 to vector<32x32xf32>
    %401 = arith.subf %201, %400 : vector<32x32xf32>
    %cst_170 = arith.constant 2.500000e+00 : f32
    %402 = vector.broadcast %cst_170 : f32 to vector<32x32xf32>
    %403 = arith.mulf %401, %402 : vector<32x32xf32>
    %404 = arith.mulf %403, %295 : vector<32x32xf32>
    %cst_171 = arith.constant 1.800000e+00 : f32
    %405 = vector.broadcast %cst_171 : f32 to vector<32x32xf32>
    %406 = arith.subf %405, %201 : vector<32x32xf32>
    %cst_172 = arith.constant 2.500000e+00 : f32
    %407 = vector.broadcast %cst_172 : f32 to vector<32x32xf32>
    %408 = arith.mulf %406, %407 : vector<32x32xf32>
    %409 = arith.mulf %408, %303 : vector<32x32xf32>
    %410 = arith.addf %404, %409 : vector<32x32xf32>
    %cst_173 = arith.constant 1.400000e+00 : f32
    %411 = vector.broadcast %cst_173 : f32 to vector<32x32xf32>
    %412 = arith.subf %201, %411 : vector<32x32xf32>
    %cst_174 = arith.constant 2.500000e+00 : f32
    %413 = vector.broadcast %cst_174 : f32 to vector<32x32xf32>
    %414 = arith.mulf %412, %413 : vector<32x32xf32>
    %415 = arith.mulf %414, %303 : vector<32x32xf32>
    %cst_175 = arith.constant 2.200000e+00 : f32
    %416 = vector.broadcast %cst_175 : f32 to vector<32x32xf32>
    %417 = arith.subf %416, %201 : vector<32x32xf32>
    %cst_176 = arith.constant 2.500000e+00 : f32
    %418 = vector.broadcast %cst_176 : f32 to vector<32x32xf32>
    %419 = arith.mulf %417, %418 : vector<32x32xf32>
    %420 = arith.mulf %419, %311 : vector<32x32xf32>
    %421 = arith.addf %415, %420 : vector<32x32xf32>
    %cst_177 = arith.constant -2.200000e+00 : f32
    %422 = vector.broadcast %cst_177 : f32 to vector<32x32xf32>
    %423 = arith.subf %201, %422 : vector<32x32xf32>
    %cst_178 = arith.constant 1.250000e+00 : f32
    %424 = vector.broadcast %cst_178 : f32 to vector<32x32xf32>
    %425 = arith.mulf %423, %424 : vector<32x32xf32>
    %426 = arith.mulf %425, %322 : vector<32x32xf32>
    %cst_179 = arith.constant -1.000000e+00 : f32
    %427 = vector.broadcast %cst_179 : f32 to vector<32x32xf32>
    %428 = arith.subf %427, %201 : vector<32x32xf32>
    %cst_180 = arith.constant 1.250000e+00 : f32
    %429 = vector.broadcast %cst_180 : f32 to vector<32x32xf32>
    %430 = arith.mulf %428, %429 : vector<32x32xf32>
    %431 = arith.mulf %430, %333 : vector<32x32xf32>
    %432 = arith.addf %426, %431 : vector<32x32xf32>
    %cst_181 = arith.constant -1.800000e+00 : f32
    %433 = vector.broadcast %cst_181 : f32 to vector<32x32xf32>
    %434 = arith.subf %201, %433 : vector<32x32xf32>
    %cst_182 = arith.constant 1.250000e+00 : f32
    %435 = vector.broadcast %cst_182 : f32 to vector<32x32xf32>
    %436 = arith.mulf %434, %435 : vector<32x32xf32>
    %437 = arith.mulf %436, %333 : vector<32x32xf32>
    %cst_183 = arith.constant -6.000000e-01 : f32
    %438 = vector.broadcast %cst_183 : f32 to vector<32x32xf32>
    %439 = arith.subf %438, %201 : vector<32x32xf32>
    %cst_184 = arith.constant 1.250000e+00 : f32
    %440 = vector.broadcast %cst_184 : f32 to vector<32x32xf32>
    %441 = arith.mulf %439, %440 : vector<32x32xf32>
    %442 = arith.mulf %441, %344 : vector<32x32xf32>
    %443 = arith.addf %437, %442 : vector<32x32xf32>
    %cst_185 = arith.constant -1.400000e+00 : f32
    %444 = vector.broadcast %cst_185 : f32 to vector<32x32xf32>
    %445 = arith.subf %201, %444 : vector<32x32xf32>
    %cst_186 = arith.constant 1.250000e+00 : f32
    %446 = vector.broadcast %cst_186 : f32 to vector<32x32xf32>
    %447 = arith.mulf %445, %446 : vector<32x32xf32>
    %448 = arith.mulf %447, %344 : vector<32x32xf32>
    %cst_187 = arith.constant -2.000000e-01 : f32
    %449 = vector.broadcast %cst_187 : f32 to vector<32x32xf32>
    %450 = arith.subf %449, %201 : vector<32x32xf32>
    %cst_188 = arith.constant 1.250000e+00 : f32
    %451 = vector.broadcast %cst_188 : f32 to vector<32x32xf32>
    %452 = arith.mulf %450, %451 : vector<32x32xf32>
    %453 = arith.mulf %452, %355 : vector<32x32xf32>
    %454 = arith.addf %448, %453 : vector<32x32xf32>
    %cst_189 = arith.constant -1.000000e+00 : f32
    %455 = vector.broadcast %cst_189 : f32 to vector<32x32xf32>
    %456 = arith.subf %201, %455 : vector<32x32xf32>
    %cst_190 = arith.constant 1.250000e+00 : f32
    %457 = vector.broadcast %cst_190 : f32 to vector<32x32xf32>
    %458 = arith.mulf %456, %457 : vector<32x32xf32>
    %459 = arith.mulf %458, %355 : vector<32x32xf32>
    %cst_191 = arith.constant 2.000000e-01 : f32
    %460 = vector.broadcast %cst_191 : f32 to vector<32x32xf32>
    %461 = arith.subf %460, %201 : vector<32x32xf32>
    %cst_192 = arith.constant 1.250000e+00 : f32
    %462 = vector.broadcast %cst_192 : f32 to vector<32x32xf32>
    %463 = arith.mulf %461, %462 : vector<32x32xf32>
    %464 = arith.mulf %463, %366 : vector<32x32xf32>
    %465 = arith.addf %459, %464 : vector<32x32xf32>
    %cst_193 = arith.constant -6.000000e-01 : f32
    %466 = vector.broadcast %cst_193 : f32 to vector<32x32xf32>
    %467 = arith.subf %201, %466 : vector<32x32xf32>
    %cst_194 = arith.constant 1.250000e+00 : f32
    %468 = vector.broadcast %cst_194 : f32 to vector<32x32xf32>
    %469 = arith.mulf %467, %468 : vector<32x32xf32>
    %470 = arith.mulf %469, %366 : vector<32x32xf32>
    %cst_195 = arith.constant 6.000000e-01 : f32
    %471 = vector.broadcast %cst_195 : f32 to vector<32x32xf32>
    %472 = arith.subf %471, %201 : vector<32x32xf32>
    %cst_196 = arith.constant 1.250000e+00 : f32
    %473 = vector.broadcast %cst_196 : f32 to vector<32x32xf32>
    %474 = arith.mulf %472, %473 : vector<32x32xf32>
    %475 = arith.mulf %474, %377 : vector<32x32xf32>
    %476 = arith.addf %470, %475 : vector<32x32xf32>
    %cst_197 = arith.constant -2.000000e-01 : f32
    %477 = vector.broadcast %cst_197 : f32 to vector<32x32xf32>
    %478 = arith.subf %201, %477 : vector<32x32xf32>
    %cst_198 = arith.constant 1.250000e+00 : f32
    %479 = vector.broadcast %cst_198 : f32 to vector<32x32xf32>
    %480 = arith.mulf %478, %479 : vector<32x32xf32>
    %481 = arith.mulf %480, %377 : vector<32x32xf32>
    %cst_199 = arith.constant 1.000000e+00 : f32
    %482 = vector.broadcast %cst_199 : f32 to vector<32x32xf32>
    %483 = arith.subf %482, %201 : vector<32x32xf32>
    %cst_200 = arith.constant 1.250000e+00 : f32
    %484 = vector.broadcast %cst_200 : f32 to vector<32x32xf32>
    %485 = arith.mulf %483, %484 : vector<32x32xf32>
    %486 = arith.mulf %485, %388 : vector<32x32xf32>
    %487 = arith.addf %481, %486 : vector<32x32xf32>
    %cst_201 = arith.constant 2.000000e-01 : f32
    %488 = vector.broadcast %cst_201 : f32 to vector<32x32xf32>
    %489 = arith.subf %201, %488 : vector<32x32xf32>
    %cst_202 = arith.constant 1.250000e+00 : f32
    %490 = vector.broadcast %cst_202 : f32 to vector<32x32xf32>
    %491 = arith.mulf %489, %490 : vector<32x32xf32>
    %492 = arith.mulf %491, %388 : vector<32x32xf32>
    %cst_203 = arith.constant 1.400000e+00 : f32
    %493 = vector.broadcast %cst_203 : f32 to vector<32x32xf32>
    %494 = arith.subf %493, %201 : vector<32x32xf32>
    %cst_204 = arith.constant 1.250000e+00 : f32
    %495 = vector.broadcast %cst_204 : f32 to vector<32x32xf32>
    %496 = arith.mulf %494, %495 : vector<32x32xf32>
    %497 = arith.mulf %496, %399 : vector<32x32xf32>
    %498 = arith.addf %492, %497 : vector<32x32xf32>
    %cst_205 = arith.constant 6.000000e-01 : f32
    %499 = vector.broadcast %cst_205 : f32 to vector<32x32xf32>
    %500 = arith.subf %201, %499 : vector<32x32xf32>
    %cst_206 = arith.constant 1.250000e+00 : f32
    %501 = vector.broadcast %cst_206 : f32 to vector<32x32xf32>
    %502 = arith.mulf %500, %501 : vector<32x32xf32>
    %503 = arith.mulf %502, %399 : vector<32x32xf32>
    %cst_207 = arith.constant 1.800000e+00 : f32
    %504 = vector.broadcast %cst_207 : f32 to vector<32x32xf32>
    %505 = arith.subf %504, %201 : vector<32x32xf32>
    %cst_208 = arith.constant 1.250000e+00 : f32
    %506 = vector.broadcast %cst_208 : f32 to vector<32x32xf32>
    %507 = arith.mulf %505, %506 : vector<32x32xf32>
    %508 = arith.mulf %507, %410 : vector<32x32xf32>
    %509 = arith.addf %503, %508 : vector<32x32xf32>
    %cst_209 = arith.constant 1.000000e+00 : f32
    %510 = vector.broadcast %cst_209 : f32 to vector<32x32xf32>
    %511 = arith.subf %201, %510 : vector<32x32xf32>
    %cst_210 = arith.constant 1.250000e+00 : f32
    %512 = vector.broadcast %cst_210 : f32 to vector<32x32xf32>
    %513 = arith.mulf %511, %512 : vector<32x32xf32>
    %514 = arith.mulf %513, %410 : vector<32x32xf32>
    %cst_211 = arith.constant 2.200000e+00 : f32
    %515 = vector.broadcast %cst_211 : f32 to vector<32x32xf32>
    %516 = arith.subf %515, %201 : vector<32x32xf32>
    %cst_212 = arith.constant 1.250000e+00 : f32
    %517 = vector.broadcast %cst_212 : f32 to vector<32x32xf32>
    %518 = arith.mulf %516, %517 : vector<32x32xf32>
    %519 = arith.mulf %518, %421 : vector<32x32xf32>
    %520 = arith.addf %514, %519 : vector<32x32xf32>
    %cst_213 = arith.constant -2.200000e+00 : f32
    %521 = vector.broadcast %cst_213 : f32 to vector<32x32xf32>
    %522 = arith.subf %201, %521 : vector<32x32xf32>
    %cst_214 = arith.constant 0.833333313 : f32
    %523 = vector.broadcast %cst_214 : f32 to vector<32x32xf32>
    %524 = arith.mulf %522, %523 : vector<32x32xf32>
    %525 = arith.mulf %524, %432 : vector<32x32xf32>
    %cst_215 = arith.constant -6.000000e-01 : f32
    %526 = vector.broadcast %cst_215 : f32 to vector<32x32xf32>
    %527 = arith.subf %526, %201 : vector<32x32xf32>
    %cst_216 = arith.constant 0.833333313 : f32
    %528 = vector.broadcast %cst_216 : f32 to vector<32x32xf32>
    %529 = arith.mulf %527, %528 : vector<32x32xf32>
    %530 = arith.mulf %529, %443 : vector<32x32xf32>
    %531 = arith.addf %525, %530 : vector<32x32xf32>
    %cst_217 = arith.constant -1.800000e+00 : f32
    %532 = vector.broadcast %cst_217 : f32 to vector<32x32xf32>
    %533 = arith.subf %201, %532 : vector<32x32xf32>
    %cst_218 = arith.constant 0.833333313 : f32
    %534 = vector.broadcast %cst_218 : f32 to vector<32x32xf32>
    %535 = arith.mulf %533, %534 : vector<32x32xf32>
    %536 = arith.mulf %535, %443 : vector<32x32xf32>
    %cst_219 = arith.constant -2.000000e-01 : f32
    %537 = vector.broadcast %cst_219 : f32 to vector<32x32xf32>
    %538 = arith.subf %537, %201 : vector<32x32xf32>
    %cst_220 = arith.constant 0.833333313 : f32
    %539 = vector.broadcast %cst_220 : f32 to vector<32x32xf32>
    %540 = arith.mulf %538, %539 : vector<32x32xf32>
    %541 = arith.mulf %540, %454 : vector<32x32xf32>
    %542 = arith.addf %536, %541 : vector<32x32xf32>
    %cst_221 = arith.constant -1.400000e+00 : f32
    %543 = vector.broadcast %cst_221 : f32 to vector<32x32xf32>
    %544 = arith.subf %201, %543 : vector<32x32xf32>
    %cst_222 = arith.constant 0.833333313 : f32
    %545 = vector.broadcast %cst_222 : f32 to vector<32x32xf32>
    %546 = arith.mulf %544, %545 : vector<32x32xf32>
    %547 = arith.mulf %546, %454 : vector<32x32xf32>
    %cst_223 = arith.constant 2.000000e-01 : f32
    %548 = vector.broadcast %cst_223 : f32 to vector<32x32xf32>
    %549 = arith.subf %548, %201 : vector<32x32xf32>
    %cst_224 = arith.constant 0.833333313 : f32
    %550 = vector.broadcast %cst_224 : f32 to vector<32x32xf32>
    %551 = arith.mulf %549, %550 : vector<32x32xf32>
    %552 = arith.mulf %551, %465 : vector<32x32xf32>
    %553 = arith.addf %547, %552 : vector<32x32xf32>
    %cst_225 = arith.constant -1.000000e+00 : f32
    %554 = vector.broadcast %cst_225 : f32 to vector<32x32xf32>
    %555 = arith.subf %201, %554 : vector<32x32xf32>
    %cst_226 = arith.constant 0.833333313 : f32
    %556 = vector.broadcast %cst_226 : f32 to vector<32x32xf32>
    %557 = arith.mulf %555, %556 : vector<32x32xf32>
    %558 = arith.mulf %557, %465 : vector<32x32xf32>
    %cst_227 = arith.constant 6.000000e-01 : f32
    %559 = vector.broadcast %cst_227 : f32 to vector<32x32xf32>
    %560 = arith.subf %559, %201 : vector<32x32xf32>
    %cst_228 = arith.constant 0.833333313 : f32
    %561 = vector.broadcast %cst_228 : f32 to vector<32x32xf32>
    %562 = arith.mulf %560, %561 : vector<32x32xf32>
    %563 = arith.mulf %562, %476 : vector<32x32xf32>
    %564 = arith.addf %558, %563 : vector<32x32xf32>
    %cst_229 = arith.constant -6.000000e-01 : f32
    %565 = vector.broadcast %cst_229 : f32 to vector<32x32xf32>
    %566 = arith.subf %201, %565 : vector<32x32xf32>
    %cst_230 = arith.constant 0.833333313 : f32
    %567 = vector.broadcast %cst_230 : f32 to vector<32x32xf32>
    %568 = arith.mulf %566, %567 : vector<32x32xf32>
    %569 = arith.mulf %568, %476 : vector<32x32xf32>
    %cst_231 = arith.constant 1.000000e+00 : f32
    %570 = vector.broadcast %cst_231 : f32 to vector<32x32xf32>
    %571 = arith.subf %570, %201 : vector<32x32xf32>
    %cst_232 = arith.constant 0.833333313 : f32
    %572 = vector.broadcast %cst_232 : f32 to vector<32x32xf32>
    %573 = arith.mulf %571, %572 : vector<32x32xf32>
    %574 = arith.mulf %573, %487 : vector<32x32xf32>
    %575 = arith.addf %569, %574 : vector<32x32xf32>
    %cst_233 = arith.constant -2.000000e-01 : f32
    %576 = vector.broadcast %cst_233 : f32 to vector<32x32xf32>
    %577 = arith.subf %201, %576 : vector<32x32xf32>
    %cst_234 = arith.constant 0.833333313 : f32
    %578 = vector.broadcast %cst_234 : f32 to vector<32x32xf32>
    %579 = arith.mulf %577, %578 : vector<32x32xf32>
    %580 = arith.mulf %579, %487 : vector<32x32xf32>
    %cst_235 = arith.constant 1.400000e+00 : f32
    %581 = vector.broadcast %cst_235 : f32 to vector<32x32xf32>
    %582 = arith.subf %581, %201 : vector<32x32xf32>
    %cst_236 = arith.constant 0.833333313 : f32
    %583 = vector.broadcast %cst_236 : f32 to vector<32x32xf32>
    %584 = arith.mulf %582, %583 : vector<32x32xf32>
    %585 = arith.mulf %584, %498 : vector<32x32xf32>
    %586 = arith.addf %580, %585 : vector<32x32xf32>
    %cst_237 = arith.constant 2.000000e-01 : f32
    %587 = vector.broadcast %cst_237 : f32 to vector<32x32xf32>
    %588 = arith.subf %201, %587 : vector<32x32xf32>
    %cst_238 = arith.constant 0.833333313 : f32
    %589 = vector.broadcast %cst_238 : f32 to vector<32x32xf32>
    %590 = arith.mulf %588, %589 : vector<32x32xf32>
    %591 = arith.mulf %590, %498 : vector<32x32xf32>
    %cst_239 = arith.constant 1.800000e+00 : f32
    %592 = vector.broadcast %cst_239 : f32 to vector<32x32xf32>
    %593 = arith.subf %592, %201 : vector<32x32xf32>
    %cst_240 = arith.constant 0.833333313 : f32
    %594 = vector.broadcast %cst_240 : f32 to vector<32x32xf32>
    %595 = arith.mulf %593, %594 : vector<32x32xf32>
    %596 = arith.mulf %595, %509 : vector<32x32xf32>
    %597 = arith.addf %591, %596 : vector<32x32xf32>
    %cst_241 = arith.constant 6.000000e-01 : f32
    %598 = vector.broadcast %cst_241 : f32 to vector<32x32xf32>
    %599 = arith.subf %201, %598 : vector<32x32xf32>
    %cst_242 = arith.constant 0.833333313 : f32
    %600 = vector.broadcast %cst_242 : f32 to vector<32x32xf32>
    %601 = arith.mulf %599, %600 : vector<32x32xf32>
    %602 = arith.mulf %601, %509 : vector<32x32xf32>
    %cst_243 = arith.constant 2.200000e+00 : f32
    %603 = vector.broadcast %cst_243 : f32 to vector<32x32xf32>
    %604 = arith.subf %603, %201 : vector<32x32xf32>
    %cst_244 = arith.constant 0.833333313 : f32
    %605 = vector.broadcast %cst_244 : f32 to vector<32x32xf32>
    %606 = arith.mulf %604, %605 : vector<32x32xf32>
    %607 = arith.mulf %606, %520 : vector<32x32xf32>
    %608 = arith.addf %602, %607 : vector<32x32xf32>
    %c0_245 = arith.constant 0 : index
    %c0_246 = arith.constant 0 : index
    %609 = vector.load %arg20[%c0_245, %c0_246] : memref<256x16xf32, #tpu.memory_space<vmem>>, vector<256x16xf32>
    %610 = vector.extract_strided_slice %609 {offsets = [0, 0], sizes = [32, 16], strides = [1, 1]} : vector<256x16xf32> to vector<32x16xf32>
    %cst_247 = arith.constant dense<0.000000e+00> : vector<32x16xf32>
    %611 = tpu.matmul %531, %610, %cst_247 {dimension_numbers = #tpu.dot_dimension_numbers<[1], [0], [0], [1], [0, 0, 1, 1], [], []>} : vector<32x32xf32>, vector<32x16xf32>, vector<32x16xf32> -> vector<32x16xf32>
    %612 = arith.addf %223, %611 : vector<32x16xf32>
    %613 = vector.extract_strided_slice %609 {offsets = [32, 0], sizes = [32, 16], strides = [1, 1]} : vector<256x16xf32> to vector<32x16xf32>
    %cst_248 = arith.constant dense<0.000000e+00> : vector<32x16xf32>
    %614 = tpu.matmul %542, %613, %cst_248 {dimension_numbers = #tpu.dot_dimension_numbers<[1], [0], [0], [1], [0, 0, 1, 1], [], []>} : vector<32x32xf32>, vector<32x16xf32>, vector<32x16xf32> -> vector<32x16xf32>
    %615 = arith.addf %612, %614 : vector<32x16xf32>
    %616 = vector.extract_strided_slice %609 {offsets = [64, 0], sizes = [32, 16], strides = [1, 1]} : vector<256x16xf32> to vector<32x16xf32>
    %cst_249 = arith.constant dense<0.000000e+00> : vector<32x16xf32>
    %617 = tpu.matmul %553, %616, %cst_249 {dimension_numbers = #tpu.dot_dimension_numbers<[1], [0], [0], [1], [0, 0, 1, 1], [], []>} : vector<32x32xf32>, vector<32x16xf32>, vector<32x16xf32> -> vector<32x16xf32>
    %618 = arith.addf %615, %617 : vector<32x16xf32>
    %619 = vector.extract_strided_slice %609 {offsets = [96, 0], sizes = [32, 16], strides = [1, 1]} : vector<256x16xf32> to vector<32x16xf32>
    %cst_250 = arith.constant dense<0.000000e+00> : vector<32x16xf32>
    %620 = tpu.matmul %564, %619, %cst_250 {dimension_numbers = #tpu.dot_dimension_numbers<[1], [0], [0], [1], [0, 0, 1, 1], [], []>} : vector<32x32xf32>, vector<32x16xf32>, vector<32x16xf32> -> vector<32x16xf32>
    %621 = arith.addf %618, %620 : vector<32x16xf32>
    %622 = vector.extract_strided_slice %609 {offsets = [128, 0], sizes = [32, 16], strides = [1, 1]} : vector<256x16xf32> to vector<32x16xf32>
    %cst_251 = arith.constant dense<0.000000e+00> : vector<32x16xf32>
    %623 = tpu.matmul %575, %622, %cst_251 {dimension_numbers = #tpu.dot_dimension_numbers<[1], [0], [0], [1], [0, 0, 1, 1], [], []>} : vector<32x32xf32>, vector<32x16xf32>, vector<32x16xf32> -> vector<32x16xf32>
    %624 = arith.addf %621, %623 : vector<32x16xf32>
    %625 = vector.extract_strided_slice %609 {offsets = [160, 0], sizes = [32, 16], strides = [1, 1]} : vector<256x16xf32> to vector<32x16xf32>
    %cst_252 = arith.constant dense<0.000000e+00> : vector<32x16xf32>
    %626 = tpu.matmul %586, %625, %cst_252 {dimension_numbers = #tpu.dot_dimension_numbers<[1], [0], [0], [1], [0, 0, 1, 1], [], []>} : vector<32x32xf32>, vector<32x16xf32>, vector<32x16xf32> -> vector<32x16xf32>
    %627 = arith.addf %624, %626 : vector<32x16xf32>
    %628 = vector.extract_strided_slice %609 {offsets = [192, 0], sizes = [32, 16], strides = [1, 1]} : vector<256x16xf32> to vector<32x16xf32>
    %cst_253 = arith.constant dense<0.000000e+00> : vector<32x16xf32>
    %629 = tpu.matmul %597, %628, %cst_253 {dimension_numbers = #tpu.dot_dimension_numbers<[1], [0], [0], [1], [0, 0, 1, 1], [], []>} : vector<32x32xf32>, vector<32x16xf32>, vector<32x16xf32> -> vector<32x16xf32>
    %630 = arith.addf %627, %629 : vector<32x16xf32>
    %631 = vector.extract_strided_slice %609 {offsets = [224, 0], sizes = [32, 16], strides = [1, 1]} : vector<256x16xf32> to vector<32x16xf32>
    %cst_254 = arith.constant dense<0.000000e+00> : vector<32x16xf32>
    %632 = tpu.matmul %608, %631, %cst_254 {dimension_numbers = #tpu.dot_dimension_numbers<[1], [0], [0], [1], [0, 0, 1, 1], [], []>} : vector<32x32xf32>, vector<32x16xf32>, vector<32x16xf32> -> vector<32x16xf32>
    %633 = arith.addf %630, %632 : vector<32x16xf32>
    %634 = math.tanh %201 : vector<32x32xf32>
    %c0_255 = arith.constant 0 : index
    %c0_256 = arith.constant 0 : index
    %635 = vector.load %arg21[%c0_255, %c0_256] : memref<128x16xf32, #tpu.memory_space<vmem>>, vector<128x16xf32>
    %cst_257 = arith.constant 1.000000e+00 : f32
    %636 = vector.broadcast %cst_257 : f32 to vector<32x32xf32>
    %cst_258 = arith.constant 2.000000e+00 : f32
    %637 = vector.broadcast %cst_258 : f32 to vector<32x32xf32>
    %638 = arith.mulf %637, %634 : vector<32x32xf32>
    %639 = arith.mulf %638, %634 : vector<32x32xf32>
    %640 = arith.subf %639, %636 : vector<32x32xf32>
    %cst_259 = arith.constant 2.000000e+00 : f32
    %641 = vector.broadcast %cst_259 : f32 to vector<32x32xf32>
    %642 = arith.mulf %641, %634 : vector<32x32xf32>
    %643 = arith.mulf %642, %640 : vector<32x32xf32>
    %644 = arith.subf %643, %634 : vector<32x32xf32>
    %645 = vector.extract_strided_slice %635 {offsets = [0, 0], sizes = [32, 16], strides = [1, 1]} : vector<128x16xf32> to vector<32x16xf32>
    %cst_260 = arith.constant dense<0.000000e+00> : vector<32x16xf32>
    %646 = tpu.matmul %636, %645, %cst_260 {dimension_numbers = #tpu.dot_dimension_numbers<[1], [0], [0], [1], [0, 0, 1, 1], [], []>} : vector<32x32xf32>, vector<32x16xf32>, vector<32x16xf32> -> vector<32x16xf32>
    %647 = vector.extract_strided_slice %635 {offsets = [32, 0], sizes = [32, 16], strides = [1, 1]} : vector<128x16xf32> to vector<32x16xf32>
    %cst_261 = arith.constant dense<0.000000e+00> : vector<32x16xf32>
    %648 = tpu.matmul %634, %647, %cst_261 {dimension_numbers = #tpu.dot_dimension_numbers<[1], [0], [0], [1], [0, 0, 1, 1], [], []>} : vector<32x32xf32>, vector<32x16xf32>, vector<32x16xf32> -> vector<32x16xf32>
    %649 = arith.addf %646, %648 : vector<32x16xf32>
    %650 = vector.extract_strided_slice %635 {offsets = [64, 0], sizes = [32, 16], strides = [1, 1]} : vector<128x16xf32> to vector<32x16xf32>
    %cst_262 = arith.constant dense<0.000000e+00> : vector<32x16xf32>
    %651 = tpu.matmul %640, %650, %cst_262 {dimension_numbers = #tpu.dot_dimension_numbers<[1], [0], [0], [1], [0, 0, 1, 1], [], []>} : vector<32x32xf32>, vector<32x16xf32>, vector<32x16xf32> -> vector<32x16xf32>
    %652 = arith.addf %649, %651 : vector<32x16xf32>
    %653 = vector.extract_strided_slice %635 {offsets = [96, 0], sizes = [32, 16], strides = [1, 1]} : vector<128x16xf32> to vector<32x16xf32>
    %cst_263 = arith.constant dense<0.000000e+00> : vector<32x16xf32>
    %654 = tpu.matmul %644, %653, %cst_263 {dimension_numbers = #tpu.dot_dimension_numbers<[1], [0], [0], [1], [0, 0, 1, 1], [], []>} : vector<32x32xf32>, vector<32x16xf32>, vector<32x16xf32> -> vector<32x16xf32>
    %655 = arith.addf %652, %654 : vector<32x16xf32>
    %c0_264 = arith.constant 0 : index
    %c0_265 = arith.constant 0 : index
    %656 = vector.load %arg22[%c0_264, %c0_265] : memref<32x16xf32, #tpu.memory_space<vmem>>, vector<32x16xf32>
    %cst_266 = arith.constant dense<0.000000e+00> : vector<32x16xf32>
    %657 = tpu.matmul %201, %656, %cst_266 {dimension_numbers = #tpu.dot_dimension_numbers<[1], [0], [0], [1], [0, 0, 1, 1], [], []>} : vector<32x32xf32>, vector<32x16xf32>, vector<32x16xf32> -> vector<32x16xf32>
    %c0_267 = arith.constant 0 : index
    %c0_268 = arith.constant 0 : index
    %658 = vector.load %arg23[%c0_267, %c0_268] : memref<1x16xf32, #tpu.memory_space<vmem>>, vector<1x16xf32>
    %659 = vector.broadcast %658 : vector<1x16xf32> to vector<32x16xf32>
    %660 = arith.addf %657, %659 : vector<32x16xf32>
    %661 = vector.extract_strided_slice %215 {offsets = [0, 0], sizes = [32, 1], strides = [1, 1]} : vector<32x3xf32> to vector<32x1xf32>
    %662 = vector.broadcast %661 : vector<32x1xf32> to vector<32x16xf32>
    %663 = arith.mulf %633, %662 : vector<32x16xf32>
    %664 = vector.extract_strided_slice %215 {offsets = [0, 1], sizes = [32, 1], strides = [1, 1]} : vector<32x3xf32> to vector<32x1xf32>
    %665 = vector.broadcast %664 : vector<32x1xf32> to vector<32x16xf32>
    %666 = arith.mulf %655, %665 : vector<32x16xf32>
    %667 = arith.addf %663, %666 : vector<32x16xf32>
    %668 = vector.extract_strided_slice %215 {offsets = [0, 2], sizes = [32, 1], strides = [1, 1]} : vector<32x3xf32> to vector<32x1xf32>
    %669 = vector.broadcast %668 : vector<32x1xf32> to vector<32x16xf32>
    %670 = arith.mulf %660, %669 : vector<32x16xf32>
    %671 = arith.addf %667, %670 : vector<32x16xf32>
    %c0_269 = arith.constant 0 : index
    %c0_270 = arith.constant 0 : index
    %672 = vector.load %arg24[%c0_269, %c0_270] : memref<32x16xf32, #tpu.memory_space<vmem>>, vector<32x16xf32>
    tpu.vector_store %arg24[%c0_269, %c0_270], %671 {strides = array<i32>} : memref<32x16xf32, #tpu.memory_space<vmem>>, vector<32x16xf32>,
    return
  }
}

</mosaic_0001>

<llo_original>
// kernel: _lambda_.2
$region0: #{_lambda_.2}
  #allocation0 [shape = 'u32[]', space=smem, size = 0x4, offset = 0x4, fixed_abs, tag = 'smem constant byte address 0x4 - core index']
  #allocation1 [shape = 'u32[72,128]{1,0:T(1,128)}', space=vmem, size = 0x9000, scoped, tag = 'internal scratch']
  %s0 = inlined_call_operand.vmem [shape: f32[32,16], index: 0, kind: input, shape index: {}]
  %s1 = inlined_call_operand.vmem [shape: f32[16,32], index: 1, kind: input, shape index: {}]
  %s2 = inlined_call_operand.vmem [shape: f32[32,32], index: 2, kind: input, shape index: {}]
  %s3 = inlined_call_operand.vmem [shape: f32[32,96], index: 3, kind: input, shape index: {}]
  %s4 = inlined_call_operand.vmem [shape: f32[1,96], index: 4, kind: input, shape index: {}]
  %s5 = inlined_call_operand.vmem [shape: f32[32,32], index: 5, kind: input, shape index: {}]
  %s6 = inlined_call_operand.vmem [shape: f32[1,32], index: 6, kind: input, shape index: {}]
  %s7 = inlined_call_operand.vmem [shape: f32[1,32], index: 7, kind: input, shape index: {}]
  %s8 = inlined_call_operand.vmem [shape: f32[1,32], index: 8, kind: input, shape index: {}]
  %s9 = inlined_call_operand.vmem [shape: f32[32,64], index: 9, kind: input, shape index: {}]
  %s10 = inlined_call_operand.vmem [shape: f32[1,64], index: 10, kind: input, shape index: {}]
  %s11 = inlined_call_operand.vmem [shape: f32[64,32], index: 11, kind: input, shape index: {}]
  %s12 = inlined_call_operand.vmem [shape: f32[1,32], index: 12, kind: input, shape index: {}]
  %s13 = inlined_call_operand.vmem [shape: f32[1,32], index: 13, kind: input, shape index: {}]
  %s14 = inlined_call_operand.vmem [shape: f32[1,32], index: 14, kind: input, shape index: {}]
  %s15 = inlined_call_operand.vmem [shape: f32[1,32], index: 15, kind: input, shape index: {}]
  %s16 = inlined_call_operand.vmem [shape: f32[1,32], index: 16, kind: input, shape index: {}]
  %s17 = inlined_call_operand.vmem [shape: f32[32,3], index: 17, kind: input, shape index: {}]
  %s18 = inlined_call_operand.vmem [shape: f32[1,3], index: 18, kind: input, shape index: {}]
  %s19 = inlined_call_operand.vmem [shape: f32[32,16], index: 19, kind: input, shape index: {}]
  %s20 = inlined_call_operand.vmem [shape: f32[256,16], index: 20, kind: input, shape index: {}]
  %s21 = inlined_call_operand.vmem [shape: f32[128,16], index: 21, kind: input, shape index: {}]
  %s22 = inlined_call_operand.vmem [shape: f32[32,16], index: 22, kind: input, shape index: {}]
  %s23 = inlined_call_operand.vmem [shape: f32[1,16], index: 23, kind: input, shape index: {}]
  %s24 = inlined_call_operand.vmem [shape: f32[32,16], index: 24, kind: output, shape index: {}]
  %s25 = sld [smem:[#allocation0]]
  $region106: #{_lambda_.2} parent=0
    _
  %s27 = ssub.s32 1, %s25
  %s28 = scalar_select 0, %s27, %s25
  // Predicated region
  $region2: #{_lambda_.2} parent=0 // pred_check
    _
  $region3: #{_lambda_.2} parent=0 // pred_check_branch
    %30 = sbr.rel (0) target = $region5
  $region4: #{_lambda_.2} parent=0 // pred_region
    _
  $region5: #{_lambda_.2} parent=0 // pred_fallthru
    _
  // Predicated region
  $region6: #{_lambda_.2} parent=0 // pred_check
    _
  $region7: #{_lambda_.2} parent=0 // pred_check_branch
    %32 = sbr.rel (0) target = $region9
  $region8: #{_lambda_.2} parent=0 // pred_region
    _
  $region9: #{_lambda_.2} parent=0 // pred_fallthru
    _
  // Predicated region
  $region10: #{_lambda_.2} parent=0 // pred_check
    _
  $region11: #{_lambda_.2} parent=0 // pred_check_branch
    %34 = sbr.rel (0) target = $region13
  $region12: #{_lambda_.2} parent=0 // pred_region
    _
  $region13: #{_lambda_.2} parent=0 // pred_fallthru
    _
  // Predicated region
  $region14: #{_lambda_.2} parent=0 // pred_check
    _
  $region15: #{_lambda_.2} parent=0 // pred_check_branch
    %36 = sbr.rel (0) target = $region17
  $region16: #{_lambda_.2} parent=0 // pred_region
    _
  $region17: #{_lambda_.2} parent=0 // pred_fallthru
    _
  // Predicated region
  $region18: #{_lambda_.2} parent=0 // pred_check
    _
  $region19: #{_lambda_.2} parent=0 // pred_check_branch
    %38 = sbr.rel (0) target = $region21
  $region20: #{_lambda_.2} parent=0 // pred_region
    _
  $region21: #{_lambda_.2} parent=0 // pred_fallthru
    _
  // Predicated region
  $region22: #{_lambda_.2} parent=0 // pred_check
    _
  $region23: #{_lambda_.2} parent=0 // pred_check_branch
    %40 = sbr.rel (0) target = $region25
  $region24: #{_lambda_.2} parent=0 // pred_region
    _
  $region25: #{_lambda_.2} parent=0 // pred_fallthru
    _
  // Predicated region
  $region26: #{_lambda_.2} parent=0 // pred_check
    _
  $region27: #{_lambda_.2} parent=0 // pred_check_branch
    %42 = sbr.rel (0) target = $region29
  $region28: #{_lambda_.2} parent=0 // pred_region
    _
  $region29: #{_lambda_.2} parent=0 // pred_fallthru
    _
  // Predicated region
  $region30: #{_lambda_.2} parent=0 // pred_check
    _
  $region31: #{_lambda_.2} parent=0 // pred_check_branch
    %44 = sbr.rel (0) target = $region33
  $region32: #{_lambda_.2} parent=0 // pred_region
    _
  $region33: #{_lambda_.2} parent=0 // pred_fallthru
    _
  // Predicated region
  $region34: #{_lambda_.2} parent=0 // pred_check
    _
  $region35: #{_lambda_.2} parent=0 // pred_check_branch
    %46 = sbr.rel (0) target = $region37
  $region36: #{_lambda_.2} parent=0 // pred_region
    _
  $region37: #{_lambda_.2} parent=0 // pred_fallthru
    _
  // Predicated region
  $region38: #{_lambda_.2} parent=0 // pred_check
    _
  $region39: #{_lambda_.2} parent=0 // pred_check_branch
    %48 = sbr.rel (0) target = $region41
  $region40: #{_lambda_.2} parent=0 // pred_region
    _
  $region41: #{_lambda_.2} parent=0 // pred_fallthru
    _
  // Predicated region
  $region42: #{_lambda_.2} parent=0 // pred_check
    _
  $region43: #{_lambda_.2} parent=0 // pred_check_branch
    %50 = sbr.rel (0) target = $region45
  $region44: #{_lambda_.2} parent=0 // pred_region
    _
  $region45: #{_lambda_.2} parent=0 // pred_fallthru
    _
  // Predicated region
  $region46: #{_lambda_.2} parent=0 // pred_check
    _
  $region47: #{_lambda_.2} parent=0 // pred_check_branch
    %52 = sbr.rel (0) target = $region49
  $region48: #{_lambda_.2} parent=0 // pred_region
    _
  $region49: #{_lambda_.2} parent=0 // pred_fallthru
    _
  // Predicated region
  $region50: #{_lambda_.2} parent=0 // pred_check
    _
  $region51: #{_lambda_.2} parent=0 // pred_check_branch
    %54 = sbr.rel (0) target = $region53
  $region52: #{_lambda_.2} parent=0 // pred_region
    _
  $region53: #{_lambda_.2} parent=0 // pred_fallthru
    _
  // Predicated region
  $region54: #{_lambda_.2} parent=0 // pred_check
    _
  $region55: #{_lambda_.2} parent=0 // pred_check_branch
    %56 = sbr.rel (0) target = $region57
  $region56: #{_lambda_.2} parent=0 // pred_region
    _
  $region57: #{_lambda_.2} parent=0 // pred_fallthru
    _
  // Predicated region
  $region58: #{_lambda_.2} parent=0 // pred_check
    _
  $region59: #{_lambda_.2} parent=0 // pred_check_branch
    %58 = sbr.rel (0) target = $region61
  $region60: #{_lambda_.2} parent=0 // pred_region
    _
  $region61: #{_lambda_.2} parent=0 // pred_fallthru
    _
  // Predicated region
  $region62: #{_lambda_.2} parent=0 // pred_check
    _
  $region63: #{_lambda_.2} parent=0 // pred_check_branch
    %60 = sbr.rel (0) target = $region65
  $region64: #{_lambda_.2} parent=0 // pred_region
    _
  $region65: #{_lambda_.2} parent=0 // pred_fallthru
    _
  // Predicated region
  $region66: #{_lambda_.2} parent=0 // pred_check
    _
  $region67: #{_lambda_.2} parent=0 // pred_check_branch
    %62 = sbr.rel (0) target = $region69
  $region68: #{_lambda_.2} parent=0 // pred_region
    _
  $region69: #{_lambda_.2} parent=0 // pred_fallthru
    _
  // Predicated region
  $region70: #{_lambda_.2} parent=0 // pred_check
    _
  $region71: #{_lambda_.2} parent=0 // pred_check_branch
    %64 = sbr.rel (0) target = $region73
  $region72: #{_lambda_.2} parent=0 // pred_region
    _
  $region73: #{_lambda_.2} parent=0 // pred_fallthru
    _
  // Predicated region
  $region74: #{_lambda_.2} parent=0 // pred_check
    _
  $region75: #{_lambda_.2} parent=0 // pred_check_branch
    %66 = sbr.rel (0) target = $region77
  $region76: #{_lambda_.2} parent=0 // pred_region
    _
  $region77: #{_lambda_.2} parent=0 // pred_fallthru
    _
  // Predicated region
  $region78: #{_lambda_.2} parent=0 // pred_check
    _
  $region79: #{_lambda_.2} parent=0 // pred_check_branch
    %68 = sbr.rel (0) target = $region81
  $region80: #{_lambda_.2} parent=0 // pred_region
    _
  $region81: #{_lambda_.2} parent=0 // pred_fallthru
    _
  // Predicated region
  $region82: #{_lambda_.2} parent=0 // pred_check
    _
  $region83: #{_lambda_.2} parent=0 // pred_check_branch
    %70 = sbr.rel (0) target = $region85
  $region84: #{_lambda_.2} parent=0 // pred_region
    _
  $region85: #{_lambda_.2} parent=0 // pred_fallthru
    _
  // Predicated region
  $region86: #{_lambda_.2} parent=0 // pred_check
    _
  $region87: #{_lambda_.2} parent=0 // pred_check_branch
    %72 = sbr.rel (0) target = $region89
  $region88: #{_lambda_.2} parent=0 // pred_region
    _
  $region89: #{_lambda_.2} parent=0 // pred_fallthru
    _
  // Predicated region
  $region90: #{_lambda_.2} parent=0 // pred_check
    _
  $region91: #{_lambda_.2} parent=0 // pred_check_branch
    %74 = sbr.rel (0) target = $region93
  $region92: #{_lambda_.2} parent=0 // pred_region
    _
  $region93: #{_lambda_.2} parent=0 // pred_fallthru
    _
  // Predicated region
  $region94: #{_lambda_.2} parent=0 // pred_check
    _
  $region95: #{_lambda_.2} parent=0 // pred_check_branch
    %76 = sbr.rel (0) target = $region97
  $region96: #{_lambda_.2} parent=0 // pred_region
    _
  $region97: #{_lambda_.2} parent=0 // pred_fallthru
    _
  %v77 = vld [vmem:[%s0] sm:$0xff]
  %v78 = vld [vmem:[%s0 + $0x8] sm:$0xff]
  %v79 = vld [vmem:[%s0 + $0x10] sm:$0xff]
  %v80 = vld [vmem:[%s0 + $0x18] sm:$0xff]
  %v81 = vld [vmem:[%s1] sm:$0xff]
  %v82 = vld [vmem:[%s1 + $0x8] sm:$0xff]
  %v83 = vld [vmem:[%s2] sm:$0xff]
  %v84 = vld [vmem:[%s2 + $0x8] sm:$0xff]
  %v85 = vld [vmem:[%s2 + $0x10] sm:$0xff]
  %v86 = vld [vmem:[%s2 + $0x18] sm:$0xff]
  %vm87 = vcmask 130048
  %v89 = vsel %vm87, %v77, 0
  %v92 = vsel %vm87, %v78, 0
  %v95 = vsel %vm87, %v79, 0
  %v98 = vsel %vm87, %v80, 0
  %100 = vmatpush.msra.mxu0 0.0
  %101 = vmatpush.msra.mxu0 0.0
  %102 = vmatpush.msra.mxu0 0.0
  %103 = vmatpush.msra.mxu0 0.0
  %104 = vmatpush.msra.mxu0 0.0
  %105 = vmatpush.msra.mxu0 0.0
  %106 = vmatpush.msra.mxu0 0.0
  %107 = vmatpush.msra.mxu0 0.0
  %108 = vmatpush.msra.mxu0 0.0
  %109 = vmatpush.msra.mxu0 0.0
  %110 = vmatpush.msra.mxu0 0.0
  %111 = vmatpush.msra.mxu0 0.0
  %112 = vmatpush.msra.mxu0 0.0
  %113 = vmatpush.msra.mxu0 0.0
  %114 = vmatpush.msra.mxu0 %v82
  %115 = vmatpush.msra.mxu0 %v81
  %116 = vmatmul.f32.gmra.mxu0 %v89
  %v117 = vpop.f32.mrf.mxu0
  %v118 = vadd.f32 %v83, %v117
  %119 = vmatmul.f32.gmra.mxu0 %v92
  %v120 = vpop.f32.mrf.mxu0
  %v121 = vadd.f32 %v84, %v120
  %122 = vmatmul.f32.gmra.mxu0 %v95
  %v123 = vpop.f32.mrf.mxu0
  %v124 = vadd.f32 %v85, %v123
  %125 = vmatmul.f32.gmra.mxu0 %v98
  %v126 = vpop.f32.mrf.mxu0
  %v127 = vadd.f32 %v86, %v126
  %128 = vdwg.mxu0
  %v129 = vlaneseq
  %v130 = vshrl.u32 %v129, 7
  %v131 = vadd.s32 %v130, 8
  %v132 = vadd.s32 %v130, 16
  %v133 = vadd.s32 %v130, 24
  %v134 = vlaneseq
  %v135 = vand.u32 %v134, 127
  %v136 = vshra.s32 %v130, 2
  %v137 = vshra.s32 %v131, 2
  %v138 = vshra.s32 %v132, 2
  %v139 = vshra.s32 %v133, 2
  %v140 = vshra.s32 %v135, 2
  %vm141 = vcmp.eq.s32.totalorder %v136, %v140
  %vm142 = vcmp.eq.s32.totalorder %v137, %v140
  %vm143 = vcmp.eq.s32.totalorder %v138, %v140
  %vm144 = vcmp.eq.s32.totalorder %v139, %v140
  %vm145 = vcmp.le.s32.totalorder %v135, %v130
  %vm146 = vcmp.le.s32.totalorder %v135, %v131
  %vm147 = vcmp.le.s32.totalorder %v135, %v132
  %vm148 = vcmp.le.s32.totalorder %v135, %v133
  %vm149 = vmand %vm145, %vm141
  %vm150 = vmand %vm146, %vm142
  %vm151 = vmand %vm147, %vm143
  %vm152 = vmand %vm148, %vm144
  %v153 = vsel %vm149, 0.0, -1e+30
  %v154 = vsel %vm150, 0.0, -1e+30
  %v155 = vsel %vm151, 0.0, -1e+30
  %v156 = vsel %vm152, 0.0, -1e+30
  %v157 = vld [vmem:[%s3] sm:$0xff]
  %v158 = vld [vmem:[%s3 + $0x8] sm:$0xff]
  %v159 = vld [vmem:[%s3 + $0x10] sm:$0xff]
  %v160 = vld [vmem:[%s3 + $0x18] sm:$0xff]
  %v161 = vld [vmem:[%s4] sm:$0x1]
  %v163 = vperm.slane %v161, 0
  %vm165 = vcmask 261120
  %v167 = vsel %vm165, %v118, 0
  %v170 = vsel %vm165, %v121, 0
  %v173 = vsel %vm165, %v124, 0
  %v176 = vsel %vm165, %v127, 0
  %178 = vmatpush.msra.mxu0 0.0
  %179 = vmatpush.msra.mxu0 0.0
  %180 = vmatpush.msra.mxu0 0.0
  %181 = vmatpush.msra.mxu0 0.0
  %182 = vmatpush.msra.mxu0 0.0
  %183 = vmatpush.msra.mxu0 0.0
  %184 = vmatpush.msra.mxu0 0.0
  %185 = vmatpush.msra.mxu0 0.0
  %186 = vmatpush.msra.mxu0 0.0
  %187 = vmatpush.msra.mxu0 0.0
  %188 = vmatpush.msra.mxu0 0.0
  %189 = vmatpush.msra.mxu0 0.0
  %190 = vmatpush.msra.mxu0 %v160
  %191 = vmatpush.msra.mxu0 %v159
  %192 = vmatpush.msra.mxu0 %v158
  %193 = vmatpush.msra.mxu0 %v157
  %194 = vmatmul.f32.gmra.mxu0 %v167
  %v195 = vpop.f32.mrf.mxu0
  %v196 = vadd.f32 %v163, %v195
  %197 = vmatmul.f32.gmra.mxu0 %v170
  %v198 = vpop.f32.mrf.mxu0
  %v199 = vadd.f32 %v163, %v198
  %200 = vmatmul.f32.gmra.mxu0 %v173
  %v201 = vpop.f32.mrf.mxu0
  %v202 = vadd.f32 %v163, %v201
  %203 = vmatmul.f32.gmra.mxu0 %v176
  %v204 = vpop.f32.mrf.mxu0
  %v205 = vadd.f32 %v163, %v204
  %206 = vdwg.mxu0
  %v207 = vld [vmem:[%s5] sm:$0xff]
  %v208 = vld [vmem:[%s5 + $0x8] sm:$0xff]
  %v209 = vld [vmem:[%s5 + $0x10] sm:$0xff]
  %v210 = vld [vmem:[%s5 + $0x18] sm:$0xff]
  %v211 = vld [vmem:[%s6] sm:$0x1]
  %216 = vrot.lane.b32.xlu0 %v196, 96
  %v217 = vpop.permute.xlu0 %216
  %218 = vrot.lane.b32.xlu0 %v199, 96
  %v219 = vpop.permute.xlu0 %218
  %220 = vrot.lane.b32.xlu0 %v202, 96
  %v221 = vpop.permute.xlu0 %220
  %222 = vrot.lane.b32.xlu0 %v205, 96
  %v223 = vpop.permute.xlu0 %222
  %vm224 = vcmask 64512
  %v225 = vsel %vm224, %v196, 0
  %v227 = vsel %vm224, %v199, 0
  %v229 = vsel %vm224, %v202, 0
  %v231 = vsel %vm224, %v205, 0
  %v233 = vsel %vm224, %v217, 0
  %v235 = vsel %vm224, %v219, 0
  %v237 = vsel %vm224, %v221, 0
  %v239 = vsel %vm224, %v223, 0
  %241 = vmatpush.xpose.msra.mxu0 0.0
  %242 = vmatpush.xpose.msra.mxu0 0.0
  %243 = vmatpush.xpose.msra.mxu0 0.0
  %244 = vmatpush.xpose.msra.mxu0 0.0
  %245 = vmatpush.xpose.msra.mxu0 0.0
  %246 = vmatpush.xpose.msra.mxu0 0.0
  %247 = vmatpush.xpose.msra.mxu0 0.0
  %248 = vmatpush.xpose.msra.mxu0 0.0
  %249 = vmatpush.xpose.msra.mxu0 0.0
  %250 = vmatpush.xpose.msra.mxu0 0.0
  %251 = vmatpush.xpose.msra.mxu0 0.0
  %252 = vmatpush.xpose.msra.mxu0 0.0
  %253 = vmatpush.xpose.msra.mxu0 %v239
  %254 = vmatpush.xpose.msra.mxu0 %v237
  %255 = vmatpush.xpose.msra.mxu0 %v235
  %256 = vmatpush.xpose.msra.mxu0 %v233
  %257 = vmatmul.f32.gmra.mxu0 %v225
  %v258 = vpop.f32.mrf.mxu0
  %v259 = vadd.f32 0.0, %v258
  %260 = vmatmul.f32.gmra.mxu0 %v227
  %v261 = vpop.f32.mrf.mxu0
  %v262 = vadd.f32 0.0, %v261
  %263 = vmatmul.f32.gmra.mxu0 %v229
  %v264 = vpop.f32.mrf.mxu0
  %v265 = vadd.f32 0.0, %v264
  %266 = vmatmul.f32.gmra.mxu0 %v231
  %v267 = vpop.f32.mrf.mxu0
  %v268 = vadd.f32 0.0, %v267
  %269 = vdwg.mxu0
  %v270 = vmul.f32 %v259, 0.35355338
  %v271 = vmul.f32 %v262, 0.35355338
  %v272 = vmul.f32 %v265, 0.35355338
  %v273 = vmul.f32 %v268, 0.35355338
  %v274 = vadd.f32 %v270, %v153
  %v275 = vadd.f32 %v271, %v154
  %v276 = vadd.f32 %v272, %v155
  %v277 = vadd.f32 %v273, %v156
  %v278 = vsel %vm165, %v274, -inf
  %279 = vmax.xlane.f32.xlu0 %v278
  %v280 = vpop.xlane.xlu0 %279
  %v281 = vsel %vm165, %v275, -inf
  %282 = vmax.xlane.f32.xlu0 %v281
  %v283 = vpop.xlane.xlu0 %282
  %v284 = vsel %vm165, %v276, -inf
  %285 = vmax.xlane.f32.xlu0 %v284
  %v286 = vpop.xlane.xlu0 %285
  %v287 = vsel %vm165, %v277, -inf
  %288 = vmax.xlane.f32.xlu0 %v287
  %v289 = vpop.xlane.xlu0 %288
  %v290 = vsub.f32 %v274, %v280
  %v291 = vsub.f32 %v275, %v283
  %v292 = vsub.f32 %v276, %v286
  %v293 = vsub.f32 %v277, %v289
  %v294 = vmul.f32 %v290, 1.442695
  %v295 = vpow.pop %v294
  %v296 = vmul.f32 %v291, 1.442695
  %v297 = vpow.pop %v296
  %v298 = vmul.f32 %v292, 1.442695
  %v299 = vpow.pop %v298
  %v300 = vmul.f32 %v293, 1.442695
  %v301 = vpow.pop %v300
  %v302 = vsel %vm165, %v295, 0.0
  %303 = vadd.xlane.f32.xlu0 %v302
  %v304 = vpop.xlane.xlu0 %303
  %v305 = vsel %vm165, %v297, 0.0
  %306 = vadd.xlane.f32.xlu0 %v305
  %v307 = vpop.xlane.xlu0 %306
  %v308 = vsel %vm165, %v299, 0.0
  %309 = vadd.xlane.f32.xlu0 %v308
  %v310 = vpop.xlane.xlu0 %309
  %v311 = vsel %vm165, %v301, 0.0
  %312 = vadd.xlane.f32.xlu0 %v311
  %v313 = vpop.xlane.xlu0 %312
  %v314 = vrcp.pop %v304
  %v315 = vmul.f32 %v304, %v314
  %v316 = vsub.f32 1.0, %v315
  %v317 = vmul.f32 %v314, %v316
  %v318 = vadd.f32 %v314, %v317
  %vm319 = vweird.f32 %v304
  %vm320 = vweird.f32 %v314
  %vm321 = vmor %vm319, %vm320
  %v322 = vsel %vm321, %v314, %v318
  %v323 = vand.u32 2147483647, %v304
  %vm324 = vcmp.eq.f32.partialorder %v323, 8.507059e+37
  %v325 = vand.u32 %v304, 2147483648
  %v326 = vor.u32 1.1754944e-38, %v325
  %v327 = vsel %vm324, %v326, %v322
  %v328 = vmul.f32 %v295, %v327
  %v329 = vrcp.pop %v307
  %v330 = vmul.f32 %v307, %v329
  %v331 = vsub.f32 1.0, %v330
  %v332 = vmul.f32 %v329, %v331
  %v333 = vadd.f32 %v329, %v332
  %vm334 = vweird.f32 %v307
  %vm335 = vweird.f32 %v329
  %vm336 = vmor %vm334, %vm335
  %v337 = vsel %vm336, %v329, %v333
  %v338 = vand.u32 2147483647, %v307
  %vm339 = vcmp.eq.f32.partialorder %v338, 8.507059e+37
  %v340 = vand.u32 %v307, 2147483648
  %v341 = vor.u32 1.1754944e-38, %v340
  %v342 = vsel %vm339, %v341, %v337
  %v343 = vmul.f32 %v297, %v342
  %v344 = vrcp.pop %v310
  %v345 = vmul.f32 %v310, %v344
  %v346 = vsub.f32 1.0, %v345
  %v347 = vmul.f32 %v344, %v346
  %v348 = vadd.f32 %v344, %v347
  %vm349 = vweird.f32 %v310
  %vm350 = vweird.f32 %v344
  %vm351 = vmor %vm349, %vm350
  %v352 = vsel %vm351, %v344, %v348
  %v353 = vand.u32 2147483647, %v310
  %vm354 = vcmp.eq.f32.partialorder %v353, 8.507059e+37
  %v355 = vand.u32 %v310, 2147483648
  %v356 = vor.u32 1.1754944e-38, %v355
  %v357 = vsel %vm354, %v356, %v352
  %v358 = vmul.f32 %v299, %v357
  %v359 = vrcp.pop %v313
  %v360 = vmul.f32 %v313, %v359
  %v361 = vsub.f32 1.0, %v360
  %v362 = vmul.f32 %v359, %v361
  %v363 = vadd.f32 %v359, %v362
  %vm364 = vweird.f32 %v313
  %vm365 = vweird.f32 %v359
  %vm366 = vmor %vm364, %vm365
  %v367 = vsel %vm366, %v359, %v363
  %v368 = vand.u32 2147483647, %v313
  %vm369 = vcmp.eq.f32.partialorder %v368, 8.507059e+37
  %v370 = vand.u32 %v313, 2147483648
  %v371 = vor.u32 1.1754944e-38, %v370
  %v372 = vsel %vm369, %v371, %v367
  %v373 = vmul.f32 %v301, %v372
  %374 = vrot.lane.b32.xlu0 %v196, 64
  %v375 = vpop.permute.xlu0 %374
  %376 = vrot.lane.b32.xlu0 %v199, 64
  %v377 = vpop.permute.xlu0 %376
  %378 = vrot.lane.b32.xlu0 %v202, 64
  %v379 = vpop.permute.xlu0 %378
  %380 = vrot.lane.b32.xlu0 %v205, 64
  %v381 = vpop.permute.xlu0 %380
  %v387 = vsel %vm165, %v328, 0
  %v390 = vsel %vm165, %v343, 0
  %v393 = vsel %vm165, %v358, 0
  %v396 = vsel %vm165, %v373, 0
  %398 = vmatpush.msra.mxu0 0.0
  %399 = vmatpush.msra.mxu0 0.0
  %400 = vmatpush.msra.mxu0 0.0
  %401 = vmatpush.msra.mxu0 0.0
  %402 = vmatpush.msra.mxu0 0.0
  %403 = vmatpush.msra.mxu0 0.0
  %404 = vmatpush.msra.mxu0 0.0
  %405 = vmatpush.msra.mxu0 0.0
  %406 = vmatpush.msra.mxu0 0.0
  %407 = vmatpush.msra.mxu0 0.0
  %408 = vmatpush.msra.mxu0 0.0
  %409 = vmatpush.msra.mxu0 0.0
  %410 = vmatpush.msra.mxu0 %v381
  %411 = vmatpush.msra.mxu0 %v379
  %412 = vmatpush.msra.mxu0 %v377
  %413 = vmatpush.msra.mxu0 %v375
  %414 = vmatmul.f32.gmra.mxu0 %v387
  %v415 = vpop.f32.mrf.mxu0
  %v416 = vadd.f32 0.0, %v415
  %417 = vmatmul.f32.gmra.mxu0 %v390
  %v418 = vpop.f32.mrf.mxu0
  %v419 = vadd.f32 0.0, %v418
  %420 = vmatmul.f32.gmra.mxu0 %v393
  %v421 = vpop.f32.mrf.mxu0
  %v422 = vadd.f32 0.0, %v421
  %423 = vmatmul.f32.gmra.mxu0 %v396
  %v424 = vpop.f32.mrf.mxu0
  %v425 = vadd.f32 0.0, %v424
  %426 = vdwg.mxu0
  %v428 = vsel %vm224, %v416, 0
  %v431 = vsel %vm224, %v419, 0
  %v434 = vsel %vm224, %v422, 0
  %v437 = vsel %vm224, %v425, 0
  %439 = vmatpush.msra.mxu0 0.0
  %440 = vmatpush.msra.mxu0 0.0
  %441 = vmatpush.msra.mxu0 0.0
  %442 = vmatpush.msra.mxu0 0.0
  %443 = vmatpush.msra.mxu0 0.0
  %444 = vmatpush.msra.mxu0 0.0
  %445 = vmatpush.msra.mxu0 0.0
  %446 = vmatpush.msra.mxu0 0.0
  %447 = vmatpush.msra.mxu0 0.0
  %448 = vmatpush.msra.mxu0 0.0
  %449 = vmatpush.msra.mxu0 0.0
  %450 = vmatpush.msra.mxu0 0.0
  %451 = vmatpush.msra.mxu0 0.0
  %452 = vmatpush.msra.mxu0 0.0
  %453 = vmatpush.msra.mxu0 0.0
  %454 = vmatpush.msra.mxu0 %v207
  %455 = vmatmul.f32.gmra.mxu0 %v428
  %v456 = vpop.f32.mrf.mxu0
  %v457 = vadd.f32 0.0, %v456
  %458 = vmatmul.f32.gmra.mxu0 %v431
  %v459 = vpop.f32.mrf.mxu0
  %v460 = vadd.f32 0.0, %v459
  %461 = vmatmul.f32.gmra.mxu0 %v434
  %v462 = vpop.f32.mrf.mxu0
  %v463 = vadd.f32 0.0, %v462
  %464 = vmatmul.f32.gmra.mxu0 %v437
  %v465 = vpop.f32.mrf.mxu0
  %v466 = vadd.f32 0.0, %v465
  %467 = vdwg.mxu0
  %v469 = vperm.slane %v211, 0
  %v471 = vadd.f32 %v469, %v457
  %v472 = vadd.f32 %v469, %v460
  %v473 = vadd.f32 %v469, %v463
  %v474 = vadd.f32 %v469, %v466
  %475 = vrot.lane.b32.xlu0 %v196, 120
  %v476 = vpop.permute.xlu0 %475
  %477 = vrot.lane.b32.xlu0 %v199, 120
  %v478 = vpop.permute.xlu0 %477
  %479 = vrot.lane.b32.xlu0 %v202, 120
  %v480 = vpop.permute.xlu0 %479
  %481 = vrot.lane.b32.xlu0 %v205, 120
  %v482 = vpop.permute.xlu0 %481
  %483 = vrot.lane.b32.xlu0 %v196, 88
  %v484 = vpop.permute.xlu0 %483
  %485 = vrot.lane.b32.xlu0 %v199, 88
  %v486 = vpop.permute.xlu0 %485
  %487 = vrot.lane.b32.xlu0 %v202, 88
  %v488 = vpop.permute.xlu0 %487
  %489 = vrot.lane.b32.xlu0 %v205, 88
  %v490 = vpop.permute.xlu0 %489
  %v491 = vsel %vm224, %v476, 0
  %v493 = vsel %vm224, %v478, 0
  %v495 = vsel %vm224, %v480, 0
  %v497 = vsel %vm224, %v482, 0
  %v499 = vsel %vm224, %v484, 0
  %v501 = vsel %vm224, %v486, 0
  %v503 = vsel %vm224, %v488, 0
  %v505 = vsel %vm224, %v490, 0
  %507 = vmatpush.xpose.msra.mxu0 0.0
  %508 = vmatpush.xpose.msra.mxu0 0.0
  %509 = vmatpush.xpose.msra.mxu0 0.0
  %510 = vmatpush.xpose.msra.mxu0 0.0
  %511 = vmatpush.xpose.msra.mxu0 0.0
  %512 = vmatpush.xpose.msra.mxu0 0.0
  %513 = vmatpush.xpose.msra.mxu0 0.0
  %514 = vmatpush.xpose.msra.mxu0 0.0
  %515 = vmatpush.xpose.msra.mxu0 0.0
  %516 = vmatpush.xpose.msra.mxu0 0.0
  %517 = vmatpush.xpose.msra.mxu0 0.0
  %518 = vmatpush.xpose.msra.mxu0 0.0
  %519 = vmatpush.xpose.msra.mxu0 %v505
  %520 = vmatpush.xpose.msra.mxu0 %v503
  %521 = vmatpush.xpose.msra.mxu0 %v501
  %522 = vmatpush.xpose.msra.mxu0 %v499
  %523 = vmatmul.f32.gmra.mxu0 %v491
  %v524 = vpop.f32.mrf.mxu0
  %v525 = vadd.f32 0.0, %v524
  %526 = vmatmul.f32.gmra.mxu0 %v493
  %v527 = vpop.f32.mrf.mxu0
  %v528 = vadd.f32 0.0, %v527
  %529 = vmatmul.f32.gmra.mxu0 %v495
  %v530 = vpop.f32.mrf.mxu0
  %v531 = vadd.f32 0.0, %v530
  %532 = vmatmul.f32.gmra.mxu0 %v497
  %v533 = vpop.f32.mrf.mxu0
  %v534 = vadd.f32 0.0, %v533
  %535 = vdwg.mxu0
  %v536 = vmul.f32 %v525, 0.35355338
  %v537 = vmul.f32 %v528, 0.35355338
  %v538 = vmul.f32 %v531, 0.35355338
  %v539 = vmul.f32 %v534, 0.35355338
  %v540 = vadd.f32 %v536, %v153
  %v541 = vadd.f32 %v537, %v154
  %v542 = vadd.f32 %v538, %v155
  %v543 = vadd.f32 %v539, %v156
  %v544 = vsel %vm165, %v540, -inf
  %545 = vmax.xlane.f32.xlu0 %v544
  %v546 = vpop.xlane.xlu0 %545
  %v547 = vsel %vm165, %v541, -inf
  %548 = vmax.xlane.f32.xlu0 %v547
  %v549 = vpop.xlane.xlu0 %548
  %v550 = vsel %vm165, %v542, -inf
  %551 = vmax.xlane.f32.xlu0 %v550
  %v552 = vpop.xlane.xlu0 %551
  %v553 = vsel %vm165, %v543, -inf
  %554 = vmax.xlane.f32.xlu0 %v553
  %v555 = vpop.xlane.xlu0 %554
  %v556 = vsub.f32 %v540, %v546
  %v557 = vsub.f32 %v541, %v549
  %v558 = vsub.f32 %v542, %v552
  %v559 = vsub.f32 %v543, %v555
  %v560 = vmul.f32 %v556, 1.442695
  %v561 = vpow.pop %v560
  %v562 = vmul.f32 %v557, 1.442695
  %v563 = vpow.pop %v562
  %v564 = vmul.f32 %v558, 1.442695
  %v565 = vpow.pop %v564
  %v566 = vmul.f32 %v559, 1.442695
  %v567 = vpow.pop %v566
  %v568 = vsel %vm165, %v561, 0.0
  %569 = vadd.xlane.f32.xlu0 %v568
  %v570 = vpop.xlane.xlu0 %569
  %v571 = vsel %vm165, %v563, 0.0
  %572 = vadd.xlane.f32.xlu0 %v571
  %v573 = vpop.xlane.xlu0 %572
  %v574 = vsel %vm165, %v565, 0.0
  %575 = vadd.xlane.f32.xlu0 %v574
  %v576 = vpop.xlane.xlu0 %575
  %v577 = vsel %vm165, %v567, 0.0
  %578 = vadd.xlane.f32.xlu0 %v577
  %v579 = vpop.xlane.xlu0 %578
  %v580 = vrcp.pop %v570
  %v581 = vmul.f32 %v570, %v580
  %v582 = vsub.f32 1.0, %v581
  %v583 = vmul.f32 %v580, %v582
  %v584 = vadd.f32 %v580, %v583
  %vm585 = vweird.f32 %v570
  %vm586 = vweird.f32 %v580
  %vm587 = vmor %vm585, %vm586
  %v588 = vsel %vm587, %v580, %v584
  %v589 = vand.u32 2147483647, %v570
  %vm590 = vcmp.eq.f32.partialorder %v589, 8.507059e+37
  %v591 = vand.u32 %v570, 2147483648
  %v592 = vor.u32 1.1754944e-38, %v591
  %v593 = vsel %vm590, %v592, %v588
  %v594 = vmul.f32 %v561, %v593
  %v595 = vrcp.pop %v573
  %v596 = vmul.f32 %v573, %v595
  %v597 = vsub.f32 1.0, %v596
  %v598 = vmul.f32 %v595, %v597
  %v599 = vadd.f32 %v595, %v598
  %vm600 = vweird.f32 %v573
  %vm601 = vweird.f32 %v595
  %vm602 = vmor %vm600, %vm601
  %v603 = vsel %vm602, %v595, %v599
  %v604 = vand.u32 2147483647, %v573
  %vm605 = vcmp.eq.f32.partialorder %v604, 8.507059e+37
  %v606 = vand.u32 %v573, 2147483648
  %v607 = vor.u32 1.1754944e-38, %v606
  %v608 = vsel %vm605, %v607, %v603
  %v609 = vmul.f32 %v563, %v608
  %v610 = vrcp.pop %v576
  %v611 = vmul.f32 %v576, %v610
  %v612 = vsub.f32 1.0, %v611
  %v613 = vmul.f32 %v610, %v612
  %v614 = vadd.f32 %v610, %v613
  %vm615 = vweird.f32 %v576
  %vm616 = vweird.f32 %v610
  %vm617 = vmor %vm615, %vm616
  %v618 = vsel %vm617, %v610, %v614
  %v619 = vand.u32 2147483647, %v576
  %vm620 = vcmp.eq.f32.partialorder %v619, 8.507059e+37
  %v621 = vand.u32 %v576, 2147483648
  %v622 = vor.u32 1.1754944e-38, %v621
  %v623 = vsel %vm620, %v622, %v618
  %v624 = vmul.f32 %v565, %v623
  %v625 = vrcp.pop %v579
  %v626 = vmul.f32 %v579, %v625
  %v627 = vsub.f32 1.0, %v626
  %v628 = vmul.f32 %v625, %v627
  %v629 = vadd.f32 %v625, %v628
  %vm630 = vweird.f32 %v579
  %vm631 = vweird.f32 %v625
  %vm632 = vmor %vm630, %vm631
  %v633 = vsel %vm632, %v625, %v629
  %v634 = vand.u32 2147483647, %v579
  %vm635 = vcmp.eq.f32.partialorder %v634, 8.507059e+37
  %v636 = vand.u32 %v579, 2147483648
  %v637 = vor.u32 1.1754944e-38, %v636
  %v638 = vsel %vm635, %v637, %v633
  %v639 = vmul.f32 %v567, %v638
  %640 = vrot.lane.b32.xlu0 %v196, 56
  %v641 = vpop.permute.xlu0 %640
  %642 = vrot.lane.b32.xlu0 %v199, 56
  %v643 = vpop.permute.xlu0 %642
  %644 = vrot.lane.b32.xlu0 %v202, 56
  %v645 = vpop.permute.xlu0 %644
  %646 = vrot.lane.b32.xlu0 %v205, 56
  %v647 = vpop.permute.xlu0 %646
  %v653 = vsel %vm165, %v594, 0
  %v656 = vsel %vm165, %v609, 0
  %v659 = vsel %vm165, %v624, 0
  %v662 = vsel %vm165, %v639, 0
  %664 = vmatpush.msra.mxu0 0.0
  %665 = vmatpush.msra.mxu0 0.0
  %666 = vmatpush.msra.mxu0 0.0
  %667 = vmatpush.msra.mxu0 0.0
  %668 = vmatpush.msra.mxu0 0.0
  %669 = vmatpush.msra.mxu0 0.0
  %670 = vmatpush.msra.mxu0 0.0
  %671 = vmatpush.msra.mxu0 0.0
  %672 = vmatpush.msra.mxu0 0.0
  %673 = vmatpush.msra.mxu0 0.0
  %674 = vmatpush.msra.mxu0 0.0
  %675 = vmatpush.msra.mxu0 0.0
  %676 = vmatpush.msra.mxu0 %v647
  %677 = vmatpush.msra.mxu0 %v645
  %678 = vmatpush.msra.mxu0 %v643
  %679 = vmatpush.msra.mxu0 %v641
  %680 = vmatmul.f32.gmra.mxu0 %v653
  %v681 = vpop.f32.mrf.mxu0
  %v682 = vadd.f32 0.0, %v681
  %683 = vmatmul.f32.gmra.mxu0 %v656
  %v684 = vpop.f32.mrf.mxu0
  %v685 = vadd.f32 0.0, %v684
  %686 = vmatmul.f32.gmra.mxu0 %v659
  %v687 = vpop.f32.mrf.mxu0
  %v688 = vadd.f32 0.0, %v687
  %689 = vmatmul.f32.gmra.mxu0 %v662
  %v690 = vpop.f32.mrf.mxu0
  %v691 = vadd.f32 0.0, %v690
  %692 = vdwg.mxu0
  %v694 = vsel %vm224, %v682, 0
  %v697 = vsel %vm224, %v685, 0
  %v700 = vsel %vm224, %v688, 0
  %v703 = vsel %vm224, %v691, 0
  %705 = vmatpush.msra.mxu0 0.0
  %706 = vmatpush.msra.mxu0 0.0
  %707 = vmatpush.msra.mxu0 0.0
  %708 = vmatpush.msra.mxu0 0.0
  %709 = vmatpush.msra.mxu0 0.0
  %710 = vmatpush.msra.mxu0 0.0
  %711 = vmatpush.msra.mxu0 0.0
  %712 = vmatpush.msra.mxu0 0.0
  %713 = vmatpush.msra.mxu0 0.0
  %714 = vmatpush.msra.mxu0 0.0
  %715 = vmatpush.msra.mxu0 0.0
  %716 = vmatpush.msra.mxu0 0.0
  %717 = vmatpush.msra.mxu0 0.0
  %718 = vmatpush.msra.mxu0 0.0
  %719 = vmatpush.msra.mxu0 0.0
  %720 = vmatpush.msra.mxu0 %v208
  %721 = vmatmul.f32.gmra.mxu0 %v694
  %v722 = vpop.f32.mrf.mxu0
  %v723 = vadd.f32 0.0, %v722
  %724 = vmatmul.f32.gmra.mxu0 %v697
  %v725 = vpop.f32.mrf.mxu0
  %v726 = vadd.f32 0.0, %v725
  %727 = vmatmul.f32.gmra.mxu0 %v700
  %v728 = vpop.f32.mrf.mxu0
  %v729 = vadd.f32 0.0, %v728
  %730 = vmatmul.f32.gmra.mxu0 %v703
  %v731 = vpop.f32.mrf.mxu0
  %v732 = vadd.f32 0.0, %v731
  %733 = vdwg.mxu0
  %v734 = vadd.f32 %v471, %v723
  %v735 = vadd.f32 %v472, %v726
  %v736 = vadd.f32 %v473, %v729
  %v737 = vadd.f32 %v474, %v732
  %738 = vrot.lane.b32.xlu0 %v196, 112
  %v739 = vpop.permute.xlu0 %738
  %740 = vrot.lane.b32.xlu0 %v199, 112
  %v741 = vpop.permute.xlu0 %740
  %742 = vrot.lane.b32.xlu0 %v202, 112
  %v743 = vpop.permute.xlu0 %742
  %744 = vrot.lane.b32.xlu0 %v205, 112
  %v745 = vpop.permute.xlu0 %744
  %746 = vrot.lane.b32.xlu0 %v196, 80
  %v747 = vpop.permute.xlu0 %746
  %748 = vrot.lane.b32.xlu0 %v199, 80
  %v749 = vpop.permute.xlu0 %748
  %750 = vrot.lane.b32.xlu0 %v202, 80
  %v751 = vpop.permute.xlu0 %750
  %752 = vrot.lane.b32.xlu0 %v205, 80
  %v753 = vpop.permute.xlu0 %752
  %v754 = vsel %vm224, %v739, 0
  %v756 = vsel %vm224, %v741, 0
  %v758 = vsel %vm224, %v743, 0
  %v760 = vsel %vm224, %v745, 0
  %v762 = vsel %vm224, %v747, 0
  %v764 = vsel %vm224, %v749, 0
  %v766 = vsel %vm224, %v751, 0
  %v768 = vsel %vm224, %v753, 0
  %770 = vmatpush.xpose.msra.mxu0 0.0
  %771 = vmatpush.xpose.msra.mxu0 0.0
  %772 = vmatpush.xpose.msra.mxu0 0.0
  %773 = vmatpush.xpose.msra.mxu0 0.0
  %774 = vmatpush.xpose.msra.mxu0 0.0
  %775 = vmatpush.xpose.msra.mxu0 0.0
  %776 = vmatpush.xpose.msra.mxu0 0.0
  %777 = vmatpush.xpose.msra.mxu0 0.0
  %778 = vmatpush.xpose.msra.mxu0 0.0
  %779 = vmatpush.xpose.msra.mxu0 0.0
  %780 = vmatpush.xpose.msra.mxu0 0.0
  %781 = vmatpush.xpose.msra.mxu0 0.0
  %782 = vmatpush.xpose.msra.mxu0 %v768
  %783 = vmatpush.xpose.msra.mxu0 %v766
  %784 = vmatpush.xpose.msra.mxu0 %v764
  %785 = vmatpush.xpose.msra.mxu0 %v762
  %786 = vmatmul.f32.gmra.mxu0 %v754
  %v787 = vpop.f32.mrf.mxu0
  %v788 = vadd.f32 0.0, %v787
  %789 = vmatmul.f32.gmra.mxu0 %v756
  %v790 = vpop.f32.mrf.mxu0
  %v791 = vadd.f32 0.0, %v790
  %792 = vmatmul.f32.gmra.mxu0 %v758
  %v793 = vpop.f32.mrf.mxu0
  %v794 = vadd.f32 0.0, %v793
  %795 = vmatmul.f32.gmra.mxu0 %v760
  %v796 = vpop.f32.mrf.mxu0
  %v797 = vadd.f32 0.0, %v796
  %798 = vdwg.mxu0
  %v799 = vmul.f32 %v788, 0.35355338
  %v800 = vmul.f32 %v791, 0.35355338
  %v801 = vmul.f32 %v794, 0.35355338
  %v802 = vmul.f32 %v797, 0.35355338
  %v803 = vadd.f32 %v799, %v153
  %v804 = vadd.f32 %v800, %v154
  %v805 = vadd.f32 %v801, %v155
  %v806 = vadd.f32 %v802, %v156
  %v807 = vsel %vm165, %v803, -inf
  %808 = vmax.xlane.f32.xlu0 %v807
  %v809 = vpop.xlane.xlu0 %808
  %v810 = vsel %vm165, %v804, -inf
  %811 = vmax.xlane.f32.xlu0 %v810
  %v812 = vpop.xlane.xlu0 %811
  %v813 = vsel %vm165, %v805, -inf
  %814 = vmax.xlane.f32.xlu0 %v813
  %v815 = vpop.xlane.xlu0 %814
  %v816 = vsel %vm165, %v806, -inf
  %817 = vmax.xlane.f32.xlu0 %v816
  %v818 = vpop.xlane.xlu0 %817
  %v819 = vsub.f32 %v803, %v809
  %v820 = vsub.f32 %v804, %v812
  %v821 = vsub.f32 %v805, %v815
  %v822 = vsub.f32 %v806, %v818
  %v823 = vmul.f32 %v819, 1.442695
  %v824 = vpow.pop %v823
  %v825 = vmul.f32 %v820, 1.442695
  %v826 = vpow.pop %v825
  %v827 = vmul.f32 %v821, 1.442695
  %v828 = vpow.pop %v827
  %v829 = vmul.f32 %v822, 1.442695
  %v830 = vpow.pop %v829
  %v831 = vsel %vm165, %v824, 0.0
  %832 = vadd.xlane.f32.xlu0 %v831
  %v833 = vpop.xlane.xlu0 %832
  %v834 = vsel %vm165, %v826, 0.0
  %835 = vadd.xlane.f32.xlu0 %v834
  %v836 = vpop.xlane.xlu0 %835
  %v837 = vsel %vm165, %v828, 0.0
  %838 = vadd.xlane.f32.xlu0 %v837
  %v839 = vpop.xlane.xlu0 %838
  %v840 = vsel %vm165, %v830, 0.0
  %841 = vadd.xlane.f32.xlu0 %v840
  %v842 = vpop.xlane.xlu0 %841
  %v843 = vrcp.pop %v833
  %v844 = vmul.f32 %v833, %v843
  %v845 = vsub.f32 1.0, %v844
  %v846 = vmul.f32 %v843, %v845
  %v847 = vadd.f32 %v843, %v846
  %vm848 = vweird.f32 %v833
  %vm849 = vweird.f32 %v843
  %vm850 = vmor %vm848, %vm849
  %v851 = vsel %vm850, %v843, %v847
  %v852 = vand.u32 2147483647, %v833
  %vm853 = vcmp.eq.f32.partialorder %v852, 8.507059e+37
  %v854 = vand.u32 %v833, 2147483648
  %v855 = vor.u32 1.1754944e-38, %v854
  %v856 = vsel %vm853, %v855, %v851
  %v857 = vmul.f32 %v824, %v856
  %v858 = vrcp.pop %v836
  %v859 = vmul.f32 %v836, %v858
  %v860 = vsub.f32 1.0, %v859
  %v861 = vmul.f32 %v858, %v860
  %v862 = vadd.f32 %v858, %v861
  %vm863 = vweird.f32 %v836
  %vm864 = vweird.f32 %v858
  %vm865 = vmor %vm863, %vm864
  %v866 = vsel %vm865, %v858, %v862
  %v867 = vand.u32 2147483647, %v836
  %vm868 = vcmp.eq.f32.partialorder %v867, 8.507059e+37
  %v869 = vand.u32 %v836, 2147483648
  %v870 = vor.u32 1.1754944e-38, %v869
  %v871 = vsel %vm868, %v870, %v866
  %v872 = vmul.f32 %v826, %v871
  %v873 = vrcp.pop %v839
  %v874 = vmul.f32 %v839, %v873
  %v875 = vsub.f32 1.0, %v874
  %v876 = vmul.f32 %v873, %v875
  %v877 = vadd.f32 %v873, %v876
  %vm878 = vweird.f32 %v839
  %vm879 = vweird.f32 %v873
  %vm880 = vmor %vm878, %vm879
  %v881 = vsel %vm880, %v873, %v877
  %v882 = vand.u32 2147483647, %v839
  %vm883 = vcmp.eq.f32.partialorder %v882, 8.507059e+37
  %v884 = vand.u32 %v839, 2147483648
  %v885 = vor.u32 1.1754944e-38, %v884
  %v886 = vsel %vm883, %v885, %v881
  %v887 = vmul.f32 %v828, %v886
  %v888 = vrcp.pop %v842
  %v889 = vmul.f32 %v842, %v888
  %v890 = vsub.f32 1.0, %v889
  %v891 = vmul.f32 %v888, %v890
  %v892 = vadd.f32 %v888, %v891
  %vm893 = vweird.f32 %v842
  %vm894 = vweird.f32 %v888
  %vm895 = vmor %vm893, %vm894
  %v896 = vsel %vm895, %v888, %v892
  %v897 = vand.u32 2147483647, %v842
  %vm898 = vcmp.eq.f32.partialorder %v897, 8.507059e+37
  %v899 = vand.u32 %v842, 2147483648
  %v900 = vor.u32 1.1754944e-38, %v899
  %v901 = vsel %vm898, %v900, %v896
  %v902 = vmul.f32 %v830, %v901
  %903 = vrot.lane.b32.xlu0 %v196, 48
  %v904 = vpop.permute.xlu0 %903
  %905 = vrot.lane.b32.xlu0 %v199, 48
  %v906 = vpop.permute.xlu0 %905
  %907 = vrot.lane.b32.xlu0 %v202, 48
  %v908 = vpop.permute.xlu0 %907
  %909 = vrot.lane.b32.xlu0 %v205, 48
  %v910 = vpop.permute.xlu0 %909
  %v916 = vsel %vm165, %v857, 0
  %v919 = vsel %vm165, %v872, 0
  %v922 = vsel %vm165, %v887, 0
  %v925 = vsel %vm165, %v902, 0
  %927 = vmatpush.msra.mxu0 0.0
  %928 = vmatpush.msra.mxu0 0.0
  %929 = vmatpush.msra.mxu0 0.0
  %930 = vmatpush.msra.mxu0 0.0
  %931 = vmatpush.msra.mxu0 0.0
  %932 = vmatpush.msra.mxu0 0.0
  %933 = vmatpush.msra.mxu0 0.0
  %934 = vmatpush.msra.mxu0 0.0
  %935 = vmatpush.msra.mxu0 0.0
  %936 = vmatpush.msra.mxu0 0.0
  %937 = vmatpush.msra.mxu0 0.0
  %938 = vmatpush.msra.mxu0 0.0
  %939 = vmatpush.msra.mxu0 %v910
  %940 = vmatpush.msra.mxu0 %v908
  %941 = vmatpush.msra.mxu0 %v906
  %942 = vmatpush.msra.mxu0 %v904
  %943 = vmatmul.f32.gmra.mxu0 %v916
  %v944 = vpop.f32.mrf.mxu0
  %v945 = vadd.f32 0.0, %v944
  %946 = vmatmul.f32.gmra.mxu0 %v919
  %v947 = vpop.f32.mrf.mxu0
  %v948 = vadd.f32 0.0, %v947
  %949 = vmatmul.f32.gmra.mxu0 %v922
  %v950 = vpop.f32.mrf.mxu0
  %v951 = vadd.f32 0.0, %v950
  %952 = vmatmul.f32.gmra.mxu0 %v925
  %v953 = vpop.f32.mrf.mxu0
  %v954 = vadd.f32 0.0, %v953
  %955 = vdwg.mxu0
  %v957 = vsel %vm224, %v945, 0
  %v960 = vsel %vm224, %v948, 0
  %v963 = vsel %vm224, %v951, 0
  %v966 = vsel %vm224, %v954, 0
  %968 = vmatpush.msra.mxu0 0.0
  %969 = vmatpush.msra.mxu0 0.0
  %970 = vmatpush.msra.mxu0 0.0
  %971 = vmatpush.msra.mxu0 0.0
  %972 = vmatpush.msra.mxu0 0.0
  %973 = vmatpush.msra.mxu0 0.0
  %974 = vmatpush.msra.mxu0 0.0
  %975 = vmatpush.msra.mxu0 0.0
  %976 = vmatpush.msra.mxu0 0.0
  %977 = vmatpush.msra.mxu0 0.0
  %978 = vmatpush.msra.mxu0 0.0
  %979 = vmatpush.msra.mxu0 0.0
  %980 = vmatpush.msra.mxu0 0.0
  %981 = vmatpush.msra.mxu0 0.0
  %982 = vmatpush.msra.mxu0 0.0
  %983 = vmatpush.msra.mxu0 %v209
  %984 = vmatmul.f32.gmra.mxu0 %v957
  %v985 = vpop.f32.mrf.mxu0
  %v986 = vadd.f32 0.0, %v985
  %987 = vmatmul.f32.gmra.mxu0 %v960
  %v988 = vpop.f32.mrf.mxu0
  %v989 = vadd.f32 0.0, %v988
  %990 = vmatmul.f32.gmra.mxu0 %v963
  %v991 = vpop.f32.mrf.mxu0
  %v992 = vadd.f32 0.0, %v991
  %993 = vmatmul.f32.gmra.mxu0 %v966
  %v994 = vpop.f32.mrf.mxu0
  %v995 = vadd.f32 0.0, %v994
  %996 = vdwg.mxu0
  %v997 = vadd.f32 %v734, %v986
  %v998 = vadd.f32 %v735, %v989
  %v999 = vadd.f32 %v736, %v992
  %v1000 = vadd.f32 %v737, %v995
  %1001 = vrot.lane.b32.xlu0 %v196, 104
  %v1002 = vpop.permute.xlu0 %1001
  %1003 = vrot.lane.b32.xlu0 %v199, 104
  %v1004 = vpop.permute.xlu0 %1003
  %1005 = vrot.lane.b32.xlu0 %v202, 104
  %v1006 = vpop.permute.xlu0 %1005
  %1007 = vrot.lane.b32.xlu0 %v205, 104
  %v1008 = vpop.permute.xlu0 %1007
  %1009 = vrot.lane.b32.xlu0 %v196, 72
  %v1010 = vpop.permute.xlu0 %1009
  %1011 = vrot.lane.b32.xlu0 %v199, 72
  %v1012 = vpop.permute.xlu0 %1011
  %1013 = vrot.lane.b32.xlu0 %v202, 72
  %v1014 = vpop.permute.xlu0 %1013
  %1015 = vrot.lane.b32.xlu0 %v205, 72
  %v1016 = vpop.permute.xlu0 %1015
  %v1017 = vsel %vm224, %v1002, 0
  %v1019 = vsel %vm224, %v1004, 0
  %v1021 = vsel %vm224, %v1006, 0
  %v1023 = vsel %vm224, %v1008, 0
  %v1025 = vsel %vm224, %v1010, 0
  %v1027 = vsel %vm224, %v1012, 0
  %v1029 = vsel %vm224, %v1014, 0
  %v1031 = vsel %vm224, %v1016, 0
  %1033 = vmatpush.xpose.msra.mxu0 0.0
  %1034 = vmatpush.xpose.msra.mxu0 0.0
  %1035 = vmatpush.xpose.msra.mxu0 0.0
  %1036 = vmatpush.xpose.msra.mxu0 0.0
  %1037 = vmatpush.xpose.msra.mxu0 0.0
  %1038 = vmatpush.xpose.msra.mxu0 0.0
  %1039 = vmatpush.xpose.msra.mxu0 0.0
  %1040 = vmatpush.xpose.msra.mxu0 0.0
  %1041 = vmatpush.xpose.msra.mxu0 0.0
  %1042 = vmatpush.xpose.msra.mxu0 0.0
  %1043 = vmatpush.xpose.msra.mxu0 0.0
  %1044 = vmatpush.xpose.msra.mxu0 0.0
  %1045 = vmatpush.xpose.msra.mxu0 %v1031
  %1046 = vmatpush.xpose.msra.mxu0 %v1029
  %1047 = vmatpush.xpose.msra.mxu0 %v1027
  %1048 = vmatpush.xpose.msra.mxu0 %v1025
  %1049 = vmatmul.f32.gmra.mxu0 %v1017
  %v1050 = vpop.f32.mrf.mxu0
  %v1051 = vadd.f32 0.0, %v1050
  %1052 = vmatmul.f32.gmra.mxu0 %v1019
  %v1053 = vpop.f32.mrf.mxu0
  %v1054 = vadd.f32 0.0, %v1053
  %1055 = vmatmul.f32.gmra.mxu0 %v1021
  %v1056 = vpop.f32.mrf.mxu0
  %v1057 = vadd.f32 0.0, %v1056
  %1058 = vmatmul.f32.gmra.mxu0 %v1023
  %v1059 = vpop.f32.mrf.mxu0
  %v1060 = vadd.f32 0.0, %v1059
  %1061 = vdwg.mxu0
  %v1062 = vmul.f32 %v1051, 0.35355338
  %v1063 = vmul.f32 %v1054, 0.35355338
  %v1064 = vmul.f32 %v1057, 0.35355338
  %v1065 = vmul.f32 %v1060, 0.35355338
  %v1066 = vadd.f32 %v1062, %v153
  %v1067 = vadd.f32 %v1063, %v154
  %v1068 = vadd.f32 %v1064, %v155
  %v1069 = vadd.f32 %v1065, %v156
  %v1070 = vsel %vm165, %v1066, -inf
  %1071 = vmax.xlane.f32.xlu0 %v1070
  %v1072 = vpop.xlane.xlu0 %1071
  %v1073 = vsel %vm165, %v1067, -inf
  %1074 = vmax.xlane.f32.xlu0 %v1073
  %v1075 = vpop.xlane.xlu0 %1074
  %v1076 = vsel %vm165, %v1068, -inf
  %1077 = vmax.xlane.f32.xlu0 %v1076
  %v1078 = vpop.xlane.xlu0 %1077
  %v1079 = vsel %vm165, %v1069, -inf
  %1080 = vmax.xlane.f32.xlu0 %v1079
  %v1081 = vpop.xlane.xlu0 %1080
  %v1082 = vsub.f32 %v1066, %v1072
  %v1083 = vsub.f32 %v1067, %v1075
  %v1084 = vsub.f32 %v1068, %v1078
  %v1085 = vsub.f32 %v1069, %v1081
  %v1086 = vmul.f32 %v1082, 1.442695
  %v1087 = vpow.pop %v1086
  %v1088 = vmul.f32 %v1083, 1.442695
  %v1089 = vpow.pop %v1088
  %v1090 = vmul.f32 %v1084, 1.442695
  %v1091 = vpow.pop %v1090
  %v1092 = vmul.f32 %v1085, 1.442695
  %v1093 = vpow.pop %v1092
  %v1094 = vsel %vm165, %v1087, 0.0
  %1095 = vadd.xlane.f32.xlu0 %v1094
  %v1096 = vpop.xlane.xlu0 %1095
  %v1097 = vsel %vm165, %v1089, 0.0
  %1098 = vadd.xlane.f32.xlu0 %v1097
  %v1099 = vpop.xlane.xlu0 %1098
  %v1100 = vsel %vm165, %v1091, 0.0
  %1101 = vadd.xlane.f32.xlu0 %v1100
  %v1102 = vpop.xlane.xlu0 %1101
  %v1103 = vsel %vm165, %v1093, 0.0
  %1104 = vadd.xlane.f32.xlu0 %v1103
  %v1105 = vpop.xlane.xlu0 %1104
  %v1106 = vrcp.pop %v1096
  %v1107 = vmul.f32 %v1096, %v1106
  %v1108 = vsub.f32 1.0, %v1107
  %v1109 = vmul.f32 %v1106, %v1108
  %v1110 = vadd.f32 %v1106, %v1109
  %vm1111 = vweird.f32 %v1096
  %vm1112 = vweird.f32 %v1106
  %vm1113 = vmor %vm1111, %vm1112
  %v1114 = vsel %vm1113, %v1106, %v1110
  %v1115 = vand.u32 2147483647, %v1096
  %vm1116 = vcmp.eq.f32.partialorder %v1115, 8.507059e+37
  %v1117 = vand.u32 %v1096, 2147483648
  %v1118 = vor.u32 1.1754944e-38, %v1117
  %v1119 = vsel %vm1116, %v1118, %v1114
  %v1120 = vmul.f32 %v1087, %v1119
  %v1121 = vrcp.pop %v1099
  %v1122 = vmul.f32 %v1099, %v1121
  %v1123 = vsub.f32 1.0, %v1122
  %v1124 = vmul.f32 %v1121, %v1123
  %v1125 = vadd.f32 %v1121, %v1124
  %vm1126 = vweird.f32 %v1099
  %vm1127 = vweird.f32 %v1121
  %vm1128 = vmor %vm1126, %vm1127
  %v1129 = vsel %vm1128, %v1121, %v1125
  %v1130 = vand.u32 2147483647, %v1099
  %vm1131 = vcmp.eq.f32.partialorder %v1130, 8.507059e+37
  %v1132 = vand.u32 %v1099, 2147483648
  %v1133 = vor.u32 1.1754944e-38, %v1132
  %v1134 = vsel %vm1131, %v1133, %v1129
  %v1135 = vmul.f32 %v1089, %v1134
  %v1136 = vrcp.pop %v1102
  %v1137 = vmul.f32 %v1102, %v1136
  %v1138 = vsub.f32 1.0, %v1137
  %v1139 = vmul.f32 %v1136, %v1138
  %v1140 = vadd.f32 %v1136, %v1139
  %vm1141 = vweird.f32 %v1102
  %vm1142 = vweird.f32 %v1136
  %vm1143 = vmor %vm1141, %vm1142
  %v1144 = vsel %vm1143, %v1136, %v1140
  %v1145 = vand.u32 2147483647, %v1102
  %vm1146 = vcmp.eq.f32.partialorder %v1145, 8.507059e+37
  %v1147 = vand.u32 %v1102, 2147483648
  %v1148 = vor.u32 1.1754944e-38, %v1147
  %v1149 = vsel %vm1146, %v1148, %v1144
  %v1150 = vmul.f32 %v1091, %v1149
  %v1151 = vrcp.pop %v1105
  %v1152 = vmul.f32 %v1105, %v1151
  %v1153 = vsub.f32 1.0, %v1152
  %v1154 = vmul.f32 %v1151, %v1153
  %v1155 = vadd.f32 %v1151, %v1154
  %vm1156 = vweird.f32 %v1105
  %vm1157 = vweird.f32 %v1151
  %vm1158 = vmor %vm1156, %vm1157
  %v1159 = vsel %vm1158, %v1151, %v1155
  %v1160 = vand.u32 2147483647, %v1105
  %vm1161 = vcmp.eq.f32.partialorder %v1160, 8.507059e+37
  %v1162 = vand.u32 %v1105, 2147483648
  %v1163 = vor.u32 1.1754944e-38, %v1162
  %v1164 = vsel %vm1161, %v1163, %v1159
  %v1165 = vmul.f32 %v1093, %v1164
  %1166 = vrot.lane.b32.xlu0 %v196, 40
  %v1167 = vpop.permute.xlu0 %1166
  %1168 = vrot.lane.b32.xlu0 %v199, 40
  %v1169 = vpop.permute.xlu0 %1168
  %1170 = vrot.lane.b32.xlu0 %v202, 40
  %v1171 = vpop.permute.xlu0 %1170
  %1172 = vrot.lane.b32.xlu0 %v205, 40
  %v1173 = vpop.permute.xlu0 %1172
  %v1179 = vsel %vm165, %v1120, 0
  %v1182 = vsel %vm165, %v1135, 0
  %v1185 = vsel %vm165, %v1150, 0
  %v1188 = vsel %vm165, %v1165, 0
  %1190 = vmatpush.msra.mxu0 0.0
  %1191 = vmatpush.msra.mxu0 0.0
  %1192 = vmatpush.msra.mxu0 0.0
  %1193 = vmatpush.msra.mxu0 0.0
  %1194 = vmatpush.msra.mxu0 0.0
  %1195 = vmatpush.msra.mxu0 0.0
  %1196 = vmatpush.msra.mxu0 0.0
  %1197 = vmatpush.msra.mxu0 0.0
  %1198 = vmatpush.msra.mxu0 0.0
  %1199 = vmatpush.msra.mxu0 0.0
  %1200 = vmatpush.msra.mxu0 0.0
  %1201 = vmatpush.msra.mxu0 0.0
  %1202 = vmatpush.msra.mxu0 %v1173
  %1203 = vmatpush.msra.mxu0 %v1171
  %1204 = vmatpush.msra.mxu0 %v1169
  %1205 = vmatpush.msra.mxu0 %v1167
  %1206 = vmatmul.f32.gmra.mxu0 %v1179
  %v1207 = vpop.f32.mrf.mxu0
  %v1208 = vadd.f32 0.0, %v1207
  %1209 = vmatmul.f32.gmra.mxu0 %v1182
  %v1210 = vpop.f32.mrf.mxu0
  %v1211 = vadd.f32 0.0, %v1210
  %1212 = vmatmul.f32.gmra.mxu0 %v1185
  %v1213 = vpop.f32.mrf.mxu0
  %v1214 = vadd.f32 0.0, %v1213
  %1215 = vmatmul.f32.gmra.mxu0 %v1188
  %v1216 = vpop.f32.mrf.mxu0
  %v1217 = vadd.f32 0.0, %v1216
  %1218 = vdwg.mxu0
  %v1220 = vsel %vm224, %v1208, 0
  %v1223 = vsel %vm224, %v1211, 0
  %v1226 = vsel %vm224, %v1214, 0
  %v1229 = vsel %vm224, %v1217, 0
  %1231 = vmatpush.msra.mxu0 0.0
  %1232 = vmatpush.msra.mxu0 0.0
  %1233 = vmatpush.msra.mxu0 0.0
  %1234 = vmatpush.msra.mxu0 0.0
  %1235 = vmatpush.msra.mxu0 0.0
  %1236 = vmatpush.msra.mxu0 0.0
  %1237 = vmatpush.msra.mxu0 0.0
  %1238 = vmatpush.msra.mxu0 0.0
  %1239 = vmatpush.msra.mxu0 0.0
  %1240 = vmatpush.msra.mxu0 0.0
  %1241 = vmatpush.msra.mxu0 0.0
  %1242 = vmatpush.msra.mxu0 0.0
  %1243 = vmatpush.msra.mxu0 0.0
  %1244 = vmatpush.msra.mxu0 0.0
  %1245 = vmatpush.msra.mxu0 0.0
  %1246 = vmatpush.msra.mxu0 %v210
  %1247 = vmatmul.f32.gmra.mxu0 %v1220
  %v1248 = vpop.f32.mrf.mxu0
  %v1249 = vadd.f32 0.0, %v1248
  %1250 = vmatmul.f32.gmra.mxu0 %v1223
  %v1251 = vpop.f32.mrf.mxu0
  %v1252 = vadd.f32 0.0, %v1251
  %1253 = vmatmul.f32.gmra.mxu0 %v1226
  %v1254 = vpop.f32.mrf.mxu0
  %v1255 = vadd.f32 0.0, %v1254
  %1256 = vmatmul.f32.gmra.mxu0 %v1229
  %v1257 = vpop.f32.mrf.mxu0
  %v1258 = vadd.f32 0.0, %v1257
  %1259 = vdwg.mxu0
  %v1260 = vadd.f32 %v997, %v1249
  %v1261 = vadd.f32 %v998, %v1252
  %v1262 = vadd.f32 %v999, %v1255
  %v1263 = vadd.f32 %v1000, %v1258
  %v1264 = vadd.f32 %v118, %v1260
  %v1265 = vadd.f32 %v121, %v1261
  %v1266 = vadd.f32 %v124, %v1262
  %v1267 = vadd.f32 %v127, %v1263
  %v1268 = vld [vmem:[%s7] sm:$0x1]
  %v1269 = vld [vmem:[%s8] sm:$0x1]
  %v1270 = vsel %vm165, %v1264, 0.0
  %1271 = vadd.xlane.f32.xlu0 %v1270
  %v1272 = vpop.xlane.xlu0 %1271
  %v1273 = vsel %vm165, %v1265, 0.0
  %1274 = vadd.xlane.f32.xlu0 %v1273
  %v1275 = vpop.xlane.xlu0 %1274
  %v1276 = vsel %vm165, %v1266, 0.0
  %1277 = vadd.xlane.f32.xlu0 %v1276
  %v1278 = vpop.xlane.xlu0 %1277
  %v1279 = vsel %vm165, %v1267, 0.0
  %1280 = vadd.xlane.f32.xlu0 %v1279
  %v1281 = vpop.xlane.xlu0 %1280
  %v1282 = vrcp.pop 32.0
  %v1283 = vmul.f32 32.0, %v1282
  %v1284 = vsub.f32 1.0, %v1283
  %v1285 = vmul.f32 %v1282, %v1284
  %v1286 = vadd.f32 %v1282, %v1285
  %vm1287 = vweird.f32 %v1282
  %v1288 = vsel %vm1287, %v1282, %v1286
  %v1289 = vmul.f32 %v1272, %v1288
  %v1290 = vmul.f32 %v1275, %v1288
  %v1291 = vmul.f32 %v1278, %v1288
  %v1292 = vmul.f32 %v1281, %v1288
  %v1293 = vsub.f32 %v1264, %v1289
  %v1294 = vsub.f32 %v1265, %v1290
  %v1295 = vsub.f32 %v1266, %v1291
  %v1296 = vsub.f32 %v1267, %v1292
  %v1297 = vmul.f32 %v1293, %v1293
  %v1298 = vmul.f32 %v1294, %v1294
  %v1299 = vmul.f32 %v1295, %v1295
  %v1300 = vmul.f32 %v1296, %v1296
  %v1301 = vsel %vm165, %v1297, 0.0
  %1302 = vadd.xlane.f32.xlu0 %v1301
  %v1303 = vpop.xlane.xlu0 %1302
  %v1304 = vsel %vm165, %v1298, 0.0
  %1305 = vadd.xlane.f32.xlu0 %v1304
  %v1306 = vpop.xlane.xlu0 %1305
  %v1307 = vsel %vm165, %v1299, 0.0
  %1308 = vadd.xlane.f32.xlu0 %v1307
  %v1309 = vpop.xlane.xlu0 %1308
  %v1310 = vsel %vm165, %v1300, 0.0
  %1311 = vadd.xlane.f32.xlu0 %v1310
  %v1312 = vpop.xlane.xlu0 %1311
  %v1313 = vmul.f32 %v1303, %v1288
  %v1314 = vmul.f32 %v1306, %v1288
  %v1315 = vmul.f32 %v1309, %v1288
  %v1316 = vmul.f32 %v1312, %v1288
  %v1317 = vadd.f32 %v1313, 1e-05
  %v1318 = vadd.f32 %v1314, 1e-05
  %v1319 = vadd.f32 %v1315, 1e-05
  %v1320 = vadd.f32 %v1316, 1e-05
  %v1321 = vrsqrt.pop %v1317
  %v1322 = vmul.f32 %v1321, %v1317
  %v1323 = vmul.f32 %v1322, %v1321
  %v1324 = vmul.f32 0.5, %v1323
  %v1325 = vsub.f32 1.5, %v1324
  %v1326 = vmul.f32 %v1321, %v1325
  %vm1327 = vweird.f32 %v1317
  %vm1328 = vweird.f32 %v1321
  %vm1329 = vmor %vm1327, %vm1328
  %v1330 = vsel %vm1329, %v1321, %v1326
  %v1331 = vrsqrt.pop %v1318
  %v1332 = vmul.f32 %v1331, %v1318
  %v1333 = vmul.f32 %v1332, %v1331
  %v1334 = vmul.f32 0.5, %v1333
  %v1335 = vsub.f32 1.5, %v1334
  %v1336 = vmul.f32 %v1331, %v1335
  %vm1337 = vweird.f32 %v1318
  %vm1338 = vweird.f32 %v1331
  %vm1339 = vmor %vm1337, %vm1338
  %v1340 = vsel %vm1339, %v1331, %v1336
  %v1341 = vrsqrt.pop %v1319
  %v1342 = vmul.f32 %v1341, %v1319
  %v1343 = vmul.f32 %v1342, %v1341
  %v1344 = vmul.f32 0.5, %v1343
  %v1345 = vsub.f32 1.5, %v1344
  %v1346 = vmul.f32 %v1341, %v1345
  %vm1347 = vweird.f32 %v1319
  %vm1348 = vweird.f32 %v1341
  %vm1349 = vmor %vm1347, %vm1348
  %v1350 = vsel %vm1349, %v1341, %v1346
  %v1351 = vrsqrt.pop %v1320
  %v1352 = vmul.f32 %v1351, %v1320
  %v1353 = vmul.f32 %v1352, %v1351
  %v1354 = vmul.f32 0.5, %v1353
  %v1355 = vsub.f32 1.5, %v1354
  %v1356 = vmul.f32 %v1351, %v1355
  %vm1357 = vweird.f32 %v1320
  %vm1358 = vweird.f32 %v1351
  %vm1359 = vmor %vm1357, %vm1358
  %v1360 = vsel %vm1359, %v1351, %v1356
  %v1361 = vmul.f32 %v1293, %v1330
  %v1362 = vmul.f32 %v1294, %v1340
  %v1363 = vmul.f32 %v1295, %v1350
  %v1364 = vmul.f32 %v1296, %v1360
  %v1366 = vperm.slane %v1268, 0
  %v1368 = vmul.f32 %v1361, %v1366
  %v1369 = vmul.f32 %v1362, %v1366
  %v1370 = vmul.f32 %v1363, %v1366
  %v1371 = vmul.f32 %v1364, %v1366
  %v1373 = vperm.slane %v1269, 0
  %v1375 = vadd.f32 %v1368, %v1373
  %v1376 = vadd.f32 %v1369, %v1373
  %v1377 = vadd.f32 %v1370, %v1373
  %v1378 = vadd.f32 %v1371, %v1373
  %v1379 = vld [vmem:[%s9] sm:$0xff]
  %v1380 = vld [vmem:[%s9 + $0x8] sm:$0xff]
  %v1381 = vld [vmem:[%s9 + $0x10] sm:$0xff]
  %v1382 = vld [vmem:[%s9 + $0x18] sm:$0xff]
  %v1383 = vld [vmem:[%s10] sm:$0x1]
  %v1385 = vperm.slane %v1383, 0
  %v1388 = vsel %vm165, %v1375, 0
  %v1391 = vsel %vm165, %v1376, 0
  %v1394 = vsel %vm165, %v1377, 0
  %v1397 = vsel %vm165, %v1378, 0
  %1399 = vmatpush.msra.mxu0 0.0
  %1400 = vmatpush.msra.mxu0 0.0
  %1401 = vmatpush.msra.mxu0 0.0
  %1402 = vmatpush.msra.mxu0 0.0
  %1403 = vmatpush.msra.mxu0 0.0
  %1404 = vmatpush.msra.mxu0 0.0
  %1405 = vmatpush.msra.mxu0 0.0
  %1406 = vmatpush.msra.mxu0 0.0
  %1407 = vmatpush.msra.mxu0 0.0
  %1408 = vmatpush.msra.mxu0 0.0
  %1409 = vmatpush.msra.mxu0 0.0
  %1410 = vmatpush.msra.mxu0 0.0
  %1411 = vmatpush.msra.mxu0 %v1382
  %1412 = vmatpush.msra.mxu0 %v1381
  %1413 = vmatpush.msra.mxu0 %v1380
  %1414 = vmatpush.msra.mxu0 %v1379
  %1415 = vmatmul.f32.gmra.mxu0 %v1388
  %v1416 = vpop.f32.mrf.mxu0
  %v1417 = vadd.f32 %v1385, %v1416
  %1418 = vmatmul.f32.gmra.mxu0 %v1391
  %v1419 = vpop.f32.mrf.mxu0
  %v1420 = vadd.f32 %v1385, %v1419
  %1421 = vmatmul.f32.gmra.mxu0 %v1394
  %v1422 = vpop.f32.mrf.mxu0
  %v1423 = vadd.f32 %v1385, %v1422
  %1424 = vmatmul.f32.gmra.mxu0 %v1397
  %v1425 = vpop.f32.mrf.mxu0
  %v1426 = vadd.f32 %v1385, %v1425
  %1427 = vdwg.mxu0
  %v1428 = vmul.f32 %v1417, 0.5
  %v1429 = vmul.f32 %v1420, 0.5
  %v1430 = vmul.f32 %v1423, 0.5
  %v1431 = vmul.f32 %v1426, 0.5
  %v1432 = vmul.f32 %v1417, 0.044715
  %v1433 = vmul.f32 %v1420, 0.044715
  %v1434 = vmul.f32 %v1423, 0.044715
  %v1435 = vmul.f32 %v1426, 0.044715
  %v1436 = vmul.f32 %v1432, %v1417
  %v1437 = vmul.f32 %v1433, %v1420
  %v1438 = vmul.f32 %v1434, %v1423
  %v1439 = vmul.f32 %v1435, %v1426
  %v1440 = vmul.f32 %v1436, %v1417
  %v1441 = vmul.f32 %v1437, %v1420
  %v1442 = vmul.f32 %v1438, %v1423
  %v1443 = vmul.f32 %v1439, %v1426
  %v1444 = vadd.f32 %v1417, %v1440
  %v1445 = vadd.f32 %v1420, %v1441
  %v1446 = vadd.f32 %v1423, %v1442
  %v1447 = vadd.f32 %v1426, %v1443
  %v1448 = vmul.f32 %v1444, 0.7978846
  %v1449 = vmul.f32 %v1445, 0.7978846
  %v1450 = vmul.f32 %v1446, 0.7978846
  %v1451 = vmul.f32 %v1447, 0.7978846
  %v1452 = vtanh.pop %v1448
  %v1453 = vtanh.pop %v1449
  %v1454 = vtanh.pop %v1450
  %v1455 = vtanh.pop %v1451
  %v1456 = vadd.f32 %v1452, 1.0
  %v1457 = vadd.f32 %v1453, 1.0
  %v1458 = vadd.f32 %v1454, 1.0
  %v1459 = vadd.f32 %v1455, 1.0
  %v1460 = vmul.f32 %v1428, %v1456
  %v1461 = vmul.f32 %v1429, %v1457
  %v1462 = vmul.f32 %v1430, %v1458
  %v1463 = vmul.f32 %v1431, %v1459
  %v1464 = vld [vmem:[%s11] sm:$0xff]
  %v1465 = vld [vmem:[%s11 + $0x8] sm:$0xff]
  %v1466 = vld [vmem:[%s11 + $0x10] sm:$0xff]
  %v1467 = vld [vmem:[%s11 + $0x18] sm:$0xff]
  %v1468 = vld [vmem:[%s11 + $0x20] sm:$0xff]
  %v1469 = vld [vmem:[%s11 + $0x28] sm:$0xff]
  %v1470 = vld [vmem:[%s11 + $0x30] sm:$0xff]
  %v1471 = vld [vmem:[%s11 + $0x38] sm:$0xff]
  %v1472 = vld [vmem:[%s12] sm:$0x1]
  %v1474 = vperm.slane %v1472, 0
  %vm1476 = vcmask 523264
  %v1478 = vsel %vm1476, %v1460, 0
  %v1481 = vsel %vm1476, %v1461, 0
  %v1484 = vsel %vm1476, %v1462, 0
  %v1487 = vsel %vm1476, %v1463, 0
  %1489 = vmatpush.msra.mxu0 0.0
  %1490 = vmatpush.msra.mxu0 0.0
  %1491 = vmatpush.msra.mxu0 0.0
  %1492 = vmatpush.msra.mxu0 0.0
  %1493 = vmatpush.msra.mxu0 0.0
  %1494 = vmatpush.msra.mxu0 0.0
  %1495 = vmatpush.msra.mxu0 0.0
  %1496 = vmatpush.msra.mxu0 0.0
  %1497 = vmatpush.msra.mxu0 %v1471
  %1498 = vmatpush.msra.mxu0 %v1470
  %1499 = vmatpush.msra.mxu0 %v1469
  %1500 = vmatpush.msra.mxu0 %v1468
  %1501 = vmatpush.msra.mxu0 %v1467
  %1502 = vmatpush.msra.mxu0 %v1466
  %1503 = vmatpush.msra.mxu0 %v1465
  %1504 = vmatpush.msra.mxu0 %v1464
  %1505 = vmatmul.f32.gmra.mxu0 %v1478
  %v1506 = vpop.f32.mrf.mxu0
  %v1507 = vadd.f32 %v1474, %v1506
  %1508 = vmatmul.f32.gmra.mxu0 %v1481
  %v1509 = vpop.f32.mrf.mxu0
  %v1510 = vadd.f32 %v1474, %v1509
  %1511 = vmatmul.f32.gmra.mxu0 %v1484
  %v1512 = vpop.f32.mrf.mxu0
  %v1513 = vadd.f32 %v1474, %v1512
  %1514 = vmatmul.f32.gmra.mxu0 %v1487
  %v1515 = vpop.f32.mrf.mxu0
  %v1516 = vadd.f32 %v1474, %v1515
  %1517 = vdwg.mxu0
  %v1518 = vadd.f32 %v1375, %v1507
  %v1519 = vadd.f32 %v1376, %v1510
  %v1520 = vadd.f32 %v1377, %v1513
  %v1521 = vadd.f32 %v1378, %v1516
  %v1522 = vld [vmem:[%s13] sm:$0x1]
  %v1523 = vld [vmem:[%s14] sm:$0x1]
  %v1524 = vsel %vm165, %v1518, 0.0
  %1525 = vadd.xlane.f32.xlu0 %v1524
  %v1526 = vpop.xlane.xlu0 %1525
  %v1527 = vsel %vm165, %v1519, 0.0
  %1528 = vadd.xlane.f32.xlu0 %v1527
  %v1529 = vpop.xlane.xlu0 %1528
  %v1530 = vsel %vm165, %v1520, 0.0
  %1531 = vadd.xlane.f32.xlu0 %v1530
  %v1532 = vpop.xlane.xlu0 %1531
  %v1533 = vsel %vm165, %v1521, 0.0
  %1534 = vadd.xlane.f32.xlu0 %v1533
  %v1535 = vpop.xlane.xlu0 %1534
  %v1536 = vmul.f32 %v1526, %v1288
  %v1537 = vmul.f32 %v1529, %v1288
  %v1538 = vmul.f32 %v1532, %v1288
  %v1539 = vmul.f32 %v1535, %v1288
  %v1540 = vsub.f32 %v1518, %v1536
  %v1541 = vsub.f32 %v1519, %v1537
  %v1542 = vsub.f32 %v1520, %v1538
  %v1543 = vsub.f32 %v1521, %v1539
  %v1544 = vmul.f32 %v1540, %v1540
  %v1545 = vmul.f32 %v1541, %v1541
  %v1546 = vmul.f32 %v1542, %v1542
  %v1547 = vmul.f32 %v1543, %v1543
  %v1548 = vsel %vm165, %v1544, 0.0
  %1549 = vadd.xlane.f32.xlu0 %v1548
  %v1550 = vpop.xlane.xlu0 %1549
  %v1551 = vsel %vm165, %v1545, 0.0
  %1552 = vadd.xlane.f32.xlu0 %v1551
  %v1553 = vpop.xlane.xlu0 %1552
  %v1554 = vsel %vm165, %v1546, 0.0
  %1555 = vadd.xlane.f32.xlu0 %v1554
  %v1556 = vpop.xlane.xlu0 %1555
  %v1557 = vsel %vm165, %v1547, 0.0
  %1558 = vadd.xlane.f32.xlu0 %v1557
  %v1559 = vpop.xlane.xlu0 %1558
  %v1560 = vmul.f32 %v1550, %v1288
  %v1561 = vmul.f32 %v1553, %v1288
  %v1562 = vmul.f32 %v1556, %v1288
  %v1563 = vmul.f32 %v1559, %v1288
  %v1564 = vadd.f32 %v1560, 1e-05
  %v1565 = vadd.f32 %v1561, 1e-05
  %v1566 = vadd.f32 %v1562, 1e-05
  %v1567 = vadd.f32 %v1563, 1e-05
  %v1568 = vrsqrt.pop %v1564
  %v1569 = vmul.f32 %v1568, %v1564
  %v1570 = vmul.f32 %v1569, %v1568
  %v1571 = vmul.f32 0.5, %v1570
  %v1572 = vsub.f32 1.5, %v1571
  %v1573 = vmul.f32 %v1568, %v1572
  %vm1574 = vweird.f32 %v1564
  %vm1575 = vweird.f32 %v1568
  %vm1576 = vmor %vm1574, %vm1575
  %v1577 = vsel %vm1576, %v1568, %v1573
  %v1578 = vrsqrt.pop %v1565
  %v1579 = vmul.f32 %v1578, %v1565
  %v1580 = vmul.f32 %v1579, %v1578
  %v1581 = vmul.f32 0.5, %v1580
  %v1582 = vsub.f32 1.5, %v1581
  %v1583 = vmul.f32 %v1578, %v1582
  %vm1584 = vweird.f32 %v1565
  %vm1585 = vweird.f32 %v1578
  %vm1586 = vmor %vm1584, %vm1585
  %v1587 = vsel %vm1586, %v1578, %v1583
  %v1588 = vrsqrt.pop %v1566
  %v1589 = vmul.f32 %v1588, %v1566
  %v1590 = vmul.f32 %v1589, %v1588
  %v1591 = vmul.f32 0.5, %v1590
  %v1592 = vsub.f32 1.5, %v1591
  %v1593 = vmul.f32 %v1588, %v1592
  %vm1594 = vweird.f32 %v1566
  %vm1595 = vweird.f32 %v1588
  %vm1596 = vmor %vm1594, %vm1595
  %v1597 = vsel %vm1596, %v1588, %v1593
  %v1598 = vrsqrt.pop %v1567
  %v1599 = vmul.f32 %v1598, %v1567
  %v1600 = vmul.f32 %v1599, %v1598
  %v1601 = vmul.f32 0.5, %v1600
  %v1602 = vsub.f32 1.5, %v1601
  %v1603 = vmul.f32 %v1598, %v1602
  %vm1604 = vweird.f32 %v1567
  %vm1605 = vweird.f32 %v1598
  %vm1606 = vmor %vm1604, %vm1605
  %v1607 = vsel %vm1606, %v1598, %v1603
  %v1608 = vmul.f32 %v1540, %v1577
  %v1609 = vmul.f32 %v1541, %v1587
  %v1610 = vmul.f32 %v1542, %v1597
  %v1611 = vmul.f32 %v1543, %v1607
  %v1613 = vperm.slane %v1522, 0
  %v1615 = vmul.f32 %v1608, %v1613
  %v1616 = vmul.f32 %v1609, %v1613
  %v1617 = vmul.f32 %v1610, %v1613
  %v1618 = vmul.f32 %v1611, %v1613
  %v1620 = vperm.slane %v1523, 0
  %v1622 = vadd.f32 %v1615, %v1620
  %v1623 = vadd.f32 %v1616, %v1620
  %v1624 = vadd.f32 %v1617, %v1620
  %v1625 = vadd.f32 %v1618, %v1620
  %v1626 = vld [vmem:[%s15] sm:$0x1]
  %v1627 = vld [vmem:[%s16] sm:$0x1]
  %v1628 = vsel %vm165, %v1622, 0.0
  %1629 = vadd.xlane.f32.xlu0 %v1628
  %v1630 = vpop.xlane.xlu0 %1629
  %v1631 = vsel %vm165, %v1623, 0.0
  %1632 = vadd.xlane.f32.xlu0 %v1631
  %v1633 = vpop.xlane.xlu0 %1632
  %v1634 = vsel %vm165, %v1624, 0.0
  %1635 = vadd.xlane.f32.xlu0 %v1634
  %v1636 = vpop.xlane.xlu0 %1635
  %v1637 = vsel %vm165, %v1625, 0.0
  %1638 = vadd.xlane.f32.xlu0 %v1637
  %v1639 = vpop.xlane.xlu0 %1638
  %v1640 = vmul.f32 %v1630, %v1288
  %v1641 = vmul.f32 %v1633, %v1288
  %v1642 = vmul.f32 %v1636, %v1288
  %v1643 = vmul.f32 %v1639, %v1288
  %v1644 = vsub.f32 %v1622, %v1640
  %v1645 = vsub.f32 %v1623, %v1641
  %v1646 = vsub.f32 %v1624, %v1642
  %v1647 = vsub.f32 %v1625, %v1643
  %v1648 = vmul.f32 %v1644, %v1644
  %v1649 = vmul.f32 %v1645, %v1645
  %v1650 = vmul.f32 %v1646, %v1646
  %v1651 = vmul.f32 %v1647, %v1647
  %v1652 = vsel %vm165, %v1648, 0.0
  %1653 = vadd.xlane.f32.xlu0 %v1652
  %v1654 = vpop.xlane.xlu0 %1653
  %v1655 = vsel %vm165, %v1649, 0.0
  %1656 = vadd.xlane.f32.xlu0 %v1655
  %v1657 = vpop.xlane.xlu0 %1656
  %v1658 = vsel %vm165, %v1650, 0.0
  %1659 = vadd.xlane.f32.xlu0 %v1658
  %v1660 = vpop.xlane.xlu0 %1659
  %v1661 = vsel %vm165, %v1651, 0.0
  %1662 = vadd.xlane.f32.xlu0 %v1661
  %v1663 = vpop.xlane.xlu0 %1662
  %v1664 = vmul.f32 %v1654, %v1288
  %v1665 = vmul.f32 %v1657, %v1288
  %v1666 = vmul.f32 %v1660, %v1288
  %v1667 = vmul.f32 %v1663, %v1288
  %v1668 = vadd.f32 %v1664, 1e-05
  %v1669 = vadd.f32 %v1665, 1e-05
  %v1670 = vadd.f32 %v1666, 1e-05
  %v1671 = vadd.f32 %v1667, 1e-05
  %v1672 = vrsqrt.pop %v1668
  %v1673 = vmul.f32 %v1672, %v1668
  %v1674 = vmul.f32 %v1673, %v1672
  %v1675 = vmul.f32 0.5, %v1674
  %v1676 = vsub.f32 1.5, %v1675
  %v1677 = vmul.f32 %v1672, %v1676
  %vm1678 = vweird.f32 %v1668
  %vm1679 = vweird.f32 %v1672
  %vm1680 = vmor %vm1678, %vm1679
  %v1681 = vsel %vm1680, %v1672, %v1677
  %v1682 = vrsqrt.pop %v1669
  %v1683 = vmul.f32 %v1682, %v1669
  %v1684 = vmul.f32 %v1683, %v1682
  %v1685 = vmul.f32 0.5, %v1684
  %v1686 = vsub.f32 1.5, %v1685
  %v1687 = vmul.f32 %v1682, %v1686
  %vm1688 = vweird.f32 %v1669
  %vm1689 = vweird.f32 %v1682
  %vm1690 = vmor %vm1688, %vm1689
  %v1691 = vsel %vm1690, %v1682, %v1687
  %v1692 = vrsqrt.pop %v1670
  %v1693 = vmul.f32 %v1692, %v1670
  %v1694 = vmul.f32 %v1693, %v1692
  %v1695 = vmul.f32 0.5, %v1694
  %v1696 = vsub.f32 1.5, %v1695
  %v1697 = vmul.f32 %v1692, %v1696
  %vm1698 = vweird.f32 %v1670
  %vm1699 = vweird.f32 %v1692
  %vm1700 = vmor %vm1698, %vm1699
  %v1701 = vsel %vm1700, %v1692, %v1697
  %v1702 = vrsqrt.pop %v1671
  %v1703 = vmul.f32 %v1702, %v1671
  %v1704 = vmul.f32 %v1703, %v1702
  %v1705 = vmul.f32 0.5, %v1704
  %v1706 = vsub.f32 1.5, %v1705
  %v1707 = vmul.f32 %v1702, %v1706
  %vm1708 = vweird.f32 %v1671
  %vm1709 = vweird.f32 %v1702
  %vm1710 = vmor %vm1708, %vm1709
  %v1711 = vsel %vm1710, %v1702, %v1707
  %v1712 = vmul.f32 %v1644, %v1681
  %v1713 = vmul.f32 %v1645, %v1691
  %v1714 = vmul.f32 %v1646, %v1701
  %v1715 = vmul.f32 %v1647, %v1711
  %v1717 = vperm.slane %v1626, 0
  %v1719 = vmul.f32 %v1712, %v1717
  %v1720 = vmul.f32 %v1713, %v1717
  %v1721 = vmul.f32 %v1714, %v1717
  %v1722 = vmul.f32 %v1715, %v1717
  %v1724 = vperm.slane %v1627, 0
  %v1726 = vadd.f32 %v1719, %v1724
  %v1727 = vadd.f32 %v1720, %v1724
  %v1728 = vadd.f32 %v1721, %v1724
  %v1729 = vadd.f32 %v1722, %v1724
  %v1730 = vld [vmem:[%s17] sm:$0xff]
  %v1731 = vld [vmem:[%s17 + $0x8] sm:$0xff]
  %v1732 = vld [vmem:[%s17 + $0x10] sm:$0xff]
  %v1733 = vld [vmem:[%s17 + $0x18] sm:$0xff]
  %v1734 = vld [vmem:[%s18] sm:$0x1]
  %v1736 = vperm.slane %v1734, 0
  %v1739 = vsel %vm165, %v1726, 0
  %v1742 = vsel %vm165, %v1727, 0
  %v1745 = vsel %vm165, %v1728, 0
  %v1748 = vsel %vm165, %v1729, 0
  %1750 = vmatpush.msra.mxu0 0.0
  %1751 = vmatpush.msra.mxu0 0.0
  %1752 = vmatpush.msra.mxu0 0.0
  %1753 = vmatpush.msra.mxu0 0.0
  %1754 = vmatpush.msra.mxu0 0.0
  %1755 = vmatpush.msra.mxu0 0.0
  %1756 = vmatpush.msra.mxu0 0.0
  %1757 = vmatpush.msra.mxu0 0.0
  %1758 = vmatpush.msra.mxu0 0.0
  %1759 = vmatpush.msra.mxu0 0.0
  %1760 = vmatpush.msra.mxu0 0.0
  %1761 = vmatpush.msra.mxu0 0.0
  %1762 = vmatpush.msra.mxu0 %v1733
  %1763 = vmatpush.msra.mxu0 %v1732
  %1764 = vmatpush.msra.mxu0 %v1731
  %1765 = vmatpush.msra.mxu0 %v1730
  %1766 = vmatmul.f32.gmra.mxu0 %v1739
  %v1767 = vpop.f32.mrf.mxu0
  %v1768 = vadd.f32 %v1736, %v1767
  %1769 = vmatmul.f32.gmra.mxu0 %v1742
  %v1770 = vpop.f32.mrf.mxu0
  %v1771 = vadd.f32 %v1736, %v1770
  %1772 = vmatmul.f32.gmra.mxu0 %v1745
  %v1773 = vpop.f32.mrf.mxu0
  %v1774 = vadd.f32 %v1736, %v1773
  %1775 = vmatmul.f32.gmra.mxu0 %v1748
  %v1776 = vpop.f32.mrf.mxu0
  %v1777 = vadd.f32 %v1736, %v1776
  %1778 = vdwg.mxu0
  %vm1779 = vcmask 23552
  %v1780 = vsel %vm1779, %v1768, -inf
  %1781 = vmax.xlane.f32.xlu0 %v1780
  %v1782 = vpop.xlane.xlu0 %1781
  %v1783 = vsel %vm1779, %v1771, -inf
  %1784 = vmax.xlane.f32.xlu0 %v1783
  %v1785 = vpop.xlane.xlu0 %1784
  %v1786 = vsel %vm1779, %v1774, -inf
  %1787 = vmax.xlane.f32.xlu0 %v1786
  %v1788 = vpop.xlane.xlu0 %1787
  %v1789 = vsel %vm1779, %v1777, -inf
  %1790 = vmax.xlane.f32.xlu0 %v1789
  %v1791 = vpop.xlane.xlu0 %1790
  %v1792 = vsub.f32 %v1768, %v1782
  %v1793 = vsub.f32 %v1771, %v1785
  %v1794 = vsub.f32 %v1774, %v1788
  %v1795 = vsub.f32 %v1777, %v1791
  %v1796 = vmul.f32 %v1792, 1.442695
  %v1797 = vpow.pop %v1796
  %v1798 = vmul.f32 %v1793, 1.442695
  %v1799 = vpow.pop %v1798
  %v1800 = vmul.f32 %v1794, 1.442695
  %v1801 = vpow.pop %v1800
  %v1802 = vmul.f32 %v1795, 1.442695
  %v1803 = vpow.pop %v1802
  %v1804 = vsel %vm1779, %v1797, 0.0
  %1805 = vadd.xlane.f32.xlu0 %v1804
  %v1806 = vpop.xlane.xlu0 %1805
  %v1807 = vsel %vm1779, %v1799, 0.0
  %1808 = vadd.xlane.f32.xlu0 %v1807
  %v1809 = vpop.xlane.xlu0 %1808
  %v1810 = vsel %vm1779, %v1801, 0.0
  %1811 = vadd.xlane.f32.xlu0 %v1810
  %v1812 = vpop.xlane.xlu0 %1811
  %v1813 = vsel %vm1779, %v1803, 0.0
  %1814 = vadd.xlane.f32.xlu0 %v1813
  %v1815 = vpop.xlane.xlu0 %1814
  %v1816 = vrcp.pop %v1806
  %v1817 = vmul.f32 %v1806, %v1816
  %v1818 = vsub.f32 1.0, %v1817
  %v1819 = vmul.f32 %v1816, %v1818
  %v1820 = vadd.f32 %v1816, %v1819
  %vm1821 = vweird.f32 %v1806
  %vm1822 = vweird.f32 %v1816
  %vm1823 = vmor %vm1821, %vm1822
  %v1824 = vsel %vm1823, %v1816, %v1820
  %v1825 = vand.u32 2147483647, %v1806
  %vm1826 = vcmp.eq.f32.partialorder %v1825, 8.507059e+37
  %v1827 = vand.u32 %v1806, 2147483648
  %v1828 = vor.u32 1.1754944e-38, %v1827
  %v1829 = vsel %vm1826, %v1828, %v1824
  %v1830 = vmul.f32 %v1797, %v1829
  %v1831 = vrcp.pop %v1809
  %v1832 = vmul.f32 %v1809, %v1831
  %v1833 = vsub.f32 1.0, %v1832
  %v1834 = vmul.f32 %v1831, %v1833
  %v1835 = vadd.f32 %v1831, %v1834
  %vm1836 = vweird.f32 %v1809
  %vm1837 = vweird.f32 %v1831
  %vm1838 = vmor %vm1836, %vm1837
  %v1839 = vsel %vm1838, %v1831, %v1835
  %v1840 = vand.u32 2147483647, %v1809
  %vm1841 = vcmp.eq.f32.partialorder %v1840, 8.507059e+37
  %v1842 = vand.u32 %v1809, 2147483648
  %v1843 = vor.u32 1.1754944e-38, %v1842
  %v1844 = vsel %vm1841, %v1843, %v1839
  %v1845 = vmul.f32 %v1799, %v1844
  %v1846 = vrcp.pop %v1812
  %v1847 = vmul.f32 %v1812, %v1846
  %v1848 = vsub.f32 1.0, %v1847
  %v1849 = vmul.f32 %v1846, %v1848
  %v1850 = vadd.f32 %v1846, %v1849
  %vm1851 = vweird.f32 %v1812
  %vm1852 = vweird.f32 %v1846
  %vm1853 = vmor %vm1851, %vm1852
  %v1854 = vsel %vm1853, %v1846, %v1850
  %v1855 = vand.u32 2147483647, %v1812
  %vm1856 = vcmp.eq.f32.partialorder %v1855, 8.507059e+37
  %v1857 = vand.u32 %v1812, 2147483648
  %v1858 = vor.u32 1.1754944e-38, %v1857
  %v1859 = vsel %vm1856, %v1858, %v1854
  %v1860 = vmul.f32 %v1801, %v1859
  %v1861 = vrcp.pop %v1815
  %v1862 = vmul.f32 %v1815, %v1861
  %v1863 = vsub.f32 1.0, %v1862
  %v1864 = vmul.f32 %v1861, %v1863
  %v1865 = vadd.f32 %v1861, %v1864
  %vm1866 = vweird.f32 %v1815
  %vm1867 = vweird.f32 %v1861
  %vm1868 = vmor %vm1866, %vm1867
  %v1869 = vsel %vm1868, %v1861, %v1865
  %v1870 = vand.u32 2147483647, %v1815
  %vm1871 = vcmp.eq.f32.partialorder %v1870, 8.507059e+37
  %v1872 = vand.u32 %v1815, 2147483648
  %v1873 = vor.u32 1.1754944e-38, %v1872
  %v1874 = vsel %vm1871, %v1873, %v1869
  %v1875 = vmul.f32 %v1803, %v1874
  %v1876 = vxor.u32 %v1726, 2147483648
  %v1877 = vxor.u32 %v1727, 2147483648
  %v1878 = vxor.u32 %v1728, 2147483648
  %v1879 = vxor.u32 %v1729, 2147483648
  %v1880 = vmul.f32 %v1876, 1.442695
  %v1881 = vpow.pop %v1880
  %v1882 = vmul.f32 %v1877, 1.442695
  %v1883 = vpow.pop %v1882
  %v1884 = vmul.f32 %v1878, 1.442695
  %v1885 = vpow.pop %v1884
  %v1886 = vmul.f32 %v1879, 1.442695
  %v1887 = vpow.pop %v1886
  %v1888 = vadd.f32 %v1881, 1.0
  %v1889 = vadd.f32 %v1883, 1.0
  %v1890 = vadd.f32 %v1885, 1.0
  %v1891 = vadd.f32 %v1887, 1.0
  %v1892 = vrcp.pop %v1888
  %v1893 = vmul.f32 %v1888, %v1892
  %v1894 = vsub.f32 1.0, %v1893
  %v1895 = vmul.f32 %v1892, %v1894
  %v1896 = vadd.f32 %v1892, %v1895
  %vm1897 = vweird.f32 %v1888
  %vm1898 = vweird.f32 %v1892
  %vm1899 = vmor %vm1897, %vm1898
  %v1900 = vsel %vm1899, %v1892, %v1896
  %v1901 = vand.u32 2147483647, %v1888
  %vm1902 = vcmp.eq.f32.partialorder %v1901, 8.507059e+37
  %v1903 = vand.u32 %v1888, 2147483648
  %v1904 = vor.u32 1.1754944e-38, %v1903
  %v1905 = vsel %vm1902, %v1904, %v1900
  %v1906 = vmul.f32 1.0, %v1905
  %v1907 = vrcp.pop %v1889
  %v1908 = vmul.f32 %v1889, %v1907
  %v1909 = vsub.f32 1.0, %v1908
  %v1910 = vmul.f32 %v1907, %v1909
  %v1911 = vadd.f32 %v1907, %v1910
  %vm1912 = vweird.f32 %v1889
  %vm1913 = vweird.f32 %v1907
  %vm1914 = vmor %vm1912, %vm1913
  %v1915 = vsel %vm1914, %v1907, %v1911
  %v1916 = vand.u32 2147483647, %v1889
  %vm1917 = vcmp.eq.f32.partialorder %v1916, 8.507059e+37
  %v1918 = vand.u32 %v1889, 2147483648
  %v1919 = vor.u32 1.1754944e-38, %v1918
  %v1920 = vsel %vm1917, %v1919, %v1915
  %v1921 = vmul.f32 1.0, %v1920
  %v1922 = vrcp.pop %v1890
  %v1923 = vmul.f32 %v1890, %v1922
  %v1924 = vsub.f32 1.0, %v1923
  %v1925 = vmul.f32 %v1922, %v1924
  %v1926 = vadd.f32 %v1922, %v1925
  %vm1927 = vweird.f32 %v1890
  %vm1928 = vweird.f32 %v1922
  %vm1929 = vmor %vm1927, %vm1928
  %v1930 = vsel %vm1929, %v1922, %v1926
  %v1931 = vand.u32 2147483647, %v1890
  %vm1932 = vcmp.eq.f32.partialorder %v1931, 8.507059e+37
  %v1933 = vand.u32 %v1890, 2147483648
  %v1934 = vor.u32 1.1754944e-38, %v1933
  %v1935 = vsel %vm1932, %v1934, %v1930
  %v1936 = vmul.f32 1.0, %v1935
  %v1937 = vrcp.pop %v1891
  %v1938 = vmul.f32 %v1891, %v1937
  %v1939 = vsub.f32 1.0, %v1938
  %v1940 = vmul.f32 %v1937, %v1939
  %v1941 = vadd.f32 %v1937, %v1940
  %vm1942 = vweird.f32 %v1891
  %vm1943 = vweird.f32 %v1937
  %vm1944 = vmor %vm1942, %vm1943
  %v1945 = vsel %vm1944, %v1937, %v1941
  %v1946 = vand.u32 2147483647, %v1891
  %vm1947 = vcmp.eq.f32.partialorder %v1946, 8.507059e+37
  %v1948 = vand.u32 %v1891, 2147483648
  %v1949 = vor.u32 1.1754944e-38, %v1948
  %v1950 = vsel %vm1947, %v1949, %v1945
  %v1951 = vmul.f32 1.0, %v1950
  %v1952 = vmul.f32 %v1726, %v1906
  %v1953 = vmul.f32 %v1727, %v1921
  %v1954 = vmul.f32 %v1728, %v1936
  %v1955 = vmul.f32 %v1729, %v1951
  %v1956 = vld [vmem:[%s19] sm:$0xff]
  %v1957 = vld [vmem:[%s19 + $0x8] sm:$0xff]
  %v1958 = vld [vmem:[%s19 + $0x10] sm:$0xff]
  %v1959 = vld [vmem:[%s19 + $0x18] sm:$0xff]
  %vm1960 = vcmp.ge.f32.partialorder %v1726, -2.2
  %vm1961 = vcmp.ge.f32.partialorder %v1727, -2.2
  %vm1962 = vcmp.ge.f32.partialorder %v1728, -2.2
  %vm1963 = vcmp.ge.f32.partialorder %v1729, -2.2
  %vm1964 = vcmp.lt.f32.partialorder %v1726, -1.8
  %vm1965 = vcmp.lt.f32.partialorder %v1727, -1.8
  %vm1966 = vcmp.lt.f32.partialorder %v1728, -1.8
  %vm1967 = vcmp.lt.f32.partialorder %v1729, -1.8
  %vm1968 = vmand %vm1960, %vm1964
  %vm1969 = vmand %vm1961, %vm1965
  %vm1970 = vmand %vm1962, %vm1966
  %vm1971 = vmand %vm1963, %vm1967
  %v1972 = vsel %vm1968, 1.0, 0.0
  %v1973 = vsel %vm1969, 1.0, 0.0
  %v1974 = vsel %vm1970, 1.0, 0.0
  %v1975 = vsel %vm1971, 1.0, 0.0
  %vm1976 = vcmp.ge.f32.partialorder %v1726, -1.8
  %vm1977 = vcmp.ge.f32.partialorder %v1727, -1.8
  %vm1978 = vcmp.ge.f32.partialorder %v1728, -1.8
  %vm1979 = vcmp.ge.f32.partialorder %v1729, -1.8
  %vm1980 = vcmp.lt.f32.partialorder %v1726, -1.4
  %vm1981 = vcmp.lt.f32.partialorder %v1727, -1.4
  %vm1982 = vcmp.lt.f32.partialorder %v1728, -1.4
  %vm1983 = vcmp.lt.f32.partialorder %v1729, -1.4
  %vm1984 = vmand %vm1976, %vm1980
  %vm1985 = vmand %vm1977, %vm1981
  %vm1986 = vmand %vm1978, %vm1982
  %vm1987 = vmand %vm1979, %vm1983
  %v1988 = vsel %vm1984, 1.0, 0.0
  %v1989 = vsel %vm1985, 1.0, 0.0
  %v1990 = vsel %vm1986, 1.0, 0.0
  %v1991 = vsel %vm1987, 1.0, 0.0
  %vm1992 = vcmp.ge.f32.partialorder %v1726, -1.4
  %vm1993 = vcmp.ge.f32.partialorder %v1727, -1.4
  %vm1994 = vcmp.ge.f32.partialorder %v1728, -1.4
  %vm1995 = vcmp.ge.f32.partialorder %v1729, -1.4
  %vm1996 = vcmp.lt.f32.partialorder %v1726, -1.0
  %vm1997 = vcmp.lt.f32.partialorder %v1727, -1.0
  %vm1998 = vcmp.lt.f32.partialorder %v1728, -1.0
  %vm1999 = vcmp.lt.f32.partialorder %v1729, -1.0
  %vm2000 = vmand %vm1992, %vm1996
  %vm2001 = vmand %vm1993, %vm1997
  %vm2002 = vmand %vm1994, %vm1998
  %vm2003 = vmand %vm1995, %vm1999
  %v2004 = vsel %vm2000, 1.0, 0.0
  %v2005 = vsel %vm2001, 1.0, 0.0
  %v2006 = vsel %vm2002, 1.0, 0.0
  %v2007 = vsel %vm2003, 1.0, 0.0
  %vm2008 = vcmp.ge.f32.partialorder %v1726, -1.0
  %vm2009 = vcmp.ge.f32.partialorder %v1727, -1.0
  %vm2010 = vcmp.ge.f32.partialorder %v1728, -1.0
  %vm2011 = vcmp.ge.f32.partialorder %v1729, -1.0
  %vm2012 = vcmp.lt.f32.partialorder %v1726, -0.6
  %vm2013 = vcmp.lt.f32.partialorder %v1727, -0.6
  %vm2014 = vcmp.lt.f32.partialorder %v1728, -0.6
  %vm2015 = vcmp.lt.f32.partialorder %v1729, -0.6
  %vm2016 = vmand %vm2008, %vm2012
  %vm2017 = vmand %vm2009, %vm2013
  %vm2018 = vmand %vm2010, %vm2014
  %vm2019 = vmand %vm2011, %vm2015
  %v2020 = vsel %vm2016, 1.0, 0.0
  %v2021 = vsel %vm2017, 1.0, 0.0
  %v2022 = vsel %vm2018, 1.0, 0.0
  %v2023 = vsel %vm2019, 1.0, 0.0
  %vm2024 = vcmp.ge.f32.partialorder %v1726, -0.6
  %vm2025 = vcmp.ge.f32.partialorder %v1727, -0.6
  %vm2026 = vcmp.ge.f32.partialorder %v1728, -0.6
  %vm2027 = vcmp.ge.f32.partialorder %v1729, -0.6
  %vm2028 = vcmp.lt.f32.partialorder %v1726, -0.2
  %vm2029 = vcmp.lt.f32.partialorder %v1727, -0.2
  %vm2030 = vcmp.lt.f32.partialorder %v1728, -0.2
  %vm2031 = vcmp.lt.f32.partialorder %v1729, -0.2
  %vm2032 = vmand %vm2024, %vm2028
  %vm2033 = vmand %vm2025, %vm2029
  %vm2034 = vmand %vm2026, %vm2030
  %vm2035 = vmand %vm2027, %vm2031
  %v2036 = vsel %vm2032, 1.0, 0.0
  %v2037 = vsel %vm2033, 1.0, 0.0
  %v2038 = vsel %vm2034, 1.0, 0.0
  %v2039 = vsel %vm2035, 1.0, 0.0
  %vm2040 = vcmp.ge.f32.partialorder %v1726, -0.2
  %vm2041 = vcmp.ge.f32.partialorder %v1727, -0.2
  %vm2042 = vcmp.ge.f32.partialorder %v1728, -0.2
  %vm2043 = vcmp.ge.f32.partialorder %v1729, -0.2
  %vm2044 = vcmp.lt.f32.partialorder %v1726, 0.2
  %vm2045 = vcmp.lt.f32.partialorder %v1727, 0.2
  %vm2046 = vcmp.lt.f32.partialorder %v1728, 0.2
  %vm2047 = vcmp.lt.f32.partialorder %v1729, 0.2
  %vm2048 = vmand %vm2040, %vm2044
  %vm2049 = vmand %vm2041, %vm2045
  %vm2050 = vmand %vm2042, %vm2046
  %vm2051 = vmand %vm2043, %vm2047
  %v2052 = vsel %vm2048, 1.0, 0.0
  %v2053 = vsel %vm2049, 1.0, 0.0
  %v2054 = vsel %vm2050, 1.0, 0.0
  %v2055 = vsel %vm2051, 1.0, 0.0
  %vm2056 = vcmp.ge.f32.partialorder %v1726, 0.2
  %vm2057 = vcmp.ge.f32.partialorder %v1727, 0.2
  %vm2058 = vcmp.ge.f32.partialorder %v1728, 0.2
  %vm2059 = vcmp.ge.f32.partialorder %v1729, 0.2
  %vm2060 = vcmp.lt.f32.partialorder %v1726, 0.6
  %vm2061 = vcmp.lt.f32.partialorder %v1727, 0.6
  %vm2062 = vcmp.lt.f32.partialorder %v1728, 0.6
  %vm2063 = vcmp.lt.f32.partialorder %v1729, 0.6
  %vm2064 = vmand %vm2056, %vm2060
  %vm2065 = vmand %vm2057, %vm2061
  %vm2066 = vmand %vm2058, %vm2062
  %vm2067 = vmand %vm2059, %vm2063
  %v2068 = vsel %vm2064, 1.0, 0.0
  %v2069 = vsel %vm2065, 1.0, 0.0
  %v2070 = vsel %vm2066, 1.0, 0.0
  %v2071 = vsel %vm2067, 1.0, 0.0
  %vm2072 = vcmp.ge.f32.partialorder %v1726, 0.6
  %vm2073 = vcmp.ge.f32.partialorder %v1727, 0.6
  %vm2074 = vcmp.ge.f32.partialorder %v1728, 0.6
  %vm2075 = vcmp.ge.f32.partialorder %v1729, 0.6
  %vm2076 = vcmp.lt.f32.partialorder %v1726, 1.0
  %vm2077 = vcmp.lt.f32.partialorder %v1727, 1.0
  %vm2078 = vcmp.lt.f32.partialorder %v1728, 1.0
  %vm2079 = vcmp.lt.f32.partialorder %v1729, 1.0
  %vm2080 = vmand %vm2072, %vm2076
  %vm2081 = vmand %vm2073, %vm2077
  %vm2082 = vmand %vm2074, %vm2078
  %vm2083 = vmand %vm2075, %vm2079
  %v2084 = vsel %vm2080, 1.0, 0.0
  %v2085 = vsel %vm2081, 1.0, 0.0
  %v2086 = vsel %vm2082, 1.0, 0.0
  %v2087 = vsel %vm2083, 1.0, 0.0
  %vm2088 = vcmp.ge.f32.partialorder %v1726, 1.0
  %vm2089 = vcmp.ge.f32.partialorder %v1727, 1.0
  %vm2090 = vcmp.ge.f32.partialorder %v1728, 1.0
  %vm2091 = vcmp.ge.f32.partialorder %v1729, 1.0
  %vm2092 = vcmp.lt.f32.partialorder %v1726, 1.4
  %vm2093 = vcmp.lt.f32.partialorder %v1727, 1.4
  %vm2094 = vcmp.lt.f32.partialorder %v1728, 1.4
  %vm2095 = vcmp.lt.f32.partialorder %v1729, 1.4
  %vm2096 = vmand %vm2088, %vm2092
  %vm2097 = vmand %vm2089, %vm2093
  %vm2098 = vmand %vm2090, %vm2094
  %vm2099 = vmand %vm2091, %vm2095
  %v2100 = vsel %vm2096, 1.0, 0.0
  %v2101 = vsel %vm2097, 1.0, 0.0
  %v2102 = vsel %vm2098, 1.0, 0.0
  %v2103 = vsel %vm2099, 1.0, 0.0
  %vm2104 = vcmp.ge.f32.partialorder %v1726, 1.4
  %vm2105 = vcmp.ge.f32.partialorder %v1727, 1.4
  %vm2106 = vcmp.ge.f32.partialorder %v1728, 1.4
  %vm2107 = vcmp.ge.f32.partialorder %v1729, 1.4
  %vm2108 = vcmp.lt.f32.partialorder %v1726, 1.8
  %vm2109 = vcmp.lt.f32.partialorder %v1727, 1.8
  %vm2110 = vcmp.lt.f32.partialorder %v1728, 1.8
  %vm2111 = vcmp.lt.f32.partialorder %v1729, 1.8
  %vm2112 = vmand %vm2104, %vm2108
  %vm2113 = vmand %vm2105, %vm2109
  %vm2114 = vmand %vm2106, %vm2110
  %vm2115 = vmand %vm2107, %vm2111
  %v2116 = vsel %vm2112, 1.0, 0.0
  %v2117 = vsel %vm2113, 1.0, 0.0
  %v2118 = vsel %vm2114, 1.0, 0.0
  %v2119 = vsel %vm2115, 1.0, 0.0
  %vm2120 = vcmp.ge.f32.partialorder %v1726, 1.8
  %vm2121 = vcmp.ge.f32.partialorder %v1727, 1.8
  %vm2122 = vcmp.ge.f32.partialorder %v1728, 1.8
  %vm2123 = vcmp.ge.f32.partialorder %v1729, 1.8
  %vm2124 = vcmp.lt.f32.partialorder %v1726, 2.2
  %vm2125 = vcmp.lt.f32.partialorder %v1727, 2.2
  %vm2126 = vcmp.lt.f32.partialorder %v1728, 2.2
  %vm2127 = vcmp.lt.f32.partialorder %v1729, 2.2
  %vm2128 = vmand %vm2120, %vm2124
  %vm2129 = vmand %vm2121, %vm2125
  %vm2130 = vmand %vm2122, %vm2126
  %vm2131 = vmand %vm2123, %vm2127
  %v2132 = vsel %vm2128, 1.0, 0.0
  %v2133 = vsel %vm2129, 1.0, 0.0
  %v2134 = vsel %vm2130, 1.0, 0.0
  %v2135 = vsel %vm2131, 1.0, 0.0
  %v2136 = vsub.f32 %v1726, -2.2
  %v2137 = vsub.f32 %v1727, -2.2
  %v2138 = vsub.f32 %v1728, -2.2
  %v2139 = vsub.f32 %v1729, -2.2
  %v2140 = vmul.f32 %v2136, 2.5
  %v2141 = vmul.f32 %v2137, 2.5
  %v2142 = vmul.f32 %v2138, 2.5
  %v2143 = vmul.f32 %v2139, 2.5
  %v2144 = vmul.f32 %v2140, %v1972
  %v2145 = vmul.f32 %v2141, %v1973
  %v2146 = vmul.f32 %v2142, %v1974
  %v2147 = vmul.f32 %v2143, %v1975
  %v2148 = vsub.f32 -1.4, %v1726
  %v2149 = vsub.f32 -1.4, %v1727
  %v2150 = vsub.f32 -1.4, %v1728
  %v2151 = vsub.f32 -1.4, %v1729
  %v2152 = vmul.f32 %v2148, 2.5
  %v2153 = vmul.f32 %v2149, 2.5
  %v2154 = vmul.f32 %v2150, 2.5
  %v2155 = vmul.f32 %v2151, 2.5
  %v2156 = vmul.f32 %v2152, %v1988
  %v2157 = vmul.f32 %v2153, %v1989
  %v2158 = vmul.f32 %v2154, %v1990
  %v2159 = vmul.f32 %v2155, %v1991
  %v2160 = vadd.f32 %v2144, %v2156
  %v2161 = vadd.f32 %v2145, %v2157
  %v2162 = vadd.f32 %v2146, %v2158
  %v2163 = vadd.f32 %v2147, %v2159
  %v2164 = vsub.f32 %v1726, -1.8
  %v2165 = vsub.f32 %v1727, -1.8
  %v2166 = vsub.f32 %v1728, -1.8
  %v2167 = vsub.f32 %v1729, -1.8
  %v2168 = vmul.f32 %v2164, 2.5
  %v2169 = vmul.f32 %v2165, 2.5
  %v2170 = vmul.f32 %v2166, 2.5
  %v2171 = vmul.f32 %v2167, 2.5
  %v2172 = vmul.f32 %v2168, %v1988
  %v2173 = vmul.f32 %v2169, %v1989
  %v2174 = vmul.f32 %v2170, %v1990
  %v2175 = vmul.f32 %v2171, %v1991
  %v2176 = vsub.f32 -1.0, %v1726
  %v2177 = vsub.f32 -1.0, %v1727
  %v2178 = vsub.f32 -1.0, %v1728
  %v2179 = vsub.f32 -1.0, %v1729
  %v2180 = vmul.f32 %v2176, 2.5
  %v2181 = vmul.f32 %v2177, 2.5
  %v2182 = vmul.f32 %v2178, 2.5
  %v2183 = vmul.f32 %v2179, 2.5
  %v2184 = vmul.f32 %v2180, %v2004
  %v2185 = vmul.f32 %v2181, %v2005
  %v2186 = vmul.f32 %v2182, %v2006
  %v2187 = vmul.f32 %v2183, %v2007
  %v2188 = vadd.f32 %v2172, %v2184
  %v2189 = vadd.f32 %v2173, %v2185
  %v2190 = vadd.f32 %v2174, %v2186
  %v2191 = vadd.f32 %v2175, %v2187
  %v2192 = vsub.f32 %v1726, -1.4
  %v2193 = vsub.f32 %v1727, -1.4
  %v2194 = vsub.f32 %v1728, -1.4
  %v2195 = vsub.f32 %v1729, -1.4
  %v2196 = vmul.f32 %v2192, 2.5
  %v2197 = vmul.f32 %v2193, 2.5
  %v2198 = vmul.f32 %v2194, 2.5
  %v2199 = vmul.f32 %v2195, 2.5
  %v2200 = vmul.f32 %v2196, %v2004
  %v2201 = vmul.f32 %v2197, %v2005
  %v2202 = vmul.f32 %v2198, %v2006
  %v2203 = vmul.f32 %v2199, %v2007
  %v2204 = vsub.f32 -0.6, %v1726
  %v2205 = vsub.f32 -0.6, %v1727
  %v2206 = vsub.f32 -0.6, %v1728
  %v2207 = vsub.f32 -0.6, %v1729
  %v2208 = vmul.f32 %v2204, 2.5
  %v2209 = vmul.f32 %v2205, 2.5
  %v2210 = vmul.f32 %v2206, 2.5
  %v2211 = vmul.f32 %v2207, 2.5
  %v2212 = vmul.f32 %v2208, %v2020
  %v2213 = vmul.f32 %v2209, %v2021
  %v2214 = vmul.f32 %v2210, %v2022
  %v2215 = vmul.f32 %v2211, %v2023
  %v2216 = vadd.f32 %v2200, %v2212
  %v2217 = vadd.f32 %v2201, %v2213
  %v2218 = vadd.f32 %v2202, %v2214
  %v2219 = vadd.f32 %v2203, %v2215
  %v2220 = vsub.f32 %v1726, -1.0
  %v2221 = vsub.f32 %v1727, -1.0
  %v2222 = vsub.f32 %v1728, -1.0
  %v2223 = vsub.f32 %v1729, -1.0
  %v2224 = vmul.f32 %v2220, 2.5
  %v2225 = vmul.f32 %v2221, 2.5
  %v2226 = vmul.f32 %v2222, 2.5
  %v2227 = vmul.f32 %v2223, 2.5
  %v2228 = vmul.f32 %v2224, %v2020
  %v2229 = vmul.f32 %v2225, %v2021
  %v2230 = vmul.f32 %v2226, %v2022
  %v2231 = vmul.f32 %v2227, %v2023
  %v2232 = vsub.f32 -0.2, %v1726
  %v2233 = vsub.f32 -0.2, %v1727
  %v2234 = vsub.f32 -0.2, %v1728
  %v2235 = vsub.f32 -0.2, %v1729
  %v2236 = vmul.f32 %v2232, 2.5
  %v2237 = vmul.f32 %v2233, 2.5
  %v2238 = vmul.f32 %v2234, 2.5
  %v2239 = vmul.f32 %v2235, 2.5
  %v2240 = vmul.f32 %v2236, %v2036
  %v2241 = vmul.f32 %v2237, %v2037
  %v2242 = vmul.f32 %v2238, %v2038
  %v2243 = vmul.f32 %v2239, %v2039
  %v2244 = vadd.f32 %v2228, %v2240
  %v2245 = vadd.f32 %v2229, %v2241
  %v2246 = vadd.f32 %v2230, %v2242
  %v2247 = vadd.f32 %v2231, %v2243
  %v2248 = vsub.f32 %v1726, -0.6
  %v2249 = vsub.f32 %v1727, -0.6
  %v2250 = vsub.f32 %v1728, -0.6
  %v2251 = vsub.f32 %v1729, -0.6
  %v2252 = vmul.f32 %v2248, 2.5
  %v2253 = vmul.f32 %v2249, 2.5
  %v2254 = vmul.f32 %v2250, 2.5
  %v2255 = vmul.f32 %v2251, 2.5
  %v2256 = vmul.f32 %v2252, %v2036
  %v2257 = vmul.f32 %v2253, %v2037
  %v2258 = vmul.f32 %v2254, %v2038
  %v2259 = vmul.f32 %v2255, %v2039
  %v2260 = vsub.f32 0.2, %v1726
  %v2261 = vsub.f32 0.2, %v1727
  %v2262 = vsub.f32 0.2, %v1728
  %v2263 = vsub.f32 0.2, %v1729
  %v2264 = vmul.f32 %v2260, 2.5
  %v2265 = vmul.f32 %v2261, 2.5
  %v2266 = vmul.f32 %v2262, 2.5
  %v2267 = vmul.f32 %v2263, 2.5
  %v2268 = vmul.f32 %v2264, %v2052
  %v2269 = vmul.f32 %v2265, %v2053
  %v2270 = vmul.f32 %v2266, %v2054
  %v2271 = vmul.f32 %v2267, %v2055
  %v2272 = vadd.f32 %v2256, %v2268
  %v2273 = vadd.f32 %v2257, %v2269
  %v2274 = vadd.f32 %v2258, %v2270
  %v2275 = vadd.f32 %v2259, %v2271
  %v2276 = vsub.f32 %v1726, -0.2
  %v2277 = vsub.f32 %v1727, -0.2
  %v2278 = vsub.f32 %v1728, -0.2
  %v2279 = vsub.f32 %v1729, -0.2
  %v2280 = vmul.f32 %v2276, 2.5
  %v2281 = vmul.f32 %v2277, 2.5
  %v2282 = vmul.f32 %v2278, 2.5
  %v2283 = vmul.f32 %v2279, 2.5
  %v2284 = vmul.f32 %v2280, %v2052
  %v2285 = vmul.f32 %v2281, %v2053
  %v2286 = vmul.f32 %v2282, %v2054
  %v2287 = vmul.f32 %v2283, %v2055
  %v2288 = vsub.f32 0.6, %v1726
  %v2289 = vsub.f32 0.6, %v1727
  %v2290 = vsub.f32 0.6, %v1728
  %v2291 = vsub.f32 0.6, %v1729
  %v2292 = vmul.f32 %v2288, 2.5
  %v2293 = vmul.f32 %v2289, 2.5
  %v2294 = vmul.f32 %v2290, 2.5
  %v2295 = vmul.f32 %v2291, 2.5
  %v2296 = vmul.f32 %v2292, %v2068
  %v2297 = vmul.f32 %v2293, %v2069
  %v2298 = vmul.f32 %v2294, %v2070
  %v2299 = vmul.f32 %v2295, %v2071
  %v2300 = vadd.f32 %v2284, %v2296
  %v2301 = vadd.f32 %v2285, %v2297
  %v2302 = vadd.f32 %v2286, %v2298
  %v2303 = vadd.f32 %v2287, %v2299
  %v2304 = vsub.f32 %v1726, 0.2
  %v2305 = vsub.f32 %v1727, 0.2
  %v2306 = vsub.f32 %v1728, 0.2
  %v2307 = vsub.f32 %v1729, 0.2
  %v2308 = vmul.f32 %v2304, 2.5
  %v2309 = vmul.f32 %v2305, 2.5
  %v2310 = vmul.f32 %v2306, 2.5
  %v2311 = vmul.f32 %v2307, 2.5
  %v2312 = vmul.f32 %v2308, %v2068
  %v2313 = vmul.f32 %v2309, %v2069
  %v2314 = vmul.f32 %v2310, %v2070
  %v2315 = vmul.f32 %v2311, %v2071
  %v2316 = vsub.f32 1.0, %v1726
  %v2317 = vsub.f32 1.0, %v1727
  %v2318 = vsub.f32 1.0, %v1728
  %v2319 = vsub.f32 1.0, %v1729
  %v2320 = vmul.f32 %v2316, 2.5
  %v2321 = vmul.f32 %v2317, 2.5
  %v2322 = vmul.f32 %v2318, 2.5
  %v2323 = vmul.f32 %v2319, 2.5
  %v2324 = vmul.f32 %v2320, %v2084
  %v2325 = vmul.f32 %v2321, %v2085
  %v2326 = vmul.f32 %v2322, %v2086
  %v2327 = vmul.f32 %v2323, %v2087
  %v2328 = vadd.f32 %v2312, %v2324
  %v2329 = vadd.f32 %v2313, %v2325
  %v2330 = vadd.f32 %v2314, %v2326
  %v2331 = vadd.f32 %v2315, %v2327
  %v2332 = vsub.f32 %v1726, 0.6
  %v2333 = vsub.f32 %v1727, 0.6
  %v2334 = vsub.f32 %v1728, 0.6
  %v2335 = vsub.f32 %v1729, 0.6
  %v2336 = vmul.f32 %v2332, 2.5
  %v2337 = vmul.f32 %v2333, 2.5
  %v2338 = vmul.f32 %v2334, 2.5
  %v2339 = vmul.f32 %v2335, 2.5
  %v2340 = vmul.f32 %v2336, %v2084
  %v2341 = vmul.f32 %v2337, %v2085
  %v2342 = vmul.f32 %v2338, %v2086
  %v2343 = vmul.f32 %v2339, %v2087
  %v2344 = vsub.f32 1.4, %v1726
  %v2345 = vsub.f32 1.4, %v1727
  %v2346 = vsub.f32 1.4, %v1728
  %v2347 = vsub.f32 1.4, %v1729
  %v2348 = vmul.f32 %v2344, 2.5
  %v2349 = vmul.f32 %v2345, 2.5
  %v2350 = vmul.f32 %v2346, 2.5
  %v2351 = vmul.f32 %v2347, 2.5
  %v2352 = vmul.f32 %v2348, %v2100
  %v2353 = vmul.f32 %v2349, %v2101
  %v2354 = vmul.f32 %v2350, %v2102
  %v2355 = vmul.f32 %v2351, %v2103
  %v2356 = vadd.f32 %v2340, %v2352
  %v2357 = vadd.f32 %v2341, %v2353
  %v2358 = vadd.f32 %v2342, %v2354
  %v2359 = vadd.f32 %v2343, %v2355
  %v2360 = vsub.f32 %v1726, 1.0
  %v2361 = vsub.f32 %v1727, 1.0
  %v2362 = vsub.f32 %v1728, 1.0
  %v2363 = vsub.f32 %v1729, 1.0
  %v2364 = vmul.f32 %v2360, 2.5
  %v2365 = vmul.f32 %v2361, 2.5
  %v2366 = vmul.f32 %v2362, 2.5
  %v2367 = vmul.f32 %v2363, 2.5
  %v2368 = vmul.f32 %v2364, %v2100
  %v2369 = vmul.f32 %v2365, %v2101
  %v2370 = vmul.f32 %v2366, %v2102
  %v2371 = vmul.f32 %v2367, %v2103
  %v2372 = vsub.f32 1.8, %v1726
  %v2373 = vsub.f32 1.8, %v1727
  %v2374 = vsub.f32 1.8, %v1728
  %v2375 = vsub.f32 1.8, %v1729
  %v2376 = vmul.f32 %v2372, 2.5
  %v2377 = vmul.f32 %v2373, 2.5
  %v2378 = vmul.f32 %v2374, 2.5
  %v2379 = vmul.f32 %v2375, 2.5
  %v2380 = vmul.f32 %v2376, %v2116
  %v2381 = vmul.f32 %v2377, %v2117
  %v2382 = vmul.f32 %v2378, %v2118
  %v2383 = vmul.f32 %v2379, %v2119
  %v2384 = vadd.f32 %v2368, %v2380
  %v2385 = vadd.f32 %v2369, %v2381
  %v2386 = vadd.f32 %v2370, %v2382
  %v2387 = vadd.f32 %v2371, %v2383
  %v2388 = vsub.f32 %v1726, 1.4
  %v2389 = vsub.f32 %v1727, 1.4
  %v2390 = vsub.f32 %v1728, 1.4
  %v2391 = vsub.f32 %v1729, 1.4
  %v2392 = vmul.f32 %v2388, 2.5
  %v2393 = vmul.f32 %v2389, 2.5
  %v2394 = vmul.f32 %v2390, 2.5
  %v2395 = vmul.f32 %v2391, 2.5
  %v2396 = vmul.f32 %v2392, %v2116
  %v2397 = vmul.f32 %v2393, %v2117
  %v2398 = vmul.f32 %v2394, %v2118
  %v2399 = vmul.f32 %v2395, %v2119
  %v2400 = vsub.f32 2.2, %v1726
  %v2401 = vsub.f32 2.2, %v1727
  %v2402 = vsub.f32 2.2, %v1728
  %v2403 = vsub.f32 2.2, %v1729
  %v2404 = vmul.f32 %v2400, 2.5
  %v2405 = vmul.f32 %v2401, 2.5
  %v2406 = vmul.f32 %v2402, 2.5
  %v2407 = vmul.f32 %v2403, 2.5
  %v2408 = vmul.f32 %v2404, %v2132
  %v2409 = vmul.f32 %v2405, %v2133
  %v2410 = vmul.f32 %v2406, %v2134
  %v2411 = vmul.f32 %v2407, %v2135
  %v2412 = vadd.f32 %v2396, %v2408
  %v2413 = vadd.f32 %v2397, %v2409
  %v2414 = vadd.f32 %v2398, %v2410
  %v2415 = vadd.f32 %v2399, %v2411
  %v2416 = vmul.f32 %v2136, 1.25
  %v2417 = vmul.f32 %v2137, 1.25
  %v2418 = vmul.f32 %v2138, 1.25
  %v2419 = vmul.f32 %v2139, 1.25
  %v2420 = vmul.f32 %v2416, %v2160
  %v2421 = vmul.f32 %v2417, %v2161
  %v2422 = vmul.f32 %v2418, %v2162
  %v2423 = vmul.f32 %v2419, %v2163
  %v2424 = vmul.f32 %v2176, 1.25
  %v2425 = vmul.f32 %v2177, 1.25
  %v2426 = vmul.f32 %v2178, 1.25
  %v2427 = vmul.f32 %v2179, 1.25
  %v2428 = vmul.f32 %v2424, %v2188
  %v2429 = vmul.f32 %v2425, %v2189
  %v2430 = vmul.f32 %v2426, %v2190
  %v2431 = vmul.f32 %v2427, %v2191
  %v2432 = vadd.f32 %v2420, %v2428
  %v2433 = vadd.f32 %v2421, %v2429
  %v2434 = vadd.f32 %v2422, %v2430
  %v2435 = vadd.f32 %v2423, %v2431
  %v2436 = vmul.f32 %v2164, 1.25
  %v2437 = vmul.f32 %v2165, 1.25
  %v2438 = vmul.f32 %v2166, 1.25
  %v2439 = vmul.f32 %v2167, 1.25
  %v2440 = vmul.f32 %v2436, %v2188
  %v2441 = vmul.f32 %v2437, %v2189
  %v2442 = vmul.f32 %v2438, %v2190
  %v2443 = vmul.f32 %v2439, %v2191
  %v2444 = vmul.f32 %v2204, 1.25
  %v2445 = vmul.f32 %v2205, 1.25
  %v2446 = vmul.f32 %v2206, 1.25
  %v2447 = vmul.f32 %v2207, 1.25
  %v2448 = vmul.f32 %v2444, %v2216
  %v2449 = vmul.f32 %v2445, %v2217
  %v2450 = vmul.f32 %v2446, %v2218
  %v2451 = vmul.f32 %v2447, %v2219
  %v2452 = vadd.f32 %v2440, %v2448
  %v2453 = vadd.f32 %v2441, %v2449
  %v2454 = vadd.f32 %v2442, %v2450
  %v2455 = vadd.f32 %v2443, %v2451
  %v2456 = vmul.f32 %v2192, 1.25
  %v2457 = vmul.f32 %v2193, 1.25
  %v2458 = vmul.f32 %v2194, 1.25
  %v2459 = vmul.f32 %v2195, 1.25
  %v2460 = vmul.f32 %v2456, %v2216
  %v2461 = vmul.f32 %v2457, %v2217
  %v2462 = vmul.f32 %v2458, %v2218
  %v2463 = vmul.f32 %v2459, %v2219
  %v2464 = vmul.f32 %v2232, 1.25
  %v2465 = vmul.f32 %v2233, 1.25
  %v2466 = vmul.f32 %v2234, 1.25
  %v2467 = vmul.f32 %v2235, 1.25
  %v2468 = vmul.f32 %v2464, %v2244
  %v2469 = vmul.f32 %v2465, %v2245
  %v2470 = vmul.f32 %v2466, %v2246
  %v2471 = vmul.f32 %v2467, %v2247
  %v2472 = vadd.f32 %v2460, %v2468
  %v2473 = vadd.f32 %v2461, %v2469
  %v2474 = vadd.f32 %v2462, %v2470
  %v2475 = vadd.f32 %v2463, %v2471
  %v2476 = vmul.f32 %v2220, 1.25
  %v2477 = vmul.f32 %v2221, 1.25
  %v2478 = vmul.f32 %v2222, 1.25
  %v2479 = vmul.f32 %v2223, 1.25
  %v2480 = vmul.f32 %v2476, %v2244
  %v2481 = vmul.f32 %v2477, %v2245
  %v2482 = vmul.f32 %v2478, %v2246
  %v2483 = vmul.f32 %v2479, %v2247
  %v2484 = vmul.f32 %v2260, 1.25
  %v2485 = vmul.f32 %v2261, 1.25
  %v2486 = vmul.f32 %v2262, 1.25
  %v2487 = vmul.f32 %v2263, 1.25
  %v2488 = vmul.f32 %v2484, %v2272
  %v2489 = vmul.f32 %v2485, %v2273
  %v2490 = vmul.f32 %v2486, %v2274
  %v2491 = vmul.f32 %v2487, %v2275
  %v2492 = vadd.f32 %v2480, %v2488
  %v2493 = vadd.f32 %v2481, %v2489
  %v2494 = vadd.f32 %v2482, %v2490
  %v2495 = vadd.f32 %v2483, %v2491
  %v2496 = vmul.f32 %v2248, 1.25
  %v2497 = vmul.f32 %v2249, 1.25
  %v2498 = vmul.f32 %v2250, 1.25
  %v2499 = vmul.f32 %v2251, 1.25
  %v2500 = vmul.f32 %v2496, %v2272
  %v2501 = vmul.f32 %v2497, %v2273
  %v2502 = vmul.f32 %v2498, %v2274
  %v2503 = vmul.f32 %v2499, %v2275
  %v2504 = vmul.f32 %v2288, 1.25
  %v2505 = vmul.f32 %v2289, 1.25
  %v2506 = vmul.f32 %v2290, 1.25
  %v2507 = vmul.f32 %v2291, 1.25
  %v2508 = vmul.f32 %v2504, %v2300
  %v2509 = vmul.f32 %v2505, %v2301
  %v2510 = vmul.f32 %v2506, %v2302
  %v2511 = vmul.f32 %v2507, %v2303
  %v2512 = vadd.f32 %v2500, %v2508
  %v2513 = vadd.f32 %v2501, %v2509
  %v2514 = vadd.f32 %v2502, %v2510
  %v2515 = vadd.f32 %v2503, %v2511
  %v2516 = vmul.f32 %v2276, 1.25
  %v2517 = vmul.f32 %v2277, 1.25
  %v2518 = vmul.f32 %v2278, 1.25
  %v2519 = vmul.f32 %v2279, 1.25
  %v2520 = vmul.f32 %v2516, %v2300
  %v2521 = vmul.f32 %v2517, %v2301
  %v2522 = vmul.f32 %v2518, %v2302
  %v2523 = vmul.f32 %v2519, %v2303
  %v2524 = vmul.f32 %v2316, 1.25
  %v2525 = vmul.f32 %v2317, 1.25
  %v2526 = vmul.f32 %v2318, 1.25
  %v2527 = vmul.f32 %v2319, 1.25
  %v2528 = vmul.f32 %v2524, %v2328
  %v2529 = vmul.f32 %v2525, %v2329
  %v2530 = vmul.f32 %v2526, %v2330
  %v2531 = vmul.f32 %v2527, %v2331
  %v2532 = vadd.f32 %v2520, %v2528
  %v2533 = vadd.f32 %v2521, %v2529
  %v2534 = vadd.f32 %v2522, %v2530
  %v2535 = vadd.f32 %v2523, %v2531
  %v2536 = vmul.f32 %v2304, 1.25
  %v2537 = vmul.f32 %v2305, 1.25
  %v2538 = vmul.f32 %v2306, 1.25
  %v2539 = vmul.f32 %v2307, 1.25
  %v2540 = vmul.f32 %v2536, %v2328
  %v2541 = vmul.f32 %v2537, %v2329
  %v2542 = vmul.f32 %v2538, %v2330
  %v2543 = vmul.f32 %v2539, %v2331
  %v2544 = vmul.f32 %v2344, 1.25
  %v2545 = vmul.f32 %v2345, 1.25
  %v2546 = vmul.f32 %v2346, 1.25
  %v2547 = vmul.f32 %v2347, 1.25
  %v2548 = vmul.f32 %v2544, %v2356
  %v2549 = vmul.f32 %v2545, %v2357
  %v2550 = vmul.f32 %v2546, %v2358
  %v2551 = vmul.f32 %v2547, %v2359
  %v2552 = vadd.f32 %v2540, %v2548
  %v2553 = vadd.f32 %v2541, %v2549
  %v2554 = vadd.f32 %v2542, %v2550
  %v2555 = vadd.f32 %v2543, %v2551
  %v2556 = vmul.f32 %v2332, 1.25
  %v2557 = vmul.f32 %v2333, 1.25
  %v2558 = vmul.f32 %v2334, 1.25
  %v2559 = vmul.f32 %v2335, 1.25
  %v2560 = vmul.f32 %v2556, %v2356
  %v2561 = vmul.f32 %v2557, %v2357
  %v2562 = vmul.f32 %v2558, %v2358
  %v2563 = vmul.f32 %v2559, %v2359
  %v2564 = vmul.f32 %v2372, 1.25
  %v2565 = vmul.f32 %v2373, 1.25
  %v2566 = vmul.f32 %v2374, 1.25
  %v2567 = vmul.f32 %v2375, 1.25
  %v2568 = vmul.f32 %v2564, %v2384
  %v2569 = vmul.f32 %v2565, %v2385
  %v2570 = vmul.f32 %v2566, %v2386
  %v2571 = vmul.f32 %v2567, %v2387
  %v2572 = vadd.f32 %v2560, %v2568
  %v2573 = vadd.f32 %v2561, %v2569
  %v2574 = vadd.f32 %v2562, %v2570
  %v2575 = vadd.f32 %v2563, %v2571
  %v2576 = vmul.f32 %v2360, 1.25
  %v2577 = vmul.f32 %v2361, 1.25
  %v2578 = vmul.f32 %v2362, 1.25
  %v2579 = vmul.f32 %v2363, 1.25
  %v2580 = vmul.f32 %v2576, %v2384
  %v2581 = vmul.f32 %v2577, %v2385
  %v2582 = vmul.f32 %v2578, %v2386
  %v2583 = vmul.f32 %v2579, %v2387
  %v2584 = vmul.f32 %v2400, 1.25
  %v2585 = vmul.f32 %v2401, 1.25
  %v2586 = vmul.f32 %v2402, 1.25
  %v2587 = vmul.f32 %v2403, 1.25
  %v2588 = vmul.f32 %v2584, %v2412
  %v2589 = vmul.f32 %v2585, %v2413
  %v2590 = vmul.f32 %v2586, %v2414
  %v2591 = vmul.f32 %v2587, %v2415
  %v2592 = vadd.f32 %v2580, %v2588
  %v2593 = vadd.f32 %v2581, %v2589
  %v2594 = vadd.f32 %v2582, %v2590
  %v2595 = vadd.f32 %v2583, %v2591
  %v2596 = vmul.f32 %v2136, 0.8333333
  %v2597 = vmul.f32 %v2137, 0.8333333
  %v2598 = vmul.f32 %v2138, 0.8333333
  %v2599 = vmul.f32 %v2139, 0.8333333
  %v2600 = vmul.f32 %v2596, %v2432
  %v2601 = vmul.f32 %v2597, %v2433
  %v2602 = vmul.f32 %v2598, %v2434
  %v2603 = vmul.f32 %v2599, %v2435
  %v2604 = vmul.f32 %v2204, 0.8333333
  %v2605 = vmul.f32 %v2205, 0.8333333
  %v2606 = vmul.f32 %v2206, 0.8333333
  %v2607 = vmul.f32 %v2207, 0.8333333
  %v2608 = vmul.f32 %v2604, %v2452
  %v2609 = vmul.f32 %v2605, %v2453
  %v2610 = vmul.f32 %v2606, %v2454
  %v2611 = vmul.f32 %v2607, %v2455
  %v2612 = vadd.f32 %v2600, %v2608
  %v2613 = vadd.f32 %v2601, %v2609
  %v2614 = vadd.f32 %v2602, %v2610
  %v2615 = vadd.f32 %v2603, %v2611
  %v2616 = vmul.f32 %v2164, 0.8333333
  %v2617 = vmul.f32 %v2165, 0.8333333
  %v2618 = vmul.f32 %v2166, 0.8333333
  %v2619 = vmul.f32 %v2167, 0.8333333
  %v2620 = vmul.f32 %v2616, %v2452
  %v2621 = vmul.f32 %v2617, %v2453
  %v2622 = vmul.f32 %v2618, %v2454
  %v2623 = vmul.f32 %v2619, %v2455
  %v2624 = vmul.f32 %v2232, 0.8333333
  %v2625 = vmul.f32 %v2233, 0.8333333
  %v2626 = vmul.f32 %v2234, 0.8333333
  %v2627 = vmul.f32 %v2235, 0.8333333
  %v2628 = vmul.f32 %v2624, %v2472
  %v2629 = vmul.f32 %v2625, %v2473
  %v2630 = vmul.f32 %v2626, %v2474
  %v2631 = vmul.f32 %v2627, %v2475
  %v2632 = vadd.f32 %v2620, %v2628
  %v2633 = vadd.f32 %v2621, %v2629
  %v2634 = vadd.f32 %v2622, %v2630
  %v2635 = vadd.f32 %v2623, %v2631
  %v2636 = vmul.f32 %v2192, 0.8333333
  %v2637 = vmul.f32 %v2193, 0.8333333
  %v2638 = vmul.f32 %v2194, 0.8333333
  %v2639 = vmul.f32 %v2195, 0.8333333
  %v2640 = vmul.f32 %v2636, %v2472
  %v2641 = vmul.f32 %v2637, %v2473
  %v2642 = vmul.f32 %v2638, %v2474
  %v2643 = vmul.f32 %v2639, %v2475
  %v2644 = vmul.f32 %v2260, 0.8333333
  %v2645 = vmul.f32 %v2261, 0.8333333
  %v2646 = vmul.f32 %v2262, 0.8333333
  %v2647 = vmul.f32 %v2263, 0.8333333
  %v2648 = vmul.f32 %v2644, %v2492
  %v2649 = vmul.f32 %v2645, %v2493
  %v2650 = vmul.f32 %v2646, %v2494
  %v2651 = vmul.f32 %v2647, %v2495
  %v2652 = vadd.f32 %v2640, %v2648
  %v2653 = vadd.f32 %v2641, %v2649
  %v2654 = vadd.f32 %v2642, %v2650
  %v2655 = vadd.f32 %v2643, %v2651
  %v2656 = vmul.f32 %v2220, 0.8333333
  %v2657 = vmul.f32 %v2221, 0.8333333
  %v2658 = vmul.f32 %v2222, 0.8333333
  %v2659 = vmul.f32 %v2223, 0.8333333
  %v2660 = vmul.f32 %v2656, %v2492
  %v2661 = vmul.f32 %v2657, %v2493
  %v2662 = vmul.f32 %v2658, %v2494
  %v2663 = vmul.f32 %v2659, %v2495
  %v2664 = vmul.f32 %v2288, 0.8333333
  %v2665 = vmul.f32 %v2289, 0.8333333
  %v2666 = vmul.f32 %v2290, 0.8333333
  %v2667 = vmul.f32 %v2291, 0.8333333
  %v2668 = vmul.f32 %v2664, %v2512
  %v2669 = vmul.f32 %v2665, %v2513
  %v2670 = vmul.f32 %v2666, %v2514
  %v2671 = vmul.f32 %v2667, %v2515
  %v2672 = vadd.f32 %v2660, %v2668
  %v2673 = vadd.f32 %v2661, %v2669
  %v2674 = vadd.f32 %v2662, %v2670
  %v2675 = vadd.f32 %v2663, %v2671
  %v2676 = vmul.f32 %v2248, 0.8333333
  %v2677 = vmul.f32 %v2249, 0.8333333
  %v2678 = vmul.f32 %v2250, 0.8333333
  %v2679 = vmul.f32 %v2251, 0.8333333
  %v2680 = vmul.f32 %v2676, %v2512
  %v2681 = vmul.f32 %v2677, %v2513
  %v2682 = vmul.f32 %v2678, %v2514
  %v2683 = vmul.f32 %v2679, %v2515
  %v2684 = vmul.f32 %v2316, 0.8333333
  %v2685 = vmul.f32 %v2317, 0.8333333
  %v2686 = vmul.f32 %v2318, 0.8333333
  %v2687 = vmul.f32 %v2319, 0.8333333
  %v2688 = vmul.f32 %v2684, %v2532
  %v2689 = vmul.f32 %v2685, %v2533
  %v2690 = vmul.f32 %v2686, %v2534
  %v2691 = vmul.f32 %v2687, %v2535
  %v2692 = vadd.f32 %v2680, %v2688
  %v2693 = vadd.f32 %v2681, %v2689
  %v2694 = vadd.f32 %v2682, %v2690
  %v2695 = vadd.f32 %v2683, %v2691
  %v2696 = vmul.f32 %v2276, 0.8333333
  %v2697 = vmul.f32 %v2277, 0.8333333
  %v2698 = vmul.f32 %v2278, 0.8333333
  %v2699 = vmul.f32 %v2279, 0.8333333
  %v2700 = vmul.f32 %v2696, %v2532
  %v2701 = vmul.f32 %v2697, %v2533
  %v2702 = vmul.f32 %v2698, %v2534
  %v2703 = vmul.f32 %v2699, %v2535
  %v2704 = vmul.f32 %v2344, 0.8333333
  %v2705 = vmul.f32 %v2345, 0.8333333
  %v2706 = vmul.f32 %v2346, 0.8333333
  %v2707 = vmul.f32 %v2347, 0.8333333
  %v2708 = vmul.f32 %v2704, %v2552
  %v2709 = vmul.f32 %v2705, %v2553
  %v2710 = vmul.f32 %v2706, %v2554
  %v2711 = vmul.f32 %v2707, %v2555
  %v2712 = vadd.f32 %v2700, %v2708
  %v2713 = vadd.f32 %v2701, %v2709
  %v2714 = vadd.f32 %v2702, %v2710
  %v2715 = vadd.f32 %v2703, %v2711
  %v2716 = vmul.f32 %v2304, 0.8333333
  %v2717 = vmul.f32 %v2305, 0.8333333
  %v2718 = vmul.f32 %v2306, 0.8333333
  %v2719 = vmul.f32 %v2307, 0.8333333
  %v2720 = vmul.f32 %v2716, %v2552
  %v2721 = vmul.f32 %v2717, %v2553
  %v2722 = vmul.f32 %v2718, %v2554
  %v2723 = vmul.f32 %v2719, %v2555
  %v2724 = vmul.f32 %v2372, 0.8333333
  %v2725 = vmul.f32 %v2373, 0.8333333
  %v2726 = vmul.f32 %v2374, 0.8333333
  %v2727 = vmul.f32 %v2375, 0.8333333
  %v2728 = vmul.f32 %v2724, %v2572
  %v2729 = vmul.f32 %v2725, %v2573
  %v2730 = vmul.f32 %v2726, %v2574
  %v2731 = vmul.f32 %v2727, %v2575
  %v2732 = vadd.f32 %v2720, %v2728
  %v2733 = vadd.f32 %v2721, %v2729
  %v2734 = vadd.f32 %v2722, %v2730
  %v2735 = vadd.f32 %v2723, %v2731
  %v2736 = vmul.f32 %v2332, 0.8333333
  %v2737 = vmul.f32 %v2333, 0.8333333
  %v2738 = vmul.f32 %v2334, 0.8333333
  %v2739 = vmul.f32 %v2335, 0.8333333
  %v2740 = vmul.f32 %v2736, %v2572
  %v2741 = vmul.f32 %v2737, %v2573
  %v2742 = vmul.f32 %v2738, %v2574
  %v2743 = vmul.f32 %v2739, %v2575
  %v2744 = vmul.f32 %v2400, 0.8333333
  %v2745 = vmul.f32 %v2401, 0.8333333
  %v2746 = vmul.f32 %v2402, 0.8333333
  %v2747 = vmul.f32 %v2403, 0.8333333
  %v2748 = vmul.f32 %v2744, %v2592
  %v2749 = vmul.f32 %v2745, %v2593
  %v2750 = vmul.f32 %v2746, %v2594
  %v2751 = vmul.f32 %v2747, %v2595
  %v2752 = vadd.f32 %v2740, %v2748
  %v2753 = vadd.f32 %v2741, %v2749
  %v2754 = vadd.f32 %v2742, %v2750
  %v2755 = vadd.f32 %v2743, %v2751
  %v2756 = vld [vmem:[%s20] sm:$0xff]
  %v2757 = vld [vmem:[%s20 + $0x8] sm:$0xff]
  %v2758 = vld [vmem:[%s20 + $0x10] sm:$0xff]
  %v2759 = vld [vmem:[%s20 + $0x18] sm:$0xff]
  %v2760 = vld [vmem:[%s20 + $0x20] sm:$0xff]
  %v2761 = vld [vmem:[%s20 + $0x28] sm:$0xff]
  %v2762 = vld [vmem:[%s20 + $0x30] sm:$0xff]
  %v2763 = vld [vmem:[%s20 + $0x38] sm:$0xff]
  %v2764 = vld [vmem:[%s20 + $0x40] sm:$0xff]
  %v2765 = vld [vmem:[%s20 + $0x48] sm:$0xff]
  %v2766 = vld [vmem:[%s20 + $0x50] sm:$0xff]
  %v2767 = vld [vmem:[%s20 + $0x58] sm:$0xff]
  %v2768 = vld [vmem:[%s20 + $0x60] sm:$0xff]
  %v2769 = vld [vmem:[%s20 + $0x68] sm:$0xff]
  %v2770 = vld [vmem:[%s20 + $0x70] sm:$0xff]
  %v2771 = vld [vmem:[%s20 + $0x78] sm:$0xff]
  %v2772 = vld [vmem:[%s20 + $0x80] sm:$0xff]
  %v2773 = vld [vmem:[%s20 + $0x88] sm:$0xff]
  %v2774 = vld [vmem:[%s20 + $0x90] sm:$0xff]
  %v2775 = vld [vmem:[%s20 + $0x98] sm:$0xff]
  %v2776 = vld [vmem:[%s20 + $0xa0] sm:$0xff]
  %v2777 = vld [vmem:[%s20 + $0xa8] sm:$0xff]
  %v2778 = vld [vmem:[%s20 + $0xb0] sm:$0xff]
  %v2779 = vld [vmem:[%s20 + $0xb8] sm:$0xff]
  %v2780 = vld [vmem:[%s20 + $0xc0] sm:$0xff]
  %v2781 = vld [vmem:[%s20 + $0xc8] sm:$0xff]
  %v2782 = vld [vmem:[%s20 + $0xd0] sm:$0xff]
  %v2783 = vld [vmem:[%s20 + $0xd8] sm:$0xff]
  %v2784 = vld [vmem:[%s20 + $0xe0] sm:$0xff]
  %v2785 = vld [vmem:[%s20 + $0xe8] sm:$0xff]
  %v2786 = vld [vmem:[%s20 + $0xf0] sm:$0xff]
  %v2787 = vld [vmem:[%s20 + $0xf8] sm:$0xff]
  %v2789 = vsel %vm165, %v2612, 0
  %v2792 = vsel %vm165, %v2613, 0
  %v2795 = vsel %vm165, %v2614, 0
  %v2798 = vsel %vm165, %v2615, 0
  %2800 = vmatpush.msra.mxu0 0.0
  %2801 = vmatpush.msra.mxu0 0.0
  %2802 = vmatpush.msra.mxu0 0.0
  %2803 = vmatpush.msra.mxu0 0.0
  %2804 = vmatpush.msra.mxu0 0.0
  %2805 = vmatpush.msra.mxu0 0.0
  %2806 = vmatpush.msra.mxu0 0.0
  %2807 = vmatpush.msra.mxu0 0.0
  %2808 = vmatpush.msra.mxu0 0.0
  %2809 = vmatpush.msra.mxu0 0.0
  %2810 = vmatpush.msra.mxu0 0.0
  %2811 = vmatpush.msra.mxu0 0.0
  %2812 = vmatpush.msra.mxu0 %v2759
  %2813 = vmatpush.msra.mxu0 %v2758
  %2814 = vmatpush.msra.mxu0 %v2757
  %2815 = vmatpush.msra.mxu0 %v2756
  %2816 = vmatmul.f32.gmra.mxu0 %v2789
  %v2817 = vpop.f32.mrf.mxu0
  %v2818 = vadd.f32 0.0, %v2817
  %2819 = vmatmul.f32.gmra.mxu0 %v2792
  %v2820 = vpop.f32.mrf.mxu0
  %v2821 = vadd.f32 0.0, %v2820
  %2822 = vmatmul.f32.gmra.mxu0 %v2795
  %v2823 = vpop.f32.mrf.mxu0
  %v2824 = vadd.f32 0.0, %v2823
  %2825 = vmatmul.f32.gmra.mxu0 %v2798
  %v2826 = vpop.f32.mrf.mxu0
  %v2827 = vadd.f32 0.0, %v2826
  %2828 = vdwg.mxu0
  %v2830 = vsel %vm165, %v1952, 0
  %v2833 = vsel %vm165, %v1953, 0
  %v2836 = vsel %vm165, %v1954, 0
  %v2839 = vsel %vm165, %v1955, 0
  %2841 = vmatpush.msra.mxu0 0.0
  %2842 = vmatpush.msra.mxu0 0.0
  %2843 = vmatpush.msra.mxu0 0.0
  %2844 = vmatpush.msra.mxu0 0.0
  %2845 = vmatpush.msra.mxu0 0.0
  %2846 = vmatpush.msra.mxu0 0.0
  %2847 = vmatpush.msra.mxu0 0.0
  %2848 = vmatpush.msra.mxu0 0.0
  %2849 = vmatpush.msra.mxu0 0.0
  %2850 = vmatpush.msra.mxu0 0.0
  %2851 = vmatpush.msra.mxu0 0.0
  %2852 = vmatpush.msra.mxu0 0.0
  %2853 = vmatpush.msra.mxu0 %v1959
  %2854 = vmatpush.msra.mxu0 %v1958
  %2855 = vmatpush.msra.mxu0 %v1957
  %2856 = vmatpush.msra.mxu0 %v1956
  %2857 = vmatmul.f32.gmra.mxu0 %v2830
  %v2858 = vpop.f32.mrf.mxu0
  %v2859 = vadd.f32 %v2818, %v2858
  %2860 = vmatmul.f32.gmra.mxu0 %v2833
  %v2861 = vpop.f32.mrf.mxu0
  %v2862 = vadd.f32 %v2821, %v2861
  %2863 = vmatmul.f32.gmra.mxu0 %v2836
  %v2864 = vpop.f32.mrf.mxu0
  %v2865 = vadd.f32 %v2824, %v2864
  %2866 = vmatmul.f32.gmra.mxu0 %v2839
  %v2867 = vpop.f32.mrf.mxu0
  %v2868 = vadd.f32 %v2827, %v2867
  %2869 = vdwg.mxu0
  %v2871 = vsel %vm165, %v2632, 0
  %v2874 = vsel %vm165, %v2633, 0
  %v2877 = vsel %vm165, %v2634, 0
  %v2880 = vsel %vm165, %v2635, 0
  %2882 = vmatpush.msra.mxu0 0.0
  %2883 = vmatpush.msra.mxu0 0.0
  %2884 = vmatpush.msra.mxu0 0.0
  %2885 = vmatpush.msra.mxu0 0.0
  %2886 = vmatpush.msra.mxu0 0.0
  %2887 = vmatpush.msra.mxu0 0.0
  %2888 = vmatpush.msra.mxu0 0.0
  %2889 = vmatpush.msra.mxu0 0.0
  %2890 = vmatpush.msra.mxu0 0.0
  %2891 = vmatpush.msra.mxu0 0.0
  %2892 = vmatpush.msra.mxu0 0.0
  %2893 = vmatpush.msra.mxu0 0.0
  %2894 = vmatpush.msra.mxu0 %v2763
  %2895 = vmatpush.msra.mxu0 %v2762
  %2896 = vmatpush.msra.mxu0 %v2761
  %2897 = vmatpush.msra.mxu0 %v2760
  %2898 = vmatmul.f32.gmra.mxu0 %v2871
  %v2899 = vpop.f32.mrf.mxu0
  %v2900 = vadd.f32 0.0, %v2899
  %2901 = vmatmul.f32.gmra.mxu0 %v2874
  %v2902 = vpop.f32.mrf.mxu0
  %v2903 = vadd.f32 0.0, %v2902
  %2904 = vmatmul.f32.gmra.mxu0 %v2877
  %v2905 = vpop.f32.mrf.mxu0
  %v2906 = vadd.f32 0.0, %v2905
  %2907 = vmatmul.f32.gmra.mxu0 %v2880
  %v2908 = vpop.f32.mrf.mxu0
  %v2909 = vadd.f32 0.0, %v2908
  %2910 = vdwg.mxu0
  %v2911 = vadd.f32 %v2859, %v2900
  %v2912 = vadd.f32 %v2862, %v2903
  %v2913 = vadd.f32 %v2865, %v2906
  %v2914 = vadd.f32 %v2868, %v2909
  %v2916 = vsel %vm165, %v2652, 0
  %v2919 = vsel %vm165, %v2653, 0
  %v2922 = vsel %vm165, %v2654, 0
  %v2925 = vsel %vm165, %v2655, 0
  %2927 = vmatpush.msra.mxu0 0.0
  %2928 = vmatpush.msra.mxu0 0.0
  %2929 = vmatpush.msra.mxu0 0.0
  %2930 = vmatpush.msra.mxu0 0.0
  %2931 = vmatpush.msra.mxu0 0.0
  %2932 = vmatpush.msra.mxu0 0.0
  %2933 = vmatpush.msra.mxu0 0.0
  %2934 = vmatpush.msra.mxu0 0.0
  %2935 = vmatpush.msra.mxu0 0.0
  %2936 = vmatpush.msra.mxu0 0.0
  %2937 = vmatpush.msra.mxu0 0.0
  %2938 = vmatpush.msra.mxu0 0.0
  %2939 = vmatpush.msra.mxu0 %v2767
  %2940 = vmatpush.msra.mxu0 %v2766
  %2941 = vmatpush.msra.mxu0 %v2765
  %2942 = vmatpush.msra.mxu0 %v2764
  %2943 = vmatmul.f32.gmra.mxu0 %v2916
  %v2944 = vpop.f32.mrf.mxu0
  %v2945 = vadd.f32 0.0, %v2944
  %2946 = vmatmul.f32.gmra.mxu0 %v2919
  %v2947 = vpop.f32.mrf.mxu0
  %v2948 = vadd.f32 0.0, %v2947
  %2949 = vmatmul.f32.gmra.mxu0 %v2922
  %v2950 = vpop.f32.mrf.mxu0
  %v2951 = vadd.f32 0.0, %v2950
  %2952 = vmatmul.f32.gmra.mxu0 %v2925
  %v2953 = vpop.f32.mrf.mxu0
  %v2954 = vadd.f32 0.0, %v2953
  %2955 = vdwg.mxu0
  %v2956 = vadd.f32 %v2911, %v2945
  %v2957 = vadd.f32 %v2912, %v2948
  %v2958 = vadd.f32 %v2913, %v2951
  %v2959 = vadd.f32 %v2914, %v2954
  %v2961 = vsel %vm165, %v2672, 0
  %v2964 = vsel %vm165, %v2673, 0
  %v2967 = vsel %vm165, %v2674, 0
  %v2970 = vsel %vm165, %v2675, 0
  %2972 = vmatpush.msra.mxu0 0.0
  %2973 = vmatpush.msra.mxu0 0.0
  %2974 = vmatpush.msra.mxu0 0.0
  %2975 = vmatpush.msra.mxu0 0.0
  %2976 = vmatpush.msra.mxu0 0.0
  %2977 = vmatpush.msra.mxu0 0.0
  %2978 = vmatpush.msra.mxu0 0.0
  %2979 = vmatpush.msra.mxu0 0.0
  %2980 = vmatpush.msra.mxu0 0.0
  %2981 = vmatpush.msra.mxu0 0.0
  %2982 = vmatpush.msra.mxu0 0.0
  %2983 = vmatpush.msra.mxu0 0.0
  %2984 = vmatpush.msra.mxu0 %v2771
  %2985 = vmatpush.msra.mxu0 %v2770
  %2986 = vmatpush.msra.mxu0 %v2769
  %2987 = vmatpush.msra.mxu0 %v2768
  %2988 = vmatmul.f32.gmra.mxu0 %v2961
  %v2989 = vpop.f32.mrf.mxu0
  %v2990 = vadd.f32 0.0, %v2989
  %2991 = vmatmul.f32.gmra.mxu0 %v2964
  %v2992 = vpop.f32.mrf.mxu0
  %v2993 = vadd.f32 0.0, %v2992
  %2994 = vmatmul.f32.gmra.mxu0 %v2967
  %v2995 = vpop.f32.mrf.mxu0
  %v2996 = vadd.f32 0.0, %v2995
  %2997 = vmatmul.f32.gmra.mxu0 %v2970
  %v2998 = vpop.f32.mrf.mxu0
  %v2999 = vadd.f32 0.0, %v2998
  %3000 = vdwg.mxu0
  %v3001 = vadd.f32 %v2956, %v2990
  %v3002 = vadd.f32 %v2957, %v2993
  %v3003 = vadd.f32 %v2958, %v2996
  %v3004 = vadd.f32 %v2959, %v2999
  %v3006 = vsel %vm165, %v2692, 0
  %v3009 = vsel %vm165, %v2693, 0
  %v3012 = vsel %vm165, %v2694, 0
  %v3015 = vsel %vm165, %v2695, 0
  %3017 = vmatpush.msra.mxu0 0.0
  %3018 = vmatpush.msra.mxu0 0.0
  %3019 = vmatpush.msra.mxu0 0.0
  %3020 = vmatpush.msra.mxu0 0.0
  %3021 = vmatpush.msra.mxu0 0.0
  %3022 = vmatpush.msra.mxu0 0.0
  %3023 = vmatpush.msra.mxu0 0.0
  %3024 = vmatpush.msra.mxu0 0.0
  %3025 = vmatpush.msra.mxu0 0.0
  %3026 = vmatpush.msra.mxu0 0.0
  %3027 = vmatpush.msra.mxu0 0.0
  %3028 = vmatpush.msra.mxu0 0.0
  %3029 = vmatpush.msra.mxu0 %v2775
  %3030 = vmatpush.msra.mxu0 %v2774
  %3031 = vmatpush.msra.mxu0 %v2773
  %3032 = vmatpush.msra.mxu0 %v2772
  %3033 = vmatmul.f32.gmra.mxu0 %v3006
  %v3034 = vpop.f32.mrf.mxu0
  %v3035 = vadd.f32 0.0, %v3034
  %3036 = vmatmul.f32.gmra.mxu0 %v3009
  %v3037 = vpop.f32.mrf.mxu0
  %v3038 = vadd.f32 0.0, %v3037
  %3039 = vmatmul.f32.gmra.mxu0 %v3012
  %v3040 = vpop.f32.mrf.mxu0
  %v3041 = vadd.f32 0.0, %v3040
  %3042 = vmatmul.f32.gmra.mxu0 %v3015
  %v3043 = vpop.f32.mrf.mxu0
  %v3044 = vadd.f32 0.0, %v3043
  %3045 = vdwg.mxu0
  %v3046 = vadd.f32 %v3001, %v3035
  %v3047 = vadd.f32 %v3002, %v3038
  %v3048 = vadd.f32 %v3003, %v3041
  %v3049 = vadd.f32 %v3004, %v3044
  %v3051 = vsel %vm165, %v2712, 0
  %v3054 = vsel %vm165, %v2713, 0
  %v3057 = vsel %vm165, %v2714, 0
  %v3060 = vsel %vm165, %v2715, 0
  %3062 = vmatpush.msra.mxu0 0.0
  %3063 = vmatpush.msra.mxu0 0.0
  %3064 = vmatpush.msra.mxu0 0.0
  %3065 = vmatpush.msra.mxu0 0.0
  %3066 = vmatpush.msra.mxu0 0.0
  %3067 = vmatpush.msra.mxu0 0.0
  %3068 = vmatpush.msra.mxu0 0.0
  %3069 = vmatpush.msra.mxu0 0.0
  %3070 = vmatpush.msra.mxu0 0.0
  %3071 = vmatpush.msra.mxu0 0.0
  %3072 = vmatpush.msra.mxu0 0.0
  %3073 = vmatpush.msra.mxu0 0.0
  %3074 = vmatpush.msra.mxu0 %v2779
  %3075 = vmatpush.msra.mxu0 %v2778
  %3076 = vmatpush.msra.mxu0 %v2777
  %3077 = vmatpush.msra.mxu0 %v2776
  %3078 = vmatmul.f32.gmra.mxu0 %v3051
  %v3079 = vpop.f32.mrf.mxu0
  %v3080 = vadd.f32 0.0, %v3079
  %3081 = vmatmul.f32.gmra.mxu0 %v3054
  %v3082 = vpop.f32.mrf.mxu0
  %v3083 = vadd.f32 0.0, %v3082
  %3084 = vmatmul.f32.gmra.mxu0 %v3057
  %v3085 = vpop.f32.mrf.mxu0
  %v3086 = vadd.f32 0.0, %v3085
  %3087 = vmatmul.f32.gmra.mxu0 %v3060
  %v3088 = vpop.f32.mrf.mxu0
  %v3089 = vadd.f32 0.0, %v3088
  %3090 = vdwg.mxu0
  %v3091 = vadd.f32 %v3046, %v3080
  %v3092 = vadd.f32 %v3047, %v3083
  %v3093 = vadd.f32 %v3048, %v3086
  %v3094 = vadd.f32 %v3049, %v3089
  %v3096 = vsel %vm165, %v2732, 0
  %v3099 = vsel %vm165, %v2733, 0
  %v3102 = vsel %vm165, %v2734, 0
  %v3105 = vsel %vm165, %v2735, 0
  %3107 = vmatpush.msra.mxu0 0.0
  %3108 = vmatpush.msra.mxu0 0.0
  %3109 = vmatpush.msra.mxu0 0.0
  %3110 = vmatpush.msra.mxu0 0.0
  %3111 = vmatpush.msra.mxu0 0.0
  %3112 = vmatpush.msra.mxu0 0.0
  %3113 = vmatpush.msra.mxu0 0.0
  %3114 = vmatpush.msra.mxu0 0.0
  %3115 = vmatpush.msra.mxu0 0.0
  %3116 = vmatpush.msra.mxu0 0.0
  %3117 = vmatpush.msra.mxu0 0.0
  %3118 = vmatpush.msra.mxu0 0.0
  %3119 = vmatpush.msra.mxu0 %v2783
  %3120 = vmatpush.msra.mxu0 %v2782
  %3121 = vmatpush.msra.mxu0 %v2781
  %3122 = vmatpush.msra.mxu0 %v2780
  %3123 = vmatmul.f32.gmra.mxu0 %v3096
  %v3124 = vpop.f32.mrf.mxu0
  %v3125 = vadd.f32 0.0, %v3124
  %3126 = vmatmul.f32.gmra.mxu0 %v3099
  %v3127 = vpop.f32.mrf.mxu0
  %v3128 = vadd.f32 0.0, %v3127
  %3129 = vmatmul.f32.gmra.mxu0 %v3102
  %v3130 = vpop.f32.mrf.mxu0
  %v3131 = vadd.f32 0.0, %v3130
  %3132 = vmatmul.f32.gmra.mxu0 %v3105
  %v3133 = vpop.f32.mrf.mxu0
  %v3134 = vadd.f32 0.0, %v3133
  %3135 = vdwg.mxu0
  %v3136 = vadd.f32 %v3091, %v3125
  %v3137 = vadd.f32 %v3092, %v3128
  %v3138 = vadd.f32 %v3093, %v3131
  %v3139 = vadd.f32 %v3094, %v3134
  %v3141 = vsel %vm165, %v2752, 0
  %v3144 = vsel %vm165, %v2753, 0
  %v3147 = vsel %vm165, %v2754, 0
  %v3150 = vsel %vm165, %v2755, 0
  %3152 = vmatpush.msra.mxu0 0.0
  %3153 = vmatpush.msra.mxu0 0.0
  %3154 = vmatpush.msra.mxu0 0.0
  %3155 = vmatpush.msra.mxu0 0.0
  %3156 = vmatpush.msra.mxu0 0.0
  %3157 = vmatpush.msra.mxu0 0.0
  %3158 = vmatpush.msra.mxu0 0.0
  %3159 = vmatpush.msra.mxu0 0.0
  %3160 = vmatpush.msra.mxu0 0.0
  %3161 = vmatpush.msra.mxu0 0.0
  %3162 = vmatpush.msra.mxu0 0.0
  %3163 = vmatpush.msra.mxu0 0.0
  %3164 = vmatpush.msra.mxu0 %v2787
  %3165 = vmatpush.msra.mxu0 %v2786
  %3166 = vmatpush.msra.mxu0 %v2785
  %3167 = vmatpush.msra.mxu0 %v2784
  %3168 = vmatmul.f32.gmra.mxu0 %v3141
  %v3169 = vpop.f32.mrf.mxu0
  %v3170 = vadd.f32 0.0, %v3169
  %3171 = vmatmul.f32.gmra.mxu0 %v3144
  %v3172 = vpop.f32.mrf.mxu0
  %v3173 = vadd.f32 0.0, %v3172
  %3174 = vmatmul.f32.gmra.mxu0 %v3147
  %v3175 = vpop.f32.mrf.mxu0
  %v3176 = vadd.f32 0.0, %v3175
  %3177 = vmatmul.f32.gmra.mxu0 %v3150
  %v3178 = vpop.f32.mrf.mxu0
  %v3179 = vadd.f32 0.0, %v3178
  %3180 = vdwg.mxu0
  %v3181 = vadd.f32 %v3136, %v3170
  %v3182 = vadd.f32 %v3137, %v3173
  %v3183 = vadd.f32 %v3138, %v3176
  %v3184 = vadd.f32 %v3139, %v3179
  %v3185 = vtanh.pop %v1726
  %v3186 = vtanh.pop %v1727
  %v3187 = vtanh.pop %v1728
  %v3188 = vtanh.pop %v1729
  %v3189 = vld [vmem:[%s21] sm:$0xff]
  %v3190 = vld [vmem:[%s21 + $0x8] sm:$0xff]
  %v3191 = vld [vmem:[%s21 + $0x10] sm:$0xff]
  %v3192 = vld [vmem:[%s21 + $0x18] sm:$0xff]
  %v3193 = vld [vmem:[%s21 + $0x20] sm:$0xff]
  %v3194 = vld [vmem:[%s21 + $0x28] sm:$0xff]
  %v3195 = vld [vmem:[%s21 + $0x30] sm:$0xff]
  %v3196 = vld [vmem:[%s21 + $0x38] sm:$0xff]
  %v3197 = vld [vmem:[%s21 + $0x40] sm:$0xff]
  %v3198 = vld [vmem:[%s21 + $0x48] sm:$0xff]
  %v3199 = vld [vmem:[%s21 + $0x50] sm:$0xff]
  %v3200 = vld [vmem:[%s21 + $0x58] sm:$0xff]
  %v3201 = vld [vmem:[%s21 + $0x60] sm:$0xff]
  %v3202 = vld [vmem:[%s21 + $0x68] sm:$0xff]
  %v3203 = vld [vmem:[%s21 + $0x70] sm:$0xff]
  %v3204 = vld [vmem:[%s21 + $0x78] sm:$0xff]
  %v3205 = vmul.f32 %v3185, 2.0
  %v3206 = vmul.f32 %v3186, 2.0
  %v3207 = vmul.f32 %v3187, 2.0
  %v3208 = vmul.f32 %v3188, 2.0
  %v3209 = vmul.f32 %v3205, %v3185
  %v3210 = vmul.f32 %v3206, %v3186
  %v3211 = vmul.f32 %v3207, %v3187
  %v3212 = vmul.f32 %v3208, %v3188
  %v3213 = vsub.f32 %v3209, 1.0
  %v3214 = vsub.f32 %v3210, 1.0
  %v3215 = vsub.f32 %v3211, 1.0
  %v3216 = vsub.f32 %v3212, 1.0
  %v3217 = vmul.f32 %v3205, %v3213
  %v3218 = vmul.f32 %v3206, %v3214
  %v3219 = vmul.f32 %v3207, %v3215
  %v3220 = vmul.f32 %v3208, %v3216
  %v3221 = vsub.f32 %v3217, %v3185
  %v3222 = vsub.f32 %v3218, %v3186
  %v3223 = vsub.f32 %v3219, %v3187
  %v3224 = vsub.f32 %v3220, %v3188
  %v3226 = vsel %vm165, %v3185, 0
  %v3229 = vsel %vm165, %v3186, 0
  %v3232 = vsel %vm165, %v3187, 0
  %v3235 = vsel %vm165, %v3188, 0
  %3237 = vmatpush.msra.mxu0 0.0
  %3238 = vmatpush.msra.mxu0 0.0
  %3239 = vmatpush.msra.mxu0 0.0
  %3240 = vmatpush.msra.mxu0 0.0
  %3241 = vmatpush.msra.mxu0 0.0
  %3242 = vmatpush.msra.mxu0 0.0
  %3243 = vmatpush.msra.mxu0 0.0
  %3244 = vmatpush.msra.mxu0 0.0
  %3245 = vmatpush.msra.mxu0 0.0
  %3246 = vmatpush.msra.mxu0 0.0
  %3247 = vmatpush.msra.mxu0 0.0
  %3248 = vmatpush.msra.mxu0 0.0
  %3249 = vmatpush.msra.mxu0 %v3196
  %3250 = vmatpush.msra.mxu0 %v3195
  %3251 = vmatpush.msra.mxu0 %v3194
  %3252 = vmatpush.msra.mxu0 %v3193
  %3253 = vmatmul.f32.gmra.mxu0 %v3226
  %v3254 = vpop.f32.mrf.mxu0
  %v3255 = vadd.f32 0.0, %v3254
  %3256 = vmatmul.f32.gmra.mxu0 %v3229
  %v3257 = vpop.f32.mrf.mxu0
  %v3258 = vadd.f32 0.0, %v3257
  %3259 = vmatmul.f32.gmra.mxu0 %v3232
  %v3260 = vpop.f32.mrf.mxu0
  %v3261 = vadd.f32 0.0, %v3260
  %3262 = vmatmul.f32.gmra.mxu0 %v3235
  %v3263 = vpop.f32.mrf.mxu0
  %v3264 = vadd.f32 0.0, %v3263
  %3265 = vdwg.mxu0
  %v3267 = vsel %vm165, 1.0, 0
  %3269 = vmatpush.msra.mxu0 0.0
  %3270 = vmatpush.msra.mxu0 0.0
  %3271 = vmatpush.msra.mxu0 0.0
  %3272 = vmatpush.msra.mxu0 0.0
  %3273 = vmatpush.msra.mxu0 0.0
  %3274 = vmatpush.msra.mxu0 0.0
  %3275 = vmatpush.msra.mxu0 0.0
  %3276 = vmatpush.msra.mxu0 0.0
  %3277 = vmatpush.msra.mxu0 0.0
  %3278 = vmatpush.msra.mxu0 0.0
  %3279 = vmatpush.msra.mxu0 0.0
  %3280 = vmatpush.msra.mxu0 0.0
  %3281 = vmatpush.msra.mxu0 %v3192
  %3282 = vmatpush.msra.mxu0 %v3191
  %3283 = vmatpush.msra.mxu0 %v3190
  %3284 = vmatpush.msra.mxu0 %v3189
  %3285 = vmatmul.f32.gmra.mxu0 %v3267
  %v3286 = vpop.f32.mrf.mxu0
  %v3287 = vadd.f32 %v3255, %v3286
  %3288 = vmatmul.f32.gmra.mxu0 %v3267
  %v3289 = vpop.f32.mrf.mxu0
  %v3290 = vadd.f32 %v3258, %v3289
  %3291 = vmatmul.f32.gmra.mxu0 %v3267
  %v3292 = vpop.f32.mrf.mxu0
  %v3293 = vadd.f32 %v3261, %v3292
  %3294 = vmatmul.f32.gmra.mxu0 %v3267
  %v3295 = vpop.f32.mrf.mxu0
  %v3296 = vadd.f32 %v3264, %v3295
  %3297 = vdwg.mxu0
  %v3299 = vsel %vm165, %v3213, 0
  %v3302 = vsel %vm165, %v3214, 0
  %v3305 = vsel %vm165, %v3215, 0
  %v3308 = vsel %vm165, %v3216, 0
  %3310 = vmatpush.msra.mxu0 0.0
  %3311 = vmatpush.msra.mxu0 0.0
  %3312 = vmatpush.msra.mxu0 0.0
  %3313 = vmatpush.msra.mxu0 0.0
  %3314 = vmatpush.msra.mxu0 0.0
  %3315 = vmatpush.msra.mxu0 0.0
  %3316 = vmatpush.msra.mxu0 0.0
  %3317 = vmatpush.msra.mxu0 0.0
  %3318 = vmatpush.msra.mxu0 0.0
  %3319 = vmatpush.msra.mxu0 0.0
  %3320 = vmatpush.msra.mxu0 0.0
  %3321 = vmatpush.msra.mxu0 0.0
  %3322 = vmatpush.msra.mxu0 %v3200
  %3323 = vmatpush.msra.mxu0 %v3199
  %3324 = vmatpush.msra.mxu0 %v3198
  %3325 = vmatpush.msra.mxu0 %v3197
  %3326 = vmatmul.f32.gmra.mxu0 %v3299
  %v3327 = vpop.f32.mrf.mxu0
  %v3328 = vadd.f32 0.0, %v3327
  %3329 = vmatmul.f32.gmra.mxu0 %v3302
  %v3330 = vpop.f32.mrf.mxu0
  %v3331 = vadd.f32 0.0, %v3330
  %3332 = vmatmul.f32.gmra.mxu0 %v3305
  %v3333 = vpop.f32.mrf.mxu0
  %v3334 = vadd.f32 0.0, %v3333
  %3335 = vmatmul.f32.gmra.mxu0 %v3308
  %v3336 = vpop.f32.mrf.mxu0
  %v3337 = vadd.f32 0.0, %v3336
  %3338 = vdwg.mxu0
  %v3339 = vadd.f32 %v3287, %v3328
  %v3340 = vadd.f32 %v3290, %v3331
  %v3341 = vadd.f32 %v3293, %v3334
  %v3342 = vadd.f32 %v3296, %v3337
  %v3344 = vsel %vm165, %v3221, 0
  %v3347 = vsel %vm165, %v3222, 0
  %v3350 = vsel %vm165, %v3223, 0
  %v3353 = vsel %vm165, %v3224, 0
  %3355 = vmatpush.msra.mxu0 0.0
  %3356 = vmatpush.msra.mxu0 0.0
  %3357 = vmatpush.msra.mxu0 0.0
  %3358 = vmatpush.msra.mxu0 0.0
  %3359 = vmatpush.msra.mxu0 0.0
  %3360 = vmatpush.msra.mxu0 0.0
  %3361 = vmatpush.msra.mxu0 0.0
  %3362 = vmatpush.msra.mxu0 0.0
  %3363 = vmatpush.msra.mxu0 0.0
  %3364 = vmatpush.msra.mxu0 0.0
  %3365 = vmatpush.msra.mxu0 0.0
  %3366 = vmatpush.msra.mxu0 0.0
  %3367 = vmatpush.msra.mxu0 %v3204
  %3368 = vmatpush.msra.mxu0 %v3203
  %3369 = vmatpush.msra.mxu0 %v3202
  %3370 = vmatpush.msra.mxu0 %v3201
  %3371 = vmatmul.f32.gmra.mxu0 %v3344
  %v3372 = vpop.f32.mrf.mxu0
  %v3373 = vadd.f32 0.0, %v3372
  %3374 = vmatmul.f32.gmra.mxu0 %v3347
  %v3375 = vpop.f32.mrf.mxu0
  %v3376 = vadd.f32 0.0, %v3375
  %3377 = vmatmul.f32.gmra.mxu0 %v3350
  %v3378 = vpop.f32.mrf.mxu0
  %v3379 = vadd.f32 0.0, %v3378
  %3380 = vmatmul.f32.gmra.mxu0 %v3353
  %v3381 = vpop.f32.mrf.mxu0
  %v3382 = vadd.f32 0.0, %v3381
  %3383 = vdwg.mxu0
  %v3384 = vadd.f32 %v3339, %v3373
  %v3385 = vadd.f32 %v3340, %v3376
  %v3386 = vadd.f32 %v3341, %v3379
  %v3387 = vadd.f32 %v3342, %v3382
  %v3388 = vld [vmem:[%s22] sm:$0xff]
  %v3389 = vld [vmem:[%s22 + $0x8] sm:$0xff]
  %v3390 = vld [vmem:[%s22 + $0x10] sm:$0xff]
  %v3391 = vld [vmem:[%s22 + $0x18] sm:$0xff]
  %v3392 = vld [vmem:[%s23] sm:$0x1]
  %v3394 = vperm.slane %v3392, 0
  %3396 = vmatpush.msra.mxu0 0.0
  %3397 = vmatpush.msra.mxu0 0.0
  %3398 = vmatpush.msra.mxu0 0.0
  %3399 = vmatpush.msra.mxu0 0.0
  %3400 = vmatpush.msra.mxu0 0.0
  %3401 = vmatpush.msra.mxu0 0.0
  %3402 = vmatpush.msra.mxu0 0.0
  %3403 = vmatpush.msra.mxu0 0.0
  %3404 = vmatpush.msra.mxu0 0.0
  %3405 = vmatpush.msra.mxu0 0.0
  %3406 = vmatpush.msra.mxu0 0.0
  %3407 = vmatpush.msra.mxu0 0.0
  %3408 = vmatpush.msra.mxu0 %v3391
  %3409 = vmatpush.msra.mxu0 %v3390
  %3410 = vmatpush.msra.mxu0 %v3389
  %3411 = vmatpush.msra.mxu0 %v3388
  %3412 = vmatmul.f32.gmra.mxu0 %v1739
  %v3413 = vpop.f32.mrf.mxu0
  %v3414 = vadd.f32 %v3394, %v3413
  %3415 = vmatmul.f32.gmra.mxu0 %v1742
  %v3416 = vpop.f32.mrf.mxu0
  %v3417 = vadd.f32 %v3394, %v3416
  %3418 = vmatmul.f32.gmra.mxu0 %v1745
  %v3419 = vpop.f32.mrf.mxu0
  %v3420 = vadd.f32 %v3394, %v3419
  %3421 = vmatmul.f32.gmra.mxu0 %v1748
  %v3422 = vpop.f32.mrf.mxu0
  %v3423 = vadd.f32 %v3394, %v3422
  %3424 = vdwg.mxu0
  %3426 = vset.pattern.permute.xlu0 0
  %3427 = vperm.xlu0 %3426, %v1830
  %v3428 = vpop.permute.xlu0 %3427
  %3431 = vset.pattern.permute.xlu0 0
  %3432 = vperm.xlu0 %3431, %v1845
  %v3433 = vpop.permute.xlu0 %3432
  %3436 = vset.pattern.permute.xlu0 0
  %3437 = vperm.xlu0 %3436, %v1860
  %v3438 = vpop.permute.xlu0 %3437
  %3441 = vset.pattern.permute.xlu0 0
  %3442 = vperm.xlu0 %3441, %v1875
  %v3443 = vpop.permute.xlu0 %3442
  %v3445 = vmul.f32 %v3181, %v3428
  %v3446 = vmul.f32 %v3182, %v3433
  %v3447 = vmul.f32 %v3183, %v3438
  %v3448 = vmul.f32 %v3184, %v3443
  %3449 = vset.pattern.permute.xlu0 1
  %3450 = vperm.xlu0 %3449, %v1830
  %v3451 = vpop.permute.xlu0 %3450
  %3453 = vset.pattern.permute.xlu0 1
  %3454 = vperm.xlu0 %3453, %v1845
  %v3455 = vpop.permute.xlu0 %3454
  %3457 = vset.pattern.permute.xlu0 1
  %3458 = vperm.xlu0 %3457, %v1860
  %v3459 = vpop.permute.xlu0 %3458
  %3461 = vset.pattern.permute.xlu0 1
  %3462 = vperm.xlu0 %3461, %v1875
  %v3463 = vpop.permute.xlu0 %3462
  %v3465 = vmul.f32 %v3384, %v3451
  %v3466 = vmul.f32 %v3385, %v3455
  %v3467 = vmul.f32 %v3386, %v3459
  %v3468 = vmul.f32 %v3387, %v3463
  %v3469 = vadd.f32 %v3445, %v3465
  %v3470 = vadd.f32 %v3446, %v3466
  %v3471 = vadd.f32 %v3447, %v3467
  %v3472 = vadd.f32 %v3448, %v3468
  %3473 = vset.pattern.permute.xlu0 2
  %3474 = vperm.xlu0 %3473, %v1830
  %v3475 = vpop.permute.xlu0 %3474
  %3477 = vset.pattern.permute.xlu0 2
  %3478 = vperm.xlu0 %3477, %v1845
  %v3479 = vpop.permute.xlu0 %3478
  %3481 = vset.pattern.permute.xlu0 2
  %3482 = vperm.xlu0 %3481, %v1860
  %v3483 = vpop.permute.xlu0 %3482
  %3485 = vset.pattern.permute.xlu0 2
  %3486 = vperm.xlu0 %3485, %v1875
  %v3487 = vpop.permute.xlu0 %3486
  %v3489 = vmul.f32 %v3414, %v3475
  %v3490 = vmul.f32 %v3417, %v3479
  %v3491 = vmul.f32 %v3420, %v3483
  %v3492 = vmul.f32 %v3423, %v3487
  %v3493 = vadd.f32 %v3469, %v3489
  %v3494 = vadd.f32 %v3470, %v3490
  %v3495 = vadd.f32 %v3471, %v3491
  %v3496 = vadd.f32 %v3472, %v3492
  %3497 = vst.msk [vmem:[%s24] sm:$0xff] %vm87, %v3493
  %3498 = vst.msk [vmem:[%s24 + $0x8] sm:$0xff] %vm87, %v3494
  %3499 = vst.msk [vmem:[%s24 + $0x10] sm:$0xff] %vm87, %v3495
  %3500 = vst.msk [vmem:[%s24 + $0x18] sm:$0xff] %vm87, %v3496
  // Predicated region
  $region98: #{_lambda_.2} parent=0 // pred_check
    _
  $region99: #{_lambda_.2} parent=0 // pred_check_branch
    %3502 = sbr.rel (0) target = $region101
  $region100: #{_lambda_.2} parent=0 // pred_region
    _
  $region101: #{_lambda_.2} parent=0 // pred_fallthru
    _
  // Predicated region
  $region102: #{_lambda_.2} parent=0 // pred_check
    _
  $region103: #{_lambda_.2} parent=0 // pred_check_branch
    %3504 = sbr.rel (0) target = $region105
  $region104: #{_lambda_.2} parent=0 // pred_region
    _
  $region105: #{_lambda_.2} parent=0 // pred_fallthru
    _

// kernel: _lambda_.3
$region0: #{_lambda_.3}
  #allocation0 [shape = 'u32[]', space=smem, size = 0x4, offset = 0x4, fixed_abs, tag = 'smem constant byte address 0x4 - core index']
  #allocation1 [shape = 'u32[72,128]{1,0:T(1,128)}', space=vmem, size = 0x9000, scoped, tag = 'internal scratch']
  %s0 = inlined_call_operand.vmem [shape: f32[32,8], index: 0, kind: input, shape index: {}]
  %s1 = inlined_call_operand.vmem [shape: f32[8,32], index: 1, kind: input, shape index: {}]
  %s2 = inlined_call_operand.vmem [shape: f32[32,32], index: 2, kind: input, shape index: {}]
  %s3 = inlined_call_operand.vmem [shape: f32[32,96], index: 3, kind: input, shape index: {}]
  %s4 = inlined_call_operand.vmem [shape: f32[1,96], index: 4, kind: input, shape index: {}]
  %s5 = inlined_call_operand.vmem [shape: f32[32,32], index: 5, kind: input, shape index: {}]
  %s6 = inlined_call_operand.vmem [shape: f32[1,32], index: 6, kind: input, shape index: {}]
  %s7 = inlined_call_operand.vmem [shape: f32[1,32], index: 7, kind: input, shape index: {}]
  %s8 = inlined_call_operand.vmem [shape: f32[1,32], index: 8, kind: input, shape index: {}]
  %s9 = inlined_call_operand.vmem [shape: f32[32,64], index: 9, kind: input, shape index: {}]
  %s10 = inlined_call_operand.vmem [shape: f32[1,64], index: 10, kind: input, shape index: {}]
  %s11 = inlined_call_operand.vmem [shape: f32[64,32], index: 11, kind: input, shape index: {}]
  %s12 = inlined_call_operand.vmem [shape: f32[1,32], index: 12, kind: input, shape index: {}]
  %s13 = inlined_call_operand.vmem [shape: f32[1,32], index: 13, kind: input, shape index: {}]
  %s14 = inlined_call_operand.vmem [shape: f32[1,32], index: 14, kind: input, shape index: {}]
  %s15 = inlined_call_operand.vmem [shape: f32[1,32], index: 15, kind: input, shape index: {}]
  %s16 = inlined_call_operand.vmem [shape: f32[1,32], index: 16, kind: input, shape index: {}]
  %s17 = inlined_call_operand.vmem [shape: f32[32,3], index: 17, kind: input, shape index: {}]
  %s18 = inlined_call_operand.vmem [shape: f32[1,3], index: 18, kind: input, shape index: {}]
  %s19 = inlined_call_operand.vmem [shape: f32[32,16], index: 19, kind: input, shape index: {}]
  %s20 = inlined_call_operand.vmem [shape: f32[256,16], index: 20, kind: input, shape index: {}]
  %s21 = inlined_call_operand.vmem [shape: f32[128,16], index: 21, kind: input, shape index: {}]
  %s22 = inlined_call_operand.vmem [shape: f32[32,16], index: 22, kind: input, shape index: {}]
  %s23 = inlined_call_operand.vmem [shape: f32[1,16], index: 23, kind: input, shape index: {}]
  %s24 = inlined_call_operand.vmem [shape: f32[32,16], index: 24, kind: output, shape index: {}]
  %s25 = sld [smem:[#allocation0]]
  $region106: #{_lambda_.3} parent=0
    _
  %s27 = ssub.s32 1, %s25
  %s28 = scalar_select 0, %s27, %s25
  // Predicated region
  $region2: #{_lambda_.3} parent=0 // pred_check
    _
  $region3: #{_lambda_.3} parent=0 // pred_check_branch
    %30 = sbr.rel (0) target = $region5
  $region4: #{_lambda_.3} parent=0 // pred_region
    _
  $region5: #{_lambda_.3} parent=0 // pred_fallthru
    _
  // Predicated region
  $region6: #{_lambda_.3} parent=0 // pred_check
    _
  $region7: #{_lambda_.3} parent=0 // pred_check_branch
    %32 = sbr.rel (0) target = $region9
  $region8: #{_lambda_.3} parent=0 // pred_region
    _
  $region9: #{_lambda_.3} parent=0 // pred_fallthru
    _
  // Predicated region
  $region10: #{_lambda_.3} parent=0 // pred_check
    _
  $region11: #{_lambda_.3} parent=0 // pred_check_branch
    %34 = sbr.rel (0) target = $region13
  $region12: #{_lambda_.3} parent=0 // pred_region
    _
  $region13: #{_lambda_.3} parent=0 // pred_fallthru
    _
  // Predicated region
  $region14: #{_lambda_.3} parent=0 // pred_check
    _
  $region15: #{_lambda_.3} parent=0 // pred_check_branch
    %36 = sbr.rel (0) target = $region17
  $region16: #{_lambda_.3} parent=0 // pred_region
    _
  $region17: #{_lambda_.3} parent=0 // pred_fallthru
    _
  // Predicated region
  $region18: #{_lambda_.3} parent=0 // pred_check
    _
  $region19: #{_lambda_.3} parent=0 // pred_check_branch
    %38 = sbr.rel (0) target = $region21
  $region20: #{_lambda_.3} parent=0 // pred_region
    _
  $region21: #{_lambda_.3} parent=0 // pred_fallthru
    _
  // Predicated region
  $region22: #{_lambda_.3} parent=0 // pred_check
    _
  $region23: #{_lambda_.3} parent=0 // pred_check_branch
    %40 = sbr.rel (0) target = $region25
  $region24: #{_lambda_.3} parent=0 // pred_region
    _
  $region25: #{_lambda_.3} parent=0 // pred_fallthru
    _
  // Predicated region
  $region26: #{_lambda_.3} parent=0 // pred_check
    _
  $region27: #{_lambda_.3} parent=0 // pred_check_branch
    %42 = sbr.rel (0) target = $region29
  $region28: #{_lambda_.3} parent=0 // pred_region
    _
  $region29: #{_lambda_.3} parent=0 // pred_fallthru
    _
  // Predicated region
  $region30: #{_lambda_.3} parent=0 // pred_check
    _
  $region31: #{_lambda_.3} parent=0 // pred_check_branch
    %44 = sbr.rel (0) target = $region33
  $region32: #{_lambda_.3} parent=0 // pred_region
    _
  $region33: #{_lambda_.3} parent=0 // pred_fallthru
    _
  // Predicated region
  $region34: #{_lambda_.3} parent=0 // pred_check
    _
  $region35: #{_lambda_.3} parent=0 // pred_check_branch
    %46 = sbr.rel (0) target = $region37
  $region36: #{_lambda_.3} parent=0 // pred_region
    _
  $region37: #{_lambda_.3} parent=0 // pred_fallthru
    _
  // Predicated region
  $region38: #{_lambda_.3} parent=0 // pred_check
    _
  $region39: #{_lambda_.3} parent=0 // pred_check_branch
    %48 = sbr.rel (0) target = $region41
  $region40: #{_lambda_.3} parent=0 // pred_region
    _
  $region41: #{_lambda_.3} parent=0 // pred_fallthru
    _
  // Predicated region
  $region42: #{_lambda_.3} parent=0 // pred_check
    _
  $region43: #{_lambda_.3} parent=0 // pred_check_branch
    %50 = sbr.rel (0) target = $region45
  $region44: #{_lambda_.3} parent=0 // pred_region
    _
  $region45: #{_lambda_.3} parent=0 // pred_fallthru
    _
  // Predicated region
  $region46: #{_lambda_.3} parent=0 // pred_check
    _
  $region47: #{_lambda_.3} parent=0 // pred_check_branch
    %52 = sbr.rel (0) target = $region49
  $region48: #{_lambda_.3} parent=0 // pred_region
    _
  $region49: #{_lambda_.3} parent=0 // pred_fallthru
    _
  // Predicated region
  $region50: #{_lambda_.3} parent=0 // pred_check
    _
  $region51: #{_lambda_.3} parent=0 // pred_check_branch
    %54 = sbr.rel (0) target = $region53
  $region52: #{_lambda_.3} parent=0 // pred_region
    _
  $region53: #{_lambda_.3} parent=0 // pred_fallthru
    _
  // Predicated region
  $region54: #{_lambda_.3} parent=0 // pred_check
    _
  $region55: #{_lambda_.3} parent=0 // pred_check_branch
    %56 = sbr.rel (0) target = $region57
  $region56: #{_lambda_.3} parent=0 // pred_region
    _
  $region57: #{_lambda_.3} parent=0 // pred_fallthru
    _
  // Predicated region
  $region58: #{_lambda_.3} parent=0 // pred_check
    _
  $region59: #{_lambda_.3} parent=0 // pred_check_branch
    %58 = sbr.rel (0) target = $region61
  $region60: #{_lambda_.3} parent=0 // pred_region
    _
  $region61: #{_lambda_.3} parent=0 // pred_fallthru
    _
  // Predicated region
  $region62: #{_lambda_.3} parent=0 // pred_check
    _
  $region63: #{_lambda_.3} parent=0 // pred_check_branch
    %60 = sbr.rel (0) target = $region65
  $region64: #{_lambda_.3} parent=0 // pred_region
    _
  $region65: #{_lambda_.3} parent=0 // pred_fallthru
    _
  // Predicated region
  $region66: #{_lambda_.3} parent=0 // pred_check
    _
  $region67: #{_lambda_.3} parent=0 // pred_check_branch
    %62 = sbr.rel (0) target = $region69
  $region68: #{_lambda_.3} parent=0 // pred_region
    _
  $region69: #{_lambda_.3} parent=0 // pred_fallthru
    _
  // Predicated region
  $region70: #{_lambda_.3} parent=0 // pred_check
    _
  $region71: #{_lambda_.3} parent=0 // pred_check_branch
    %64 = sbr.rel (0) target = $region73
  $region72: #{_lambda_.3} parent=0 // pred_region
    _
  $region73: #{_lambda_.3} parent=0 // pred_fallthru
    _
  // Predicated region
  $region74: #{_lambda_.3} parent=0 // pred_check
    _
  $region75: #{_lambda_.3} parent=0 // pred_check_branch
    %66 = sbr.rel (0) target = $region77
  $region76: #{_lambda_.3} parent=0 // pred_region
    _
  $region77: #{_lambda_.3} parent=0 // pred_fallthru
    _
  // Predicated region
  $region78: #{_lambda_.3} parent=0 // pred_check
    _
  $region79: #{_lambda_.3} parent=0 // pred_check_branch
    %68 = sbr.rel (0) target = $region81
  $region80: #{_lambda_.3} parent=0 // pred_region
    _
  $region81: #{_lambda_.3} parent=0 // pred_fallthru
    _
  // Predicated region
  $region82: #{_lambda_.3} parent=0 // pred_check
    _
  $region83: #{_lambda_.3} parent=0 // pred_check_branch
    %70 = sbr.rel (0) target = $region85
  $region84: #{_lambda_.3} parent=0 // pred_region
    _
  $region85: #{_lambda_.3} parent=0 // pred_fallthru
    _
  // Predicated region
  $region86: #{_lambda_.3} parent=0 // pred_check
    _
  $region87: #{_lambda_.3} parent=0 // pred_check_branch
    %72 = sbr.rel (0) target = $region89
  $region88: #{_lambda_.3} parent=0 // pred_region
    _
  $region89: #{_lambda_.3} parent=0 // pred_fallthru
    _
  // Predicated region
  $region90: #{_lambda_.3} parent=0 // pred_check
    _
  $region91: #{_lambda_.3} parent=0 // pred_check_branch
    %74 = sbr.rel (0) target = $region93
  $region92: #{_lambda_.3} parent=0 // pred_region
    _
  $region93: #{_lambda_.3} parent=0 // pred_fallthru
    _
  // Predicated region
  $region94: #{_lambda_.3} parent=0 // pred_check
    _
  $region95: #{_lambda_.3} parent=0 // pred_check_branch
    %76 = sbr.rel (0) target = $region97
  $region96: #{_lambda_.3} parent=0 // pred_region
    _
  $region97: #{_lambda_.3} parent=0 // pred_fallthru
    _
  %v77 = vld [vmem:[%s0] sm:$0xff]
  %v78 = vld [vmem:[%s0 + $0x8] sm:$0xff]
  %v79 = vld [vmem:[%s0 + $0x10] sm:$0xff]
  %v80 = vld [vmem:[%s0 + $0x18] sm:$0xff]
  %v81 = vld [vmem:[%s1] sm:$0xff]
  %v82 = vld [vmem:[%s2] sm:$0xff]
  %v83 = vld [vmem:[%s2 + $0x8] sm:$0xff]
  %v84 = vld [vmem:[%s2 + $0x10] sm:$0xff]
  %v85 = vld [vmem:[%s2 + $0x18] sm:$0xff]
  %vm86 = vcmask 64512
  %v88 = vsel %vm86, %v77, 0
  %v91 = vsel %vm86, %v78, 0
  %v94 = vsel %vm86, %v79, 0
  %v97 = vsel %vm86, %v80, 0
  %99 = vmatpush.msra.mxu0 0.0
  %100 = vmatpush.msra.mxu0 0.0
  %101 = vmatpush.msra.mxu0 0.0
  %102 = vmatpush.msra.mxu0 0.0
  %103 = vmatpush.msra.mxu0 0.0
  %104 = vmatpush.msra.mxu0 0.0
  %105 = vmatpush.msra.mxu0 0.0
  %106 = vmatpush.msra.mxu0 0.0
  %107 = vmatpush.msra.mxu0 0.0
  %108 = vmatpush.msra.mxu0 0.0
  %109 = vmatpush.msra.mxu0 0.0
  %110 = vmatpush.msra.mxu0 0.0
  %111 = vmatpush.msra.mxu0 0.0
  %112 = vmatpush.msra.mxu0 0.0
  %113 = vmatpush.msra.mxu0 0.0
  %114 = vmatpush.msra.mxu0 %v81
  %115 = vmatmul.f32.gmra.mxu0 %v88
  %v116 = vpop.f32.mrf.mxu0
  %v117 = vadd.f32 %v82, %v116
  %118 = vmatmul.f32.gmra.mxu0 %v91
  %v119 = vpop.f32.mrf.mxu0
  %v120 = vadd.f32 %v83, %v119
  %121 = vmatmul.f32.gmra.mxu0 %v94
  %v122 = vpop.f32.mrf.mxu0
  %v123 = vadd.f32 %v84, %v122
  %124 = vmatmul.f32.gmra.mxu0 %v97
  %v125 = vpop.f32.mrf.mxu0
  %v126 = vadd.f32 %v85, %v125
  %127 = vdwg.mxu0
  %v128 = vlaneseq
  %v129 = vshrl.u32 %v128, 7
  %v130 = vadd.s32 %v129, 8
  %v131 = vadd.s32 %v129, 16
  %v132 = vadd.s32 %v129, 24
  %v133 = vlaneseq
  %v134 = vand.u32 %v133, 127
  %v135 = vshra.s32 %v129, 2
  %v136 = vshra.s32 %v130, 2
  %v137 = vshra.s32 %v131, 2
  %v138 = vshra.s32 %v132, 2
  %v139 = vshra.s32 %v134, 2
  %vm140 = vcmp.eq.s32.totalorder %v135, %v139
  %vm141 = vcmp.eq.s32.totalorder %v136, %v139
  %vm142 = vcmp.eq.s32.totalorder %v137, %v139
  %vm143 = vcmp.eq.s32.totalorder %v138, %v139
  %vm144 = vcmp.le.s32.totalorder %v134, %v129
  %vm145 = vcmp.le.s32.totalorder %v134, %v130
  %vm146 = vcmp.le.s32.totalorder %v134, %v131
  %vm147 = vcmp.le.s32.totalorder %v134, %v132
  %vm148 = vmand %vm144, %vm140
  %vm149 = vmand %vm145, %vm141
  %vm150 = vmand %vm146, %vm142
  %vm151 = vmand %vm147, %vm143
  %v152 = vsel %vm148, 0.0, -1e+30
  %v153 = vsel %vm149, 0.0, -1e+30
  %v154 = vsel %vm150, 0.0, -1e+30
  %v155 = vsel %vm151, 0.0, -1e+30
  %v156 = vld [vmem:[%s3] sm:$0xff]
  %v157 = vld [vmem:[%s3 + $0x8] sm:$0xff]
  %v158 = vld [vmem:[%s3 + $0x10] sm:$0xff]
  %v159 = vld [vmem:[%s3 + $0x18] sm:$0xff]
  %v160 = vld [vmem:[%s4] sm:$0x1]
  %v162 = vperm.slane %v160, 0
  %vm164 = vcmask 261120
  %v166 = vsel %vm164, %v117, 0
  %v169 = vsel %vm164, %v120, 0
  %v172 = vsel %vm164, %v123, 0
  %v175 = vsel %vm164, %v126, 0
  %177 = vmatpush.msra.mxu0 0.0
  %178 = vmatpush.msra.mxu0 0.0
  %179 = vmatpush.msra.mxu0 0.0
  %180 = vmatpush.msra.mxu0 0.0
  %181 = vmatpush.msra.mxu0 0.0
  %182 = vmatpush.msra.mxu0 0.0
  %183 = vmatpush.msra.mxu0 0.0
  %184 = vmatpush.msra.mxu0 0.0
  %185 = vmatpush.msra.mxu0 0.0
  %186 = vmatpush.msra.mxu0 0.0
  %187 = vmatpush.msra.mxu0 0.0
  %188 = vmatpush.msra.mxu0 0.0
  %189 = vmatpush.msra.mxu0 %v159
  %190 = vmatpush.msra.mxu0 %v158
  %191 = vmatpush.msra.mxu0 %v157
  %192 = vmatpush.msra.mxu0 %v156
  %193 = vmatmul.f32.gmra.mxu0 %v166
  %v194 = vpop.f32.mrf.mxu0
  %v195 = vadd.f32 %v162, %v194
  %196 = vmatmul.f32.gmra.mxu0 %v169
  %v197 = vpop.f32.mrf.mxu0
  %v198 = vadd.f32 %v162, %v197
  %199 = vmatmul.f32.gmra.mxu0 %v172
  %v200 = vpop.f32.mrf.mxu0
  %v201 = vadd.f32 %v162, %v200
  %202 = vmatmul.f32.gmra.mxu0 %v175
  %v203 = vpop.f32.mrf.mxu0
  %v204 = vadd.f32 %v162, %v203
  %205 = vdwg.mxu0
  %v206 = vld [vmem:[%s5] sm:$0xff]
  %v207 = vld [vmem:[%s5 + $0x8] sm:$0xff]
  %v208 = vld [vmem:[%s5 + $0x10] sm:$0xff]
  %v209 = vld [vmem:[%s5 + $0x18] sm:$0xff]
  %v210 = vld [vmem:[%s6] sm:$0x1]
  %215 = vrot.lane.b32.xlu0 %v195, 96
  %v216 = vpop.permute.xlu0 %215
  %217 = vrot.lane.b32.xlu0 %v198, 96
  %v218 = vpop.permute.xlu0 %217
  %219 = vrot.lane.b32.xlu0 %v201, 96
  %v220 = vpop.permute.xlu0 %219
  %221 = vrot.lane.b32.xlu0 %v204, 96
  %v222 = vpop.permute.xlu0 %221
  %v223 = vsel %vm86, %v195, 0
  %v225 = vsel %vm86, %v198, 0
  %v227 = vsel %vm86, %v201, 0
  %v229 = vsel %vm86, %v204, 0
  %v231 = vsel %vm86, %v216, 0
  %v233 = vsel %vm86, %v218, 0
  %v235 = vsel %vm86, %v220, 0
  %v237 = vsel %vm86, %v222, 0
  %239 = vmatpush.xpose.msra.mxu0 0.0
  %240 = vmatpush.xpose.msra.mxu0 0.0
  %241 = vmatpush.xpose.msra.mxu0 0.0
  %242 = vmatpush.xpose.msra.mxu0 0.0
  %243 = vmatpush.xpose.msra.mxu0 0.0
  %244 = vmatpush.xpose.msra.mxu0 0.0
  %245 = vmatpush.xpose.msra.mxu0 0.0
  %246 = vmatpush.xpose.msra.mxu0 0.0
  %247 = vmatpush.xpose.msra.mxu0 0.0
  %248 = vmatpush.xpose.msra.mxu0 0.0
  %249 = vmatpush.xpose.msra.mxu0 0.0
  %250 = vmatpush.xpose.msra.mxu0 0.0
  %251 = vmatpush.xpose.msra.mxu0 %v237
  %252 = vmatpush.xpose.msra.mxu0 %v235
  %253 = vmatpush.xpose.msra.mxu0 %v233
  %254 = vmatpush.xpose.msra.mxu0 %v231
  %255 = vmatmul.f32.gmra.mxu0 %v223
  %v256 = vpop.f32.mrf.mxu0
  %v257 = vadd.f32 0.0, %v256
  %258 = vmatmul.f32.gmra.mxu0 %v225
  %v259 = vpop.f32.mrf.mxu0
  %v260 = vadd.f32 0.0, %v259
  %261 = vmatmul.f32.gmra.mxu0 %v227
  %v262 = vpop.f32.mrf.mxu0
  %v263 = vadd.f32 0.0, %v262
  %264 = vmatmul.f32.gmra.mxu0 %v229
  %v265 = vpop.f32.mrf.mxu0
  %v266 = vadd.f32 0.0, %v265
  %267 = vdwg.mxu0
  %v268 = vmul.f32 %v257, 0.35355338
  %v269 = vmul.f32 %v260, 0.35355338
  %v270 = vmul.f32 %v263, 0.35355338
  %v271 = vmul.f32 %v266, 0.35355338
  %v272 = vadd.f32 %v268, %v152
  %v273 = vadd.f32 %v269, %v153
  %v274 = vadd.f32 %v270, %v154
  %v275 = vadd.f32 %v271, %v155
  %v276 = vsel %vm164, %v272, -inf
  %277 = vmax.xlane.f32.xlu0 %v276
  %v278 = vpop.xlane.xlu0 %277
  %v279 = vsel %vm164, %v273, -inf
  %280 = vmax.xlane.f32.xlu0 %v279
  %v281 = vpop.xlane.xlu0 %280
  %v282 = vsel %vm164, %v274, -inf
  %283 = vmax.xlane.f32.xlu0 %v282
  %v284 = vpop.xlane.xlu0 %283
  %v285 = vsel %vm164, %v275, -inf
  %286 = vmax.xlane.f32.xlu0 %v285
  %v287 = vpop.xlane.xlu0 %286
  %v288 = vsub.f32 %v272, %v278
  %v289 = vsub.f32 %v273, %v281
  %v290 = vsub.f32 %v274, %v284
  %v291 = vsub.f32 %v275, %v287
  %v292 = vmul.f32 %v288, 1.442695
  %v293 = vpow.pop %v292
  %v294 = vmul.f32 %v289, 1.442695
  %v295 = vpow.pop %v294
  %v296 = vmul.f32 %v290, 1.442695
  %v297 = vpow.pop %v296
  %v298 = vmul.f32 %v291, 1.442695
  %v299 = vpow.pop %v298
  %v300 = vsel %vm164, %v293, 0.0
  %301 = vadd.xlane.f32.xlu0 %v300
  %v302 = vpop.xlane.xlu0 %301
  %v303 = vsel %vm164, %v295, 0.0
  %304 = vadd.xlane.f32.xlu0 %v303
  %v305 = vpop.xlane.xlu0 %304
  %v306 = vsel %vm164, %v297, 0.0
  %307 = vadd.xlane.f32.xlu0 %v306
  %v308 = vpop.xlane.xlu0 %307
  %v309 = vsel %vm164, %v299, 0.0
  %310 = vadd.xlane.f32.xlu0 %v309
  %v311 = vpop.xlane.xlu0 %310
  %v312 = vrcp.pop %v302
  %v313 = vmul.f32 %v302, %v312
  %v314 = vsub.f32 1.0, %v313
  %v315 = vmul.f32 %v312, %v314
  %v316 = vadd.f32 %v312, %v315
  %vm317 = vweird.f32 %v302
  %vm318 = vweird.f32 %v312
  %vm319 = vmor %vm317, %vm318
  %v320 = vsel %vm319, %v312, %v316
  %v321 = vand.u32 2147483647, %v302
  %vm322 = vcmp.eq.f32.partialorder %v321, 8.507059e+37
  %v323 = vand.u32 %v302, 2147483648
  %v324 = vor.u32 1.1754944e-38, %v323
  %v325 = vsel %vm322, %v324, %v320
  %v326 = vmul.f32 %v293, %v325
  %v327 = vrcp.pop %v305
  %v328 = vmul.f32 %v305, %v327
  %v329 = vsub.f32 1.0, %v328
  %v330 = vmul.f32 %v327, %v329
  %v331 = vadd.f32 %v327, %v330
  %vm332 = vweird.f32 %v305
  %vm333 = vweird.f32 %v327
  %vm334 = vmor %vm332, %vm333
  %v335 = vsel %vm334, %v327, %v331
  %v336 = vand.u32 2147483647, %v305
  %vm337 = vcmp.eq.f32.partialorder %v336, 8.507059e+37
  %v338 = vand.u32 %v305, 2147483648
  %v339 = vor.u32 1.1754944e-38, %v338
  %v340 = vsel %vm337, %v339, %v335
  %v341 = vmul.f32 %v295, %v340
  %v342 = vrcp.pop %v308
  %v343 = vmul.f32 %v308, %v342
  %v344 = vsub.f32 1.0, %v343
  %v345 = vmul.f32 %v342, %v344
  %v346 = vadd.f32 %v342, %v345
  %vm347 = vweird.f32 %v308
  %vm348 = vweird.f32 %v342
  %vm349 = vmor %vm347, %vm348
  %v350 = vsel %vm349, %v342, %v346
  %v351 = vand.u32 2147483647, %v308
  %vm352 = vcmp.eq.f32.partialorder %v351, 8.507059e+37
  %v353 = vand.u32 %v308, 2147483648
  %v354 = vor.u32 1.1754944e-38, %v353
  %v355 = vsel %vm352, %v354, %v350
  %v356 = vmul.f32 %v297, %v355
  %v357 = vrcp.pop %v311
  %v358 = vmul.f32 %v311, %v357
  %v359 = vsub.f32 1.0, %v358
  %v360 = vmul.f32 %v357, %v359
  %v361 = vadd.f32 %v357, %v360
  %vm362 = vweird.f32 %v311
  %vm363 = vweird.f32 %v357
  %vm364 = vmor %vm362, %vm363
  %v365 = vsel %vm364, %v357, %v361
  %v366 = vand.u32 2147483647, %v311
  %vm367 = vcmp.eq.f32.partialorder %v366, 8.507059e+37
  %v368 = vand.u32 %v311, 2147483648
  %v369 = vor.u32 1.1754944e-38, %v368
  %v370 = vsel %vm367, %v369, %v365
  %v371 = vmul.f32 %v299, %v370
  %372 = vrot.lane.b32.xlu0 %v195, 64
  %v373 = vpop.permute.xlu0 %372
  %374 = vrot.lane.b32.xlu0 %v198, 64
  %v375 = vpop.permute.xlu0 %374
  %376 = vrot.lane.b32.xlu0 %v201, 64
  %v377 = vpop.permute.xlu0 %376
  %378 = vrot.lane.b32.xlu0 %v204, 64
  %v379 = vpop.permute.xlu0 %378
  %v385 = vsel %vm164, %v326, 0
  %v388 = vsel %vm164, %v341, 0
  %v391 = vsel %vm164, %v356, 0
  %v394 = vsel %vm164, %v371, 0
  %396 = vmatpush.msra.mxu0 0.0
  %397 = vmatpush.msra.mxu0 0.0
  %398 = vmatpush.msra.mxu0 0.0
  %399 = vmatpush.msra.mxu0 0.0
  %400 = vmatpush.msra.mxu0 0.0
  %401 = vmatpush.msra.mxu0 0.0
  %402 = vmatpush.msra.mxu0 0.0
  %403 = vmatpush.msra.mxu0 0.0
  %404 = vmatpush.msra.mxu0 0.0
  %405 = vmatpush.msra.mxu0 0.0
  %406 = vmatpush.msra.mxu0 0.0
  %407 = vmatpush.msra.mxu0 0.0
  %408 = vmatpush.msra.mxu0 %v379
  %409 = vmatpush.msra.mxu0 %v377
  %410 = vmatpush.msra.mxu0 %v375
  %411 = vmatpush.msra.mxu0 %v373
  %412 = vmatmul.f32.gmra.mxu0 %v385
  %v413 = vpop.f32.mrf.mxu0
  %v414 = vadd.f32 0.0, %v413
  %415 = vmatmul.f32.gmra.mxu0 %v388
  %v416 = vpop.f32.mrf.mxu0
  %v417 = vadd.f32 0.0, %v416
  %418 = vmatmul.f32.gmra.mxu0 %v391
  %v419 = vpop.f32.mrf.mxu0
  %v420 = vadd.f32 0.0, %v419
  %421 = vmatmul.f32.gmra.mxu0 %v394
  %v422 = vpop.f32.mrf.mxu0
  %v423 = vadd.f32 0.0, %v422
  %424 = vdwg.mxu0
  %v426 = vsel %vm86, %v414, 0
  %v429 = vsel %vm86, %v417, 0
  %v432 = vsel %vm86, %v420, 0
  %v435 = vsel %vm86, %v423, 0
  %437 = vmatpush.msra.mxu0 0.0
  %438 = vmatpush.msra.mxu0 0.0
  %439 = vmatpush.msra.mxu0 0.0
  %440 = vmatpush.msra.mxu0 0.0
  %441 = vmatpush.msra.mxu0 0.0
  %442 = vmatpush.msra.mxu0 0.0
  %443 = vmatpush.msra.mxu0 0.0
  %444 = vmatpush.msra.mxu0 0.0
  %445 = vmatpush.msra.mxu0 0.0
  %446 = vmatpush.msra.mxu0 0.0
  %447 = vmatpush.msra.mxu0 0.0
  %448 = vmatpush.msra.mxu0 0.0
  %449 = vmatpush.msra.mxu0 0.0
  %450 = vmatpush.msra.mxu0 0.0
  %451 = vmatpush.msra.mxu0 0.0
  %452 = vmatpush.msra.mxu0 %v206
  %453 = vmatmul.f32.gmra.mxu0 %v426
  %v454 = vpop.f32.mrf.mxu0
  %v455 = vadd.f32 0.0, %v454
  %456 = vmatmul.f32.gmra.mxu0 %v429
  %v457 = vpop.f32.mrf.mxu0
  %v458 = vadd.f32 0.0, %v457
  %459 = vmatmul.f32.gmra.mxu0 %v432
  %v460 = vpop.f32.mrf.mxu0
  %v461 = vadd.f32 0.0, %v460
  %462 = vmatmul.f32.gmra.mxu0 %v435
  %v463 = vpop.f32.mrf.mxu0
  %v464 = vadd.f32 0.0, %v463
  %465 = vdwg.mxu0
  %v467 = vperm.slane %v210, 0
  %v469 = vadd.f32 %v467, %v455
  %v470 = vadd.f32 %v467, %v458
  %v471 = vadd.f32 %v467, %v461
  %v472 = vadd.f32 %v467, %v464
  %473 = vrot.lane.b32.xlu0 %v195, 120
  %v474 = vpop.permute.xlu0 %473
  %475 = vrot.lane.b32.xlu0 %v198, 120
  %v476 = vpop.permute.xlu0 %475
  %477 = vrot.lane.b32.xlu0 %v201, 120
  %v478 = vpop.permute.xlu0 %477
  %479 = vrot.lane.b32.xlu0 %v204, 120
  %v480 = vpop.permute.xlu0 %479
  %481 = vrot.lane.b32.xlu0 %v195, 88
  %v482 = vpop.permute.xlu0 %481
  %483 = vrot.lane.b32.xlu0 %v198, 88
  %v484 = vpop.permute.xlu0 %483
  %485 = vrot.lane.b32.xlu0 %v201, 88
  %v486 = vpop.permute.xlu0 %485
  %487 = vrot.lane.b32.xlu0 %v204, 88
  %v488 = vpop.permute.xlu0 %487
  %v489 = vsel %vm86, %v474, 0
  %v491 = vsel %vm86, %v476, 0
  %v493 = vsel %vm86, %v478, 0
  %v495 = vsel %vm86, %v480, 0
  %v497 = vsel %vm86, %v482, 0
  %v499 = vsel %vm86, %v484, 0
  %v501 = vsel %vm86, %v486, 0
  %v503 = vsel %vm86, %v488, 0
  %505 = vmatpush.xpose.msra.mxu0 0.0
  %506 = vmatpush.xpose.msra.mxu0 0.0
  %507 = vmatpush.xpose.msra.mxu0 0.0
  %508 = vmatpush.xpose.msra.mxu0 0.0
  %509 = vmatpush.xpose.msra.mxu0 0.0
  %510 = vmatpush.xpose.msra.mxu0 0.0
  %511 = vmatpush.xpose.msra.mxu0 0.0
  %512 = vmatpush.xpose.msra.mxu0 0.0
  %513 = vmatpush.xpose.msra.mxu0 0.0
  %514 = vmatpush.xpose.msra.mxu0 0.0
  %515 = vmatpush.xpose.msra.mxu0 0.0
  %516 = vmatpush.xpose.msra.mxu0 0.0
  %517 = vmatpush.xpose.msra.mxu0 %v503
  %518 = vmatpush.xpose.msra.mxu0 %v501
  %519 = vmatpush.xpose.msra.mxu0 %v499
  %520 = vmatpush.xpose.msra.mxu0 %v497
  %521 = vmatmul.f32.gmra.mxu0 %v489
  %v522 = vpop.f32.mrf.mxu0
  %v523 = vadd.f32 0.0, %v522
  %524 = vmatmul.f32.gmra.mxu0 %v491
  %v525 = vpop.f32.mrf.mxu0
  %v526 = vadd.f32 0.0, %v525
  %527 = vmatmul.f32.gmra.mxu0 %v493
  %v528 = vpop.f32.mrf.mxu0
  %v529 = vadd.f32 0.0, %v528
  %530 = vmatmul.f32.gmra.mxu0 %v495
  %v531 = vpop.f32.mrf.mxu0
  %v532 = vadd.f32 0.0, %v531
  %533 = vdwg.mxu0
  %v534 = vmul.f32 %v523, 0.35355338
  %v535 = vmul.f32 %v526, 0.35355338
  %v536 = vmul.f32 %v529, 0.35355338
  %v537 = vmul.f32 %v532, 0.35355338
  %v538 = vadd.f32 %v534, %v152
  %v539 = vadd.f32 %v535, %v153
  %v540 = vadd.f32 %v536, %v154
  %v541 = vadd.f32 %v537, %v155
  %v542 = vsel %vm164, %v538, -inf
  %543 = vmax.xlane.f32.xlu0 %v542
  %v544 = vpop.xlane.xlu0 %543
  %v545 = vsel %vm164, %v539, -inf
  %546 = vmax.xlane.f32.xlu0 %v545
  %v547 = vpop.xlane.xlu0 %546
  %v548 = vsel %vm164, %v540, -inf
  %549 = vmax.xlane.f32.xlu0 %v548
  %v550 = vpop.xlane.xlu0 %549
  %v551 = vsel %vm164, %v541, -inf
  %552 = vmax.xlane.f32.xlu0 %v551
  %v553 = vpop.xlane.xlu0 %552
  %v554 = vsub.f32 %v538, %v544
  %v555 = vsub.f32 %v539, %v547
  %v556 = vsub.f32 %v540, %v550
  %v557 = vsub.f32 %v541, %v553
  %v558 = vmul.f32 %v554, 1.442695
  %v559 = vpow.pop %v558
  %v560 = vmul.f32 %v555, 1.442695
  %v561 = vpow.pop %v560
  %v562 = vmul.f32 %v556, 1.442695
  %v563 = vpow.pop %v562
  %v564 = vmul.f32 %v557, 1.442695
  %v565 = vpow.pop %v564
  %v566 = vsel %vm164, %v559, 0.0
  %567 = vadd.xlane.f32.xlu0 %v566
  %v568 = vpop.xlane.xlu0 %567
  %v569 = vsel %vm164, %v561, 0.0
  %570 = vadd.xlane.f32.xlu0 %v569
  %v571 = vpop.xlane.xlu0 %570
  %v572 = vsel %vm164, %v563, 0.0
  %573 = vadd.xlane.f32.xlu0 %v572
  %v574 = vpop.xlane.xlu0 %573
  %v575 = vsel %vm164, %v565, 0.0
  %576 = vadd.xlane.f32.xlu0 %v575
  %v577 = vpop.xlane.xlu0 %576
  %v578 = vrcp.pop %v568
  %v579 = vmul.f32 %v568, %v578
  %v580 = vsub.f32 1.0, %v579
  %v581 = vmul.f32 %v578, %v580
  %v582 = vadd.f32 %v578, %v581
  %vm583 = vweird.f32 %v568
  %vm584 = vweird.f32 %v578
  %vm585 = vmor %vm583, %vm584
  %v586 = vsel %vm585, %v578, %v582
  %v587 = vand.u32 2147483647, %v568
  %vm588 = vcmp.eq.f32.partialorder %v587, 8.507059e+37
  %v589 = vand.u32 %v568, 2147483648
  %v590 = vor.u32 1.1754944e-38, %v589
  %v591 = vsel %vm588, %v590, %v586
  %v592 = vmul.f32 %v559, %v591
  %v593 = vrcp.pop %v571
  %v594 = vmul.f32 %v571, %v593
  %v595 = vsub.f32 1.0, %v594
  %v596 = vmul.f32 %v593, %v595
  %v597 = vadd.f32 %v593, %v596
  %vm598 = vweird.f32 %v571
  %vm599 = vweird.f32 %v593
  %vm600 = vmor %vm598, %vm599
  %v601 = vsel %vm600, %v593, %v597
  %v602 = vand.u32 2147483647, %v571
  %vm603 = vcmp.eq.f32.partialorder %v602, 8.507059e+37
  %v604 = vand.u32 %v571, 2147483648
  %v605 = vor.u32 1.1754944e-38, %v604
  %v606 = vsel %vm603, %v605, %v601
  %v607 = vmul.f32 %v561, %v606
  %v608 = vrcp.pop %v574
  %v609 = vmul.f32 %v574, %v608
  %v610 = vsub.f32 1.0, %v609
  %v611 = vmul.f32 %v608, %v610
  %v612 = vadd.f32 %v608, %v611
  %vm613 = vweird.f32 %v574
  %vm614 = vweird.f32 %v608
  %vm615 = vmor %vm613, %vm614
  %v616 = vsel %vm615, %v608, %v612
  %v617 = vand.u32 2147483647, %v574
  %vm618 = vcmp.eq.f32.partialorder %v617, 8.507059e+37
  %v619 = vand.u32 %v574, 2147483648
  %v620 = vor.u32 1.1754944e-38, %v619
  %v621 = vsel %vm618, %v620, %v616
  %v622 = vmul.f32 %v563, %v621
  %v623 = vrcp.pop %v577
  %v624 = vmul.f32 %v577, %v623
  %v625 = vsub.f32 1.0, %v624
  %v626 = vmul.f32 %v623, %v625
  %v627 = vadd.f32 %v623, %v626
  %vm628 = vweird.f32 %v577
  %vm629 = vweird.f32 %v623
  %vm630 = vmor %vm628, %vm629
  %v631 = vsel %vm630, %v623, %v627
  %v632 = vand.u32 2147483647, %v577
  %vm633 = vcmp.eq.f32.partialorder %v632, 8.507059e+37
  %v634 = vand.u32 %v577, 2147483648
  %v635 = vor.u32 1.1754944e-38, %v634
  %v636 = vsel %vm633, %v635, %v631
  %v637 = vmul.f32 %v565, %v636
  %638 = vrot.lane.b32.xlu0 %v195, 56
  %v639 = vpop.permute.xlu0 %638
  %640 = vrot.lane.b32.xlu0 %v198, 56
  %v641 = vpop.permute.xlu0 %640
  %642 = vrot.lane.b32.xlu0 %v201, 56
  %v643 = vpop.permute.xlu0 %642
  %644 = vrot.lane.b32.xlu0 %v204, 56
  %v645 = vpop.permute.xlu0 %644
  %v651 = vsel %vm164, %v592, 0
  %v654 = vsel %vm164, %v607, 0
  %v657 = vsel %vm164, %v622, 0
  %v660 = vsel %vm164, %v637, 0
  %662 = vmatpush.msra.mxu0 0.0
  %663 = vmatpush.msra.mxu0 0.0
  %664 = vmatpush.msra.mxu0 0.0
  %665 = vmatpush.msra.mxu0 0.0
  %666 = vmatpush.msra.mxu0 0.0
  %667 = vmatpush.msra.mxu0 0.0
  %668 = vmatpush.msra.mxu0 0.0
  %669 = vmatpush.msra.mxu0 0.0
  %670 = vmatpush.msra.mxu0 0.0
  %671 = vmatpush.msra.mxu0 0.0
  %672 = vmatpush.msra.mxu0 0.0
  %673 = vmatpush.msra.mxu0 0.0
  %674 = vmatpush.msra.mxu0 %v645
  %675 = vmatpush.msra.mxu0 %v643
  %676 = vmatpush.msra.mxu0 %v641
  %677 = vmatpush.msra.mxu0 %v639
  %678 = vmatmul.f32.gmra.mxu0 %v651
  %v679 = vpop.f32.mrf.mxu0
  %v680 = vadd.f32 0.0, %v679
  %681 = vmatmul.f32.gmra.mxu0 %v654
  %v682 = vpop.f32.mrf.mxu0
  %v683 = vadd.f32 0.0, %v682
  %684 = vmatmul.f32.gmra.mxu0 %v657
  %v685 = vpop.f32.mrf.mxu0
  %v686 = vadd.f32 0.0, %v685
  %687 = vmatmul.f32.gmra.mxu0 %v660
  %v688 = vpop.f32.mrf.mxu0
  %v689 = vadd.f32 0.0, %v688
  %690 = vdwg.mxu0
  %v692 = vsel %vm86, %v680, 0
  %v695 = vsel %vm86, %v683, 0
  %v698 = vsel %vm86, %v686, 0
  %v701 = vsel %vm86, %v689, 0
  %703 = vmatpush.msra.mxu0 0.0
  %704 = vmatpush.msra.mxu0 0.0
  %705 = vmatpush.msra.mxu0 0.0
  %706 = vmatpush.msra.mxu0 0.0
  %707 = vmatpush.msra.mxu0 0.0
  %708 = vmatpush.msra.mxu0 0.0
  %709 = vmatpush.msra.mxu0 0.0
  %710 = vmatpush.msra.mxu0 0.0
  %711 = vmatpush.msra.mxu0 0.0
  %712 = vmatpush.msra.mxu0 0.0
  %713 = vmatpush.msra.mxu0 0.0
  %714 = vmatpush.msra.mxu0 0.0
  %715 = vmatpush.msra.mxu0 0.0
  %716 = vmatpush.msra.mxu0 0.0
  %717 = vmatpush.msra.mxu0 0.0
  %718 = vmatpush.msra.mxu0 %v207
  %719 = vmatmul.f32.gmra.mxu0 %v692
  %v720 = vpop.f32.mrf.mxu0
  %v721 = vadd.f32 0.0, %v720
  %722 = vmatmul.f32.gmra.mxu0 %v695
  %v723 = vpop.f32.mrf.mxu0
  %v724 = vadd.f32 0.0, %v723
  %725 = vmatmul.f32.gmra.mxu0 %v698
  %v726 = vpop.f32.mrf.mxu0
  %v727 = vadd.f32 0.0, %v726
  %728 = vmatmul.f32.gmra.mxu0 %v701
  %v729 = vpop.f32.mrf.mxu0
  %v730 = vadd.f32 0.0, %v729
  %731 = vdwg.mxu0
  %v732 = vadd.f32 %v469, %v721
  %v733 = vadd.f32 %v470, %v724
  %v734 = vadd.f32 %v471, %v727
  %v735 = vadd.f32 %v472, %v730
  %736 = vrot.lane.b32.xlu0 %v195, 112
  %v737 = vpop.permute.xlu0 %736
  %738 = vrot.lane.b32.xlu0 %v198, 112
  %v739 = vpop.permute.xlu0 %738
  %740 = vrot.lane.b32.xlu0 %v201, 112
  %v741 = vpop.permute.xlu0 %740
  %742 = vrot.lane.b32.xlu0 %v204, 112
  %v743 = vpop.permute.xlu0 %742
  %744 = vrot.lane.b32.xlu0 %v195, 80
  %v745 = vpop.permute.xlu0 %744
  %746 = vrot.lane.b32.xlu0 %v198, 80
  %v747 = vpop.permute.xlu0 %746
  %748 = vrot.lane.b32.xlu0 %v201, 80
  %v749 = vpop.permute.xlu0 %748
  %750 = vrot.lane.b32.xlu0 %v204, 80
  %v751 = vpop.permute.xlu0 %750
  %v752 = vsel %vm86, %v737, 0
  %v754 = vsel %vm86, %v739, 0
  %v756 = vsel %vm86, %v741, 0
  %v758 = vsel %vm86, %v743, 0
  %v760 = vsel %vm86, %v745, 0
  %v762 = vsel %vm86, %v747, 0
  %v764 = vsel %vm86, %v749, 0
  %v766 = vsel %vm86, %v751, 0
  %768 = vmatpush.xpose.msra.mxu0 0.0
  %769 = vmatpush.xpose.msra.mxu0 0.0
  %770 = vmatpush.xpose.msra.mxu0 0.0
  %771 = vmatpush.xpose.msra.mxu0 0.0
  %772 = vmatpush.xpose.msra.mxu0 0.0
  %773 = vmatpush.xpose.msra.mxu0 0.0
  %774 = vmatpush.xpose.msra.mxu0 0.0
  %775 = vmatpush.xpose.msra.mxu0 0.0
  %776 = vmatpush.xpose.msra.mxu0 0.0
  %777 = vmatpush.xpose.msra.mxu0 0.0
  %778 = vmatpush.xpose.msra.mxu0 0.0
  %779 = vmatpush.xpose.msra.mxu0 0.0
  %780 = vmatpush.xpose.msra.mxu0 %v766
  %781 = vmatpush.xpose.msra.mxu0 %v764
  %782 = vmatpush.xpose.msra.mxu0 %v762
  %783 = vmatpush.xpose.msra.mxu0 %v760
  %784 = vmatmul.f32.gmra.mxu0 %v752
  %v785 = vpop.f32.mrf.mxu0
  %v786 = vadd.f32 0.0, %v785
  %787 = vmatmul.f32.gmra.mxu0 %v754
  %v788 = vpop.f32.mrf.mxu0
  %v789 = vadd.f32 0.0, %v788
  %790 = vmatmul.f32.gmra.mxu0 %v756
  %v791 = vpop.f32.mrf.mxu0
  %v792 = vadd.f32 0.0, %v791
  %793 = vmatmul.f32.gmra.mxu0 %v758
  %v794 = vpop.f32.mrf.mxu0
  %v795 = vadd.f32 0.0, %v794
  %796 = vdwg.mxu0
  %v797 = vmul.f32 %v786, 0.35355338
  %v798 = vmul.f32 %v789, 0.35355338
  %v799 = vmul.f32 %v792, 0.35355338
  %v800 = vmul.f32 %v795, 0.35355338
  %v801 = vadd.f32 %v797, %v152
  %v802 = vadd.f32 %v798, %v153
  %v803 = vadd.f32 %v799, %v154
  %v804 = vadd.f32 %v800, %v155
  %v805 = vsel %vm164, %v801, -inf
  %806 = vmax.xlane.f32.xlu0 %v805
  %v807 = vpop.xlane.xlu0 %806
  %v808 = vsel %vm164, %v802, -inf
  %809 = vmax.xlane.f32.xlu0 %v808
  %v810 = vpop.xlane.xlu0 %809
  %v811 = vsel %vm164, %v803, -inf
  %812 = vmax.xlane.f32.xlu0 %v811
  %v813 = vpop.xlane.xlu0 %812
  %v814 = vsel %vm164, %v804, -inf
  %815 = vmax.xlane.f32.xlu0 %v814
  %v816 = vpop.xlane.xlu0 %815
  %v817 = vsub.f32 %v801, %v807
  %v818 = vsub.f32 %v802, %v810
  %v819 = vsub.f32 %v803, %v813
  %v820 = vsub.f32 %v804, %v816
  %v821 = vmul.f32 %v817, 1.442695
  %v822 = vpow.pop %v821
  %v823 = vmul.f32 %v818, 1.442695
  %v824 = vpow.pop %v823
  %v825 = vmul.f32 %v819, 1.442695
  %v826 = vpow.pop %v825
  %v827 = vmul.f32 %v820, 1.442695
  %v828 = vpow.pop %v827
  %v829 = vsel %vm164, %v822, 0.0
  %830 = vadd.xlane.f32.xlu0 %v829
  %v831 = vpop.xlane.xlu0 %830
  %v832 = vsel %vm164, %v824, 0.0
  %833 = vadd.xlane.f32.xlu0 %v832
  %v834 = vpop.xlane.xlu0 %833
  %v835 = vsel %vm164, %v826, 0.0
  %836 = vadd.xlane.f32.xlu0 %v835
  %v837 = vpop.xlane.xlu0 %836
  %v838 = vsel %vm164, %v828, 0.0
  %839 = vadd.xlane.f32.xlu0 %v838
  %v840 = vpop.xlane.xlu0 %839
  %v841 = vrcp.pop %v831
  %v842 = vmul.f32 %v831, %v841
  %v843 = vsub.f32 1.0, %v842
  %v844 = vmul.f32 %v841, %v843
  %v845 = vadd.f32 %v841, %v844
  %vm846 = vweird.f32 %v831
  %vm847 = vweird.f32 %v841
  %vm848 = vmor %vm846, %vm847
  %v849 = vsel %vm848, %v841, %v845
  %v850 = vand.u32 2147483647, %v831
  %vm851 = vcmp.eq.f32.partialorder %v850, 8.507059e+37
  %v852 = vand.u32 %v831, 2147483648
  %v853 = vor.u32 1.1754944e-38, %v852
  %v854 = vsel %vm851, %v853, %v849
  %v855 = vmul.f32 %v822, %v854
  %v856 = vrcp.pop %v834
  %v857 = vmul.f32 %v834, %v856
  %v858 = vsub.f32 1.0, %v857
  %v859 = vmul.f32 %v856, %v858
  %v860 = vadd.f32 %v856, %v859
  %vm861 = vweird.f32 %v834
  %vm862 = vweird.f32 %v856
  %vm863 = vmor %vm861, %vm862
  %v864 = vsel %vm863, %v856, %v860
  %v865 = vand.u32 2147483647, %v834
  %vm866 = vcmp.eq.f32.partialorder %v865, 8.507059e+37
  %v867 = vand.u32 %v834, 2147483648
  %v868 = vor.u32 1.1754944e-38, %v867
  %v869 = vsel %vm866, %v868, %v864
  %v870 = vmul.f32 %v824, %v869
  %v871 = vrcp.pop %v837
  %v872 = vmul.f32 %v837, %v871
  %v873 = vsub.f32 1.0, %v872
  %v874 = vmul.f32 %v871, %v873
  %v875 = vadd.f32 %v871, %v874
  %vm876 = vweird.f32 %v837
  %vm877 = vweird.f32 %v871
  %vm878 = vmor %vm876, %vm877
  %v879 = vsel %vm878, %v871, %v875
  %v880 = vand.u32 2147483647, %v837
  %vm881 = vcmp.eq.f32.partialorder %v880, 8.507059e+37
  %v882 = vand.u32 %v837, 2147483648
  %v883 = vor.u32 1.1754944e-38, %v882
  %v884 = vsel %vm881, %v883, %v879
  %v885 = vmul.f32 %v826, %v884
  %v886 = vrcp.pop %v840
  %v887 = vmul.f32 %v840, %v886
  %v888 = vsub.f32 1.0, %v887
  %v889 = vmul.f32 %v886, %v888
  %v890 = vadd.f32 %v886, %v889
  %vm891 = vweird.f32 %v840
  %vm892 = vweird.f32 %v886
  %vm893 = vmor %vm891, %vm892
  %v894 = vsel %vm893, %v886, %v890
  %v895 = vand.u32 2147483647, %v840
  %vm896 = vcmp.eq.f32.partialorder %v895, 8.507059e+37
  %v897 = vand.u32 %v840, 2147483648
  %v898 = vor.u32 1.1754944e-38, %v897
  %v899 = vsel %vm896, %v898, %v894
  %v900 = vmul.f32 %v828, %v899
  %901 = vrot.lane.b32.xlu0 %v195, 48
  %v902 = vpop.permute.xlu0 %901
  %903 = vrot.lane.b32.xlu0 %v198, 48
  %v904 = vpop.permute.xlu0 %903
  %905 = vrot.lane.b32.xlu0 %v201, 48
  %v906 = vpop.permute.xlu0 %905
  %907 = vrot.lane.b32.xlu0 %v204, 48
  %v908 = vpop.permute.xlu0 %907
  %v914 = vsel %vm164, %v855, 0
  %v917 = vsel %vm164, %v870, 0
  %v920 = vsel %vm164, %v885, 0
  %v923 = vsel %vm164, %v900, 0
  %925 = vmatpush.msra.mxu0 0.0
  %926 = vmatpush.msra.mxu0 0.0
  %927 = vmatpush.msra.mxu0 0.0
  %928 = vmatpush.msra.mxu0 0.0
  %929 = vmatpush.msra.mxu0 0.0
  %930 = vmatpush.msra.mxu0 0.0
  %931 = vmatpush.msra.mxu0 0.0
  %932 = vmatpush.msra.mxu0 0.0
  %933 = vmatpush.msra.mxu0 0.0
  %934 = vmatpush.msra.mxu0 0.0
  %935 = vmatpush.msra.mxu0 0.0
  %936 = vmatpush.msra.mxu0 0.0
  %937 = vmatpush.msra.mxu0 %v908
  %938 = vmatpush.msra.mxu0 %v906
  %939 = vmatpush.msra.mxu0 %v904
  %940 = vmatpush.msra.mxu0 %v902
  %941 = vmatmul.f32.gmra.mxu0 %v914
  %v942 = vpop.f32.mrf.mxu0
  %v943 = vadd.f32 0.0, %v942
  %944 = vmatmul.f32.gmra.mxu0 %v917
  %v945 = vpop.f32.mrf.mxu0
  %v946 = vadd.f32 0.0, %v945
  %947 = vmatmul.f32.gmra.mxu0 %v920
  %v948 = vpop.f32.mrf.mxu0
  %v949 = vadd.f32 0.0, %v948
  %950 = vmatmul.f32.gmra.mxu0 %v923
  %v951 = vpop.f32.mrf.mxu0
  %v952 = vadd.f32 0.0, %v951
  %953 = vdwg.mxu0
  %v955 = vsel %vm86, %v943, 0
  %v958 = vsel %vm86, %v946, 0
  %v961 = vsel %vm86, %v949, 0
  %v964 = vsel %vm86, %v952, 0
  %966 = vmatpush.msra.mxu0 0.0
  %967 = vmatpush.msra.mxu0 0.0
  %968 = vmatpush.msra.mxu0 0.0
  %969 = vmatpush.msra.mxu0 0.0
  %970 = vmatpush.msra.mxu0 0.0
  %971 = vmatpush.msra.mxu0 0.0
  %972 = vmatpush.msra.mxu0 0.0
  %973 = vmatpush.msra.mxu0 0.0
  %974 = vmatpush.msra.mxu0 0.0
  %975 = vmatpush.msra.mxu0 0.0
  %976 = vmatpush.msra.mxu0 0.0
  %977 = vmatpush.msra.mxu0 0.0
  %978 = vmatpush.msra.mxu0 0.0
  %979 = vmatpush.msra.mxu0 0.0
  %980 = vmatpush.msra.mxu0 0.0
  %981 = vmatpush.msra.mxu0 %v208
  %982 = vmatmul.f32.gmra.mxu0 %v955
  %v983 = vpop.f32.mrf.mxu0
  %v984 = vadd.f32 0.0, %v983
  %985 = vmatmul.f32.gmra.mxu0 %v958
  %v986 = vpop.f32.mrf.mxu0
  %v987 = vadd.f32 0.0, %v986
  %988 = vmatmul.f32.gmra.mxu0 %v961
  %v989 = vpop.f32.mrf.mxu0
  %v990 = vadd.f32 0.0, %v989
  %991 = vmatmul.f32.gmra.mxu0 %v964
  %v992 = vpop.f32.mrf.mxu0
  %v993 = vadd.f32 0.0, %v992
  %994 = vdwg.mxu0
  %v995 = vadd.f32 %v732, %v984
  %v996 = vadd.f32 %v733, %v987
  %v997 = vadd.f32 %v734, %v990
  %v998 = vadd.f32 %v735, %v993
  %999 = vrot.lane.b32.xlu0 %v195, 104
  %v1000 = vpop.permute.xlu0 %999
  %1001 = vrot.lane.b32.xlu0 %v198, 104
  %v1002 = vpop.permute.xlu0 %1001
  %1003 = vrot.lane.b32.xlu0 %v201, 104
  %v1004 = vpop.permute.xlu0 %1003
  %1005 = vrot.lane.b32.xlu0 %v204, 104
  %v1006 = vpop.permute.xlu0 %1005
  %1007 = vrot.lane.b32.xlu0 %v195, 72
  %v1008 = vpop.permute.xlu0 %1007
  %1009 = vrot.lane.b32.xlu0 %v198, 72
  %v1010 = vpop.permute.xlu0 %1009
  %1011 = vrot.lane.b32.xlu0 %v201, 72
  %v1012 = vpop.permute.xlu0 %1011
  %1013 = vrot.lane.b32.xlu0 %v204, 72
  %v1014 = vpop.permute.xlu0 %1013
  %v1015 = vsel %vm86, %v1000, 0
  %v1017 = vsel %vm86, %v1002, 0
  %v1019 = vsel %vm86, %v1004, 0
  %v1021 = vsel %vm86, %v1006, 0
  %v1023 = vsel %vm86, %v1008, 0
  %v1025 = vsel %vm86, %v1010, 0
  %v1027 = vsel %vm86, %v1012, 0
  %v1029 = vsel %vm86, %v1014, 0
  %1031 = vmatpush.xpose.msra.mxu0 0.0
  %1032 = vmatpush.xpose.msra.mxu0 0.0
  %1033 = vmatpush.xpose.msra.mxu0 0.0
  %1034 = vmatpush.xpose.msra.mxu0 0.0
  %1035 = vmatpush.xpose.msra.mxu0 0.0
  %1036 = vmatpush.xpose.msra.mxu0 0.0
  %1037 = vmatpush.xpose.msra.mxu0 0.0
  %1038 = vmatpush.xpose.msra.mxu0 0.0
  %1039 = vmatpush.xpose.msra.mxu0 0.0
  %1040 = vmatpush.xpose.msra.mxu0 0.0
  %1041 = vmatpush.xpose.msra.mxu0 0.0
  %1042 = vmatpush.xpose.msra.mxu0 0.0
  %1043 = vmatpush.xpose.msra.mxu0 %v1029
  %1044 = vmatpush.xpose.msra.mxu0 %v1027
  %1045 = vmatpush.xpose.msra.mxu0 %v1025
  %1046 = vmatpush.xpose.msra.mxu0 %v1023
  %1047 = vmatmul.f32.gmra.mxu0 %v1015
  %v1048 = vpop.f32.mrf.mxu0
  %v1049 = vadd.f32 0.0, %v1048
  %1050 = vmatmul.f32.gmra.mxu0 %v1017
  %v1051 = vpop.f32.mrf.mxu0
  %v1052 = vadd.f32 0.0, %v1051
  %1053 = vmatmul.f32.gmra.mxu0 %v1019
  %v1054 = vpop.f32.mrf.mxu0
  %v1055 = vadd.f32 0.0, %v1054
  %1056 = vmatmul.f32.gmra.mxu0 %v1021
  %v1057 = vpop.f32.mrf.mxu0
  %v1058 = vadd.f32 0.0, %v1057
  %1059 = vdwg.mxu0
  %v1060 = vmul.f32 %v1049, 0.35355338
  %v1061 = vmul.f32 %v1052, 0.35355338
  %v1062 = vmul.f32 %v1055, 0.35355338
  %v1063 = vmul.f32 %v1058, 0.35355338
  %v1064 = vadd.f32 %v1060, %v152
  %v1065 = vadd.f32 %v1061, %v153
  %v1066 = vadd.f32 %v1062, %v154
  %v1067 = vadd.f32 %v1063, %v155
  %v1068 = vsel %vm164, %v1064, -inf
  %1069 = vmax.xlane.f32.xlu0 %v1068
  %v1070 = vpop.xlane.xlu0 %1069
  %v1071 = vsel %vm164, %v1065, -inf
  %1072 = vmax.xlane.f32.xlu0 %v1071
  %v1073 = vpop.xlane.xlu0 %1072
  %v1074 = vsel %vm164, %v1066, -inf
  %1075 = vmax.xlane.f32.xlu0 %v1074
  %v1076 = vpop.xlane.xlu0 %1075
  %v1077 = vsel %vm164, %v1067, -inf
  %1078 = vmax.xlane.f32.xlu0 %v1077
  %v1079 = vpop.xlane.xlu0 %1078
  %v1080 = vsub.f32 %v1064, %v1070
  %v1081 = vsub.f32 %v1065, %v1073
  %v1082 = vsub.f32 %v1066, %v1076
  %v1083 = vsub.f32 %v1067, %v1079
  %v1084 = vmul.f32 %v1080, 1.442695
  %v1085 = vpow.pop %v1084
  %v1086 = vmul.f32 %v1081, 1.442695
  %v1087 = vpow.pop %v1086
  %v1088 = vmul.f32 %v1082, 1.442695
  %v1089 = vpow.pop %v1088
  %v1090 = vmul.f32 %v1083, 1.442695
  %v1091 = vpow.pop %v1090
  %v1092 = vsel %vm164, %v1085, 0.0
  %1093 = vadd.xlane.f32.xlu0 %v1092
  %v1094 = vpop.xlane.xlu0 %1093
  %v1095 = vsel %vm164, %v1087, 0.0
  %1096 = vadd.xlane.f32.xlu0 %v1095
  %v1097 = vpop.xlane.xlu0 %1096
  %v1098 = vsel %vm164, %v1089, 0.0
  %1099 = vadd.xlane.f32.xlu0 %v1098
  %v1100 = vpop.xlane.xlu0 %1099
  %v1101 = vsel %vm164, %v1091, 0.0
  %1102 = vadd.xlane.f32.xlu0 %v1101
  %v1103 = vpop.xlane.xlu0 %1102
  %v1104 = vrcp.pop %v1094
  %v1105 = vmul.f32 %v1094, %v1104
  %v1106 = vsub.f32 1.0, %v1105
  %v1107 = vmul.f32 %v1104, %v1106
  %v1108 = vadd.f32 %v1104, %v1107
  %vm1109 = vweird.f32 %v1094
  %vm1110 = vweird.f32 %v1104
  %vm1111 = vmor %vm1109, %vm1110
  %v1112 = vsel %vm1111, %v1104, %v1108
  %v1113 = vand.u32 2147483647, %v1094
  %vm1114 = vcmp.eq.f32.partialorder %v1113, 8.507059e+37
  %v1115 = vand.u32 %v1094, 2147483648
  %v1116 = vor.u32 1.1754944e-38, %v1115
  %v1117 = vsel %vm1114, %v1116, %v1112
  %v1118 = vmul.f32 %v1085, %v1117
  %v1119 = vrcp.pop %v1097
  %v1120 = vmul.f32 %v1097, %v1119
  %v1121 = vsub.f32 1.0, %v1120
  %v1122 = vmul.f32 %v1119, %v1121
  %v1123 = vadd.f32 %v1119, %v1122
  %vm1124 = vweird.f32 %v1097
  %vm1125 = vweird.f32 %v1119
  %vm1126 = vmor %vm1124, %vm1125
  %v1127 = vsel %vm1126, %v1119, %v1123
  %v1128 = vand.u32 2147483647, %v1097
  %vm1129 = vcmp.eq.f32.partialorder %v1128, 8.507059e+37
  %v1130 = vand.u32 %v1097, 2147483648
  %v1131 = vor.u32 1.1754944e-38, %v1130
  %v1132 = vsel %vm1129, %v1131, %v1127
  %v1133 = vmul.f32 %v1087, %v1132
  %v1134 = vrcp.pop %v1100
  %v1135 = vmul.f32 %v1100, %v1134
  %v1136 = vsub.f32 1.0, %v1135
  %v1137 = vmul.f32 %v1134, %v1136
  %v1138 = vadd.f32 %v1134, %v1137
  %vm1139 = vweird.f32 %v1100
  %vm1140 = vweird.f32 %v1134
  %vm1141 = vmor %vm1139, %vm1140
  %v1142 = vsel %vm1141, %v1134, %v1138
  %v1143 = vand.u32 2147483647, %v1100
  %vm1144 = vcmp.eq.f32.partialorder %v1143, 8.507059e+37
  %v1145 = vand.u32 %v1100, 2147483648
  %v1146 = vor.u32 1.1754944e-38, %v1145
  %v1147 = vsel %vm1144, %v1146, %v1142
  %v1148 = vmul.f32 %v1089, %v1147
  %v1149 = vrcp.pop %v1103
  %v1150 = vmul.f32 %v1103, %v1149
  %v1151 = vsub.f32 1.0, %v1150
  %v1152 = vmul.f32 %v1149, %v1151
  %v1153 = vadd.f32 %v1149, %v1152
  %vm1154 = vweird.f32 %v1103
  %vm1155 = vweird.f32 %v1149
  %vm1156 = vmor %vm1154, %vm1155
  %v1157 = vsel %vm1156, %v1149, %v1153
  %v1158 = vand.u32 2147483647, %v1103
  %vm1159 = vcmp.eq.f32.partialorder %v1158, 8.507059e+37
  %v1160 = vand.u32 %v1103, 2147483648
  %v1161 = vor.u32 1.1754944e-38, %v1160
  %v1162 = vsel %vm1159, %v1161, %v1157
  %v1163 = vmul.f32 %v1091, %v1162
  %1164 = vrot.lane.b32.xlu0 %v195, 40
  %v1165 = vpop.permute.xlu0 %1164
  %1166 = vrot.lane.b32.xlu0 %v198, 40
  %v1167 = vpop.permute.xlu0 %1166
  %1168 = vrot.lane.b32.xlu0 %v201, 40
  %v1169 = vpop.permute.xlu0 %1168
  %1170 = vrot.lane.b32.xlu0 %v204, 40
  %v1171 = vpop.permute.xlu0 %1170
  %v1177 = vsel %vm164, %v1118, 0
  %v1180 = vsel %vm164, %v1133, 0
  %v1183 = vsel %vm164, %v1148, 0
  %v1186 = vsel %vm164, %v1163, 0
  %1188 = vmatpush.msra.mxu0 0.0
  %1189 = vmatpush.msra.mxu0 0.0
  %1190 = vmatpush.msra.mxu0 0.0
  %1191 = vmatpush.msra.mxu0 0.0
  %1192 = vmatpush.msra.mxu0 0.0
  %1193 = vmatpush.msra.mxu0 0.0
  %1194 = vmatpush.msra.mxu0 0.0
  %1195 = vmatpush.msra.mxu0 0.0
  %1196 = vmatpush.msra.mxu0 0.0
  %1197 = vmatpush.msra.mxu0 0.0
  %1198 = vmatpush.msra.mxu0 0.0
  %1199 = vmatpush.msra.mxu0 0.0
  %1200 = vmatpush.msra.mxu0 %v1171
  %1201 = vmatpush.msra.mxu0 %v1169
  %1202 = vmatpush.msra.mxu0 %v1167
  %1203 = vmatpush.msra.mxu0 %v1165
  %1204 = vmatmul.f32.gmra.mxu0 %v1177
  %v1205 = vpop.f32.mrf.mxu0
  %v1206 = vadd.f32 0.0, %v1205
  %1207 = vmatmul.f32.gmra.mxu0 %v1180
  %v1208 = vpop.f32.mrf.mxu0
  %v1209 = vadd.f32 0.0, %v1208
  %1210 = vmatmul.f32.gmra.mxu0 %v1183
  %v1211 = vpop.f32.mrf.mxu0
  %v1212 = vadd.f32 0.0, %v1211
  %1213 = vmatmul.f32.gmra.mxu0 %v1186
  %v1214 = vpop.f32.mrf.mxu0
  %v1215 = vadd.f32 0.0, %v1214
  %1216 = vdwg.mxu0
  %v1218 = vsel %vm86, %v1206, 0
  %v1221 = vsel %vm86, %v1209, 0
  %v1224 = vsel %vm86, %v1212, 0
  %v1227 = vsel %vm86, %v1215, 0
  %1229 = vmatpush.msra.mxu0 0.0
  %1230 = vmatpush.msra.mxu0 0.0
  %1231 = vmatpush.msra.mxu0 0.0
  %1232 = vmatpush.msra.mxu0 0.0
  %1233 = vmatpush.msra.mxu0 0.0
  %1234 = vmatpush.msra.mxu0 0.0
  %1235 = vmatpush.msra.mxu0 0.0
  %1236 = vmatpush.msra.mxu0 0.0
  %1237 = vmatpush.msra.mxu0 0.0
  %1238 = vmatpush.msra.mxu0 0.0
  %1239 = vmatpush.msra.mxu0 0.0
  %1240 = vmatpush.msra.mxu0 0.0
  %1241 = vmatpush.msra.mxu0 0.0
  %1242 = vmatpush.msra.mxu0 0.0
  %1243 = vmatpush.msra.mxu0 0.0
  %1244 = vmatpush.msra.mxu0 %v209
  %1245 = vmatmul.f32.gmra.mxu0 %v1218
  %v1246 = vpop.f32.mrf.mxu0
  %v1247 = vadd.f32 0.0, %v1246
  %1248 = vmatmul.f32.gmra.mxu0 %v1221
  %v1249 = vpop.f32.mrf.mxu0
  %v1250 = vadd.f32 0.0, %v1249
  %1251 = vmatmul.f32.gmra.mxu0 %v1224
  %v1252 = vpop.f32.mrf.mxu0
  %v1253 = vadd.f32 0.0, %v1252
  %1254 = vmatmul.f32.gmra.mxu0 %v1227
  %v1255 = vpop.f32.mrf.mxu0
  %v1256 = vadd.f32 0.0, %v1255
  %1257 = vdwg.mxu0
  %v1258 = vadd.f32 %v995, %v1247
  %v1259 = vadd.f32 %v996, %v1250
  %v1260 = vadd.f32 %v997, %v1253
  %v1261 = vadd.f32 %v998, %v1256
  %v1262 = vadd.f32 %v117, %v1258
  %v1263 = vadd.f32 %v120, %v1259
  %v1264 = vadd.f32 %v123, %v1260
  %v1265 = vadd.f32 %v126, %v1261
  %v1266 = vld [vmem:[%s7] sm:$0x1]
  %v1267 = vld [vmem:[%s8] sm:$0x1]
  %v1268 = vsel %vm164, %v1262, 0.0
  %1269 = vadd.xlane.f32.xlu0 %v1268
  %v1270 = vpop.xlane.xlu0 %1269
  %v1271 = vsel %vm164, %v1263, 0.0
  %1272 = vadd.xlane.f32.xlu0 %v1271
  %v1273 = vpop.xlane.xlu0 %1272
  %v1274 = vsel %vm164, %v1264, 0.0
  %1275 = vadd.xlane.f32.xlu0 %v1274
  %v1276 = vpop.xlane.xlu0 %1275
  %v1277 = vsel %vm164, %v1265, 0.0
  %1278 = vadd.xlane.f32.xlu0 %v1277
  %v1279 = vpop.xlane.xlu0 %1278
  %v1280 = vrcp.pop 32.0
  %v1281 = vmul.f32 32.0, %v1280
  %v1282 = vsub.f32 1.0, %v1281
  %v1283 = vmul.f32 %v1280, %v1282
  %v1284 = vadd.f32 %v1280, %v1283
  %vm1285 = vweird.f32 %v1280
  %v1286 = vsel %vm1285, %v1280, %v1284
  %v1287 = vmul.f32 %v1270, %v1286
  %v1288 = vmul.f32 %v1273, %v1286
  %v1289 = vmul.f32 %v1276, %v1286
  %v1290 = vmul.f32 %v1279, %v1286
  %v1291 = vsub.f32 %v1262, %v1287
  %v1292 = vsub.f32 %v1263, %v1288
  %v1293 = vsub.f32 %v1264, %v1289
  %v1294 = vsub.f32 %v1265, %v1290
  %v1295 = vmul.f32 %v1291, %v1291
  %v1296 = vmul.f32 %v1292, %v1292
  %v1297 = vmul.f32 %v1293, %v1293
  %v1298 = vmul.f32 %v1294, %v1294
  %v1299 = vsel %vm164, %v1295, 0.0
  %1300 = vadd.xlane.f32.xlu0 %v1299
  %v1301 = vpop.xlane.xlu0 %1300
  %v1302 = vsel %vm164, %v1296, 0.0
  %1303 = vadd.xlane.f32.xlu0 %v1302
  %v1304 = vpop.xlane.xlu0 %1303
  %v1305 = vsel %vm164, %v1297, 0.0
  %1306 = vadd.xlane.f32.xlu0 %v1305
  %v1307 = vpop.xlane.xlu0 %1306
  %v1308 = vsel %vm164, %v1298, 0.0
  %1309 = vadd.xlane.f32.xlu0 %v1308
  %v1310 = vpop.xlane.xlu0 %1309
  %v1311 = vmul.f32 %v1301, %v1286
  %v1312 = vmul.f32 %v1304, %v1286
  %v1313 = vmul.f32 %v1307, %v1286
  %v1314 = vmul.f32 %v1310, %v1286
  %v1315 = vadd.f32 %v1311, 1e-05
  %v1316 = vadd.f32 %v1312, 1e-05
  %v1317 = vadd.f32 %v1313, 1e-05
  %v1318 = vadd.f32 %v1314, 1e-05
  %v1319 = vrsqrt.pop %v1315
  %v1320 = vmul.f32 %v1319, %v1315
  %v1321 = vmul.f32 %v1320, %v1319
  %v1322 = vmul.f32 0.5, %v1321
  %v1323 = vsub.f32 1.5, %v1322
  %v1324 = vmul.f32 %v1319, %v1323
  %vm1325 = vweird.f32 %v1315
  %vm1326 = vweird.f32 %v1319
  %vm1327 = vmor %vm1325, %vm1326
  %v1328 = vsel %vm1327, %v1319, %v1324
  %v1329 = vrsqrt.pop %v1316
  %v1330 = vmul.f32 %v1329, %v1316
  %v1331 = vmul.f32 %v1330, %v1329
  %v1332 = vmul.f32 0.5, %v1331
  %v1333 = vsub.f32 1.5, %v1332
  %v1334 = vmul.f32 %v1329, %v1333
  %vm1335 = vweird.f32 %v1316
  %vm1336 = vweird.f32 %v1329
  %vm1337 = vmor %vm1335, %vm1336
  %v1338 = vsel %vm1337, %v1329, %v1334
  %v1339 = vrsqrt.pop %v1317
  %v1340 = vmul.f32 %v1339, %v1317
  %v1341 = vmul.f32 %v1340, %v1339
  %v1342 = vmul.f32 0.5, %v1341
  %v1343 = vsub.f32 1.5, %v1342
  %v1344 = vmul.f32 %v1339, %v1343
  %vm1345 = vweird.f32 %v1317
  %vm1346 = vweird.f32 %v1339
  %vm1347 = vmor %vm1345, %vm1346
  %v1348 = vsel %vm1347, %v1339, %v1344
  %v1349 = vrsqrt.pop %v1318
  %v1350 = vmul.f32 %v1349, %v1318
  %v1351 = vmul.f32 %v1350, %v1349
  %v1352 = vmul.f32 0.5, %v1351
  %v1353 = vsub.f32 1.5, %v1352
  %v1354 = vmul.f32 %v1349, %v1353
  %vm1355 = vweird.f32 %v1318
  %vm1356 = vweird.f32 %v1349
  %vm1357 = vmor %vm1355, %vm1356
  %v1358 = vsel %vm1357, %v1349, %v1354
  %v1359 = vmul.f32 %v1291, %v1328
  %v1360 = vmul.f32 %v1292, %v1338
  %v1361 = vmul.f32 %v1293, %v1348
  %v1362 = vmul.f32 %v1294, %v1358
  %v1364 = vperm.slane %v1266, 0
  %v1366 = vmul.f32 %v1359, %v1364
  %v1367 = vmul.f32 %v1360, %v1364
  %v1368 = vmul.f32 %v1361, %v1364
  %v1369 = vmul.f32 %v1362, %v1364
  %v1371 = vperm.slane %v1267, 0
  %v1373 = vadd.f32 %v1366, %v1371
  %v1374 = vadd.f32 %v1367, %v1371
  %v1375 = vadd.f32 %v1368, %v1371
  %v1376 = vadd.f32 %v1369, %v1371
  %v1377 = vld [vmem:[%s9] sm:$0xff]
  %v1378 = vld [vmem:[%s9 + $0x8] sm:$0xff]
  %v1379 = vld [vmem:[%s9 + $0x10] sm:$0xff]
  %v1380 = vld [vmem:[%s9 + $0x18] sm:$0xff]
  %v1381 = vld [vmem:[%s10] sm:$0x1]
  %v1383 = vperm.slane %v1381, 0
  %v1386 = vsel %vm164, %v1373, 0
  %v1389 = vsel %vm164, %v1374, 0
  %v1392 = vsel %vm164, %v1375, 0
  %v1395 = vsel %vm164, %v1376, 0
  %1397 = vmatpush.msra.mxu0 0.0
  %1398 = vmatpush.msra.mxu0 0.0
  %1399 = vmatpush.msra.mxu0 0.0
  %1400 = vmatpush.msra.mxu0 0.0
  %1401 = vmatpush.msra.mxu0 0.0
  %1402 = vmatpush.msra.mxu0 0.0
  %1403 = vmatpush.msra.mxu0 0.0
  %1404 = vmatpush.msra.mxu0 0.0
  %1405 = vmatpush.msra.mxu0 0.0
  %1406 = vmatpush.msra.mxu0 0.0
  %1407 = vmatpush.msra.mxu0 0.0
  %1408 = vmatpush.msra.mxu0 0.0
  %1409 = vmatpush.msra.mxu0 %v1380
  %1410 = vmatpush.msra.mxu0 %v1379
  %1411 = vmatpush.msra.mxu0 %v1378
  %1412 = vmatpush.msra.mxu0 %v1377
  %1413 = vmatmul.f32.gmra.mxu0 %v1386
  %v1414 = vpop.f32.mrf.mxu0
  %v1415 = vadd.f32 %v1383, %v1414
  %1416 = vmatmul.f32.gmra.mxu0 %v1389
  %v1417 = vpop.f32.mrf.mxu0
  %v1418 = vadd.f32 %v1383, %v1417
  %1419 = vmatmul.f32.gmra.mxu0 %v1392
  %v1420 = vpop.f32.mrf.mxu0
  %v1421 = vadd.f32 %v1383, %v1420
  %1422 = vmatmul.f32.gmra.mxu0 %v1395
  %v1423 = vpop.f32.mrf.mxu0
  %v1424 = vadd.f32 %v1383, %v1423
  %1425 = vdwg.mxu0
  %v1426 = vmul.f32 %v1415, 0.5
  %v1427 = vmul.f32 %v1418, 0.5
  %v1428 = vmul.f32 %v1421, 0.5
  %v1429 = vmul.f32 %v1424, 0.5
  %v1430 = vmul.f32 %v1415, 0.044715
  %v1431 = vmul.f32 %v1418, 0.044715
  %v1432 = vmul.f32 %v1421, 0.044715
  %v1433 = vmul.f32 %v1424, 0.044715
  %v1434 = vmul.f32 %v1430, %v1415
  %v1435 = vmul.f32 %v1431, %v1418
  %v1436 = vmul.f32 %v1432, %v1421
  %v1437 = vmul.f32 %v1433, %v1424
  %v1438 = vmul.f32 %v1434, %v1415
  %v1439 = vmul.f32 %v1435, %v1418
  %v1440 = vmul.f32 %v1436, %v1421
  %v1441 = vmul.f32 %v1437, %v1424
  %v1442 = vadd.f32 %v1415, %v1438
  %v1443 = vadd.f32 %v1418, %v1439
  %v1444 = vadd.f32 %v1421, %v1440
  %v1445 = vadd.f32 %v1424, %v1441
  %v1446 = vmul.f32 %v1442, 0.7978846
  %v1447 = vmul.f32 %v1443, 0.7978846
  %v1448 = vmul.f32 %v1444, 0.7978846
  %v1449 = vmul.f32 %v1445, 0.7978846
  %v1450 = vtanh.pop %v1446
  %v1451 = vtanh.pop %v1447
  %v1452 = vtanh.pop %v1448
  %v1453 = vtanh.pop %v1449
  %v1454 = vadd.f32 %v1450, 1.0
  %v1455 = vadd.f32 %v1451, 1.0
  %v1456 = vadd.f32 %v1452, 1.0
  %v1457 = vadd.f32 %v1453, 1.0
  %v1458 = vmul.f32 %v1426, %v1454
  %v1459 = vmul.f32 %v1427, %v1455
  %v1460 = vmul.f32 %v1428, %v1456
  %v1461 = vmul.f32 %v1429, %v1457
  %v1462 = vld [vmem:[%s11] sm:$0xff]
  %v1463 = vld [vmem:[%s11 + $0x8] sm:$0xff]
  %v1464 = vld [vmem:[%s11 + $0x10] sm:$0xff]
  %v1465 = vld [vmem:[%s11 + $0x18] sm:$0xff]
  %v1466 = vld [vmem:[%s11 + $0x20] sm:$0xff]
  %v1467 = vld [vmem:[%s11 + $0x28] sm:$0xff]
  %v1468 = vld [vmem:[%s11 + $0x30] sm:$0xff]
  %v1469 = vld [vmem:[%s11 + $0x38] sm:$0xff]
  %v1470 = vld [vmem:[%s12] sm:$0x1]
  %v1472 = vperm.slane %v1470, 0
  %vm1474 = vcmask 523264
  %v1476 = vsel %vm1474, %v1458, 0
  %v1479 = vsel %vm1474, %v1459, 0
  %v1482 = vsel %vm1474, %v1460, 0
  %v1485 = vsel %vm1474, %v1461, 0
  %1487 = vmatpush.msra.mxu0 0.0
  %1488 = vmatpush.msra.mxu0 0.0
  %1489 = vmatpush.msra.mxu0 0.0
  %1490 = vmatpush.msra.mxu0 0.0
  %1491 = vmatpush.msra.mxu0 0.0
  %1492 = vmatpush.msra.mxu0 0.0
  %1493 = vmatpush.msra.mxu0 0.0
  %1494 = vmatpush.msra.mxu0 0.0
  %1495 = vmatpush.msra.mxu0 %v1469
  %1496 = vmatpush.msra.mxu0 %v1468
  %1497 = vmatpush.msra.mxu0 %v1467
  %1498 = vmatpush.msra.mxu0 %v1466
  %1499 = vmatpush.msra.mxu0 %v1465
  %1500 = vmatpush.msra.mxu0 %v1464
  %1501 = vmatpush.msra.mxu0 %v1463
  %1502 = vmatpush.msra.mxu0 %v1462
  %1503 = vmatmul.f32.gmra.mxu0 %v1476
  %v1504 = vpop.f32.mrf.mxu0
  %v1505 = vadd.f32 %v1472, %v1504
  %1506 = vmatmul.f32.gmra.mxu0 %v1479
  %v1507 = vpop.f32.mrf.mxu0
  %v1508 = vadd.f32 %v1472, %v1507
  %1509 = vmatmul.f32.gmra.mxu0 %v1482
  %v1510 = vpop.f32.mrf.mxu0
  %v1511 = vadd.f32 %v1472, %v1510
  %1512 = vmatmul.f32.gmra.mxu0 %v1485
  %v1513 = vpop.f32.mrf.mxu0
  %v1514 = vadd.f32 %v1472, %v1513
  %1515 = vdwg.mxu0
  %v1516 = vadd.f32 %v1373, %v1505
  %v1517 = vadd.f32 %v1374, %v1508
  %v1518 = vadd.f32 %v1375, %v1511
  %v1519 = vadd.f32 %v1376, %v1514
  %v1520 = vld [vmem:[%s13] sm:$0x1]
  %v1521 = vld [vmem:[%s14] sm:$0x1]
  %v1522 = vsel %vm164, %v1516, 0.0
  %1523 = vadd.xlane.f32.xlu0 %v1522
  %v1524 = vpop.xlane.xlu0 %1523
  %v1525 = vsel %vm164, %v1517, 0.0
  %1526 = vadd.xlane.f32.xlu0 %v1525
  %v1527 = vpop.xlane.xlu0 %1526
  %v1528 = vsel %vm164, %v1518, 0.0
  %1529 = vadd.xlane.f32.xlu0 %v1528
  %v1530 = vpop.xlane.xlu0 %1529
  %v1531 = vsel %vm164, %v1519, 0.0
  %1532 = vadd.xlane.f32.xlu0 %v1531
  %v1533 = vpop.xlane.xlu0 %1532
  %v1534 = vmul.f32 %v1524, %v1286
  %v1535 = vmul.f32 %v1527, %v1286
  %v1536 = vmul.f32 %v1530, %v1286
  %v1537 = vmul.f32 %v1533, %v1286
  %v1538 = vsub.f32 %v1516, %v1534
  %v1539 = vsub.f32 %v1517, %v1535
  %v1540 = vsub.f32 %v1518, %v1536
  %v1541 = vsub.f32 %v1519, %v1537
  %v1542 = vmul.f32 %v1538, %v1538
  %v1543 = vmul.f32 %v1539, %v1539
  %v1544 = vmul.f32 %v1540, %v1540
  %v1545 = vmul.f32 %v1541, %v1541
  %v1546 = vsel %vm164, %v1542, 0.0
  %1547 = vadd.xlane.f32.xlu0 %v1546
  %v1548 = vpop.xlane.xlu0 %1547
  %v1549 = vsel %vm164, %v1543, 0.0
  %1550 = vadd.xlane.f32.xlu0 %v1549
  %v1551 = vpop.xlane.xlu0 %1550
  %v1552 = vsel %vm164, %v1544, 0.0
  %1553 = vadd.xlane.f32.xlu0 %v1552
  %v1554 = vpop.xlane.xlu0 %1553
  %v1555 = vsel %vm164, %v1545, 0.0
  %1556 = vadd.xlane.f32.xlu0 %v1555
  %v1557 = vpop.xlane.xlu0 %1556
  %v1558 = vmul.f32 %v1548, %v1286
  %v1559 = vmul.f32 %v1551, %v1286
  %v1560 = vmul.f32 %v1554, %v1286
  %v1561 = vmul.f32 %v1557, %v1286
  %v1562 = vadd.f32 %v1558, 1e-05
  %v1563 = vadd.f32 %v1559, 1e-05
  %v1564 = vadd.f32 %v1560, 1e-05
  %v1565 = vadd.f32 %v1561, 1e-05
  %v1566 = vrsqrt.pop %v1562
  %v1567 = vmul.f32 %v1566, %v1562
  %v1568 = vmul.f32 %v1567, %v1566
  %v1569 = vmul.f32 0.5, %v1568
  %v1570 = vsub.f32 1.5, %v1569
  %v1571 = vmul.f32 %v1566, %v1570
  %vm1572 = vweird.f32 %v1562
  %vm1573 = vweird.f32 %v1566
  %vm1574 = vmor %vm1572, %vm1573
  %v1575 = vsel %vm1574, %v1566, %v1571
  %v1576 = vrsqrt.pop %v1563
  %v1577 = vmul.f32 %v1576, %v1563
  %v1578 = vmul.f32 %v1577, %v1576
  %v1579 = vmul.f32 0.5, %v1578
  %v1580 = vsub.f32 1.5, %v1579
  %v1581 = vmul.f32 %v1576, %v1580
  %vm1582 = vweird.f32 %v1563
  %vm1583 = vweird.f32 %v1576
  %vm1584 = vmor %vm1582, %vm1583
  %v1585 = vsel %vm1584, %v1576, %v1581
  %v1586 = vrsqrt.pop %v1564
  %v1587 = vmul.f32 %v1586, %v1564
  %v1588 = vmul.f32 %v1587, %v1586
  %v1589 = vmul.f32 0.5, %v1588
  %v1590 = vsub.f32 1.5, %v1589
  %v1591 = vmul.f32 %v1586, %v1590
  %vm1592 = vweird.f32 %v1564
  %vm1593 = vweird.f32 %v1586
  %vm1594 = vmor %vm1592, %vm1593
  %v1595 = vsel %vm1594, %v1586, %v1591
  %v1596 = vrsqrt.pop %v1565
  %v1597 = vmul.f32 %v1596, %v1565
  %v1598 = vmul.f32 %v1597, %v1596
  %v1599 = vmul.f32 0.5, %v1598
  %v1600 = vsub.f32 1.5, %v1599
  %v1601 = vmul.f32 %v1596, %v1600
  %vm1602 = vweird.f32 %v1565
  %vm1603 = vweird.f32 %v1596
  %vm1604 = vmor %vm1602, %vm1603
  %v1605 = vsel %vm1604, %v1596, %v1601
  %v1606 = vmul.f32 %v1538, %v1575
  %v1607 = vmul.f32 %v1539, %v1585
  %v1608 = vmul.f32 %v1540, %v1595
  %v1609 = vmul.f32 %v1541, %v1605
  %v1611 = vperm.slane %v1520, 0
  %v1613 = vmul.f32 %v1606, %v1611
  %v1614 = vmul.f32 %v1607, %v1611
  %v1615 = vmul.f32 %v1608, %v1611
  %v1616 = vmul.f32 %v1609, %v1611
  %v1618 = vperm.slane %v1521, 0
  %v1620 = vadd.f32 %v1613, %v1618
  %v1621 = vadd.f32 %v1614, %v1618
  %v1622 = vadd.f32 %v1615, %v1618
  %v1623 = vadd.f32 %v1616, %v1618
  %v1624 = vld [vmem:[%s15] sm:$0x1]
  %v1625 = vld [vmem:[%s16] sm:$0x1]
  %v1626 = vsel %vm164, %v1620, 0.0
  %1627 = vadd.xlane.f32.xlu0 %v1626
  %v1628 = vpop.xlane.xlu0 %1627
  %v1629 = vsel %vm164, %v1621, 0.0
  %1630 = vadd.xlane.f32.xlu0 %v1629
  %v1631 = vpop.xlane.xlu0 %1630
  %v1632 = vsel %vm164, %v1622, 0.0
  %1633 = vadd.xlane.f32.xlu0 %v1632
  %v1634 = vpop.xlane.xlu0 %1633
  %v1635 = vsel %vm164, %v1623, 0.0
  %1636 = vadd.xlane.f32.xlu0 %v1635
  %v1637 = vpop.xlane.xlu0 %1636
  %v1638 = vmul.f32 %v1628, %v1286
  %v1639 = vmul.f32 %v1631, %v1286
  %v1640 = vmul.f32 %v1634, %v1286
  %v1641 = vmul.f32 %v1637, %v1286
  %v1642 = vsub.f32 %v1620, %v1638
  %v1643 = vsub.f32 %v1621, %v1639
  %v1644 = vsub.f32 %v1622, %v1640
  %v1645 = vsub.f32 %v1623, %v1641
  %v1646 = vmul.f32 %v1642, %v1642
  %v1647 = vmul.f32 %v1643, %v1643
  %v1648 = vmul.f32 %v1644, %v1644
  %v1649 = vmul.f32 %v1645, %v1645
  %v1650 = vsel %vm164, %v1646, 0.0
  %1651 = vadd.xlane.f32.xlu0 %v1650
  %v1652 = vpop.xlane.xlu0 %1651
  %v1653 = vsel %vm164, %v1647, 0.0
  %1654 = vadd.xlane.f32.xlu0 %v1653
  %v1655 = vpop.xlane.xlu0 %1654
  %v1656 = vsel %vm164, %v1648, 0.0
  %1657 = vadd.xlane.f32.xlu0 %v1656
  %v1658 = vpop.xlane.xlu0 %1657
  %v1659 = vsel %vm164, %v1649, 0.0
  %1660 = vadd.xlane.f32.xlu0 %v1659
  %v1661 = vpop.xlane.xlu0 %1660
  %v1662 = vmul.f32 %v1652, %v1286
  %v1663 = vmul.f32 %v1655, %v1286
  %v1664 = vmul.f32 %v1658, %v1286
  %v1665 = vmul.f32 %v1661, %v1286
  %v1666 = vadd.f32 %v1662, 1e-05
  %v1667 = vadd.f32 %v1663, 1e-05
  %v1668 = vadd.f32 %v1664, 1e-05
  %v1669 = vadd.f32 %v1665, 1e-05
  %v1670 = vrsqrt.pop %v1666
  %v1671 = vmul.f32 %v1670, %v1666
  %v1672 = vmul.f32 %v1671, %v1670
  %v1673 = vmul.f32 0.5, %v1672
  %v1674 = vsub.f32 1.5, %v1673
  %v1675 = vmul.f32 %v1670, %v1674
  %vm1676 = vweird.f32 %v1666
  %vm1677 = vweird.f32 %v1670
  %vm1678 = vmor %vm1676, %vm1677
  %v1679 = vsel %vm1678, %v1670, %v1675
  %v1680 = vrsqrt.pop %v1667
  %v1681 = vmul.f32 %v1680, %v1667
  %v1682 = vmul.f32 %v1681, %v1680
  %v1683 = vmul.f32 0.5, %v1682
  %v1684 = vsub.f32 1.5, %v1683
  %v1685 = vmul.f32 %v1680, %v1684
  %vm1686 = vweird.f32 %v1667
  %vm1687 = vweird.f32 %v1680
  %vm1688 = vmor %vm1686, %vm1687
  %v1689 = vsel %vm1688, %v1680, %v1685
  %v1690 = vrsqrt.pop %v1668
  %v1691 = vmul.f32 %v1690, %v1668
  %v1692 = vmul.f32 %v1691, %v1690
  %v1693 = vmul.f32 0.5, %v1692
  %v1694 = vsub.f32 1.5, %v1693
  %v1695 = vmul.f32 %v1690, %v1694
  %vm1696 = vweird.f32 %v1668
  %vm1697 = vweird.f32 %v1690
  %vm1698 = vmor %vm1696, %vm1697
  %v1699 = vsel %vm1698, %v1690, %v1695
  %v1700 = vrsqrt.pop %v1669
  %v1701 = vmul.f32 %v1700, %v1669
  %v1702 = vmul.f32 %v1701, %v1700
  %v1703 = vmul.f32 0.5, %v1702
  %v1704 = vsub.f32 1.5, %v1703
  %v1705 = vmul.f32 %v1700, %v1704
  %vm1706 = vweird.f32 %v1669
  %vm1707 = vweird.f32 %v1700
  %vm1708 = vmor %vm1706, %vm1707
  %v1709 = vsel %vm1708, %v1700, %v1705
  %v1710 = vmul.f32 %v1642, %v1679
  %v1711 = vmul.f32 %v1643, %v1689
  %v1712 = vmul.f32 %v1644, %v1699
  %v1713 = vmul.f32 %v1645, %v1709
  %v1715 = vperm.slane %v1624, 0
  %v1717 = vmul.f32 %v1710, %v1715
  %v1718 = vmul.f32 %v1711, %v1715
  %v1719 = vmul.f32 %v1712, %v1715
  %v1720 = vmul.f32 %v1713, %v1715
  %v1722 = vperm.slane %v1625, 0
  %v1724 = vadd.f32 %v1717, %v1722
  %v1725 = vadd.f32 %v1718, %v1722
  %v1726 = vadd.f32 %v1719, %v1722
  %v1727 = vadd.f32 %v1720, %v1722
  %v1728 = vld [vmem:[%s17] sm:$0xff]
  %v1729 = vld [vmem:[%s17 + $0x8] sm:$0xff]
  %v1730 = vld [vmem:[%s17 + $0x10] sm:$0xff]
  %v1731 = vld [vmem:[%s17 + $0x18] sm:$0xff]
  %v1732 = vld [vmem:[%s18] sm:$0x1]
  %v1734 = vperm.slane %v1732, 0
  %v1737 = vsel %vm164, %v1724, 0
  %v1740 = vsel %vm164, %v1725, 0
  %v1743 = vsel %vm164, %v1726, 0
  %v1746 = vsel %vm164, %v1727, 0
  %1748 = vmatpush.msra.mxu0 0.0
  %1749 = vmatpush.msra.mxu0 0.0
  %1750 = vmatpush.msra.mxu0 0.0
  %1751 = vmatpush.msra.mxu0 0.0
  %1752 = vmatpush.msra.mxu0 0.0
  %1753 = vmatpush.msra.mxu0 0.0
  %1754 = vmatpush.msra.mxu0 0.0
  %1755 = vmatpush.msra.mxu0 0.0
  %1756 = vmatpush.msra.mxu0 0.0
  %1757 = vmatpush.msra.mxu0 0.0
  %1758 = vmatpush.msra.mxu0 0.0
  %1759 = vmatpush.msra.mxu0 0.0
  %1760 = vmatpush.msra.mxu0 %v1731
  %1761 = vmatpush.msra.mxu0 %v1730
  %1762 = vmatpush.msra.mxu0 %v1729
  %1763 = vmatpush.msra.mxu0 %v1728
  %1764 = vmatmul.f32.gmra.mxu0 %v1737
  %v1765 = vpop.f32.mrf.mxu0
  %v1766 = vadd.f32 %v1734, %v1765
  %1767 = vmatmul.f32.gmra.mxu0 %v1740
  %v1768 = vpop.f32.mrf.mxu0
  %v1769 = vadd.f32 %v1734, %v1768
  %1770 = vmatmul.f32.gmra.mxu0 %v1743
  %v1771 = vpop.f32.mrf.mxu0
  %v1772 = vadd.f32 %v1734, %v1771
  %1773 = vmatmul.f32.gmra.mxu0 %v1746
  %v1774 = vpop.f32.mrf.mxu0
  %v1775 = vadd.f32 %v1734, %v1774
  %1776 = vdwg.mxu0
  %vm1777 = vcmask 23552
  %v1778 = vsel %vm1777, %v1766, -inf
  %1779 = vmax.xlane.f32.xlu0 %v1778
  %v1780 = vpop.xlane.xlu0 %1779
  %v1781 = vsel %vm1777, %v1769, -inf
  %1782 = vmax.xlane.f32.xlu0 %v1781
  %v1783 = vpop.xlane.xlu0 %1782
  %v1784 = vsel %vm1777, %v1772, -inf
  %1785 = vmax.xlane.f32.xlu0 %v1784
  %v1786 = vpop.xlane.xlu0 %1785
  %v1787 = vsel %vm1777, %v1775, -inf
  %1788 = vmax.xlane.f32.xlu0 %v1787
  %v1789 = vpop.xlane.xlu0 %1788
  %v1790 = vsub.f32 %v1766, %v1780
  %v1791 = vsub.f32 %v1769, %v1783
  %v1792 = vsub.f32 %v1772, %v1786
  %v1793 = vsub.f32 %v1775, %v1789
  %v1794 = vmul.f32 %v1790, 1.442695
  %v1795 = vpow.pop %v1794
  %v1796 = vmul.f32 %v1791, 1.442695
  %v1797 = vpow.pop %v1796
  %v1798 = vmul.f32 %v1792, 1.442695
  %v1799 = vpow.pop %v1798
  %v1800 = vmul.f32 %v1793, 1.442695
  %v1801 = vpow.pop %v1800
  %v1802 = vsel %vm1777, %v1795, 0.0
  %1803 = vadd.xlane.f32.xlu0 %v1802
  %v1804 = vpop.xlane.xlu0 %1803
  %v1805 = vsel %vm1777, %v1797, 0.0
  %1806 = vadd.xlane.f32.xlu0 %v1805
  %v1807 = vpop.xlane.xlu0 %1806
  %v1808 = vsel %vm1777, %v1799, 0.0
  %1809 = vadd.xlane.f32.xlu0 %v1808
  %v1810 = vpop.xlane.xlu0 %1809
  %v1811 = vsel %vm1777, %v1801, 0.0
  %1812 = vadd.xlane.f32.xlu0 %v1811
  %v1813 = vpop.xlane.xlu0 %1812
  %v1814 = vrcp.pop %v1804
  %v1815 = vmul.f32 %v1804, %v1814
  %v1816 = vsub.f32 1.0, %v1815
  %v1817 = vmul.f32 %v1814, %v1816
  %v1818 = vadd.f32 %v1814, %v1817
  %vm1819 = vweird.f32 %v1804
  %vm1820 = vweird.f32 %v1814
  %vm1821 = vmor %vm1819, %vm1820
  %v1822 = vsel %vm1821, %v1814, %v1818
  %v1823 = vand.u32 2147483647, %v1804
  %vm1824 = vcmp.eq.f32.partialorder %v1823, 8.507059e+37
  %v1825 = vand.u32 %v1804, 2147483648
  %v1826 = vor.u32 1.1754944e-38, %v1825
  %v1827 = vsel %vm1824, %v1826, %v1822
  %v1828 = vmul.f32 %v1795, %v1827
  %v1829 = vrcp.pop %v1807
  %v1830 = vmul.f32 %v1807, %v1829
  %v1831 = vsub.f32 1.0, %v1830
  %v1832 = vmul.f32 %v1829, %v1831
  %v1833 = vadd.f32 %v1829, %v1832
  %vm1834 = vweird.f32 %v1807
  %vm1835 = vweird.f32 %v1829
  %vm1836 = vmor %vm1834, %vm1835
  %v1837 = vsel %vm1836, %v1829, %v1833
  %v1838 = vand.u32 2147483647, %v1807
  %vm1839 = vcmp.eq.f32.partialorder %v1838, 8.507059e+37
  %v1840 = vand.u32 %v1807, 2147483648
  %v1841 = vor.u32 1.1754944e-38, %v1840
  %v1842 = vsel %vm1839, %v1841, %v1837
  %v1843 = vmul.f32 %v1797, %v1842
  %v1844 = vrcp.pop %v1810
  %v1845 = vmul.f32 %v1810, %v1844
  %v1846 = vsub.f32 1.0, %v1845
  %v1847 = vmul.f32 %v1844, %v1846
  %v1848 = vadd.f32 %v1844, %v1847
  %vm1849 = vweird.f32 %v1810
  %vm1850 = vweird.f32 %v1844
  %vm1851 = vmor %vm1849, %vm1850
  %v1852 = vsel %vm1851, %v1844, %v1848
  %v1853 = vand.u32 2147483647, %v1810
  %vm1854 = vcmp.eq.f32.partialorder %v1853, 8.507059e+37
  %v1855 = vand.u32 %v1810, 2147483648
  %v1856 = vor.u32 1.1754944e-38, %v1855
  %v1857 = vsel %vm1854, %v1856, %v1852
  %v1858 = vmul.f32 %v1799, %v1857
  %v1859 = vrcp.pop %v1813
  %v1860 = vmul.f32 %v1813, %v1859
  %v1861 = vsub.f32 1.0, %v1860
  %v1862 = vmul.f32 %v1859, %v1861
  %v1863 = vadd.f32 %v1859, %v1862
  %vm1864 = vweird.f32 %v1813
  %vm1865 = vweird.f32 %v1859
  %vm1866 = vmor %vm1864, %vm1865
  %v1867 = vsel %vm1866, %v1859, %v1863
  %v1868 = vand.u32 2147483647, %v1813
  %vm1869 = vcmp.eq.f32.partialorder %v1868, 8.507059e+37
  %v1870 = vand.u32 %v1813, 2147483648
  %v1871 = vor.u32 1.1754944e-38, %v1870
  %v1872 = vsel %vm1869, %v1871, %v1867
  %v1873 = vmul.f32 %v1801, %v1872
  %v1874 = vxor.u32 %v1724, 2147483648
  %v1875 = vxor.u32 %v1725, 2147483648
  %v1876 = vxor.u32 %v1726, 2147483648
  %v1877 = vxor.u32 %v1727, 2147483648
  %v1878 = vmul.f32 %v1874, 1.442695
  %v1879 = vpow.pop %v1878
  %v1880 = vmul.f32 %v1875, 1.442695
  %v1881 = vpow.pop %v1880
  %v1882 = vmul.f32 %v1876, 1.442695
  %v1883 = vpow.pop %v1882
  %v1884 = vmul.f32 %v1877, 1.442695
  %v1885 = vpow.pop %v1884
  %v1886 = vadd.f32 %v1879, 1.0
  %v1887 = vadd.f32 %v1881, 1.0
  %v1888 = vadd.f32 %v1883, 1.0
  %v1889 = vadd.f32 %v1885, 1.0
  %v1890 = vrcp.pop %v1886
  %v1891 = vmul.f32 %v1886, %v1890
  %v1892 = vsub.f32 1.0, %v1891
  %v1893 = vmul.f32 %v1890, %v1892
  %v1894 = vadd.f32 %v1890, %v1893
  %vm1895 = vweird.f32 %v1886
  %vm1896 = vweird.f32 %v1890
  %vm1897 = vmor %vm1895, %vm1896
  %v1898 = vsel %vm1897, %v1890, %v1894
  %v1899 = vand.u32 2147483647, %v1886
  %vm1900 = vcmp.eq.f32.partialorder %v1899, 8.507059e+37
  %v1901 = vand.u32 %v1886, 2147483648
  %v1902 = vor.u32 1.1754944e-38, %v1901
  %v1903 = vsel %vm1900, %v1902, %v1898
  %v1904 = vmul.f32 1.0, %v1903
  %v1905 = vrcp.pop %v1887
  %v1906 = vmul.f32 %v1887, %v1905
  %v1907 = vsub.f32 1.0, %v1906
  %v1908 = vmul.f32 %v1905, %v1907
  %v1909 = vadd.f32 %v1905, %v1908
  %vm1910 = vweird.f32 %v1887
  %vm1911 = vweird.f32 %v1905
  %vm1912 = vmor %vm1910, %vm1911
  %v1913 = vsel %vm1912, %v1905, %v1909
  %v1914 = vand.u32 2147483647, %v1887
  %vm1915 = vcmp.eq.f32.partialorder %v1914, 8.507059e+37
  %v1916 = vand.u32 %v1887, 2147483648
  %v1917 = vor.u32 1.1754944e-38, %v1916
  %v1918 = vsel %vm1915, %v1917, %v1913
  %v1919 = vmul.f32 1.0, %v1918
  %v1920 = vrcp.pop %v1888
  %v1921 = vmul.f32 %v1888, %v1920
  %v1922 = vsub.f32 1.0, %v1921
  %v1923 = vmul.f32 %v1920, %v1922
  %v1924 = vadd.f32 %v1920, %v1923
  %vm1925 = vweird.f32 %v1888
  %vm1926 = vweird.f32 %v1920
  %vm1927 = vmor %vm1925, %vm1926
  %v1928 = vsel %vm1927, %v1920, %v1924
  %v1929 = vand.u32 2147483647, %v1888
  %vm1930 = vcmp.eq.f32.partialorder %v1929, 8.507059e+37
  %v1931 = vand.u32 %v1888, 2147483648
  %v1932 = vor.u32 1.1754944e-38, %v1931
  %v1933 = vsel %vm1930, %v1932, %v1928
  %v1934 = vmul.f32 1.0, %v1933
  %v1935 = vrcp.pop %v1889
  %v1936 = vmul.f32 %v1889, %v1935
  %v1937 = vsub.f32 1.0, %v1936
  %v1938 = vmul.f32 %v1935, %v1937
  %v1939 = vadd.f32 %v1935, %v1938
  %vm1940 = vweird.f32 %v1889
  %vm1941 = vweird.f32 %v1935
  %vm1942 = vmor %vm1940, %vm1941
  %v1943 = vsel %vm1942, %v1935, %v1939
  %v1944 = vand.u32 2147483647, %v1889
  %vm1945 = vcmp.eq.f32.partialorder %v1944, 8.507059e+37
  %v1946 = vand.u32 %v1889, 2147483648
  %v1947 = vor.u32 1.1754944e-38, %v1946
  %v1948 = vsel %vm1945, %v1947, %v1943
  %v1949 = vmul.f32 1.0, %v1948
  %v1950 = vmul.f32 %v1724, %v1904
  %v1951 = vmul.f32 %v1725, %v1919
  %v1952 = vmul.f32 %v1726, %v1934
  %v1953 = vmul.f32 %v1727, %v1949
  %v1954 = vld [vmem:[%s19] sm:$0xff]
  %v1955 = vld [vmem:[%s19 + $0x8] sm:$0xff]
  %v1956 = vld [vmem:[%s19 + $0x10] sm:$0xff]
  %v1957 = vld [vmem:[%s19 + $0x18] sm:$0xff]
  %vm1958 = vcmp.ge.f32.partialorder %v1724, -2.2
  %vm1959 = vcmp.ge.f32.partialorder %v1725, -2.2
  %vm1960 = vcmp.ge.f32.partialorder %v1726, -2.2
  %vm1961 = vcmp.ge.f32.partialorder %v1727, -2.2
  %vm1962 = vcmp.lt.f32.partialorder %v1724, -1.8
  %vm1963 = vcmp.lt.f32.partialorder %v1725, -1.8
  %vm1964 = vcmp.lt.f32.partialorder %v1726, -1.8
  %vm1965 = vcmp.lt.f32.partialorder %v1727, -1.8
  %vm1966 = vmand %vm1958, %vm1962
  %vm1967 = vmand %vm1959, %vm1963
  %vm1968 = vmand %vm1960, %vm1964
  %vm1969 = vmand %vm1961, %vm1965
  %v1970 = vsel %vm1966, 1.0, 0.0
  %v1971 = vsel %vm1967, 1.0, 0.0
  %v1972 = vsel %vm1968, 1.0, 0.0
  %v1973 = vsel %vm1969, 1.0, 0.0
  %vm1974 = vcmp.ge.f32.partialorder %v1724, -1.8
  %vm1975 = vcmp.ge.f32.partialorder %v1725, -1.8
  %vm1976 = vcmp.ge.f32.partialorder %v1726, -1.8
  %vm1977 = vcmp.ge.f32.partialorder %v1727, -1.8
  %vm1978 = vcmp.lt.f32.partialorder %v1724, -1.4
  %vm1979 = vcmp.lt.f32.partialorder %v1725, -1.4
  %vm1980 = vcmp.lt.f32.partialorder %v1726, -1.4
  %vm1981 = vcmp.lt.f32.partialorder %v1727, -1.4
  %vm1982 = vmand %vm1974, %vm1978
  %vm1983 = vmand %vm1975, %vm1979
  %vm1984 = vmand %vm1976, %vm1980
  %vm1985 = vmand %vm1977, %vm1981
  %v1986 = vsel %vm1982, 1.0, 0.0
  %v1987 = vsel %vm1983, 1.0, 0.0
  %v1988 = vsel %vm1984, 1.0, 0.0
  %v1989 = vsel %vm1985, 1.0, 0.0
  %vm1990 = vcmp.ge.f32.partialorder %v1724, -1.4
  %vm1991 = vcmp.ge.f32.partialorder %v1725, -1.4
  %vm1992 = vcmp.ge.f32.partialorder %v1726, -1.4
  %vm1993 = vcmp.ge.f32.partialorder %v1727, -1.4
  %vm1994 = vcmp.lt.f32.partialorder %v1724, -1.0
  %vm1995 = vcmp.lt.f32.partialorder %v1725, -1.0
  %vm1996 = vcmp.lt.f32.partialorder %v1726, -1.0
  %vm1997 = vcmp.lt.f32.partialorder %v1727, -1.0
  %vm1998 = vmand %vm1990, %vm1994
  %vm1999 = vmand %vm1991, %vm1995
  %vm2000 = vmand %vm1992, %vm1996
  %vm2001 = vmand %vm1993, %vm1997
  %v2002 = vsel %vm1998, 1.0, 0.0
  %v2003 = vsel %vm1999, 1.0, 0.0
  %v2004 = vsel %vm2000, 1.0, 0.0
  %v2005 = vsel %vm2001, 1.0, 0.0
  %vm2006 = vcmp.ge.f32.partialorder %v1724, -1.0
  %vm2007 = vcmp.ge.f32.partialorder %v1725, -1.0
  %vm2008 = vcmp.ge.f32.partialorder %v1726, -1.0
  %vm2009 = vcmp.ge.f32.partialorder %v1727, -1.0
  %vm2010 = vcmp.lt.f32.partialorder %v1724, -0.6
  %vm2011 = vcmp.lt.f32.partialorder %v1725, -0.6
  %vm2012 = vcmp.lt.f32.partialorder %v1726, -0.6
  %vm2013 = vcmp.lt.f32.partialorder %v1727, -0.6
  %vm2014 = vmand %vm2006, %vm2010
  %vm2015 = vmand %vm2007, %vm2011
  %vm2016 = vmand %vm2008, %vm2012
  %vm2017 = vmand %vm2009, %vm2013
  %v2018 = vsel %vm2014, 1.0, 0.0
  %v2019 = vsel %vm2015, 1.0, 0.0
  %v2020 = vsel %vm2016, 1.0, 0.0
  %v2021 = vsel %vm2017, 1.0, 0.0
  %vm2022 = vcmp.ge.f32.partialorder %v1724, -0.6
  %vm2023 = vcmp.ge.f32.partialorder %v1725, -0.6
  %vm2024 = vcmp.ge.f32.partialorder %v1726, -0.6
  %vm2025 = vcmp.ge.f32.partialorder %v1727, -0.6
  %vm2026 = vcmp.lt.f32.partialorder %v1724, -0.2
  %vm2027 = vcmp.lt.f32.partialorder %v1725, -0.2
  %vm2028 = vcmp.lt.f32.partialorder %v1726, -0.2
  %vm2029 = vcmp.lt.f32.partialorder %v1727, -0.2
  %vm2030 = vmand %vm2022, %vm2026
  %vm2031 = vmand %vm2023, %vm2027
  %vm2032 = vmand %vm2024, %vm2028
  %vm2033 = vmand %vm2025, %vm2029
  %v2034 = vsel %vm2030, 1.0, 0.0
  %v2035 = vsel %vm2031, 1.0, 0.0
  %v2036 = vsel %vm2032, 1.0, 0.0
  %v2037 = vsel %vm2033, 1.0, 0.0
  %vm2038 = vcmp.ge.f32.partialorder %v1724, -0.2
  %vm2039 = vcmp.ge.f32.partialorder %v1725, -0.2
  %vm2040 = vcmp.ge.f32.partialorder %v1726, -0.2
  %vm2041 = vcmp.ge.f32.partialorder %v1727, -0.2
  %vm2042 = vcmp.lt.f32.partialorder %v1724, 0.2
  %vm2043 = vcmp.lt.f32.partialorder %v1725, 0.2
  %vm2044 = vcmp.lt.f32.partialorder %v1726, 0.2
  %vm2045 = vcmp.lt.f32.partialorder %v1727, 0.2
  %vm2046 = vmand %vm2038, %vm2042
  %vm2047 = vmand %vm2039, %vm2043
  %vm2048 = vmand %vm2040, %vm2044
  %vm2049 = vmand %vm2041, %vm2045
  %v2050 = vsel %vm2046, 1.0, 0.0
  %v2051 = vsel %vm2047, 1.0, 0.0
  %v2052 = vsel %vm2048, 1.0, 0.0
  %v2053 = vsel %vm2049, 1.0, 0.0
  %vm2054 = vcmp.ge.f32.partialorder %v1724, 0.2
  %vm2055 = vcmp.ge.f32.partialorder %v1725, 0.2
  %vm2056 = vcmp.ge.f32.partialorder %v1726, 0.2
  %vm2057 = vcmp.ge.f32.partialorder %v1727, 0.2
  %vm2058 = vcmp.lt.f32.partialorder %v1724, 0.6
  %vm2059 = vcmp.lt.f32.partialorder %v1725, 0.6
  %vm2060 = vcmp.lt.f32.partialorder %v1726, 0.6
  %vm2061 = vcmp.lt.f32.partialorder %v1727, 0.6
  %vm2062 = vmand %vm2054, %vm2058
  %vm2063 = vmand %vm2055, %vm2059
  %vm2064 = vmand %vm2056, %vm2060
  %vm2065 = vmand %vm2057, %vm2061
  %v2066 = vsel %vm2062, 1.0, 0.0
  %v2067 = vsel %vm2063, 1.0, 0.0
  %v2068 = vsel %vm2064, 1.0, 0.0
  %v2069 = vsel %vm2065, 1.0, 0.0
  %vm2070 = vcmp.ge.f32.partialorder %v1724, 0.6
  %vm2071 = vcmp.ge.f32.partialorder %v1725, 0.6
  %vm2072 = vcmp.ge.f32.partialorder %v1726, 0.6
  %vm2073 = vcmp.ge.f32.partialorder %v1727, 0.6
  %vm2074 = vcmp.lt.f32.partialorder %v1724, 1.0
  %vm2075 = vcmp.lt.f32.partialorder %v1725, 1.0
  %vm2076 = vcmp.lt.f32.partialorder %v1726, 1.0
  %vm2077 = vcmp.lt.f32.partialorder %v1727, 1.0
  %vm2078 = vmand %vm2070, %vm2074
  %vm2079 = vmand %vm2071, %vm2075
  %vm2080 = vmand %vm2072, %vm2076
  %vm2081 = vmand %vm2073, %vm2077
  %v2082 = vsel %vm2078, 1.0, 0.0
  %v2083 = vsel %vm2079, 1.0, 0.0
  %v2084 = vsel %vm2080, 1.0, 0.0
  %v2085 = vsel %vm2081, 1.0, 0.0
  %vm2086 = vcmp.ge.f32.partialorder %v1724, 1.0
  %vm2087 = vcmp.ge.f32.partialorder %v1725, 1.0
  %vm2088 = vcmp.ge.f32.partialorder %v1726, 1.0
  %vm2089 = vcmp.ge.f32.partialorder %v1727, 1.0
  %vm2090 = vcmp.lt.f32.partialorder %v1724, 1.4
  %vm2091 = vcmp.lt.f32.partialorder %v1725, 1.4
  %vm2092 = vcmp.lt.f32.partialorder %v1726, 1.4
  %vm2093 = vcmp.lt.f32.partialorder %v1727, 1.4
  %vm2094 = vmand %vm2086, %vm2090
  %vm2095 = vmand %vm2087, %vm2091
  %vm2096 = vmand %vm2088, %vm2092
  %vm2097 = vmand %vm2089, %vm2093
  %v2098 = vsel %vm2094, 1.0, 0.0
  %v2099 = vsel %vm2095, 1.0, 0.0
  %v2100 = vsel %vm2096, 1.0, 0.0
  %v2101 = vsel %vm2097, 1.0, 0.0
  %vm2102 = vcmp.ge.f32.partialorder %v1724, 1.4
  %vm2103 = vcmp.ge.f32.partialorder %v1725, 1.4
  %vm2104 = vcmp.ge.f32.partialorder %v1726, 1.4
  %vm2105 = vcmp.ge.f32.partialorder %v1727, 1.4
  %vm2106 = vcmp.lt.f32.partialorder %v1724, 1.8
  %vm2107 = vcmp.lt.f32.partialorder %v1725, 1.8
  %vm2108 = vcmp.lt.f32.partialorder %v1726, 1.8
  %vm2109 = vcmp.lt.f32.partialorder %v1727, 1.8
  %vm2110 = vmand %vm2102, %vm2106
  %vm2111 = vmand %vm2103, %vm2107
  %vm2112 = vmand %vm2104, %vm2108
  %vm2113 = vmand %vm2105, %vm2109
  %v2114 = vsel %vm2110, 1.0, 0.0
  %v2115 = vsel %vm2111, 1.0, 0.0
  %v2116 = vsel %vm2112, 1.0, 0.0
  %v2117 = vsel %vm2113, 1.0, 0.0
  %vm2118 = vcmp.ge.f32.partialorder %v1724, 1.8
  %vm2119 = vcmp.ge.f32.partialorder %v1725, 1.8
  %vm2120 = vcmp.ge.f32.partialorder %v1726, 1.8
  %vm2121 = vcmp.ge.f32.partialorder %v1727, 1.8
  %vm2122 = vcmp.lt.f32.partialorder %v1724, 2.2
  %vm2123 = vcmp.lt.f32.partialorder %v1725, 2.2
  %vm2124 = vcmp.lt.f32.partialorder %v1726, 2.2
  %vm2125 = vcmp.lt.f32.partialorder %v1727, 2.2
  %vm2126 = vmand %vm2118, %vm2122
  %vm2127 = vmand %vm2119, %vm2123
  %vm2128 = vmand %vm2120, %vm2124
  %vm2129 = vmand %vm2121, %vm2125
  %v2130 = vsel %vm2126, 1.0, 0.0
  %v2131 = vsel %vm2127, 1.0, 0.0
  %v2132 = vsel %vm2128, 1.0, 0.0
  %v2133 = vsel %vm2129, 1.0, 0.0
  %v2134 = vsub.f32 %v1724, -2.2
  %v2135 = vsub.f32 %v1725, -2.2
  %v2136 = vsub.f32 %v1726, -2.2
  %v2137 = vsub.f32 %v1727, -2.2
  %v2138 = vmul.f32 %v2134, 2.5
  %v2139 = vmul.f32 %v2135, 2.5
  %v2140 = vmul.f32 %v2136, 2.5
  %v2141 = vmul.f32 %v2137, 2.5
  %v2142 = vmul.f32 %v2138, %v1970
  %v2143 = vmul.f32 %v2139, %v1971
  %v2144 = vmul.f32 %v2140, %v1972
  %v2145 = vmul.f32 %v2141, %v1973
  %v2146 = vsub.f32 -1.4, %v1724
  %v2147 = vsub.f32 -1.4, %v1725
  %v2148 = vsub.f32 -1.4, %v1726
  %v2149 = vsub.f32 -1.4, %v1727
  %v2150 = vmul.f32 %v2146, 2.5
  %v2151 = vmul.f32 %v2147, 2.5
  %v2152 = vmul.f32 %v2148, 2.5
  %v2153 = vmul.f32 %v2149, 2.5
  %v2154 = vmul.f32 %v2150, %v1986
  %v2155 = vmul.f32 %v2151, %v1987
  %v2156 = vmul.f32 %v2152, %v1988
  %v2157 = vmul.f32 %v2153, %v1989
  %v2158 = vadd.f32 %v2142, %v2154
  %v2159 = vadd.f32 %v2143, %v2155
  %v2160 = vadd.f32 %v2144, %v2156
  %v2161 = vadd.f32 %v2145, %v2157
  %v2162 = vsub.f32 %v1724, -1.8
  %v2163 = vsub.f32 %v1725, -1.8
  %v2164 = vsub.f32 %v1726, -1.8
  %v2165 = vsub.f32 %v1727, -1.8
  %v2166 = vmul.f32 %v2162, 2.5
  %v2167 = vmul.f32 %v2163, 2.5
  %v2168 = vmul.f32 %v2164, 2.5
  %v2169 = vmul.f32 %v2165, 2.5
  %v2170 = vmul.f32 %v2166, %v1986
  %v2171 = vmul.f32 %v2167, %v1987
  %v2172 = vmul.f32 %v2168, %v1988
  %v2173 = vmul.f32 %v2169, %v1989
  %v2174 = vsub.f32 -1.0, %v1724
  %v2175 = vsub.f32 -1.0, %v1725
  %v2176 = vsub.f32 -1.0, %v1726
  %v2177 = vsub.f32 -1.0, %v1727
  %v2178 = vmul.f32 %v2174, 2.5
  %v2179 = vmul.f32 %v2175, 2.5
  %v2180 = vmul.f32 %v2176, 2.5
  %v2181 = vmul.f32 %v2177, 2.5
  %v2182 = vmul.f32 %v2178, %v2002
  %v2183 = vmul.f32 %v2179, %v2003
  %v2184 = vmul.f32 %v2180, %v2004
  %v2185 = vmul.f32 %v2181, %v2005
  %v2186 = vadd.f32 %v2170, %v2182
  %v2187 = vadd.f32 %v2171, %v2183
  %v2188 = vadd.f32 %v2172, %v2184
  %v2189 = vadd.f32 %v2173, %v2185
  %v2190 = vsub.f32 %v1724, -1.4
  %v2191 = vsub.f32 %v1725, -1.4
  %v2192 = vsub.f32 %v1726, -1.4
  %v2193 = vsub.f32 %v1727, -1.4
  %v2194 = vmul.f32 %v2190, 2.5
  %v2195 = vmul.f32 %v2191, 2.5
  %v2196 = vmul.f32 %v2192, 2.5
  %v2197 = vmul.f32 %v2193, 2.5
  %v2198 = vmul.f32 %v2194, %v2002
  %v2199 = vmul.f32 %v2195, %v2003
  %v2200 = vmul.f32 %v2196, %v2004
  %v2201 = vmul.f32 %v2197, %v2005
  %v2202 = vsub.f32 -0.6, %v1724
  %v2203 = vsub.f32 -0.6, %v1725
  %v2204 = vsub.f32 -0.6, %v1726
  %v2205 = vsub.f32 -0.6, %v1727
  %v2206 = vmul.f32 %v2202, 2.5
  %v2207 = vmul.f32 %v2203, 2.5
  %v2208 = vmul.f32 %v2204, 2.5
  %v2209 = vmul.f32 %v2205, 2.5
  %v2210 = vmul.f32 %v2206, %v2018
  %v2211 = vmul.f32 %v2207, %v2019
  %v2212 = vmul.f32 %v2208, %v2020
  %v2213 = vmul.f32 %v2209, %v2021
  %v2214 = vadd.f32 %v2198, %v2210
  %v2215 = vadd.f32 %v2199, %v2211
  %v2216 = vadd.f32 %v2200, %v2212
  %v2217 = vadd.f32 %v2201, %v2213
  %v2218 = vsub.f32 %v1724, -1.0
  %v2219 = vsub.f32 %v1725, -1.0
  %v2220 = vsub.f32 %v1726, -1.0
  %v2221 = vsub.f32 %v1727, -1.0
  %v2222 = vmul.f32 %v2218, 2.5
  %v2223 = vmul.f32 %v2219, 2.5
  %v2224 = vmul.f32 %v2220, 2.5
  %v2225 = vmul.f32 %v2221, 2.5
  %v2226 = vmul.f32 %v2222, %v2018
  %v2227 = vmul.f32 %v2223, %v2019
  %v2228 = vmul.f32 %v2224, %v2020
  %v2229 = vmul.f32 %v2225, %v2021
  %v2230 = vsub.f32 -0.2, %v1724
  %v2231 = vsub.f32 -0.2, %v1725
  %v2232 = vsub.f32 -0.2, %v1726
  %v2233 = vsub.f32 -0.2, %v1727
  %v2234 = vmul.f32 %v2230, 2.5
  %v2235 = vmul.f32 %v2231, 2.5
  %v2236 = vmul.f32 %v2232, 2.5
  %v2237 = vmul.f32 %v2233, 2.5
  %v2238 = vmul.f32 %v2234, %v2034
  %v2239 = vmul.f32 %v2235, %v2035
  %v2240 = vmul.f32 %v2236, %v2036
  %v2241 = vmul.f32 %v2237, %v2037
  %v2242 = vadd.f32 %v2226, %v2238
  %v2243 = vadd.f32 %v2227, %v2239
  %v2244 = vadd.f32 %v2228, %v2240
  %v2245 = vadd.f32 %v2229, %v2241
  %v2246 = vsub.f32 %v1724, -0.6
  %v2247 = vsub.f32 %v1725, -0.6
  %v2248 = vsub.f32 %v1726, -0.6
  %v2249 = vsub.f32 %v1727, -0.6
  %v2250 = vmul.f32 %v2246, 2.5
  %v2251 = vmul.f32 %v2247, 2.5
  %v2252 = vmul.f32 %v2248, 2.5
  %v2253 = vmul.f32 %v2249, 2.5
  %v2254 = vmul.f32 %v2250, %v2034
  %v2255 = vmul.f32 %v2251, %v2035
  %v2256 = vmul.f32 %v2252, %v2036
  %v2257 = vmul.f32 %v2253, %v2037
  %v2258 = vsub.f32 0.2, %v1724
  %v2259 = vsub.f32 0.2, %v1725
  %v2260 = vsub.f32 0.2, %v1726
  %v2261 = vsub.f32 0.2, %v1727
  %v2262 = vmul.f32 %v2258, 2.5
  %v2263 = vmul.f32 %v2259, 2.5
  %v2264 = vmul.f32 %v2260, 2.5
  %v2265 = vmul.f32 %v2261, 2.5
  %v2266 = vmul.f32 %v2262, %v2050
  %v2267 = vmul.f32 %v2263, %v2051
  %v2268 = vmul.f32 %v2264, %v2052
  %v2269 = vmul.f32 %v2265, %v2053
  %v2270 = vadd.f32 %v2254, %v2266
  %v2271 = vadd.f32 %v2255, %v2267
  %v2272 = vadd.f32 %v2256, %v2268
  %v2273 = vadd.f32 %v2257, %v2269
  %v2274 = vsub.f32 %v1724, -0.2
  %v2275 = vsub.f32 %v1725, -0.2
  %v2276 = vsub.f32 %v1726, -0.2
  %v2277 = vsub.f32 %v1727, -0.2
  %v2278 = vmul.f32 %v2274, 2.5
  %v2279 = vmul.f32 %v2275, 2.5
  %v2280 = vmul.f32 %v2276, 2.5
  %v2281 = vmul.f32 %v2277, 2.5
  %v2282 = vmul.f32 %v2278, %v2050
  %v2283 = vmul.f32 %v2279, %v2051
  %v2284 = vmul.f32 %v2280, %v2052
  %v2285 = vmul.f32 %v2281, %v2053
  %v2286 = vsub.f32 0.6, %v1724
  %v2287 = vsub.f32 0.6, %v1725
  %v2288 = vsub.f32 0.6, %v1726
  %v2289 = vsub.f32 0.6, %v1727
  %v2290 = vmul.f32 %v2286, 2.5
  %v2291 = vmul.f32 %v2287, 2.5
  %v2292 = vmul.f32 %v2288, 2.5
  %v2293 = vmul.f32 %v2289, 2.5
  %v2294 = vmul.f32 %v2290, %v2066
  %v2295 = vmul.f32 %v2291, %v2067
  %v2296 = vmul.f32 %v2292, %v2068
  %v2297 = vmul.f32 %v2293, %v2069
  %v2298 = vadd.f32 %v2282, %v2294
  %v2299 = vadd.f32 %v2283, %v2295
  %v2300 = vadd.f32 %v2284, %v2296
  %v2301 = vadd.f32 %v2285, %v2297
  %v2302 = vsub.f32 %v1724, 0.2
  %v2303 = vsub.f32 %v1725, 0.2
  %v2304 = vsub.f32 %v1726, 0.2
  %v2305 = vsub.f32 %v1727, 0.2
  %v2306 = vmul.f32 %v2302, 2.5
  %v2307 = vmul.f32 %v2303, 2.5
  %v2308 = vmul.f32 %v2304, 2.5
  %v2309 = vmul.f32 %v2305, 2.5
  %v2310 = vmul.f32 %v2306, %v2066
  %v2311 = vmul.f32 %v2307, %v2067
  %v2312 = vmul.f32 %v2308, %v2068
  %v2313 = vmul.f32 %v2309, %v2069
  %v2314 = vsub.f32 1.0, %v1724
  %v2315 = vsub.f32 1.0, %v1725
  %v2316 = vsub.f32 1.0, %v1726
  %v2317 = vsub.f32 1.0, %v1727
  %v2318 = vmul.f32 %v2314, 2.5
  %v2319 = vmul.f32 %v2315, 2.5
  %v2320 = vmul.f32 %v2316, 2.5
  %v2321 = vmul.f32 %v2317, 2.5
  %v2322 = vmul.f32 %v2318, %v2082
  %v2323 = vmul.f32 %v2319, %v2083
  %v2324 = vmul.f32 %v2320, %v2084
  %v2325 = vmul.f32 %v2321, %v2085
  %v2326 = vadd.f32 %v2310, %v2322
  %v2327 = vadd.f32 %v2311, %v2323
  %v2328 = vadd.f32 %v2312, %v2324
  %v2329 = vadd.f32 %v2313, %v2325
  %v2330 = vsub.f32 %v1724, 0.6
  %v2331 = vsub.f32 %v1725, 0.6
  %v2332 = vsub.f32 %v1726, 0.6
  %v2333 = vsub.f32 %v1727, 0.6
  %v2334 = vmul.f32 %v2330, 2.5
  %v2335 = vmul.f32 %v2331, 2.5
  %v2336 = vmul.f32 %v2332, 2.5
  %v2337 = vmul.f32 %v2333, 2.5
  %v2338 = vmul.f32 %v2334, %v2082
  %v2339 = vmul.f32 %v2335, %v2083
  %v2340 = vmul.f32 %v2336, %v2084
  %v2341 = vmul.f32 %v2337, %v2085
  %v2342 = vsub.f32 1.4, %v1724
  %v2343 = vsub.f32 1.4, %v1725
  %v2344 = vsub.f32 1.4, %v1726
  %v2345 = vsub.f32 1.4, %v1727
  %v2346 = vmul.f32 %v2342, 2.5
  %v2347 = vmul.f32 %v2343, 2.5
  %v2348 = vmul.f32 %v2344, 2.5
  %v2349 = vmul.f32 %v2345, 2.5
  %v2350 = vmul.f32 %v2346, %v2098
  %v2351 = vmul.f32 %v2347, %v2099
  %v2352 = vmul.f32 %v2348, %v2100
  %v2353 = vmul.f32 %v2349, %v2101
  %v2354 = vadd.f32 %v2338, %v2350
  %v2355 = vadd.f32 %v2339, %v2351
  %v2356 = vadd.f32 %v2340, %v2352
  %v2357 = vadd.f32 %v2341, %v2353
  %v2358 = vsub.f32 %v1724, 1.0
  %v2359 = vsub.f32 %v1725, 1.0
  %v2360 = vsub.f32 %v1726, 1.0
  %v2361 = vsub.f32 %v1727, 1.0
  %v2362 = vmul.f32 %v2358, 2.5
  %v2363 = vmul.f32 %v2359, 2.5
  %v2364 = vmul.f32 %v2360, 2.5
  %v2365 = vmul.f32 %v2361, 2.5
  %v2366 = vmul.f32 %v2362, %v2098
  %v2367 = vmul.f32 %v2363, %v2099
  %v2368 = vmul.f32 %v2364, %v2100
  %v2369 = vmul.f32 %v2365, %v2101
  %v2370 = vsub.f32 1.8, %v1724
  %v2371 = vsub.f32 1.8, %v1725
  %v2372 = vsub.f32 1.8, %v1726
  %v2373 = vsub.f32 1.8, %v1727
  %v2374 = vmul.f32 %v2370, 2.5
  %v2375 = vmul.f32 %v2371, 2.5
  %v2376 = vmul.f32 %v2372, 2.5
  %v2377 = vmul.f32 %v2373, 2.5
  %v2378 = vmul.f32 %v2374, %v2114
  %v2379 = vmul.f32 %v2375, %v2115
  %v2380 = vmul.f32 %v2376, %v2116
  %v2381 = vmul.f32 %v2377, %v2117
  %v2382 = vadd.f32 %v2366, %v2378
  %v2383 = vadd.f32 %v2367, %v2379
  %v2384 = vadd.f32 %v2368, %v2380
  %v2385 = vadd.f32 %v2369, %v2381
  %v2386 = vsub.f32 %v1724, 1.4
  %v2387 = vsub.f32 %v1725, 1.4
  %v2388 = vsub.f32 %v1726, 1.4
  %v2389 = vsub.f32 %v1727, 1.4
  %v2390 = vmul.f32 %v2386, 2.5
  %v2391 = vmul.f32 %v2387, 2.5
  %v2392 = vmul.f32 %v2388, 2.5
  %v2393 = vmul.f32 %v2389, 2.5
  %v2394 = vmul.f32 %v2390, %v2114
  %v2395 = vmul.f32 %v2391, %v2115
  %v2396 = vmul.f32 %v2392, %v2116
  %v2397 = vmul.f32 %v2393, %v2117
  %v2398 = vsub.f32 2.2, %v1724
  %v2399 = vsub.f32 2.2, %v1725
  %v2400 = vsub.f32 2.2, %v1726
  %v2401 = vsub.f32 2.2, %v1727
  %v2402 = vmul.f32 %v2398, 2.5
  %v2403 = vmul.f32 %v2399, 2.5
  %v2404 = vmul.f32 %v2400, 2.5
  %v2405 = vmul.f32 %v2401, 2.5
  %v2406 = vmul.f32 %v2402, %v2130
  %v2407 = vmul.f32 %v2403, %v2131
  %v2408 = vmul.f32 %v2404, %v2132
  %v2409 = vmul.f32 %v2405, %v2133
  %v2410 = vadd.f32 %v2394, %v2406
  %v2411 = vadd.f32 %v2395, %v2407
  %v2412 = vadd.f32 %v2396, %v2408
  %v2413 = vadd.f32 %v2397, %v2409
  %v2414 = vmul.f32 %v2134, 1.25
  %v2415 = vmul.f32 %v2135, 1.25
  %v2416 = vmul.f32 %v2136, 1.25
  %v2417 = vmul.f32 %v2137, 1.25
  %v2418 = vmul.f32 %v2414, %v2158
  %v2419 = vmul.f32 %v2415, %v2159
  %v2420 = vmul.f32 %v2416, %v2160
  %v2421 = vmul.f32 %v2417, %v2161
  %v2422 = vmul.f32 %v2174, 1.25
  %v2423 = vmul.f32 %v2175, 1.25
  %v2424 = vmul.f32 %v2176, 1.25
  %v2425 = vmul.f32 %v2177, 1.25
  %v2426 = vmul.f32 %v2422, %v2186
  %v2427 = vmul.f32 %v2423, %v2187
  %v2428 = vmul.f32 %v2424, %v2188
  %v2429 = vmul.f32 %v2425, %v2189
  %v2430 = vadd.f32 %v2418, %v2426
  %v2431 = vadd.f32 %v2419, %v2427
  %v2432 = vadd.f32 %v2420, %v2428
  %v2433 = vadd.f32 %v2421, %v2429
  %v2434 = vmul.f32 %v2162, 1.25
  %v2435 = vmul.f32 %v2163, 1.25
  %v2436 = vmul.f32 %v2164, 1.25
  %v2437 = vmul.f32 %v2165, 1.25
  %v2438 = vmul.f32 %v2434, %v2186
  %v2439 = vmul.f32 %v2435, %v2187
  %v2440 = vmul.f32 %v2436, %v2188
  %v2441 = vmul.f32 %v2437, %v2189
  %v2442 = vmul.f32 %v2202, 1.25
  %v2443 = vmul.f32 %v2203, 1.25
  %v2444 = vmul.f32 %v2204, 1.25
  %v2445 = vmul.f32 %v2205, 1.25
  %v2446 = vmul.f32 %v2442, %v2214
  %v2447 = vmul.f32 %v2443, %v2215
  %v2448 = vmul.f32 %v2444, %v2216
  %v2449 = vmul.f32 %v2445, %v2217
  %v2450 = vadd.f32 %v2438, %v2446
  %v2451 = vadd.f32 %v2439, %v2447
  %v2452 = vadd.f32 %v2440, %v2448
  %v2453 = vadd.f32 %v2441, %v2449
  %v2454 = vmul.f32 %v2190, 1.25
  %v2455 = vmul.f32 %v2191, 1.25
  %v2456 = vmul.f32 %v2192, 1.25
  %v2457 = vmul.f32 %v2193, 1.25
  %v2458 = vmul.f32 %v2454, %v2214
  %v2459 = vmul.f32 %v2455, %v2215
  %v2460 = vmul.f32 %v2456, %v2216
  %v2461 = vmul.f32 %v2457, %v2217
  %v2462 = vmul.f32 %v2230, 1.25
  %v2463 = vmul.f32 %v2231, 1.25
  %v2464 = vmul.f32 %v2232, 1.25
  %v2465 = vmul.f32 %v2233, 1.25
  %v2466 = vmul.f32 %v2462, %v2242
  %v2467 = vmul.f32 %v2463, %v2243
  %v2468 = vmul.f32 %v2464, %v2244
  %v2469 = vmul.f32 %v2465, %v2245
  %v2470 = vadd.f32 %v2458, %v2466
  %v2471 = vadd.f32 %v2459, %v2467
  %v2472 = vadd.f32 %v2460, %v2468
  %v2473 = vadd.f32 %v2461, %v2469
  %v2474 = vmul.f32 %v2218, 1.25
  %v2475 = vmul.f32 %v2219, 1.25
  %v2476 = vmul.f32 %v2220, 1.25
  %v2477 = vmul.f32 %v2221, 1.25
  %v2478 = vmul.f32 %v2474, %v2242
  %v2479 = vmul.f32 %v2475, %v2243
  %v2480 = vmul.f32 %v2476, %v2244
  %v2481 = vmul.f32 %v2477, %v2245
  %v2482 = vmul.f32 %v2258, 1.25
  %v2483 = vmul.f32 %v2259, 1.25
  %v2484 = vmul.f32 %v2260, 1.25
  %v2485 = vmul.f32 %v2261, 1.25
  %v2486 = vmul.f32 %v2482, %v2270
  %v2487 = vmul.f32 %v2483, %v2271
  %v2488 = vmul.f32 %v2484, %v2272
  %v2489 = vmul.f32 %v2485, %v2273
  %v2490 = vadd.f32 %v2478, %v2486
  %v2491 = vadd.f32 %v2479, %v2487
  %v2492 = vadd.f32 %v2480, %v2488
  %v2493 = vadd.f32 %v2481, %v2489
  %v2494 = vmul.f32 %v2246, 1.25
  %v2495 = vmul.f32 %v2247, 1.25
  %v2496 = vmul.f32 %v2248, 1.25
  %v2497 = vmul.f32 %v2249, 1.25
  %v2498 = vmul.f32 %v2494, %v2270
  %v2499 = vmul.f32 %v2495, %v2271
  %v2500 = vmul.f32 %v2496, %v2272
  %v2501 = vmul.f32 %v2497, %v2273
  %v2502 = vmul.f32 %v2286, 1.25
  %v2503 = vmul.f32 %v2287, 1.25
  %v2504 = vmul.f32 %v2288, 1.25
  %v2505 = vmul.f32 %v2289, 1.25
  %v2506 = vmul.f32 %v2502, %v2298
  %v2507 = vmul.f32 %v2503, %v2299
  %v2508 = vmul.f32 %v2504, %v2300
  %v2509 = vmul.f32 %v2505, %v2301
  %v2510 = vadd.f32 %v2498, %v2506
  %v2511 = vadd.f32 %v2499, %v2507
  %v2512 = vadd.f32 %v2500, %v2508
  %v2513 = vadd.f32 %v2501, %v2509
  %v2514 = vmul.f32 %v2274, 1.25
  %v2515 = vmul.f32 %v2275, 1.25
  %v2516 = vmul.f32 %v2276, 1.25
  %v2517 = vmul.f32 %v2277, 1.25
  %v2518 = vmul.f32 %v2514, %v2298
  %v2519 = vmul.f32 %v2515, %v2299
  %v2520 = vmul.f32 %v2516, %v2300
  %v2521 = vmul.f32 %v2517, %v2301
  %v2522 = vmul.f32 %v2314, 1.25
  %v2523 = vmul.f32 %v2315, 1.25
  %v2524 = vmul.f32 %v2316, 1.25
  %v2525 = vmul.f32 %v2317, 1.25
  %v2526 = vmul.f32 %v2522, %v2326
  %v2527 = vmul.f32 %v2523, %v2327
  %v2528 = vmul.f32 %v2524, %v2328
  %v2529 = vmul.f32 %v2525, %v2329
  %v2530 = vadd.f32 %v2518, %v2526
  %v2531 = vadd.f32 %v2519, %v2527
  %v2532 = vadd.f32 %v2520, %v2528
  %v2533 = vadd.f32 %v2521, %v2529
  %v2534 = vmul.f32 %v2302, 1.25
  %v2535 = vmul.f32 %v2303, 1.25
  %v2536 = vmul.f32 %v2304, 1.25
  %v2537 = vmul.f32 %v2305, 1.25
  %v2538 = vmul.f32 %v2534, %v2326
  %v2539 = vmul.f32 %v2535, %v2327
  %v2540 = vmul.f32 %v2536, %v2328
  %v2541 = vmul.f32 %v2537, %v2329
  %v2542 = vmul.f32 %v2342, 1.25
  %v2543 = vmul.f32 %v2343, 1.25
  %v2544 = vmul.f32 %v2344, 1.25
  %v2545 = vmul.f32 %v2345, 1.25
  %v2546 = vmul.f32 %v2542, %v2354
  %v2547 = vmul.f32 %v2543, %v2355
  %v2548 = vmul.f32 %v2544, %v2356
  %v2549 = vmul.f32 %v2545, %v2357
  %v2550 = vadd.f32 %v2538, %v2546
  %v2551 = vadd.f32 %v2539, %v2547
  %v2552 = vadd.f32 %v2540, %v2548
  %v2553 = vadd.f32 %v2541, %v2549
  %v2554 = vmul.f32 %v2330, 1.25
  %v2555 = vmul.f32 %v2331, 1.25
  %v2556 = vmul.f32 %v2332, 1.25
  %v2557 = vmul.f32 %v2333, 1.25
  %v2558 = vmul.f32 %v2554, %v2354
  %v2559 = vmul.f32 %v2555, %v2355
  %v2560 = vmul.f32 %v2556, %v2356
  %v2561 = vmul.f32 %v2557, %v2357
  %v2562 = vmul.f32 %v2370, 1.25
  %v2563 = vmul.f32 %v2371, 1.25
  %v2564 = vmul.f32 %v2372, 1.25
  %v2565 = vmul.f32 %v2373, 1.25
  %v2566 = vmul.f32 %v2562, %v2382
  %v2567 = vmul.f32 %v2563, %v2383
  %v2568 = vmul.f32 %v2564, %v2384
  %v2569 = vmul.f32 %v2565, %v2385
  %v2570 = vadd.f32 %v2558, %v2566
  %v2571 = vadd.f32 %v2559, %v2567
  %v2572 = vadd.f32 %v2560, %v2568
  %v2573 = vadd.f32 %v2561, %v2569
  %v2574 = vmul.f32 %v2358, 1.25
  %v2575 = vmul.f32 %v2359, 1.25
  %v2576 = vmul.f32 %v2360, 1.25
  %v2577 = vmul.f32 %v2361, 1.25
  %v2578 = vmul.f32 %v2574, %v2382
  %v2579 = vmul.f32 %v2575, %v2383
  %v2580 = vmul.f32 %v2576, %v2384
  %v2581 = vmul.f32 %v2577, %v2385
  %v2582 = vmul.f32 %v2398, 1.25
  %v2583 = vmul.f32 %v2399, 1.25
  %v2584 = vmul.f32 %v2400, 1.25
  %v2585 = vmul.f32 %v2401, 1.25
  %v2586 = vmul.f32 %v2582, %v2410
  %v2587 = vmul.f32 %v2583, %v2411
  %v2588 = vmul.f32 %v2584, %v2412
  %v2589 = vmul.f32 %v2585, %v2413
  %v2590 = vadd.f32 %v2578, %v2586
  %v2591 = vadd.f32 %v2579, %v2587
  %v2592 = vadd.f32 %v2580, %v2588
  %v2593 = vadd.f32 %v2581, %v2589
  %v2594 = vmul.f32 %v2134, 0.8333333
  %v2595 = vmul.f32 %v2135, 0.8333333
  %v2596 = vmul.f32 %v2136, 0.8333333
  %v2597 = vmul.f32 %v2137, 0.8333333
  %v2598 = vmul.f32 %v2594, %v2430
  %v2599 = vmul.f32 %v2595, %v2431
  %v2600 = vmul.f32 %v2596, %v2432
  %v2601 = vmul.f32 %v2597, %v2433
  %v2602 = vmul.f32 %v2202, 0.8333333
  %v2603 = vmul.f32 %v2203, 0.8333333
  %v2604 = vmul.f32 %v2204, 0.8333333
  %v2605 = vmul.f32 %v2205, 0.8333333
  %v2606 = vmul.f32 %v2602, %v2450
  %v2607 = vmul.f32 %v2603, %v2451
  %v2608 = vmul.f32 %v2604, %v2452
  %v2609 = vmul.f32 %v2605, %v2453
  %v2610 = vadd.f32 %v2598, %v2606
  %v2611 = vadd.f32 %v2599, %v2607
  %v2612 = vadd.f32 %v2600, %v2608
  %v2613 = vadd.f32 %v2601, %v2609
  %v2614 = vmul.f32 %v2162, 0.8333333
  %v2615 = vmul.f32 %v2163, 0.8333333
  %v2616 = vmul.f32 %v2164, 0.8333333
  %v2617 = vmul.f32 %v2165, 0.8333333
  %v2618 = vmul.f32 %v2614, %v2450
  %v2619 = vmul.f32 %v2615, %v2451
  %v2620 = vmul.f32 %v2616, %v2452
  %v2621 = vmul.f32 %v2617, %v2453
  %v2622 = vmul.f32 %v2230, 0.8333333
  %v2623 = vmul.f32 %v2231, 0.8333333
  %v2624 = vmul.f32 %v2232, 0.8333333
  %v2625 = vmul.f32 %v2233, 0.8333333
  %v2626 = vmul.f32 %v2622, %v2470
  %v2627 = vmul.f32 %v2623, %v2471
  %v2628 = vmul.f32 %v2624, %v2472
  %v2629 = vmul.f32 %v2625, %v2473
  %v2630 = vadd.f32 %v2618, %v2626
  %v2631 = vadd.f32 %v2619, %v2627
  %v2632 = vadd.f32 %v2620, %v2628
  %v2633 = vadd.f32 %v2621, %v2629
  %v2634 = vmul.f32 %v2190, 0.8333333
  %v2635 = vmul.f32 %v2191, 0.8333333
  %v2636 = vmul.f32 %v2192, 0.8333333
  %v2637 = vmul.f32 %v2193, 0.8333333
  %v2638 = vmul.f32 %v2634, %v2470
  %v2639 = vmul.f32 %v2635, %v2471
  %v2640 = vmul.f32 %v2636, %v2472
  %v2641 = vmul.f32 %v2637, %v2473
  %v2642 = vmul.f32 %v2258, 0.8333333
  %v2643 = vmul.f32 %v2259, 0.8333333
  %v2644 = vmul.f32 %v2260, 0.8333333
  %v2645 = vmul.f32 %v2261, 0.8333333
  %v2646 = vmul.f32 %v2642, %v2490
  %v2647 = vmul.f32 %v2643, %v2491
  %v2648 = vmul.f32 %v2644, %v2492
  %v2649 = vmul.f32 %v2645, %v2493
  %v2650 = vadd.f32 %v2638, %v2646
  %v2651 = vadd.f32 %v2639, %v2647
  %v2652 = vadd.f32 %v2640, %v2648
  %v2653 = vadd.f32 %v2641, %v2649
  %v2654 = vmul.f32 %v2218, 0.8333333
  %v2655 = vmul.f32 %v2219, 0.8333333
  %v2656 = vmul.f32 %v2220, 0.8333333
  %v2657 = vmul.f32 %v2221, 0.8333333
  %v2658 = vmul.f32 %v2654, %v2490
  %v2659 = vmul.f32 %v2655, %v2491
  %v2660 = vmul.f32 %v2656, %v2492
  %v2661 = vmul.f32 %v2657, %v2493
  %v2662 = vmul.f32 %v2286, 0.8333333
  %v2663 = vmul.f32 %v2287, 0.8333333
  %v2664 = vmul.f32 %v2288, 0.8333333
  %v2665 = vmul.f32 %v2289, 0.8333333
  %v2666 = vmul.f32 %v2662, %v2510
  %v2667 = vmul.f32 %v2663, %v2511
  %v2668 = vmul.f32 %v2664, %v2512
  %v2669 = vmul.f32 %v2665, %v2513
  %v2670 = vadd.f32 %v2658, %v2666
  %v2671 = vadd.f32 %v2659, %v2667
  %v2672 = vadd.f32 %v2660, %v2668
  %v2673 = vadd.f32 %v2661, %v2669
  %v2674 = vmul.f32 %v2246, 0.8333333
  %v2675 = vmul.f32 %v2247, 0.8333333
  %v2676 = vmul.f32 %v2248, 0.8333333
  %v2677 = vmul.f32 %v2249, 0.8333333
  %v2678 = vmul.f32 %v2674, %v2510
  %v2679 = vmul.f32 %v2675, %v2511
  %v2680 = vmul.f32 %v2676, %v2512
  %v2681 = vmul.f32 %v2677, %v2513
  %v2682 = vmul.f32 %v2314, 0.8333333
  %v2683 = vmul.f32 %v2315, 0.8333333
  %v2684 = vmul.f32 %v2316, 0.8333333
  %v2685 = vmul.f32 %v2317, 0.8333333
  %v2686 = vmul.f32 %v2682, %v2530
  %v2687 = vmul.f32 %v2683, %v2531
  %v2688 = vmul.f32 %v2684, %v2532
  %v2689 = vmul.f32 %v2685, %v2533
  %v2690 = vadd.f32 %v2678, %v2686
  %v2691 = vadd.f32 %v2679, %v2687
  %v2692 = vadd.f32 %v2680, %v2688
  %v2693 = vadd.f32 %v2681, %v2689
  %v2694 = vmul.f32 %v2274, 0.8333333
  %v2695 = vmul.f32 %v2275, 0.8333333
  %v2696 = vmul.f32 %v2276, 0.8333333
  %v2697 = vmul.f32 %v2277, 0.8333333
  %v2698 = vmul.f32 %v2694, %v2530
  %v2699 = vmul.f32 %v2695, %v2531
  %v2700 = vmul.f32 %v2696, %v2532
  %v2701 = vmul.f32 %v2697, %v2533
  %v2702 = vmul.f32 %v2342, 0.8333333
  %v2703 = vmul.f32 %v2343, 0.8333333
  %v2704 = vmul.f32 %v2344, 0.8333333
  %v2705 = vmul.f32 %v2345, 0.8333333
  %v2706 = vmul.f32 %v2702, %v2550
  %v2707 = vmul.f32 %v2703, %v2551
  %v2708 = vmul.f32 %v2704, %v2552
  %v2709 = vmul.f32 %v2705, %v2553
  %v2710 = vadd.f32 %v2698, %v2706
  %v2711 = vadd.f32 %v2699, %v2707
  %v2712 = vadd.f32 %v2700, %v2708
  %v2713 = vadd.f32 %v2701, %v2709
  %v2714 = vmul.f32 %v2302, 0.8333333
  %v2715 = vmul.f32 %v2303, 0.8333333
  %v2716 = vmul.f32 %v2304, 0.8333333
  %v2717 = vmul.f32 %v2305, 0.8333333
  %v2718 = vmul.f32 %v2714, %v2550
  %v2719 = vmul.f32 %v2715, %v2551
  %v2720 = vmul.f32 %v2716, %v2552
  %v2721 = vmul.f32 %v2717, %v2553
  %v2722 = vmul.f32 %v2370, 0.8333333
  %v2723 = vmul.f32 %v2371, 0.8333333
  %v2724 = vmul.f32 %v2372, 0.8333333
  %v2725 = vmul.f32 %v2373, 0.8333333
  %v2726 = vmul.f32 %v2722, %v2570
  %v2727 = vmul.f32 %v2723, %v2571
  %v2728 = vmul.f32 %v2724, %v2572
  %v2729 = vmul.f32 %v2725, %v2573
  %v2730 = vadd.f32 %v2718, %v2726
  %v2731 = vadd.f32 %v2719, %v2727
  %v2732 = vadd.f32 %v2720, %v2728
  %v2733 = vadd.f32 %v2721, %v2729
  %v2734 = vmul.f32 %v2330, 0.8333333
  %v2735 = vmul.f32 %v2331, 0.8333333
  %v2736 = vmul.f32 %v2332, 0.8333333
  %v2737 = vmul.f32 %v2333, 0.8333333
  %v2738 = vmul.f32 %v2734, %v2570
  %v2739 = vmul.f32 %v2735, %v2571
  %v2740 = vmul.f32 %v2736, %v2572
  %v2741 = vmul.f32 %v2737, %v2573
  %v2742 = vmul.f32 %v2398, 0.8333333
  %v2743 = vmul.f32 %v2399, 0.8333333
  %v2744 = vmul.f32 %v2400, 0.8333333
  %v2745 = vmul.f32 %v2401, 0.8333333
  %v2746 = vmul.f32 %v2742, %v2590
  %v2747 = vmul.f32 %v2743, %v2591
  %v2748 = vmul.f32 %v2744, %v2592
  %v2749 = vmul.f32 %v2745, %v2593
  %v2750 = vadd.f32 %v2738, %v2746
  %v2751 = vadd.f32 %v2739, %v2747
  %v2752 = vadd.f32 %v2740, %v2748
  %v2753 = vadd.f32 %v2741, %v2749
  %v2754 = vld [vmem:[%s20] sm:$0xff]
  %v2755 = vld [vmem:[%s20 + $0x8] sm:$0xff]
  %v2756 = vld [vmem:[%s20 + $0x10] sm:$0xff]
  %v2757 = vld [vmem:[%s20 + $0x18] sm:$0xff]
  %v2758 = vld [vmem:[%s20 + $0x20] sm:$0xff]
  %v2759 = vld [vmem:[%s20 + $0x28] sm:$0xff]
  %v2760 = vld [vmem:[%s20 + $0x30] sm:$0xff]
  %v2761 = vld [vmem:[%s20 + $0x38] sm:$0xff]
  %v2762 = vld [vmem:[%s20 + $0x40] sm:$0xff]
  %v2763 = vld [vmem:[%s20 + $0x48] sm:$0xff]
  %v2764 = vld [vmem:[%s20 + $0x50] sm:$0xff]
  %v2765 = vld [vmem:[%s20 + $0x58] sm:$0xff]
  %v2766 = vld [vmem:[%s20 + $0x60] sm:$0xff]
  %v2767 = vld [vmem:[%s20 + $0x68] sm:$0xff]
  %v2768 = vld [vmem:[%s20 + $0x70] sm:$0xff]
  %v2769 = vld [vmem:[%s20 + $0x78] sm:$0xff]
  %v2770 = vld [vmem:[%s20 + $0x80] sm:$0xff]
  %v2771 = vld [vmem:[%s20 + $0x88] sm:$0xff]
  %v2772 = vld [vmem:[%s20 + $0x90] sm:$0xff]
  %v2773 = vld [vmem:[%s20 + $0x98] sm:$0xff]
  %v2774 = vld [vmem:[%s20 + $0xa0] sm:$0xff]
  %v2775 = vld [vmem:[%s20 + $0xa8] sm:$0xff]
  %v2776 = vld [vmem:[%s20 + $0xb0] sm:$0xff]
  %v2777 = vld [vmem:[%s20 + $0xb8] sm:$0xff]
  %v2778 = vld [vmem:[%s20 + $0xc0] sm:$0xff]
  %v2779 = vld [vmem:[%s20 + $0xc8] sm:$0xff]
  %v2780 = vld [vmem:[%s20 + $0xd0] sm:$0xff]
  %v2781 = vld [vmem:[%s20 + $0xd8] sm:$0xff]
  %v2782 = vld [vmem:[%s20 + $0xe0] sm:$0xff]
  %v2783 = vld [vmem:[%s20 + $0xe8] sm:$0xff]
  %v2784 = vld [vmem:[%s20 + $0xf0] sm:$0xff]
  %v2785 = vld [vmem:[%s20 + $0xf8] sm:$0xff]
  %v2787 = vsel %vm164, %v2610, 0
  %v2790 = vsel %vm164, %v2611, 0
  %v2793 = vsel %vm164, %v2612, 0
  %v2796 = vsel %vm164, %v2613, 0
  %2798 = vmatpush.msra.mxu0 0.0
  %2799 = vmatpush.msra.mxu0 0.0
  %2800 = vmatpush.msra.mxu0 0.0
  %2801 = vmatpush.msra.mxu0 0.0
  %2802 = vmatpush.msra.mxu0 0.0
  %2803 = vmatpush.msra.mxu0 0.0
  %2804 = vmatpush.msra.mxu0 0.0
  %2805 = vmatpush.msra.mxu0 0.0
  %2806 = vmatpush.msra.mxu0 0.0
  %2807 = vmatpush.msra.mxu0 0.0
  %2808 = vmatpush.msra.mxu0 0.0
  %2809 = vmatpush.msra.mxu0 0.0
  %2810 = vmatpush.msra.mxu0 %v2757
  %2811 = vmatpush.msra.mxu0 %v2756
  %2812 = vmatpush.msra.mxu0 %v2755
  %2813 = vmatpush.msra.mxu0 %v2754
  %2814 = vmatmul.f32.gmra.mxu0 %v2787
  %v2815 = vpop.f32.mrf.mxu0
  %v2816 = vadd.f32 0.0, %v2815
  %2817 = vmatmul.f32.gmra.mxu0 %v2790
  %v2818 = vpop.f32.mrf.mxu0
  %v2819 = vadd.f32 0.0, %v2818
  %2820 = vmatmul.f32.gmra.mxu0 %v2793
  %v2821 = vpop.f32.mrf.mxu0
  %v2822 = vadd.f32 0.0, %v2821
  %2823 = vmatmul.f32.gmra.mxu0 %v2796
  %v2824 = vpop.f32.mrf.mxu0
  %v2825 = vadd.f32 0.0, %v2824
  %2826 = vdwg.mxu0
  %v2828 = vsel %vm164, %v1950, 0
  %v2831 = vsel %vm164, %v1951, 0
  %v2834 = vsel %vm164, %v1952, 0
  %v2837 = vsel %vm164, %v1953, 0
  %2839 = vmatpush.msra.mxu0 0.0
  %2840 = vmatpush.msra.mxu0 0.0
  %2841 = vmatpush.msra.mxu0 0.0
  %2842 = vmatpush.msra.mxu0 0.0
  %2843 = vmatpush.msra.mxu0 0.0
  %2844 = vmatpush.msra.mxu0 0.0
  %2845 = vmatpush.msra.mxu0 0.0
  %2846 = vmatpush.msra.mxu0 0.0
  %2847 = vmatpush.msra.mxu0 0.0
  %2848 = vmatpush.msra.mxu0 0.0
  %2849 = vmatpush.msra.mxu0 0.0
  %2850 = vmatpush.msra.mxu0 0.0
  %2851 = vmatpush.msra.mxu0 %v1957
  %2852 = vmatpush.msra.mxu0 %v1956
  %2853 = vmatpush.msra.mxu0 %v1955
  %2854 = vmatpush.msra.mxu0 %v1954
  %2855 = vmatmul.f32.gmra.mxu0 %v2828
  %v2856 = vpop.f32.mrf.mxu0
  %v2857 = vadd.f32 %v2816, %v2856
  %2858 = vmatmul.f32.gmra.mxu0 %v2831
  %v2859 = vpop.f32.mrf.mxu0
  %v2860 = vadd.f32 %v2819, %v2859
  %2861 = vmatmul.f32.gmra.mxu0 %v2834
  %v2862 = vpop.f32.mrf.mxu0
  %v2863 = vadd.f32 %v2822, %v2862
  %2864 = vmatmul.f32.gmra.mxu0 %v2837
  %v2865 = vpop.f32.mrf.mxu0
  %v2866 = vadd.f32 %v2825, %v2865
  %2867 = vdwg.mxu0
  %v2869 = vsel %vm164, %v2630, 0
  %v2872 = vsel %vm164, %v2631, 0
  %v2875 = vsel %vm164, %v2632, 0
  %v2878 = vsel %vm164, %v2633, 0
  %2880 = vmatpush.msra.mxu0 0.0
  %2881 = vmatpush.msra.mxu0 0.0
  %2882 = vmatpush.msra.mxu0 0.0
  %2883 = vmatpush.msra.mxu0 0.0
  %2884 = vmatpush.msra.mxu0 0.0
  %2885 = vmatpush.msra.mxu0 0.0
  %2886 = vmatpush.msra.mxu0 0.0
  %2887 = vmatpush.msra.mxu0 0.0
  %2888 = vmatpush.msra.mxu0 0.0
  %2889 = vmatpush.msra.mxu0 0.0
  %2890 = vmatpush.msra.mxu0 0.0
  %2891 = vmatpush.msra.mxu0 0.0
  %2892 = vmatpush.msra.mxu0 %v2761
  %2893 = vmatpush.msra.mxu0 %v2760
  %2894 = vmatpush.msra.mxu0 %v2759
  %2895 = vmatpush.msra.mxu0 %v2758
  %2896 = vmatmul.f32.gmra.mxu0 %v2869
  %v2897 = vpop.f32.mrf.mxu0
  %v2898 = vadd.f32 0.0, %v2897
  %2899 = vmatmul.f32.gmra.mxu0 %v2872
  %v2900 = vpop.f32.mrf.mxu0
  %v2901 = vadd.f32 0.0, %v2900
  %2902 = vmatmul.f32.gmra.mxu0 %v2875
  %v2903 = vpop.f32.mrf.mxu0
  %v2904 = vadd.f32 0.0, %v2903
  %2905 = vmatmul.f32.gmra.mxu0 %v2878
  %v2906 = vpop.f32.mrf.mxu0
  %v2907 = vadd.f32 0.0, %v2906
  %2908 = vdwg.mxu0
  %v2909 = vadd.f32 %v2857, %v2898
  %v2910 = vadd.f32 %v2860, %v2901
  %v2911 = vadd.f32 %v2863, %v2904
  %v2912 = vadd.f32 %v2866, %v2907
  %v2914 = vsel %vm164, %v2650, 0
  %v2917 = vsel %vm164, %v2651, 0
  %v2920 = vsel %vm164, %v2652, 0
  %v2923 = vsel %vm164, %v2653, 0
  %2925 = vmatpush.msra.mxu0 0.0
  %2926 = vmatpush.msra.mxu0 0.0
  %2927 = vmatpush.msra.mxu0 0.0
  %2928 = vmatpush.msra.mxu0 0.0
  %2929 = vmatpush.msra.mxu0 0.0
  %2930 = vmatpush.msra.mxu0 0.0
  %2931 = vmatpush.msra.mxu0 0.0
  %2932 = vmatpush.msra.mxu0 0.0
  %2933 = vmatpush.msra.mxu0 0.0
  %2934 = vmatpush.msra.mxu0 0.0
  %2935 = vmatpush.msra.mxu0 0.0
  %2936 = vmatpush.msra.mxu0 0.0
  %2937 = vmatpush.msra.mxu0 %v2765
  %2938 = vmatpush.msra.mxu0 %v2764
  %2939 = vmatpush.msra.mxu0 %v2763
  %2940 = vmatpush.msra.mxu0 %v2762
  %2941 = vmatmul.f32.gmra.mxu0 %v2914
  %v2942 = vpop.f32.mrf.mxu0
  %v2943 = vadd.f32 0.0, %v2942
  %2944 = vmatmul.f32.gmra.mxu0 %v2917
  %v2945 = vpop.f32.mrf.mxu0
  %v2946 = vadd.f32 0.0, %v2945
  %2947 = vmatmul.f32.gmra.mxu0 %v2920
  %v2948 = vpop.f32.mrf.mxu0
  %v2949 = vadd.f32 0.0, %v2948
  %2950 = vmatmul.f32.gmra.mxu0 %v2923
  %v2951 = vpop.f32.mrf.mxu0
  %v2952 = vadd.f32 0.0, %v2951
  %2953 = vdwg.mxu0
  %v2954 = vadd.f32 %v2909, %v2943
  %v2955 = vadd.f32 %v2910, %v2946
  %v2956 = vadd.f32 %v2911, %v2949
  %v2957 = vadd.f32 %v2912, %v2952
  %v2959 = vsel %vm164, %v2670, 0
  %v2962 = vsel %vm164, %v2671, 0
  %v2965 = vsel %vm164, %v2672, 0
  %v2968 = vsel %vm164, %v2673, 0
  %2970 = vmatpush.msra.mxu0 0.0
  %2971 = vmatpush.msra.mxu0 0.0
  %2972 = vmatpush.msra.mxu0 0.0
  %2973 = vmatpush.msra.mxu0 0.0
  %2974 = vmatpush.msra.mxu0 0.0
  %2975 = vmatpush.msra.mxu0 0.0
  %2976 = vmatpush.msra.mxu0 0.0
  %2977 = vmatpush.msra.mxu0 0.0
  %2978 = vmatpush.msra.mxu0 0.0
  %2979 = vmatpush.msra.mxu0 0.0
  %2980 = vmatpush.msra.mxu0 0.0
  %2981 = vmatpush.msra.mxu0 0.0
  %2982 = vmatpush.msra.mxu0 %v2769
  %2983 = vmatpush.msra.mxu0 %v2768
  %2984 = vmatpush.msra.mxu0 %v2767
  %2985 = vmatpush.msra.mxu0 %v2766
  %2986 = vmatmul.f32.gmra.mxu0 %v2959
  %v2987 = vpop.f32.mrf.mxu0
  %v2988 = vadd.f32 0.0, %v2987
  %2989 = vmatmul.f32.gmra.mxu0 %v2962
  %v2990 = vpop.f32.mrf.mxu0
  %v2991 = vadd.f32 0.0, %v2990
  %2992 = vmatmul.f32.gmra.mxu0 %v2965
  %v2993 = vpop.f32.mrf.mxu0
  %v2994 = vadd.f32 0.0, %v2993
  %2995 = vmatmul.f32.gmra.mxu0 %v2968
  %v2996 = vpop.f32.mrf.mxu0
  %v2997 = vadd.f32 0.0, %v2996
  %2998 = vdwg.mxu0
  %v2999 = vadd.f32 %v2954, %v2988
  %v3000 = vadd.f32 %v2955, %v2991
  %v3001 = vadd.f32 %v2956, %v2994
  %v3002 = vadd.f32 %v2957, %v2997
  %v3004 = vsel %vm164, %v2690, 0
  %v3007 = vsel %vm164, %v2691, 0
  %v3010 = vsel %vm164, %v2692, 0
  %v3013 = vsel %vm164, %v2693, 0
  %3015 = vmatpush.msra.mxu0 0.0
  %3016 = vmatpush.msra.mxu0 0.0
  %3017 = vmatpush.msra.mxu0 0.0
  %3018 = vmatpush.msra.mxu0 0.0
  %3019 = vmatpush.msra.mxu0 0.0
  %3020 = vmatpush.msra.mxu0 0.0
  %3021 = vmatpush.msra.mxu0 0.0
  %3022 = vmatpush.msra.mxu0 0.0
  %3023 = vmatpush.msra.mxu0 0.0
  %3024 = vmatpush.msra.mxu0 0.0
  %3025 = vmatpush.msra.mxu0 0.0
  %3026 = vmatpush.msra.mxu0 0.0
  %3027 = vmatpush.msra.mxu0 %v2773
  %3028 = vmatpush.msra.mxu0 %v2772
  %3029 = vmatpush.msra.mxu0 %v2771
  %3030 = vmatpush.msra.mxu0 %v2770
  %3031 = vmatmul.f32.gmra.mxu0 %v3004
  %v3032 = vpop.f32.mrf.mxu0
  %v3033 = vadd.f32 0.0, %v3032
  %3034 = vmatmul.f32.gmra.mxu0 %v3007
  %v3035 = vpop.f32.mrf.mxu0
  %v3036 = vadd.f32 0.0, %v3035
  %3037 = vmatmul.f32.gmra.mxu0 %v3010
  %v3038 = vpop.f32.mrf.mxu0
  %v3039 = vadd.f32 0.0, %v3038
  %3040 = vmatmul.f32.gmra.mxu0 %v3013
  %v3041 = vpop.f32.mrf.mxu0
  %v3042 = vadd.f32 0.0, %v3041
  %3043 = vdwg.mxu0
  %v3044 = vadd.f32 %v2999, %v3033
  %v3045 = vadd.f32 %v3000, %v3036
  %v3046 = vadd.f32 %v3001, %v3039
  %v3047 = vadd.f32 %v3002, %v3042
  %v3049 = vsel %vm164, %v2710, 0
  %v3052 = vsel %vm164, %v2711, 0
  %v3055 = vsel %vm164, %v2712, 0
  %v3058 = vsel %vm164, %v2713, 0
  %3060 = vmatpush.msra.mxu0 0.0
  %3061 = vmatpush.msra.mxu0 0.0
  %3062 = vmatpush.msra.mxu0 0.0
  %3063 = vmatpush.msra.mxu0 0.0
  %3064 = vmatpush.msra.mxu0 0.0
  %3065 = vmatpush.msra.mxu0 0.0
  %3066 = vmatpush.msra.mxu0 0.0
  %3067 = vmatpush.msra.mxu0 0.0
  %3068 = vmatpush.msra.mxu0 0.0
  %3069 = vmatpush.msra.mxu0 0.0
  %3070 = vmatpush.msra.mxu0 0.0
  %3071 = vmatpush.msra.mxu0 0.0
  %3072 = vmatpush.msra.mxu0 %v2777
  %3073 = vmatpush.msra.mxu0 %v2776
  %3074 = vmatpush.msra.mxu0 %v2775
  %3075 = vmatpush.msra.mxu0 %v2774
  %3076 = vmatmul.f32.gmra.mxu0 %v3049
  %v3077 = vpop.f32.mrf.mxu0
  %v3078 = vadd.f32 0.0, %v3077
  %3079 = vmatmul.f32.gmra.mxu0 %v3052
  %v3080 = vpop.f32.mrf.mxu0
  %v3081 = vadd.f32 0.0, %v3080
  %3082 = vmatmul.f32.gmra.mxu0 %v3055
  %v3083 = vpop.f32.mrf.mxu0
  %v3084 = vadd.f32 0.0, %v3083
  %3085 = vmatmul.f32.gmra.mxu0 %v3058
  %v3086 = vpop.f32.mrf.mxu0
  %v3087 = vadd.f32 0.0, %v3086
  %3088 = vdwg.mxu0
  %v3089 = vadd.f32 %v3044, %v3078
  %v3090 = vadd.f32 %v3045, %v3081
  %v3091 = vadd.f32 %v3046, %v3084
  %v3092 = vadd.f32 %v3047, %v3087
  %v3094 = vsel %vm164, %v2730, 0
  %v3097 = vsel %vm164, %v2731, 0
  %v3100 = vsel %vm164, %v2732, 0
  %v3103 = vsel %vm164, %v2733, 0
  %3105 = vmatpush.msra.mxu0 0.0
  %3106 = vmatpush.msra.mxu0 0.0
  %3107 = vmatpush.msra.mxu0 0.0
  %3108 = vmatpush.msra.mxu0 0.0
  %3109 = vmatpush.msra.mxu0 0.0
  %3110 = vmatpush.msra.mxu0 0.0
  %3111 = vmatpush.msra.mxu0 0.0
  %3112 = vmatpush.msra.mxu0 0.0
  %3113 = vmatpush.msra.mxu0 0.0
  %3114 = vmatpush.msra.mxu0 0.0
  %3115 = vmatpush.msra.mxu0 0.0
  %3116 = vmatpush.msra.mxu0 0.0
  %3117 = vmatpush.msra.mxu0 %v2781
  %3118 = vmatpush.msra.mxu0 %v2780
  %3119 = vmatpush.msra.mxu0 %v2779
  %3120 = vmatpush.msra.mxu0 %v2778
  %3121 = vmatmul.f32.gmra.mxu0 %v3094
  %v3122 = vpop.f32.mrf.mxu0
  %v3123 = vadd.f32 0.0, %v3122
  %3124 = vmatmul.f32.gmra.mxu0 %v3097
  %v3125 = vpop.f32.mrf.mxu0
  %v3126 = vadd.f32 0.0, %v3125
  %3127 = vmatmul.f32.gmra.mxu0 %v3100
  %v3128 = vpop.f32.mrf.mxu0
  %v3129 = vadd.f32 0.0, %v3128
  %3130 = vmatmul.f32.gmra.mxu0 %v3103
  %v3131 = vpop.f32.mrf.mxu0
  %v3132 = vadd.f32 0.0, %v3131
  %3133 = vdwg.mxu0
  %v3134 = vadd.f32 %v3089, %v3123
  %v3135 = vadd.f32 %v3090, %v3126
  %v3136 = vadd.f32 %v3091, %v3129
  %v3137 = vadd.f32 %v3092, %v3132
  %v3139 = vsel %vm164, %v2750, 0
  %v3142 = vsel %vm164, %v2751, 0
  %v3145 = vsel %vm164, %v2752, 0
  %v3148 = vsel %vm164, %v2753, 0
  %3150 = vmatpush.msra.mxu0 0.0
  %3151 = vmatpush.msra.mxu0 0.0
  %3152 = vmatpush.msra.mxu0 0.0
  %3153 = vmatpush.msra.mxu0 0.0
  %3154 = vmatpush.msra.mxu0 0.0
  %3155 = vmatpush.msra.mxu0 0.0
  %3156 = vmatpush.msra.mxu0 0.0
  %3157 = vmatpush.msra.mxu0 0.0
  %3158 = vmatpush.msra.mxu0 0.0
  %3159 = vmatpush.msra.mxu0 0.0
  %3160 = vmatpush.msra.mxu0 0.0
  %3161 = vmatpush.msra.mxu0 0.0
  %3162 = vmatpush.msra.mxu0 %v2785
  %3163 = vmatpush.msra.mxu0 %v2784
  %3164 = vmatpush.msra.mxu0 %v2783
  %3165 = vmatpush.msra.mxu0 %v2782
  %3166 = vmatmul.f32.gmra.mxu0 %v3139
  %v3167 = vpop.f32.mrf.mxu0
  %v3168 = vadd.f32 0.0, %v3167
  %3169 = vmatmul.f32.gmra.mxu0 %v3142
  %v3170 = vpop.f32.mrf.mxu0
  %v3171 = vadd.f32 0.0, %v3170
  %3172 = vmatmul.f32.gmra.mxu0 %v3145
  %v3173 = vpop.f32.mrf.mxu0
  %v3174 = vadd.f32 0.0, %v3173
  %3175 = vmatmul.f32.gmra.mxu0 %v3148
  %v3176 = vpop.f32.mrf.mxu0
  %v3177 = vadd.f32 0.0, %v3176
  %3178 = vdwg.mxu0
  %v3179 = vadd.f32 %v3134, %v3168
  %v3180 = vadd.f32 %v3135, %v3171
  %v3181 = vadd.f32 %v3136, %v3174
  %v3182 = vadd.f32 %v3137, %v3177
  %v3183 = vtanh.pop %v1724
  %v3184 = vtanh.pop %v1725
  %v3185 = vtanh.pop %v1726
  %v3186 = vtanh.pop %v1727
  %v3187 = vld [vmem:[%s21] sm:$0xff]
  %v3188 = vld [vmem:[%s21 + $0x8] sm:$0xff]
  %v3189 = vld [vmem:[%s21 + $0x10] sm:$0xff]
  %v3190 = vld [vmem:[%s21 + $0x18] sm:$0xff]
  %v3191 = vld [vmem:[%s21 + $0x20] sm:$0xff]
  %v3192 = vld [vmem:[%s21 + $0x28] sm:$0xff]
  %v3193 = vld [vmem:[%s21 + $0x30] sm:$0xff]
  %v3194 = vld [vmem:[%s21 + $0x38] sm:$0xff]
  %v3195 = vld [vmem:[%s21 + $0x40] sm:$0xff]
  %v3196 = vld [vmem:[%s21 + $0x48] sm:$0xff]
  %v3197 = vld [vmem:[%s21 + $0x50] sm:$0xff]
  %v3198 = vld [vmem:[%s21 + $0x58] sm:$0xff]
  %v3199 = vld [vmem:[%s21 + $0x60] sm:$0xff]
  %v3200 = vld [vmem:[%s21 + $0x68] sm:$0xff]
  %v3201 = vld [vmem:[%s21 + $0x70] sm:$0xff]
  %v3202 = vld [vmem:[%s21 + $0x78] sm:$0xff]
  %v3203 = vmul.f32 %v3183, 2.0
  %v3204 = vmul.f32 %v3184, 2.0
  %v3205 = vmul.f32 %v3185, 2.0
  %v3206 = vmul.f32 %v3186, 2.0
  %v3207 = vmul.f32 %v3203, %v3183
  %v3208 = vmul.f32 %v3204, %v3184
  %v3209 = vmul.f32 %v3205, %v3185
  %v3210 = vmul.f32 %v3206, %v3186
  %v3211 = vsub.f32 %v3207, 1.0
  %v3212 = vsub.f32 %v3208, 1.0
  %v3213 = vsub.f32 %v3209, 1.0
  %v3214 = vsub.f32 %v3210, 1.0
  %v3215 = vmul.f32 %v3203, %v3211
  %v3216 = vmul.f32 %v3204, %v3212
  %v3217 = vmul.f32 %v3205, %v3213
  %v3218 = vmul.f32 %v3206, %v3214
  %v3219 = vsub.f32 %v3215, %v3183
  %v3220 = vsub.f32 %v3216, %v3184
  %v3221 = vsub.f32 %v3217, %v3185
  %v3222 = vsub.f32 %v3218, %v3186
  %v3224 = vsel %vm164, %v3183, 0
  %v3227 = vsel %vm164, %v3184, 0
  %v3230 = vsel %vm164, %v3185, 0
  %v3233 = vsel %vm164, %v3186, 0
  %3235 = vmatpush.msra.mxu0 0.0
  %3236 = vmatpush.msra.mxu0 0.0
  %3237 = vmatpush.msra.mxu0 0.0
  %3238 = vmatpush.msra.mxu0 0.0
  %3239 = vmatpush.msra.mxu0 0.0
  %3240 = vmatpush.msra.mxu0 0.0
  %3241 = vmatpush.msra.mxu0 0.0
  %3242 = vmatpush.msra.mxu0 0.0
  %3243 = vmatpush.msra.mxu0 0.0
  %3244 = vmatpush.msra.mxu0 0.0
  %3245 = vmatpush.msra.mxu0 0.0
  %3246 = vmatpush.msra.mxu0 0.0
  %3247 = vmatpush.msra.mxu0 %v3194
  %3248 = vmatpush.msra.mxu0 %v3193
  %3249 = vmatpush.msra.mxu0 %v3192
  %3250 = vmatpush.msra.mxu0 %v3191
  %3251 = vmatmul.f32.gmra.mxu0 %v3224
  %v3252 = vpop.f32.mrf.mxu0
  %v3253 = vadd.f32 0.0, %v3252
  %3254 = vmatmul.f32.gmra.mxu0 %v3227
  %v3255 = vpop.f32.mrf.mxu0
  %v3256 = vadd.f32 0.0, %v3255
  %3257 = vmatmul.f32.gmra.mxu0 %v3230
  %v3258 = vpop.f32.mrf.mxu0
  %v3259 = vadd.f32 0.0, %v3258
  %3260 = vmatmul.f32.gmra.mxu0 %v3233
  %v3261 = vpop.f32.mrf.mxu0
  %v3262 = vadd.f32 0.0, %v3261
  %3263 = vdwg.mxu0
  %v3265 = vsel %vm164, 1.0, 0
  %3267 = vmatpush.msra.mxu0 0.0
  %3268 = vmatpush.msra.mxu0 0.0
  %3269 = vmatpush.msra.mxu0 0.0
  %3270 = vmatpush.msra.mxu0 0.0
  %3271 = vmatpush.msra.mxu0 0.0
  %3272 = vmatpush.msra.mxu0 0.0
  %3273 = vmatpush.msra.mxu0 0.0
  %3274 = vmatpush.msra.mxu0 0.0
  %3275 = vmatpush.msra.mxu0 0.0
  %3276 = vmatpush.msra.mxu0 0.0
  %3277 = vmatpush.msra.mxu0 0.0
  %3278 = vmatpush.msra.mxu0 0.0
  %3279 = vmatpush.msra.mxu0 %v3190
  %3280 = vmatpush.msra.mxu0 %v3189
  %3281 = vmatpush.msra.mxu0 %v3188
  %3282 = vmatpush.msra.mxu0 %v3187
  %3283 = vmatmul.f32.gmra.mxu0 %v3265
  %v3284 = vpop.f32.mrf.mxu0
  %v3285 = vadd.f32 %v3253, %v3284
  %3286 = vmatmul.f32.gmra.mxu0 %v3265
  %v3287 = vpop.f32.mrf.mxu0
  %v3288 = vadd.f32 %v3256, %v3287
  %3289 = vmatmul.f32.gmra.mxu0 %v3265
  %v3290 = vpop.f32.mrf.mxu0
  %v3291 = vadd.f32 %v3259, %v3290
  %3292 = vmatmul.f32.gmra.mxu0 %v3265
  %v3293 = vpop.f32.mrf.mxu0
  %v3294 = vadd.f32 %v3262, %v3293
  %3295 = vdwg.mxu0
  %v3297 = vsel %vm164, %v3211, 0
  %v3300 = vsel %vm164, %v3212, 0
  %v3303 = vsel %vm164, %v3213, 0
  %v3306 = vsel %vm164, %v3214, 0
  %3308 = vmatpush.msra.mxu0 0.0
  %3309 = vmatpush.msra.mxu0 0.0
  %3310 = vmatpush.msra.mxu0 0.0
  %3311 = vmatpush.msra.mxu0 0.0
  %3312 = vmatpush.msra.mxu0 0.0
  %3313 = vmatpush.msra.mxu0 0.0
  %3314 = vmatpush.msra.mxu0 0.0
  %3315 = vmatpush.msra.mxu0 0.0
  %3316 = vmatpush.msra.mxu0 0.0
  %3317 = vmatpush.msra.mxu0 0.0
  %3318 = vmatpush.msra.mxu0 0.0
  %3319 = vmatpush.msra.mxu0 0.0
  %3320 = vmatpush.msra.mxu0 %v3198
  %3321 = vmatpush.msra.mxu0 %v3197
  %3322 = vmatpush.msra.mxu0 %v3196
  %3323 = vmatpush.msra.mxu0 %v3195
  %3324 = vmatmul.f32.gmra.mxu0 %v3297
  %v3325 = vpop.f32.mrf.mxu0
  %v3326 = vadd.f32 0.0, %v3325
  %3327 = vmatmul.f32.gmra.mxu0 %v3300
  %v3328 = vpop.f32.mrf.mxu0
  %v3329 = vadd.f32 0.0, %v3328
  %3330 = vmatmul.f32.gmra.mxu0 %v3303
  %v3331 = vpop.f32.mrf.mxu0
  %v3332 = vadd.f32 0.0, %v3331
  %3333 = vmatmul.f32.gmra.mxu0 %v3306
  %v3334 = vpop.f32.mrf.mxu0
  %v3335 = vadd.f32 0.0, %v3334
  %3336 = vdwg.mxu0
  %v3337 = vadd.f32 %v3285, %v3326
  %v3338 = vadd.f32 %v3288, %v3329
  %v3339 = vadd.f32 %v3291, %v3332
  %v3340 = vadd.f32 %v3294, %v3335
  %v3342 = vsel %vm164, %v3219, 0
  %v3345 = vsel %vm164, %v3220, 0
  %v3348 = vsel %vm164, %v3221, 0
  %v3351 = vsel %vm164, %v3222, 0
  %3353 = vmatpush.msra.mxu0 0.0
  %3354 = vmatpush.msra.mxu0 0.0
  %3355 = vmatpush.msra.mxu0 0.0
  %3356 = vmatpush.msra.mxu0 0.0
  %3357 = vmatpush.msra.mxu0 0.0
  %3358 = vmatpush.msra.mxu0 0.0
  %3359 = vmatpush.msra.mxu0 0.0
  %3360 = vmatpush.msra.mxu0 0.0
  %3361 = vmatpush.msra.mxu0 0.0
  %3362 = vmatpush.msra.mxu0 0.0
  %3363 = vmatpush.msra.mxu0 0.0
  %3364 = vmatpush.msra.mxu0 0.0
  %3365 = vmatpush.msra.mxu0 %v3202
  %3366 = vmatpush.msra.mxu0 %v3201
  %3367 = vmatpush.msra.mxu0 %v3200
  %3368 = vmatpush.msra.mxu0 %v3199
  %3369 = vmatmul.f32.gmra.mxu0 %v3342
  %v3370 = vpop.f32.mrf.mxu0
  %v3371 = vadd.f32 0.0, %v3370
  %3372 = vmatmul.f32.gmra.mxu0 %v3345
  %v3373 = vpop.f32.mrf.mxu0
  %v3374 = vadd.f32 0.0, %v3373
  %3375 = vmatmul.f32.gmra.mxu0 %v3348
  %v3376 = vpop.f32.mrf.mxu0
  %v3377 = vadd.f32 0.0, %v3376
  %3378 = vmatmul.f32.gmra.mxu0 %v3351
  %v3379 = vpop.f32.mrf.mxu0
  %v3380 = vadd.f32 0.0, %v3379
  %3381 = vdwg.mxu0
  %v3382 = vadd.f32 %v3337, %v3371
  %v3383 = vadd.f32 %v3338, %v3374
  %v3384 = vadd.f32 %v3339, %v3377
  %v3385 = vadd.f32 %v3340, %v3380
  %v3386 = vld [vmem:[%s22] sm:$0xff]
  %v3387 = vld [vmem:[%s22 + $0x8] sm:$0xff]
  %v3388 = vld [vmem:[%s22 + $0x10] sm:$0xff]
  %v3389 = vld [vmem:[%s22 + $0x18] sm:$0xff]
  %v3390 = vld [vmem:[%s23] sm:$0x1]
  %v3392 = vperm.slane %v3390, 0
  %3394 = vmatpush.msra.mxu0 0.0
  %3395 = vmatpush.msra.mxu0 0.0
  %3396 = vmatpush.msra.mxu0 0.0
  %3397 = vmatpush.msra.mxu0 0.0
  %3398 = vmatpush.msra.mxu0 0.0
  %3399 = vmatpush.msra.mxu0 0.0
  %3400 = vmatpush.msra.mxu0 0.0
  %3401 = vmatpush.msra.mxu0 0.0
  %3402 = vmatpush.msra.mxu0 0.0
  %3403 = vmatpush.msra.mxu0 0.0
  %3404 = vmatpush.msra.mxu0 0.0
  %3405 = vmatpush.msra.mxu0 0.0
  %3406 = vmatpush.msra.mxu0 %v3389
  %3407 = vmatpush.msra.mxu0 %v3388
  %3408 = vmatpush.msra.mxu0 %v3387
  %3409 = vmatpush.msra.mxu0 %v3386
  %3410 = vmatmul.f32.gmra.mxu0 %v1737
  %v3411 = vpop.f32.mrf.mxu0
  %v3412 = vadd.f32 %v3392, %v3411
  %3413 = vmatmul.f32.gmra.mxu0 %v1740
  %v3414 = vpop.f32.mrf.mxu0
  %v3415 = vadd.f32 %v3392, %v3414
  %3416 = vmatmul.f32.gmra.mxu0 %v1743
  %v3417 = vpop.f32.mrf.mxu0
  %v3418 = vadd.f32 %v3392, %v3417
  %3419 = vmatmul.f32.gmra.mxu0 %v1746
  %v3420 = vpop.f32.mrf.mxu0
  %v3421 = vadd.f32 %v3392, %v3420
  %3422 = vdwg.mxu0
  %3424 = vset.pattern.permute.xlu0 0
  %3425 = vperm.xlu0 %3424, %v1828
  %v3426 = vpop.permute.xlu0 %3425
  %3429 = vset.pattern.permute.xlu0 0
  %3430 = vperm.xlu0 %3429, %v1843
  %v3431 = vpop.permute.xlu0 %3430
  %3434 = vset.pattern.permute.xlu0 0
  %3435 = vperm.xlu0 %3434, %v1858
  %v3436 = vpop.permute.xlu0 %3435
  %3439 = vset.pattern.permute.xlu0 0
  %3440 = vperm.xlu0 %3439, %v1873
  %v3441 = vpop.permute.xlu0 %3440
  %v3443 = vmul.f32 %v3179, %v3426
  %v3444 = vmul.f32 %v3180, %v3431
  %v3445 = vmul.f32 %v3181, %v3436
  %v3446 = vmul.f32 %v3182, %v3441
  %3447 = vset.pattern.permute.xlu0 1
  %3448 = vperm.xlu0 %3447, %v1828
  %v3449 = vpop.permute.xlu0 %3448
  %3451 = vset.pattern.permute.xlu0 1
  %3452 = vperm.xlu0 %3451, %v1843
  %v3453 = vpop.permute.xlu0 %3452
  %3455 = vset.pattern.permute.xlu0 1
  %3456 = vperm.xlu0 %3455, %v1858
  %v3457 = vpop.permute.xlu0 %3456
  %3459 = vset.pattern.permute.xlu0 1
  %3460 = vperm.xlu0 %3459, %v1873
  %v3461 = vpop.permute.xlu0 %3460
  %v3463 = vmul.f32 %v3382, %v3449
  %v3464 = vmul.f32 %v3383, %v3453
  %v3465 = vmul.f32 %v3384, %v3457
  %v3466 = vmul.f32 %v3385, %v3461
  %v3467 = vadd.f32 %v3443, %v3463
  %v3468 = vadd.f32 %v3444, %v3464
  %v3469 = vadd.f32 %v3445, %v3465
  %v3470 = vadd.f32 %v3446, %v3466
  %3471 = vset.pattern.permute.xlu0 2
  %3472 = vperm.xlu0 %3471, %v1828
  %v3473 = vpop.permute.xlu0 %3472
  %3475 = vset.pattern.permute.xlu0 2
  %3476 = vperm.xlu0 %3475, %v1843
  %v3477 = vpop.permute.xlu0 %3476
  %3479 = vset.pattern.permute.xlu0 2
  %3480 = vperm.xlu0 %3479, %v1858
  %v3481 = vpop.permute.xlu0 %3480
  %3483 = vset.pattern.permute.xlu0 2
  %3484 = vperm.xlu0 %3483, %v1873
  %v3485 = vpop.permute.xlu0 %3484
  %v3487 = vmul.f32 %v3412, %v3473
  %v3488 = vmul.f32 %v3415, %v3477
  %v3489 = vmul.f32 %v3418, %v3481
  %v3490 = vmul.f32 %v3421, %v3485
  %v3491 = vadd.f32 %v3467, %v3487
  %v3492 = vadd.f32 %v3468, %v3488
  %v3493 = vadd.f32 %v3469, %v3489
  %v3494 = vadd.f32 %v3470, %v3490
  %vm3495 = vcmask 130048
  %3496 = vst.msk [vmem:[%s24] sm:$0xff] %vm3495, %v3491
  %3497 = vst.msk [vmem:[%s24 + $0x8] sm:$0xff] %vm3495, %v3492
  %3498 = vst.msk [vmem:[%s24 + $0x10] sm:$0xff] %vm3495, %v3493
  %3499 = vst.msk [vmem:[%s24 + $0x18] sm:$0xff] %vm3495, %v3494
  // Predicated region
  $region98: #{_lambda_.3} parent=0 // pred_check
    _
  $region99: #{_lambda_.3} parent=0 // pred_check_branch
    %3501 = sbr.rel (0) target = $region101
  $region100: #{_lambda_.3} parent=0 // pred_region
    _
  $region101: #{_lambda_.3} parent=0 // pred_fallthru
    _
  // Predicated region
  $region102: #{_lambda_.3} parent=0 // pred_check
    _
  $region103: #{_lambda_.3} parent=0 // pred_check_branch
    %3503 = sbr.rel (0) target = $region105
  $region104: #{_lambda_.3} parent=0 // pred_region
    _
  $region105: #{_lambda_.3} parent=0 // pred_fallthru
    _

</llo_original>
